<compile_context>
chip_gen: v5e
topology: v5e:2x2
jax: 0.10.0
libtpu: 0.0.40
codegen_flags: <defaults>
</compile_context>

<pallas_src>
import jax
import jax.numpy as jnp
from jax.experimental import pallas as pl
from jax.experimental.pallas import tpu as pltpu


# ----------------------------------------------------------------------------
# Per-generation VMEM budgeting
# ----------------------------------------------------------------------------
def _vmem_limit_bytes():
    """Scoped-VMEM limit per generation (v5e/v6e: 128 MiB phys, v7x: 64 MiB)."""
    try:
        phys = pltpu.get_tpu_info().vmem_capacity_bytes
        return int(min(phys * 3 // 4, 96 * 1024 * 1024))
    except Exception:
        return 32 * 1024 * 1024          # safe everywhere


def _pick_batch_tile(batch, bytes_per_b, budget_bytes):
    """Largest divisor of `batch` fitting the VMEM budget; >=2 grid steps when
    batch >= 16 (v7x has 2 TensorCores); prefer multiple-of-8 (sublane-dense
    output rows)."""
    tb = max(1, min(batch, budget_bytes // max(1, bytes_per_b)))
    if batch >= 16:
        tb = min(tb, batch // 2)
    divisors = [d for d in range(1, batch + 1) if batch % d == 0 and d <= tb]
    aligned = [d for d in divisors if d % 8 == 0 or d == batch]
    return max(aligned) if aligned else max(divisors)


# ----------------------------------------------------------------------------
# Fused kernel: pointwise conv -> residual tower (+MaxPool) -> MLP head
# ----------------------------------------------------------------------------
def _dpcnn_fused_kernel(emb_ref, cnn_w_ref, cnn_b_ref,
                        w1_ref, b1_ref, w2_ref, b2_ref,
                        wi_ref, bi_ref, wh_ref, bh_ref, wo_ref, bo_ref,
                        o_ref):
    tb, L0, E = emb_ref.shape
    C = cnn_w_ref.shape[1]
    nblocks = w1_ref.shape[0]

    # --- DPCNN.cnn: Conv1d(E, C, kernel_size=1) == per-position matmul ------
    x = jnp.dot(emb_ref[...].reshape(tb * L0, E), cnn_w_ref[...],
                preferred_element_type=jnp.float32) + cnn_b_ref[...]
    x = x.reshape(tb, L0, C)                           # f32 carry across blocks

    def conv5(act_f32, w, b, L):
        # ReLU in f32 (v5e VPU has no bf16), cast to bf16 BEFORE the tap build
        # so the 5x-wide operand is built in bf16 (half the copy traffic).
        a = jnp.maximum(act_f32, 0.0).astype(jnp.bfloat16)
        back = max(2, (-(L + 2)) % 8)                  # sublane-aligned buffer
        pad_f = jnp.zeros((tb, 2, C), jnp.bfloat16)
        pad_b = jnp.zeros((tb, back, C), jnp.bfloat16)
        ap = jnp.concatenate([pad_f, a, pad_b], axis=1)          # (tb, L+2+back, C)
        taps = jnp.concatenate([ap[:, k:k + L, :] for k in range(5)], axis=-1)
        y = jnp.dot(taps.reshape(tb * L, 5 * C), w,
                    preferred_element_type=jnp.float32) + b      # f32 accum
        return y.reshape(tb, L, C)

    # --- residual tower, unrolled at trace time (L shrinks per block) -------
    L = L0
    for i in range(nblocks):
        h = conv5(x, w1_ref[i], b1_ref[i], L)          # ReLU -> conv5
        r = conv5(h, w2_ref[i], b2_ref[i], L)          # ReLU -> conv5
        x = x + r                                      # residual add (f32)
        if i < nblocks - 1:                            # DownSample: MaxPool1d(2)
            Lp = L // 2                                # PyTorch floors odd L
            if L != 2 * Lp:
                x = x[:, :2 * Lp, :]
            x = x.reshape(tb, Lp, 2, C).max(axis=2)
            L = Lp

    # --- squeeze(dim=-1) + CodeLabelingLayer MLP head ------------------------
    assert L == 1, "sequence length must reduce to 1 before the labeling head"
    feat = x[:, 0, :].astype(jnp.bfloat16)             # (tb, C)
    h = jnp.dot(feat, wi_ref[...], preferred_element_type=jnp.float32) + bi_ref[...]
    h = jnp.maximum(h, 0.0).astype(jnp.bfloat16)
    h = jnp.dot(h, wh_ref[...], preferred_element_type=jnp.float32) + bh_ref[...]
    h = jnp.maximum(h, 0.0).astype(jnp.bfloat16)       # Dropout == identity (eval)
    o_ref[...] = jnp.dot(h, wo_ref[...],
                         preferred_element_type=jnp.float32) + bo_ref[...]


# ----------------------------------------------------------------------------
# Full model forward (DPCNN4Code1) -- embedding gather in JAX, rest fused.
# ----------------------------------------------------------------------------
def dpcnn4code1_forward(tokens, p):
    """`p` must be the output of prepare_params() (bf16 weights, stacked)."""
    emb = p["embedding"][tokens]                       # (B, L, E) bf16 gather
    # TODO(synk): fuse this gather into the kernel via PrefetchScalarGridSpec
    # row-gather to avoid materializing (B, L, E) in HBM.
    B, L0, E = emb.shape
    C = p["cnn_w"].shape[1]
    H = p["mlp_w_in"].shape[1]
    num_labels = p["mlp_w_out"].shape[1]
    nblocks = p["w1"].shape[0]

    # The PyTorch model's squeeze(dim=-1) + Linear requires L to reduce to 1.
    L = L0
    for _ in range(nblocks - 1):
        L //= 2
    assert L == 1, "sequence length must reduce to 1 before the labeling head"

    # --- batch tile: fit VMEM working set, keep >= 2 grid steps -------------
    vmem_limit = _vmem_limit_bytes()
    weight_bytes = 2 * (p["cnn_w"].size + p["w1"].size + p["w2"].size +
                        p["mlp_w_in"].size + p["mlp_w_h"].size + p["mlp_w_out"].size)
    act_budget = max(vmem_limit - 2 * weight_bytes - (8 << 20), 2 << 20)
    bytes_per_b = 32 * L0 * max(E, C)        # taps + padded buf + f32 carries
    tb = _pick_batch_tile(B, bytes_per_b, act_budget)

    return pl.pallas_call(
        _dpcnn_fused_kernel,
        out_shape=jax.ShapeDtypeStruct((B, num_labels), jnp.float32),
        grid=(B // tb,),
        in_specs=[
            pl.BlockSpec((tb, L0, E), lambda i: (i, 0, 0)),          # embeddings
            pl.BlockSpec((E, C), lambda i: (0, 0)),                  # cnn_w
            pl.BlockSpec((1, C), lambda i: (0, 0)),                  # cnn_b
            pl.BlockSpec((nblocks, 5 * C, C), lambda i: (0, 0, 0)),  # w1 (stacked)
            pl.BlockSpec((nblocks, 1, C), lambda i: (0, 0, 0)),      # b1
            pl.BlockSpec((nblocks, 5 * C, C), lambda i: (0, 0, 0)),  # w2 (stacked)
            pl.BlockSpec((nblocks, 1, C), lambda i: (0, 0, 0)),      # b2
            pl.BlockSpec((C, H), lambda i: (0, 0)),                  # mlp in
            pl.BlockSpec((1, H), lambda i: (0, 0)),
            pl.BlockSpec((H, H), lambda i: (0, 0)),                  # mlp hidden
            pl.BlockSpec((1, H), lambda i: (0, 0)),
            pl.BlockSpec((H, num_labels), lambda i: (0, 0)),         # mlp out
            pl.BlockSpec((1, num_labels), lambda i: (0, 0)),
        ],
        out_specs=pl.BlockSpec((tb, num_labels), lambda i: (i, 0)),
        compiler_params=pltpu.CompilerParams(
            dimension_semantics=("parallel",),
            vmem_limit_bytes=vmem_limit),
    )(emb,
      p["cnn_w"], p["cnn_b"],
      p["w1"], p["b1"], p["w2"], p["b2"],
      p["mlp_w_in"], p["mlp_b_in"],
      p["mlp_w_h"], p["mlp_b_h"],
      p["mlp_w_out"], p["mlp_b_out"])


# ----------------------------------------------------------------------------
# One-time parameter preparation: pre-cast to bf16, pre-stack conv taps.
# ----------------------------------------------------------------------------
def prepare_params(raw):
    C = raw["cnn_w"].shape[1]
    H = raw["mlp_w_in"].shape[1]
    O = raw["mlp_w_out"].shape[1]
    w1 = jnp.stack([b["w1"].reshape(5 * C, C) for b in raw["blocks"]])
    w2 = jnp.stack([b["w2"].reshape(5 * C, C) for b in raw["blocks"]])
    b1 = jnp.stack([b["b1"].reshape(1, C) for b in raw["blocks"]])
    b2 = jnp.stack([b["b2"].reshape(1, C) for b in raw["blocks"]])
    return {
        "embedding": raw["embedding"].astype(jnp.bfloat16),
        "cnn_w": raw["cnn_w"].astype(jnp.bfloat16),
        "cnn_b": raw["cnn_b"].reshape(1, C).astype(jnp.float32),
        "w1": w1.astype(jnp.bfloat16), "b1": b1.astype(jnp.float32),
        "w2": w2.astype(jnp.bfloat16), "b2": b2.astype(jnp.float32),
        "mlp_w_in": raw["mlp_w_in"].astype(jnp.bfloat16),
        "mlp_b_in": raw["mlp_b_in"].reshape(1, H).astype(jnp.float32),
        "mlp_w_h": raw["mlp_w_h"].astype(jnp.bfloat16),
        "mlp_b_h": raw["mlp_b_h"].reshape(1, H).astype(jnp.float32),
        "mlp_w_out": raw["mlp_w_out"].astype(jnp.bfloat16),
        "mlp_b_out": raw["mlp_b_out"].reshape(1, O).astype(jnp.float32),
    }


# ----------------------------------------------------------------------------
# Pure-JAX f32 reference (mirrors the PyTorch forward) for correctness check.
# ----------------------------------------------------------------------------
def reference_forward(tokens, params):
    emb = params["embedding"][tokens]                  # (B, L, E) f32
    x = jnp.einsum("ble,eh->blh", emb, params["cnn_w"]) + params["cnn_b"]

    def conv5(h, w, b):
        y = jax.lax.conv_general_dilated(
            h, w, window_strides=(1,), padding=[(2, 2)],
            dimension_numbers=("NWC", "WIO", "NWC"))
        return y + b

    nblocks = len(params["blocks"])
    for i, blk in enumerate(params["blocks"]):
        r = conv5(jax.nn.relu(x), blk["w1"], blk["b1"])
        r = conv5(jax.nn.relu(r), blk["w2"], blk["b2"])
        x = x + r
        if i < nblocks - 1:                            # MaxPool1d(2), floors odd L
            B, L, C = x.shape
            Lp = L // 2
            x = x[:, :2 * Lp, :].reshape(B, Lp, 2, C).max(axis=2)

    x = x[:, 0, :]
    h = jax.nn.relu(x @ params["mlp_w_in"] + params["mlp_b_in"])
    h = jax.nn.relu(h @ params["mlp_w_h"] + params["mlp_b_h"])
    return h @ params["mlp_w_out"] + params["mlp_b_out"]


# ----------------------------------------------------------------------------
# Deterministic parameter init (shapes follow the PyTorch module __init__)
# ----------------------------------------------------------------------------
def init_params(key, *, vocab_size, token_ebd_size, code_ebd_size,
                padding_value, num_layers, num_labels, mlp_hidden=1024):
    keys = iter(jax.random.split(key, 16 + 4 * num_layers))

    def w(shape, scale=0.05):
        return scale * jax.random.normal(next(keys), shape, jnp.float32)

    emb = w((vocab_size, token_ebd_size))
    emb = emb.at[padding_value].set(0.0)               # padding_idx -> zeros

    params = {
        "embedding": emb,
        # Conv1d(E, H, k=1) weight (H, E, 1) stored transposed as (E, H)
        "cnn_w": w((token_ebd_size, code_ebd_size)),
        "cnn_b": w((code_ebd_size,)),
        "blocks": [],
        "mlp_w_in": w((code_ebd_size, mlp_hidden)),
        "mlp_b_in": w((mlp_hidden,)),
        "mlp_w_h": w((mlp_hidden, mlp_hidden)),
        "mlp_b_h": w((mlp_hidden,)),
        "mlp_w_out": w((mlp_hidden, num_labels)),
        "mlp_b_out": w((num_labels,)),
    }
    for _ in range(num_layers):
        params["blocks"].append({
            # Conv1d(H, H, k=5) weight (H, H, 5) stored as (K, C_in, C_out)
            "w1": w((5, code_ebd_size, code_ebd_size)),
            "b1": w((code_ebd_size,)),
            "w2": w((5, code_ebd_size, code_ebd_size)),
            "b2": w((code_ebd_size,)),
        })
    return params


if __name__ == "__main__":
    # Lane-dense demo config: num_layers=4 -> 3 downsampling blocks, so
    # L = 2**3 = 8 reduces to length 1 before the labeling head.  B=16 so the
    # batch-tiled grid has >= 2 steps with multiple-of-8 tiles (v7x dual TCs).
    B, L = 16, 8
    vocab_size = 64
    token_ebd_size = 128      # multiple of 128 -> lane-dense matmuls
    code_ebd_size = 128       # multiple of 128 -> lane-dense channel dim
    padding_value = 0
    num_layers = 4
    num_labels = 256          # multiple of 128 -> lane-dense output stores

    key = jax.random.PRNGKey(0)
    pkey, tkey = jax.random.split(key)
    raw_params = init_params(pkey,
                             vocab_size=vocab_size,
                             token_ebd_size=token_ebd_size,
                             code_ebd_size=code_ebd_size,
                             padding_value=padding_value,
                             num_layers=num_layers,
                             num_labels=num_labels)
    tokens = jax.random.randint(tkey, (B, L), 0, vocab_size, dtype=jnp.int32)

    prepped = prepare_params(raw_params)               # one-time bf16 cast/stack

    fwd = jax.jit(dpcnn4code1_forward)
    out = jax.block_until_ready(fwd(tokens, prepped))
    assert out.shape == (B, num_labels), out.shape

    ref = jax.block_until_ready(reference_forward(tokens, raw_params))
    # bf16 MXU inputs with f32 accumulation -> small, bounded drift vs f32 ref.
    assert jnp.allclose(out, ref, atol=2e-2, rtol=2e-2), (
        float(jnp.max(jnp.abs(out - ref))))

    print("KERNEL_OK")
</pallas_src>

<mosaic_0001>
module attributes {stable_mosaic.version = 11 : i64} {
  func.func @_dpcnn_fused_kernel(%arg0: i32, %arg1: memref<8x8x128xbf16, #tpu.memory_space<vmem>>, %arg2: memref<128x128xbf16, #tpu.memory_space<vmem>>, %arg3: memref<1x128xf32, #tpu.memory_space<vmem>>, %arg4: memref<4x640x128xbf16, #tpu.memory_space<vmem>>, %arg5: memref<4x1x128xf32, #tpu.memory_space<vmem>>, %arg6: memref<4x640x128xbf16, #tpu.memory_space<vmem>>, %arg7: memref<4x1x128xf32, #tpu.memory_space<vmem>>, %arg8: memref<128x1024xbf16, #tpu.memory_space<vmem>>, %arg9: memref<1x1024xf32, #tpu.memory_space<vmem>>, %arg10: memref<1024x1024xbf16, #tpu.memory_space<vmem>>, %arg11: memref<1x1024xf32, #tpu.memory_space<vmem>>, %arg12: memref<1024x256xbf16, #tpu.memory_space<vmem>>, %arg13: memref<1x256xf32, #tpu.memory_space<vmem>>, %arg14: memref<8x256xf32, #tpu.memory_space<vmem>>) attributes {dimension_semantics = [#tpu.dimension_semantics<parallel>], iteration_bounds = array<i64: 2>, scalar_prefetch = 0 : i64, scratch_operands = 0 : i64, tpu.core_type = #tpu.core_type<tc>, window_params = [{transform_indices = @transform_0, window_bounds = array<i64: 8, 8, 128>}, {pipeline_mode = #tpu.pipeline_mode<synchronous>, transform_indices = @transform_1, window_bounds = array<i64: 128, 128>}, {pipeline_mode = #tpu.pipeline_mode<synchronous>, transform_indices = @transform_2, window_bounds = array<i64: 1, 128>}, {pipeline_mode = #tpu.pipeline_mode<synchronous>, transform_indices = @transform_3, window_bounds = array<i64: 4, 640, 128>}, {pipeline_mode = #tpu.pipeline_mode<synchronous>, transform_indices = @transform_4, window_bounds = array<i64: 4, 1, 128>}, {pipeline_mode = #tpu.pipeline_mode<synchronous>, transform_indices = @transform_5, window_bounds = array<i64: 4, 640, 128>}, {pipeline_mode = #tpu.pipeline_mode<synchronous>, transform_indices = @transform_6, window_bounds = array<i64: 4, 1, 128>}, {pipeline_mode = #tpu.pipeline_mode<synchronous>, transform_indices = @transform_7, window_bounds = array<i64: 128, 1024>}, {pipeline_mode = #tpu.pipeline_mode<synchronous>, transform_indices = @transform_8, window_bounds = array<i64: 1, 1024>}, {pipeline_mode = #tpu.pipeline_mode<synchronous>, transform_indices = @transform_9, window_bounds = array<i64: 1024, 1024>}, {pipeline_mode = #tpu.pipeline_mode<synchronous>, transform_indices = @transform_10, window_bounds = array<i64: 1, 1024>}, {pipeline_mode = #tpu.pipeline_mode<synchronous>, transform_indices = @transform_11, window_bounds = array<i64: 1024, 256>}, {pipeline_mode = #tpu.pipeline_mode<synchronous>, transform_indices = @transform_12, window_bounds = array<i64: 1, 256>}, {transform_indices = @transform_13, window_bounds = array<i64: 8, 256>}]} {
    %c0 = arith.constant 0 : index
    %c0_0 = arith.constant 0 : index
    %c0_1 = arith.constant 0 : index
    %0 = vector.load %arg1[%c0, %c0_0, %c0_1] : memref<8x8x128xbf16, #tpu.memory_space<vmem>>, vector<8x8x128xbf16>
    %1 = vector.shape_cast %0 : vector<8x8x128xbf16> to vector<64x128xbf16>
    %c0_2 = arith.constant 0 : index
    %c0_3 = arith.constant 0 : index
    %2 = vector.load %arg2[%c0_2, %c0_3] : memref<128x128xbf16, #tpu.memory_space<vmem>>, vector<128x128xbf16>
    %cst = arith.constant dense<0.000000e+00> : vector<64x128xf32>
    %3 = tpu.matmul %1, %2, %cst {dimension_numbers = #tpu.dot_dimension_numbers<[1], [0], [0], [1], [0, 0, 1, 1], [], []>} : vector<64x128xbf16>, vector<128x128xbf16>, vector<64x128xf32> -> vector<64x128xf32>
    %c0_4 = arith.constant 0 : index
    %c0_5 = arith.constant 0 : index
    %4 = vector.load %arg3[%c0_4, %c0_5] : memref<1x128xf32, #tpu.memory_space<vmem>>, vector<1x128xf32>
    %5 = vector.broadcast %4 : vector<1x128xf32> to vector<64x128xf32>
    %6 = arith.addf %3, %5 : vector<64x128xf32>
    %7 = vector.shape_cast %6 : vector<64x128xf32> to vector<8x8x128xf32>
    %c0_6 = arith.constant 0 : index
    %c0_7 = arith.constant 0 : index
    %c0_8 = arith.constant 0 : index
    %8 = vector.load %arg4[%c0_6, %c0_7, %c0_8] : memref<4x640x128xbf16, #tpu.memory_space<vmem>>, vector<1x640x128xbf16>
    %9 = vector.shape_cast %8 : vector<1x640x128xbf16> to vector<640x128xbf16>
    %c0_9 = arith.constant 0 : index
    %c0_10 = arith.constant 0 : index
    %c0_11 = arith.constant 0 : index
    %10 = vector.load %arg5[%c0_9, %c0_10, %c0_11] : memref<4x1x128xf32, #tpu.memory_space<vmem>>, vector<1x1x128xf32>
    %11 = vector.shape_cast %10 : vector<1x1x128xf32> to vector<1x128xf32>
    %cst_12 = arith.constant 0.000000e+00 : f32
    %12 = vector.broadcast %cst_12 : f32 to vector<8x8x128xf32>
    %13 = arith.maximumf %7, %12 : vector<8x8x128xf32>
    %14 = arith.truncf %13 : vector<8x8x128xf32> to vector<8x8x128xbf16>
    %cst_13 = arith.constant 0.000000e+00 : bf16
    %15 = vector.broadcast %cst_13 : bf16 to vector<8x2x128xbf16>
    %cst_14 = arith.constant 0.000000e+00 : bf16
    %16 = vector.broadcast %cst_14 : bf16 to vector<8x6x128xbf16>
    %17 = tpu.concatenate %15, %14, %16 in 1 : vector<8x2x128xbf16>, vector<8x8x128xbf16>, vector<8x6x128xbf16> -> vector<8x16x128xbf16>
    %18 = vector.extract_strided_slice %17 {offsets = [0, 0, 0], sizes = [8, 8, 128], strides = [1, 1, 1]} : vector<8x16x128xbf16> to vector<8x8x128xbf16>
    %19 = vector.extract_strided_slice %17 {offsets = [0, 1, 0], sizes = [8, 8, 128], strides = [1, 1, 1]} : vector<8x16x128xbf16> to vector<8x8x128xbf16>
    %20 = vector.extract_strided_slice %17 {offsets = [0, 2, 0], sizes = [8, 8, 128], strides = [1, 1, 1]} : vector<8x16x128xbf16> to vector<8x8x128xbf16>
    %21 = vector.extract_strided_slice %17 {offsets = [0, 3, 0], sizes = [8, 8, 128], strides = [1, 1, 1]} : vector<8x16x128xbf16> to vector<8x8x128xbf16>
    %22 = vector.extract_strided_slice %17 {offsets = [0, 4, 0], sizes = [8, 8, 128], strides = [1, 1, 1]} : vector<8x16x128xbf16> to vector<8x8x128xbf16>
    %23 = tpu.concatenate %18, %19, %20, %21, %22 in 2 : vector<8x8x128xbf16>, vector<8x8x128xbf16>, vector<8x8x128xbf16>, vector<8x8x128xbf16>, vector<8x8x128xbf16> -> vector<8x8x640xbf16>
    %24 = vector.shape_cast %23 : vector<8x8x640xbf16> to vector<64x640xbf16>
    %cst_15 = arith.constant dense<0.000000e+00> : vector<64x128xf32>
    %25 = tpu.matmul %24, %9, %cst_15 {dimension_numbers = #tpu.dot_dimension_numbers<[1], [0], [0], [1], [0, 0, 1, 1], [], []>} : vector<64x640xbf16>, vector<640x128xbf16>, vector<64x128xf32> -> vector<64x128xf32>
    %26 = vector.broadcast %11 : vector<1x128xf32> to vector<64x128xf32>
    %27 = arith.addf %25, %26 : vector<64x128xf32>
    %28 = vector.shape_cast %27 : vector<64x128xf32> to vector<8x8x128xf32>
    %c0_16 = arith.constant 0 : index
    %c0_17 = arith.constant 0 : index
    %c0_18 = arith.constant 0 : index
    %29 = vector.load %arg6[%c0_16, %c0_17, %c0_18] : memref<4x640x128xbf16, #tpu.memory_space<vmem>>, vector<1x640x128xbf16>
    %30 = vector.shape_cast %29 : vector<1x640x128xbf16> to vector<640x128xbf16>
    %c0_19 = arith.constant 0 : index
    %c0_20 = arith.constant 0 : index
    %c0_21 = arith.constant 0 : index
    %31 = vector.load %arg7[%c0_19, %c0_20, %c0_21] : memref<4x1x128xf32, #tpu.memory_space<vmem>>, vector<1x1x128xf32>
    %32 = vector.shape_cast %31 : vector<1x1x128xf32> to vector<1x128xf32>
    %cst_22 = arith.constant 0.000000e+00 : f32
    %33 = vector.broadcast %cst_22 : f32 to vector<8x8x128xf32>
    %34 = arith.maximumf %28, %33 : vector<8x8x128xf32>
    %35 = arith.truncf %34 : vector<8x8x128xf32> to vector<8x8x128xbf16>
    %cst_23 = arith.constant 0.000000e+00 : bf16
    %36 = vector.broadcast %cst_23 : bf16 to vector<8x2x128xbf16>
    %cst_24 = arith.constant 0.000000e+00 : bf16
    %37 = vector.broadcast %cst_24 : bf16 to vector<8x6x128xbf16>
    %38 = tpu.concatenate %36, %35, %37 in 1 : vector<8x2x128xbf16>, vector<8x8x128xbf16>, vector<8x6x128xbf16> -> vector<8x16x128xbf16>
    %39 = vector.extract_strided_slice %38 {offsets = [0, 0, 0], sizes = [8, 8, 128], strides = [1, 1, 1]} : vector<8x16x128xbf16> to vector<8x8x128xbf16>
    %40 = vector.extract_strided_slice %38 {offsets = [0, 1, 0], sizes = [8, 8, 128], strides = [1, 1, 1]} : vector<8x16x128xbf16> to vector<8x8x128xbf16>
    %41 = vector.extract_strided_slice %38 {offsets = [0, 2, 0], sizes = [8, 8, 128], strides = [1, 1, 1]} : vector<8x16x128xbf16> to vector<8x8x128xbf16>
    %42 = vector.extract_strided_slice %38 {offsets = [0, 3, 0], sizes = [8, 8, 128], strides = [1, 1, 1]} : vector<8x16x128xbf16> to vector<8x8x128xbf16>
    %43 = vector.extract_strided_slice %38 {offsets = [0, 4, 0], sizes = [8, 8, 128], strides = [1, 1, 1]} : vector<8x16x128xbf16> to vector<8x8x128xbf16>
    %44 = tpu.concatenate %39, %40, %41, %42, %43 in 2 : vector<8x8x128xbf16>, vector<8x8x128xbf16>, vector<8x8x128xbf16>, vector<8x8x128xbf16>, vector<8x8x128xbf16> -> vector<8x8x640xbf16>
    %45 = vector.shape_cast %44 : vector<8x8x640xbf16> to vector<64x640xbf16>
    %cst_25 = arith.constant dense<0.000000e+00> : vector<64x128xf32>
    %46 = tpu.matmul %45, %30, %cst_25 {dimension_numbers = #tpu.dot_dimension_numbers<[1], [0], [0], [1], [0, 0, 1, 1], [], []>} : vector<64x640xbf16>, vector<640x128xbf16>, vector<64x128xf32> -> vector<64x128xf32>
    %47 = vector.broadcast %32 : vector<1x128xf32> to vector<64x128xf32>
    %48 = arith.addf %46, %47 : vector<64x128xf32>
    %49 = vector.shape_cast %48 : vector<64x128xf32> to vector<8x8x128xf32>
    %50 = arith.addf %7, %49 : vector<8x8x128xf32>
    %51 = vector.shape_cast %50 : vector<8x8x128xf32> to vector<8x4x2x128xf32>
    %cst_26 = arith.constant dense<0xFF800000> : vector<8x4x128xf32>
    %52 = vector.multi_reduction <maximumf>, %51, %cst_26 [2] : vector<8x4x2x128xf32> to vector<8x4x128xf32>
    %c1 = arith.constant 1 : index
    %c0_27 = arith.constant 0 : index
    %c0_28 = arith.constant 0 : index
    %53 = vector.load %arg4[%c1, %c0_27, %c0_28] : memref<4x640x128xbf16, #tpu.memory_space<vmem>>, vector<1x640x128xbf16>
    %54 = vector.shape_cast %53 : vector<1x640x128xbf16> to vector<640x128xbf16>
    %c1_29 = arith.constant 1 : index
    %c0_30 = arith.constant 0 : index
    %c0_31 = arith.constant 0 : index
    %55 = vector.load %arg5[%c1_29, %c0_30, %c0_31] : memref<4x1x128xf32, #tpu.memory_space<vmem>>, vector<1x1x128xf32>
    %56 = vector.shape_cast %55 : vector<1x1x128xf32> to vector<1x128xf32>
    %cst_32 = arith.constant 0.000000e+00 : f32
    %57 = vector.broadcast %cst_32 : f32 to vector<8x4x128xf32>
    %58 = arith.maximumf %52, %57 : vector<8x4x128xf32>
    %59 = arith.truncf %58 : vector<8x4x128xf32> to vector<8x4x128xbf16>
    %cst_33 = arith.constant 0.000000e+00 : bf16
    %60 = vector.broadcast %cst_33 : bf16 to vector<8x2x128xbf16>
    %cst_34 = arith.constant 0.000000e+00 : bf16
    %61 = vector.broadcast %cst_34 : bf16 to vector<8x2x128xbf16>
    %62 = tpu.concatenate %60, %59, %61 in 1 : vector<8x2x128xbf16>, vector<8x4x128xbf16>, vector<8x2x128xbf16> -> vector<8x8x128xbf16>
    %63 = vector.extract_strided_slice %62 {offsets = [0, 0, 0], sizes = [8, 4, 128], strides = [1, 1, 1]} : vector<8x8x128xbf16> to vector<8x4x128xbf16>
    %64 = vector.extract_strided_slice %62 {offsets = [0, 1, 0], sizes = [8, 4, 128], strides = [1, 1, 1]} : vector<8x8x128xbf16> to vector<8x4x128xbf16>
    %65 = vector.extract_strided_slice %62 {offsets = [0, 2, 0], sizes = [8, 4, 128], strides = [1, 1, 1]} : vector<8x8x128xbf16> to vector<8x4x128xbf16>
    %66 = vector.extract_strided_slice %62 {offsets = [0, 3, 0], sizes = [8, 4, 128], strides = [1, 1, 1]} : vector<8x8x128xbf16> to vector<8x4x128xbf16>
    %67 = vector.extract_strided_slice %62 {offsets = [0, 4, 0], sizes = [8, 4, 128], strides = [1, 1, 1]} : vector<8x8x128xbf16> to vector<8x4x128xbf16>
    %68 = tpu.concatenate %63, %64, %65, %66, %67 in 2 : vector<8x4x128xbf16>, vector<8x4x128xbf16>, vector<8x4x128xbf16>, vector<8x4x128xbf16>, vector<8x4x128xbf16> -> vector<8x4x640xbf16>
    %69 = vector.shape_cast %68 : vector<8x4x640xbf16> to vector<32x640xbf16>
    %cst_35 = arith.constant dense<0.000000e+00> : vector<32x128xf32>
    %70 = tpu.matmul %69, %54, %cst_35 {dimension_numbers = #tpu.dot_dimension_numbers<[1], [0], [0], [1], [0, 0, 1, 1], [], []>} : vector<32x640xbf16>, vector<640x128xbf16>, vector<32x128xf32> -> vector<32x128xf32>
    %71 = vector.broadcast %56 : vector<1x128xf32> to vector<32x128xf32>
    %72 = arith.addf %70, %71 : vector<32x128xf32>
    %73 = vector.shape_cast %72 : vector<32x128xf32> to vector<8x4x128xf32>
    %c1_36 = arith.constant 1 : index
    %c0_37 = arith.constant 0 : index
    %c0_38 = arith.constant 0 : index
    %74 = vector.load %arg6[%c1_36, %c0_37, %c0_38] : memref<4x640x128xbf16, #tpu.memory_space<vmem>>, vector<1x640x128xbf16>
    %75 = vector.shape_cast %74 : vector<1x640x128xbf16> to vector<640x128xbf16>
    %c1_39 = arith.constant 1 : index
    %c0_40 = arith.constant 0 : index
    %c0_41 = arith.constant 0 : index
    %76 = vector.load %arg7[%c1_39, %c0_40, %c0_41] : memref<4x1x128xf32, #tpu.memory_space<vmem>>, vector<1x1x128xf32>
    %77 = vector.shape_cast %76 : vector<1x1x128xf32> to vector<1x128xf32>
    %cst_42 = arith.constant 0.000000e+00 : f32
    %78 = vector.broadcast %cst_42 : f32 to vector<8x4x128xf32>
    %79 = arith.maximumf %73, %78 : vector<8x4x128xf32>
    %80 = arith.truncf %79 : vector<8x4x128xf32> to vector<8x4x128xbf16>
    %cst_43 = arith.constant 0.000000e+00 : bf16
    %81 = vector.broadcast %cst_43 : bf16 to vector<8x2x128xbf16>
    %cst_44 = arith.constant 0.000000e+00 : bf16
    %82 = vector.broadcast %cst_44 : bf16 to vector<8x2x128xbf16>
    %83 = tpu.concatenate %81, %80, %82 in 1 : vector<8x2x128xbf16>, vector<8x4x128xbf16>, vector<8x2x128xbf16> -> vector<8x8x128xbf16>
    %84 = vector.extract_strided_slice %83 {offsets = [0, 0, 0], sizes = [8, 4, 128], strides = [1, 1, 1]} : vector<8x8x128xbf16> to vector<8x4x128xbf16>
    %85 = vector.extract_strided_slice %83 {offsets = [0, 1, 0], sizes = [8, 4, 128], strides = [1, 1, 1]} : vector<8x8x128xbf16> to vector<8x4x128xbf16>
    %86 = vector.extract_strided_slice %83 {offsets = [0, 2, 0], sizes = [8, 4, 128], strides = [1, 1, 1]} : vector<8x8x128xbf16> to vector<8x4x128xbf16>
    %87 = vector.extract_strided_slice %83 {offsets = [0, 3, 0], sizes = [8, 4, 128], strides = [1, 1, 1]} : vector<8x8x128xbf16> to vector<8x4x128xbf16>
    %88 = vector.extract_strided_slice %83 {offsets = [0, 4, 0], sizes = [8, 4, 128], strides = [1, 1, 1]} : vector<8x8x128xbf16> to vector<8x4x128xbf16>
    %89 = tpu.concatenate %84, %85, %86, %87, %88 in 2 : vector<8x4x128xbf16>, vector<8x4x128xbf16>, vector<8x4x128xbf16>, vector<8x4x128xbf16>, vector<8x4x128xbf16> -> vector<8x4x640xbf16>
    %90 = vector.shape_cast %89 : vector<8x4x640xbf16> to vector<32x640xbf16>
    %cst_45 = arith.constant dense<0.000000e+00> : vector<32x128xf32>
    %91 = tpu.matmul %90, %75, %cst_45 {dimension_numbers = #tpu.dot_dimension_numbers<[1], [0], [0], [1], [0, 0, 1, 1], [], []>} : vector<32x640xbf16>, vector<640x128xbf16>, vector<32x128xf32> -> vector<32x128xf32>
    %92 = vector.broadcast %77 : vector<1x128xf32> to vector<32x128xf32>
    %93 = arith.addf %91, %92 : vector<32x128xf32>
    %94 = vector.shape_cast %93 : vector<32x128xf32> to vector<8x4x128xf32>
    %95 = arith.addf %52, %94 : vector<8x4x128xf32>
    %96 = vector.shape_cast %95 : vector<8x4x128xf32> to vector<8x2x2x128xf32>
    %cst_46 = arith.constant dense<0xFF800000> : vector<8x2x128xf32>
    %97 = vector.multi_reduction <maximumf>, %96, %cst_46 [2] : vector<8x2x2x128xf32> to vector<8x2x128xf32>
    %c2 = arith.constant 2 : index
    %c0_47 = arith.constant 0 : index
    %c0_48 = arith.constant 0 : index
    %98 = vector.load %arg4[%c2, %c0_47, %c0_48] : memref<4x640x128xbf16, #tpu.memory_space<vmem>>, vector<1x640x128xbf16>
    %99 = vector.shape_cast %98 : vector<1x640x128xbf16> to vector<640x128xbf16>
    %c2_49 = arith.constant 2 : index
    %c0_50 = arith.constant 0 : index
    %c0_51 = arith.constant 0 : index
    %100 = vector.load %arg5[%c2_49, %c0_50, %c0_51] : memref<4x1x128xf32, #tpu.memory_space<vmem>>, vector<1x1x128xf32>
    %101 = vector.shape_cast %100 : vector<1x1x128xf32> to vector<1x128xf32>
    %cst_52 = arith.constant 0.000000e+00 : f32
    %102 = vector.broadcast %cst_52 : f32 to vector<8x2x128xf32>
    %103 = arith.maximumf %97, %102 : vector<8x2x128xf32>
    %104 = arith.truncf %103 : vector<8x2x128xf32> to vector<8x2x128xbf16>
    %cst_53 = arith.constant 0.000000e+00 : bf16
    %105 = vector.broadcast %cst_53 : bf16 to vector<8x2x128xbf16>
    %cst_54 = arith.constant 0.000000e+00 : bf16
    %106 = vector.broadcast %cst_54 : bf16 to vector<8x4x128xbf16>
    %107 = tpu.concatenate %105, %104, %106 in 1 : vector<8x2x128xbf16>, vector<8x2x128xbf16>, vector<8x4x128xbf16> -> vector<8x8x128xbf16>
    %108 = vector.extract_strided_slice %107 {offsets = [0, 0, 0], sizes = [8, 2, 128], strides = [1, 1, 1]} : vector<8x8x128xbf16> to vector<8x2x128xbf16>
    %109 = vector.extract_strided_slice %107 {offsets = [0, 1, 0], sizes = [8, 2, 128], strides = [1, 1, 1]} : vector<8x8x128xbf16> to vector<8x2x128xbf16>
    %110 = vector.extract_strided_slice %107 {offsets = [0, 2, 0], sizes = [8, 2, 128], strides = [1, 1, 1]} : vector<8x8x128xbf16> to vector<8x2x128xbf16>
    %111 = vector.extract_strided_slice %107 {offsets = [0, 3, 0], sizes = [8, 2, 128], strides = [1, 1, 1]} : vector<8x8x128xbf16> to vector<8x2x128xbf16>
    %112 = vector.extract_strided_slice %107 {offsets = [0, 4, 0], sizes = [8, 2, 128], strides = [1, 1, 1]} : vector<8x8x128xbf16> to vector<8x2x128xbf16>
    %113 = tpu.concatenate %108, %109, %110, %111, %112 in 2 : vector<8x2x128xbf16>, vector<8x2x128xbf16>, vector<8x2x128xbf16>, vector<8x2x128xbf16>, vector<8x2x128xbf16> -> vector<8x2x640xbf16>
    %114 = vector.shape_cast %113 : vector<8x2x640xbf16> to vector<16x640xbf16>
    %cst_55 = arith.constant dense<0.000000e+00> : vector<16x128xf32>
    %115 = tpu.matmul %114, %99, %cst_55 {dimension_numbers = #tpu.dot_dimension_numbers<[1], [0], [0], [1], [0, 0, 1, 1], [], []>} : vector<16x640xbf16>, vector<640x128xbf16>, vector<16x128xf32> -> vector<16x128xf32>
    %116 = vector.broadcast %101 : vector<1x128xf32> to vector<16x128xf32>
    %117 = arith.addf %115, %116 : vector<16x128xf32>
    %118 = vector.shape_cast %117 : vector<16x128xf32> to vector<8x2x128xf32>
    %c2_56 = arith.constant 2 : index
    %c0_57 = arith.constant 0 : index
    %c0_58 = arith.constant 0 : index
    %119 = vector.load %arg6[%c2_56, %c0_57, %c0_58] : memref<4x640x128xbf16, #tpu.memory_space<vmem>>, vector<1x640x128xbf16>
    %120 = vector.shape_cast %119 : vector<1x640x128xbf16> to vector<640x128xbf16>
    %c2_59 = arith.constant 2 : index
    %c0_60 = arith.constant 0 : index
    %c0_61 = arith.constant 0 : index
    %121 = vector.load %arg7[%c2_59, %c0_60, %c0_61] : memref<4x1x128xf32, #tpu.memory_space<vmem>>, vector<1x1x128xf32>
    %122 = vector.shape_cast %121 : vector<1x1x128xf32> to vector<1x128xf32>
    %cst_62 = arith.constant 0.000000e+00 : f32
    %123 = vector.broadcast %cst_62 : f32 to vector<8x2x128xf32>
    %124 = arith.maximumf %118, %123 : vector<8x2x128xf32>
    %125 = arith.truncf %124 : vector<8x2x128xf32> to vector<8x2x128xbf16>
    %cst_63 = arith.constant 0.000000e+00 : bf16
    %126 = vector.broadcast %cst_63 : bf16 to vector<8x2x128xbf16>
    %cst_64 = arith.constant 0.000000e+00 : bf16
    %127 = vector.broadcast %cst_64 : bf16 to vector<8x4x128xbf16>
    %128 = tpu.concatenate %126, %125, %127 in 1 : vector<8x2x128xbf16>, vector<8x2x128xbf16>, vector<8x4x128xbf16> -> vector<8x8x128xbf16>
    %129 = vector.extract_strided_slice %128 {offsets = [0, 0, 0], sizes = [8, 2, 128], strides = [1, 1, 1]} : vector<8x8x128xbf16> to vector<8x2x128xbf16>
    %130 = vector.extract_strided_slice %128 {offsets = [0, 1, 0], sizes = [8, 2, 128], strides = [1, 1, 1]} : vector<8x8x128xbf16> to vector<8x2x128xbf16>
    %131 = vector.extract_strided_slice %128 {offsets = [0, 2, 0], sizes = [8, 2, 128], strides = [1, 1, 1]} : vector<8x8x128xbf16> to vector<8x2x128xbf16>
    %132 = vector.extract_strided_slice %128 {offsets = [0, 3, 0], sizes = [8, 2, 128], strides = [1, 1, 1]} : vector<8x8x128xbf16> to vector<8x2x128xbf16>
    %133 = vector.extract_strided_slice %128 {offsets = [0, 4, 0], sizes = [8, 2, 128], strides = [1, 1, 1]} : vector<8x8x128xbf16> to vector<8x2x128xbf16>
    %134 = tpu.concatenate %129, %130, %131, %132, %133 in 2 : vector<8x2x128xbf16>, vector<8x2x128xbf16>, vector<8x2x128xbf16>, vector<8x2x128xbf16>, vector<8x2x128xbf16> -> vector<8x2x640xbf16>
    %135 = vector.shape_cast %134 : vector<8x2x640xbf16> to vector<16x640xbf16>
    %cst_65 = arith.constant dense<0.000000e+00> : vector<16x128xf32>
    %136 = tpu.matmul %135, %120, %cst_65 {dimension_numbers = #tpu.dot_dimension_numbers<[1], [0], [0], [1], [0, 0, 1, 1], [], []>} : vector<16x640xbf16>, vector<640x128xbf16>, vector<16x128xf32> -> vector<16x128xf32>
    %137 = vector.broadcast %122 : vector<1x128xf32> to vector<16x128xf32>
    %138 = arith.addf %136, %137 : vector<16x128xf32>
    %139 = vector.shape_cast %138 : vector<16x128xf32> to vector<8x2x128xf32>
    %140 = arith.addf %97, %139 : vector<8x2x128xf32>
    %141 = vector.shape_cast %140 : vector<8x2x128xf32> to vector<8x1x2x128xf32>
    %cst_66 = arith.constant dense<0xFF800000> : vector<8x1x128xf32>
    %142 = vector.multi_reduction <maximumf>, %141, %cst_66 [2] : vector<8x1x2x128xf32> to vector<8x1x128xf32>
    %c3 = arith.constant 3 : index
    %c0_67 = arith.constant 0 : index
    %c0_68 = arith.constant 0 : index
    %143 = vector.load %arg4[%c3, %c0_67, %c0_68] : memref<4x640x128xbf16, #tpu.memory_space<vmem>>, vector<1x640x128xbf16>
    %144 = vector.shape_cast %143 : vector<1x640x128xbf16> to vector<640x128xbf16>
    %c3_69 = arith.constant 3 : index
    %c0_70 = arith.constant 0 : index
    %c0_71 = arith.constant 0 : index
    %145 = vector.load %arg5[%c3_69, %c0_70, %c0_71] : memref<4x1x128xf32, #tpu.memory_space<vmem>>, vector<1x1x128xf32>
    %146 = vector.shape_cast %145 : vector<1x1x128xf32> to vector<1x128xf32>
    %cst_72 = arith.constant 0.000000e+00 : f32
    %147 = vector.broadcast %cst_72 : f32 to vector<8x1x128xf32>
    %148 = arith.maximumf %142, %147 : vector<8x1x128xf32>
    %149 = arith.truncf %148 : vector<8x1x128xf32> to vector<8x1x128xbf16>
    %cst_73 = arith.constant 0.000000e+00 : bf16
    %150 = vector.broadcast %cst_73 : bf16 to vector<8x2x128xbf16>
    %cst_74 = arith.constant 0.000000e+00 : bf16
    %151 = vector.broadcast %cst_74 : bf16 to vector<8x5x128xbf16>
    %152 = tpu.concatenate %150, %149, %151 in 1 : vector<8x2x128xbf16>, vector<8x1x128xbf16>, vector<8x5x128xbf16> -> vector<8x8x128xbf16>
    %153 = vector.extract_strided_slice %152 {offsets = [0, 0, 0], sizes = [8, 1, 128], strides = [1, 1, 1]} : vector<8x8x128xbf16> to vector<8x1x128xbf16>
    %154 = vector.extract_strided_slice %152 {offsets = [0, 1, 0], sizes = [8, 1, 128], strides = [1, 1, 1]} : vector<8x8x128xbf16> to vector<8x1x128xbf16>
    %155 = vector.extract_strided_slice %152 {offsets = [0, 2, 0], sizes = [8, 1, 128], strides = [1, 1, 1]} : vector<8x8x128xbf16> to vector<8x1x128xbf16>
    %156 = vector.extract_strided_slice %152 {offsets = [0, 3, 0], sizes = [8, 1, 128], strides = [1, 1, 1]} : vector<8x8x128xbf16> to vector<8x1x128xbf16>
    %157 = vector.extract_strided_slice %152 {offsets = [0, 4, 0], sizes = [8, 1, 128], strides = [1, 1, 1]} : vector<8x8x128xbf16> to vector<8x1x128xbf16>
    %158 = tpu.concatenate %153, %154, %155, %156, %157 in 2 : vector<8x1x128xbf16>, vector<8x1x128xbf16>, vector<8x1x128xbf16>, vector<8x1x128xbf16>, vector<8x1x128xbf16> -> vector<8x1x640xbf16>
    %159 = vector.shape_cast %158 : vector<8x1x640xbf16> to vector<8x640xbf16>
    %cst_75 = arith.constant dense<0.000000e+00> : vector<8x128xf32>
    %160 = tpu.matmul %159, %144, %cst_75 {dimension_numbers = #tpu.dot_dimension_numbers<[1], [0], [0], [1], [0, 0, 1, 1], [], []>} : vector<8x640xbf16>, vector<640x128xbf16>, vector<8x128xf32> -> vector<8x128xf32>
    %161 = vector.broadcast %146 : vector<1x128xf32> to vector<8x128xf32>
    %162 = arith.addf %160, %161 : vector<8x128xf32>
    %163 = vector.shape_cast %162 : vector<8x128xf32> to vector<8x1x128xf32>
    %c3_76 = arith.constant 3 : index
    %c0_77 = arith.constant 0 : index
    %c0_78 = arith.constant 0 : index
    %164 = vector.load %arg6[%c3_76, %c0_77, %c0_78] : memref<4x640x128xbf16, #tpu.memory_space<vmem>>, vector<1x640x128xbf16>
    %165 = vector.shape_cast %164 : vector<1x640x128xbf16> to vector<640x128xbf16>
    %c3_79 = arith.constant 3 : index
    %c0_80 = arith.constant 0 : index
    %c0_81 = arith.constant 0 : index
    %166 = vector.load %arg7[%c3_79, %c0_80, %c0_81] : memref<4x1x128xf32, #tpu.memory_space<vmem>>, vector<1x1x128xf32>
    %167 = vector.shape_cast %166 : vector<1x1x128xf32> to vector<1x128xf32>
    %cst_82 = arith.constant 0.000000e+00 : f32
    %168 = vector.broadcast %cst_82 : f32 to vector<8x1x128xf32>
    %169 = arith.maximumf %163, %168 : vector<8x1x128xf32>
    %170 = arith.truncf %169 : vector<8x1x128xf32> to vector<8x1x128xbf16>
    %cst_83 = arith.constant 0.000000e+00 : bf16
    %171 = vector.broadcast %cst_83 : bf16 to vector<8x2x128xbf16>
    %cst_84 = arith.constant 0.000000e+00 : bf16
    %172 = vector.broadcast %cst_84 : bf16 to vector<8x5x128xbf16>
    %173 = tpu.concatenate %171, %170, %172 in 1 : vector<8x2x128xbf16>, vector<8x1x128xbf16>, vector<8x5x128xbf16> -> vector<8x8x128xbf16>
    %174 = vector.extract_strided_slice %173 {offsets = [0, 0, 0], sizes = [8, 1, 128], strides = [1, 1, 1]} : vector<8x8x128xbf16> to vector<8x1x128xbf16>
    %175 = vector.extract_strided_slice %173 {offsets = [0, 1, 0], sizes = [8, 1, 128], strides = [1, 1, 1]} : vector<8x8x128xbf16> to vector<8x1x128xbf16>
    %176 = vector.extract_strided_slice %173 {offsets = [0, 2, 0], sizes = [8, 1, 128], strides = [1, 1, 1]} : vector<8x8x128xbf16> to vector<8x1x128xbf16>
    %177 = vector.extract_strided_slice %173 {offsets = [0, 3, 0], sizes = [8, 1, 128], strides = [1, 1, 1]} : vector<8x8x128xbf16> to vector<8x1x128xbf16>
    %178 = vector.extract_strided_slice %173 {offsets = [0, 4, 0], sizes = [8, 1, 128], strides = [1, 1, 1]} : vector<8x8x128xbf16> to vector<8x1x128xbf16>
    %179 = tpu.concatenate %174, %175, %176, %177, %178 in 2 : vector<8x1x128xbf16>, vector<8x1x128xbf16>, vector<8x1x128xbf16>, vector<8x1x128xbf16>, vector<8x1x128xbf16> -> vector<8x1x640xbf16>
    %180 = vector.shape_cast %179 : vector<8x1x640xbf16> to vector<8x640xbf16>
    %cst_85 = arith.constant dense<0.000000e+00> : vector<8x128xf32>
    %181 = tpu.matmul %180, %165, %cst_85 {dimension_numbers = #tpu.dot_dimension_numbers<[1], [0], [0], [1], [0, 0, 1, 1], [], []>} : vector<8x640xbf16>, vector<640x128xbf16>, vector<8x128xf32> -> vector<8x128xf32>
    %182 = vector.broadcast %167 : vector<1x128xf32> to vector<8x128xf32>
    %183 = arith.addf %181, %182 : vector<8x128xf32>
    %184 = vector.shape_cast %183 : vector<8x128xf32> to vector<8x1x128xf32>
    %185 = arith.addf %142, %184 : vector<8x1x128xf32>
    %186 = vector.shape_cast %185 : vector<8x1x128xf32> to vector<8x128xf32>
    %187 = arith.truncf %186 : vector<8x128xf32> to vector<8x128xbf16>
    %c0_86 = arith.constant 0 : index
    %c0_87 = arith.constant 0 : index
    %188 = vector.load %arg8[%c0_86, %c0_87] : memref<128x1024xbf16, #tpu.memory_space<vmem>>, vector<128x1024xbf16>
    %cst_88 = arith.constant dense<0.000000e+00> : vector<8x1024xf32>
    %189 = tpu.matmul %187, %188, %cst_88 {dimension_numbers = #tpu.dot_dimension_numbers<[1], [0], [0], [1], [0, 0, 1, 1], [], []>} : vector<8x128xbf16>, vector<128x1024xbf16>, vector<8x1024xf32> -> vector<8x1024xf32>
    %c0_89 = arith.constant 0 : index
    %c0_90 = arith.constant 0 : index
    %190 = vector.load %arg9[%c0_89, %c0_90] : memref<1x1024xf32, #tpu.memory_space<vmem>>, vector<1x1024xf32>
    %191 = vector.broadcast %190 : vector<1x1024xf32> to vector<8x1024xf32>
    %192 = arith.addf %189, %191 : vector<8x1024xf32>
    %cst_91 = arith.constant 0.000000e+00 : f32
    %193 = vector.broadcast %cst_91 : f32 to vector<8x1024xf32>
    %194 = arith.maximumf %192, %193 : vector<8x1024xf32>
    %195 = arith.truncf %194 : vector<8x1024xf32> to vector<8x1024xbf16>
    %c0_92 = arith.constant 0 : index
    %c0_93 = arith.constant 0 : index
    %196 = vector.load %arg10[%c0_92, %c0_93] : memref<1024x1024xbf16, #tpu.memory_space<vmem>>, vector<1024x1024xbf16>
    %cst_94 = arith.constant dense<0.000000e+00> : vector<8x1024xf32>
    %197 = tpu.matmul %195, %196, %cst_94 {dimension_numbers = #tpu.dot_dimension_numbers<[1], [0], [0], [1], [0, 0, 1, 1], [], []>} : vector<8x1024xbf16>, vector<1024x1024xbf16>, vector<8x1024xf32> -> vector<8x1024xf32>
    %c0_95 = arith.constant 0 : index
    %c0_96 = arith.constant 0 : index
    %198 = vector.load %arg11[%c0_95, %c0_96] : memref<1x1024xf32, #tpu.memory_space<vmem>>, vector<1x1024xf32>
    %199 = vector.broadcast %198 : vector<1x1024xf32> to vector<8x1024xf32>
    %200 = arith.addf %197, %199 : vector<8x1024xf32>
    %cst_97 = arith.constant 0.000000e+00 : f32
    %201 = vector.broadcast %cst_97 : f32 to vector<8x1024xf32>
    %202 = arith.maximumf %200, %201 : vector<8x1024xf32>
    %203 = arith.truncf %202 : vector<8x1024xf32> to vector<8x1024xbf16>
    %c0_98 = arith.constant 0 : index
    %c0_99 = arith.constant 0 : index
    %204 = vector.load %arg12[%c0_98, %c0_99] : memref<1024x256xbf16, #tpu.memory_space<vmem>>, vector<1024x256xbf16>
    %cst_100 = arith.constant dense<0.000000e+00> : vector<8x256xf32>
    %205 = tpu.matmul %203, %204, %cst_100 {dimension_numbers = #tpu.dot_dimension_numbers<[1], [0], [0], [1], [0, 0, 1, 1], [], []>} : vector<8x1024xbf16>, vector<1024x256xbf16>, vector<8x256xf32> -> vector<8x256xf32>
    %c0_101 = arith.constant 0 : index
    %c0_102 = arith.constant 0 : index
    %206 = vector.load %arg13[%c0_101, %c0_102] : memref<1x256xf32, #tpu.memory_space<vmem>>, vector<1x256xf32>
    %207 = vector.broadcast %206 : vector<1x256xf32> to vector<8x256xf32>
    %208 = arith.addf %205, %207 : vector<8x256xf32>
    %c0_103 = arith.constant 0 : index
    %c0_104 = arith.constant 0 : index
    %209 = vector.load %arg14[%c0_103, %c0_104] : memref<8x256xf32, #tpu.memory_space<vmem>>, vector<8x256xf32>
    tpu.vector_store %arg14[%c0_103, %c0_104], %208 {strides = array<i32>} : memref<8x256xf32, #tpu.memory_space<vmem>>, vector<8x256xf32>,
    return
  }
  func.func @transform_0(%arg0: i32) -> (i32, i32, i32) {
    %c0_i32 = arith.constant 0 : i32
    %c0_i32_0 = arith.constant 0 : i32
    %c0_i32_1 = arith.constant 0 : i32
    return %arg0, %c0_i32, %c0_i32_0 : i32, i32, i32
  }
  func.func @transform_1(%arg0: i32) -> (i32, i32) {
    %c0_i32 = arith.constant 0 : i32
    %c0_i32_0 = arith.constant 0 : i32
    %c0_i32_1 = arith.constant 0 : i32
    return %c0_i32, %c0_i32_0 : i32, i32
  }
  func.func @transform_2(%arg0: i32) -> (i32, i32) {
    %c0_i32 = arith.constant 0 : i32
    %c0_i32_0 = arith.constant 0 : i32
    %c0_i32_1 = arith.constant 0 : i32
    return %c0_i32, %c0_i32_0 : i32, i32
  }
  func.func @transform_3(%arg0: i32) -> (i32, i32, i32) {
    %c0_i32 = arith.constant 0 : i32
    %c0_i32_0 = arith.constant 0 : i32
    %c0_i32_1 = arith.constant 0 : i32
    %c0_i32_2 = arith.constant 0 : i32
    return %c0_i32, %c0_i32_0, %c0_i32_1 : i32, i32, i32
  }
  func.func @transform_4(%arg0: i32) -> (i32, i32, i32) {
    %c0_i32 = arith.constant 0 : i32
    %c0_i32_0 = arith.constant 0 : i32
    %c0_i32_1 = arith.constant 0 : i32
    %c0_i32_2 = arith.constant 0 : i32
    return %c0_i32, %c0_i32_0, %c0_i32_1 : i32, i32, i32
  }
  func.func @transform_5(%arg0: i32) -> (i32, i32, i32) {
    %c0_i32 = arith.constant 0 : i32
    %c0_i32_0 = arith.constant 0 : i32
    %c0_i32_1 = arith.constant 0 : i32
    %c0_i32_2 = arith.constant 0 : i32
    return %c0_i32, %c0_i32_0, %c0_i32_1 : i32, i32, i32
  }
  func.func @transform_6(%arg0: i32) -> (i32, i32, i32) {
    %c0_i32 = arith.constant 0 : i32
    %c0_i32_0 = arith.constant 0 : i32
    %c0_i32_1 = arith.constant 0 : i32
    %c0_i32_2 = arith.constant 0 : i32
    return %c0_i32, %c0_i32_0, %c0_i32_1 : i32, i32, i32
  }
  func.func @transform_7(%arg0: i32) -> (i32, i32) {
    %c0_i32 = arith.constant 0 : i32
    %c0_i32_0 = arith.constant 0 : i32
    %c0_i32_1 = arith.constant 0 : i32
    return %c0_i32, %c0_i32_0 : i32, i32
  }
  func.func @transform_8(%arg0: i32) -> (i32, i32) {
    %c0_i32 = arith.constant 0 : i32
    %c0_i32_0 = arith.constant 0 : i32
    %c0_i32_1 = arith.constant 0 : i32
    return %c0_i32, %c0_i32_0 : i32, i32
  }
  func.func @transform_9(%arg0: i32) -> (i32, i32) {
    %c0_i32 = arith.constant 0 : i32
    %c0_i32_0 = arith.constant 0 : i32
    %c0_i32_1 = arith.constant 0 : i32
    return %c0_i32, %c0_i32_0 : i32, i32
  }
  func.func @transform_10(%arg0: i32) -> (i32, i32) {
    %c0_i32 = arith.constant 0 : i32
    %c0_i32_0 = arith.constant 0 : i32
    %c0_i32_1 = arith.constant 0 : i32
    return %c0_i32, %c0_i32_0 : i32, i32
  }
  func.func @transform_11(%arg0: i32) -> (i32, i32) {
    %c0_i32 = arith.constant 0 : i32
    %c0_i32_0 = arith.constant 0 : i32
    %c0_i32_1 = arith.constant 0 : i32
    return %c0_i32, %c0_i32_0 : i32, i32
  }
  func.func @transform_12(%arg0: i32) -> (i32, i32) {
    %c0_i32 = arith.constant 0 : i32
    %c0_i32_0 = arith.constant 0 : i32
    %c0_i32_1 = arith.constant 0 : i32
    return %c0_i32, %c0_i32_0 : i32, i32
  }
  func.func @transform_13(%arg0: i32) -> (i32, i32) {
    %c0_i32 = arith.constant 0 : i32
    %c0_i32_0 = arith.constant 0 : i32
    return %arg0, %c0_i32 : i32, i32
  }
}

</mosaic_0001>

<llo_original>
// kernel: dpcnn4code1_forward.1
$region0: #{dpcnn4code1_forward.1}
  #allocation0 [shape = 'u32[]', space=smem, size = 0x4, offset = 0x4, fixed_abs, tag = 'smem constant byte address 0x4 - core index']
  #allocation1 [shape = 'u32[72,128]{1,0:T(1,128)}', space=vmem, size = 0x9000, scoped, tag = 'internal scratch']
  %s0 = inlined_call_operand.vmem [shape: bf16[16,8,128], index: 0, kind: input, shape index: {}]
  %s1 = inlined_call_operand.hbm [shape: bf16[128,128], index: 1, kind: input, shape index: {}]
  %s2 = inlined_call_operand.hbm [shape: f32[1,128], index: 2, kind: input, shape index: {}]
  %s3 = inlined_call_operand.hbm [shape: bf16[4,640,128], index: 3, kind: input, shape index: {}]
  %s4 = inlined_call_operand.hbm [shape: f32[4,1,128], index: 4, kind: input, shape index: {}]
  %s5 = inlined_call_operand.hbm [shape: bf16[4,640,128], index: 5, kind: input, shape index: {}]
  %s6 = inlined_call_operand.hbm [shape: f32[4,1,128], index: 6, kind: input, shape index: {}]
  %s7 = inlined_call_operand.hbm [shape: bf16[128,1024], index: 7, kind: input, shape index: {}]
  %s8 = inlined_call_operand.hbm [shape: f32[1,1024], index: 8, kind: input, shape index: {}]
  %s9 = inlined_call_operand.hbm [shape: bf16[1024,1024], index: 9, kind: input, shape index: {}]
  %s10 = inlined_call_operand.hbm [shape: f32[1,1024], index: 10, kind: input, shape index: {}]
  %s11 = inlined_call_operand.hbm [shape: bf16[1024,256], index: 11, kind: input, shape index: {}]
  %s12 = inlined_call_operand.hbm [shape: f32[1,256], index: 12, kind: input, shape index: {}]
  %s13 = inlined_call_operand.hbm [shape: f32[16,256], index: 13, kind: output, shape index: {}]
  %s14 = sld [smem:[#allocation0]]
  $region133: #{dpcnn4code1_forward.1} parent=0
    _
  %s16 = ssub.s32 1, %s14
  %s17 = scalar_select 0, %s16, %s14
  $region1: #{dpcnn4code1_forward.1} parent=0
    #allocation2 [shape = 'u8[32768]{0}', space=vmem, size = 0x8000, scoped, tag = 'input window, operand 1, single buffered']
    #allocation3 [shape = 's32[2]{0}', space=sflag, size = 0x8, scoped, tag = 'scoped memory for dpcnn4code1_forward.1']
    #allocation4 [shape = 's32[2]{0}', space=sflag, size = 0x8, scoped, tag = 'scoped memory for dpcnn4code1_forward.1']
    #allocation5 [shape = 'u8[512]{0}', space=vmem, size = 0x400, scoped, tag = 'input window, operand 2, single buffered']
    #allocation6 [shape = 's32[1]{0}', space=sflag, size = 0x4, scoped, tag = 'scoped memory for dpcnn4code1_forward.1']
    #allocation7 [shape = 'u8[655360]{0}', space=vmem, size = 0xa0000, scoped, tag = 'input window, operand 3, single buffered']
    #allocation8 [shape = 'u8[2048]{0}', space=vmem, size = 0x800, scoped, tag = 'input window, operand 4, single buffered']
    #allocation9 [shape = 's32[1]{0}', space=sflag, size = 0x4, scoped, tag = 'scoped memory for dpcnn4code1_forward.1']
    #allocation10 [shape = 'u8[655360]{0}', space=vmem, size = 0xa0000, scoped, tag = 'input window, operand 5, single buffered']
    #allocation11 [shape = 'u8[2048]{0}', space=vmem, size = 0x800, scoped, tag = 'input window, operand 6, single buffered']
    #allocation12 [shape = 's32[1]{0}', space=sflag, size = 0x4, scoped, tag = 'scoped memory for dpcnn4code1_forward.1']
    #allocation13 [shape = 'u8[262144]{0}', space=vmem, size = 0x40000, scoped, tag = 'input window, operand 7, single buffered']
    #allocation14 [shape = 'u8[4096]{0}', space=vmem, size = 0x1000, scoped, tag = 'input window, operand 8, single buffered']
    #allocation15 [shape = 's32[1]{0}', space=sflag, size = 0x4, scoped, tag = 'scoped memory for dpcnn4code1_forward.1']
    #allocation16 [shape = 'u8[2097152]{0}', space=vmem, size = 0x200000, scoped, tag = 'input window, operand 9, single buffered']
    #allocation17 [shape = 'u8[4096]{0}', space=vmem, size = 0x1000, scoped, tag = 'input window, operand 10, single buffered']
    #allocation18 [shape = 's32[1]{0}', space=sflag, size = 0x4, scoped, tag = 'scoped memory for dpcnn4code1_forward.1']
    #allocation19 [shape = 'u8[524288]{0}', space=vmem, size = 0x80000, scoped, tag = 'input window, operand 11, single buffered']
    #allocation20 [shape = 'u8[1024]{0}', space=vmem, size = 0x400, scoped, tag = 'input window, operand 12, single buffered']
    #allocation21 [shape = 's32[1]{0}', space=sflag, size = 0x4, scoped, tag = 'scoped memory for dpcnn4code1_forward.1']
    #allocation22 [shape = 'u8[16384]{0}', space=vmem, size = 0x4000, scoped, tag = 'output window, operand 0']
    %18 = vsyncpa [#allocation3], 0
    %19 = vsyncpa [#allocation6], 0
    %20 = vsyncpa [#allocation9], 0
    %21 = vsyncpa [#allocation12], 0
    %22 = vsyncpa [#allocation15], 0
    %23 = vsyncpa [#allocation18], 0
    %24 = vsyncpa [#allocation21], 0
    %25 = vsyncpa [#allocation4], 0
    %s26 = scalar_lea.sflag [#allocation4], 1
    %27 = vsyncpa %s26, 0
    loop: start=0, step=1, limit=4
    $region2: #{dpcnn4code1_forward.1} parent=1 // loop_pre_header
      _
    $region3: #{dpcnn4code1_forward.1} parent=1 // loop_header
      %s29 = sphi 0, %s33
      %p30 = scmp.ge.s32.totalorder %s29, 4
      %s39 = sphi 0, %s41
      %s42 = sphi 0, %s39
      %s43 = sphi 0, %s42
      %s59 = sphi 0, %s43
      %s63 = sphi 0, %s63
      %s65 = sphi 0, %s63
      %s66 = sphi 0, %s65
      %s80 = sphi 0, %s66
      %s84 = sphi 0, %s84
      %s86 = sphi 0, %s84
      %s87 = sphi 0, %s86
      %s101 = sphi 0, %s87
      %s105 = sphi 0, %s105
      %s107 = sphi 0, %s105
      %s108 = sphi 0, %s107
      %s122 = sphi 0, %s108
      %s126 = sphi 0, %s126
      %s128 = sphi 0, %s126
      %s129 = sphi 0, %s128
      %s143 = sphi 0, %s129
      %s147 = sphi 0, %s147
      %s149 = sphi 0, %s147
      %s150 = sphi 0, %s149
      %s164 = sphi 0, %s150
      %s168 = sphi 0, %s168
      %s170 = sphi 0, %s168
      %s171 = sphi 0, %s170
      %s185 = sphi 0, %s171
      %s189 = sphi 0, %s189
      %s191 = sphi 0, %s189
      %s192 = sphi 0, %s191
      %s206 = sphi 0, %s192
      %s210 = sphi 0, %s210
      %s212 = sphi 0, %s210
      %s213 = sphi 0, %s212
      %s227 = sphi 0, %s213
      %s231 = sphi 0, %s231
      %s233 = sphi 0, %s231
      %s234 = sphi 0, %s233
      %s248 = sphi 0, %s234
      %s252 = sphi 0, %s252
      %s254 = sphi 0, %s252
      %s255 = sphi 0, %s254
      %s269 = sphi 0, %s255
      %s273 = sphi 0, %s273
      %s275 = sphi 0, %s273
      %s276 = sphi 0, %s275
      %s290 = sphi 0, %s276
      %s294 = sphi 0, %s294
      %s296 = sphi 0, %s294
      %s297 = sphi 0, %s296
      %s311 = sphi 0, %s297
      %s317 = sphi 0, %s319
      %s320 = sphi 0, %s317
      %s321 = sphi 0, %s320
      %s337 = sphi 0, %s321
    $region4: #{dpcnn4code1_forward.1} parent=1 // loop_header_branch
      %32 = sbr.rel (%p30) target = $region8
    $region5: #{dpcnn4code1_forward.1} parent=1 // loop_body
      %s34 = ssub.s32 %s29, 1
      %s35 = ssub.s32 %s29, 2
      %s36 = sadd.s32 %s29, 1
      %s37 = ssub.s32 %s29, %s36
      %p38 = scmp.eq.s32.totalorder %s37, 0
      %s40 = sadd.s32 %s39, 1
      %s41 = scalar_select %p38, %s39, %s40
      %p44 = pneg %p38
      %p45 = scmp.eq.s32.totalorder %s29, 1
      %p46 = por %p44, %p45
      %p47 = scmp.ne.s32.totalorder %s39, %s42
      %p48 = scmp.eq.s32.totalorder %s29, 0
      %p49 = por %p47, %p48
      %p50 = scmp.ne.s32.totalorder %s39, %s42
      %p51 = scmp.eq.s32.totalorder %s34, 1
      %p52 = por %p50, %p51
      %p53 = scmp.ne.s32.totalorder %s42, %s43
      %p54 = scmp.eq.s32.totalorder %s34, 0
      %p55 = por %p53, %p54
      %p56 = scmp.ne.s32.totalorder %s42, %s43
      %p57 = scmp.eq.s32.totalorder %s35, 1
      %p58 = por %p56, %p57
      %p60 = scmp.ne.s32.totalorder %s43, %s59
      %p61 = scmp.eq.s32.totalorder %s35, 0
      %p62 = por %p60, %p61
      %s64 = sadd.s32 %s63, 1
      %p67 = scmp.eq.s32.totalorder %s29, 1
      %p68 = scmp.ne.s32.totalorder %s63, %s65
      %p69 = scmp.eq.s32.totalorder %s29, 0
      %p70 = por %p68, %p69
      %p71 = scmp.ne.s32.totalorder %s63, %s65
      %p72 = scmp.eq.s32.totalorder %s34, 1
      %p73 = por %p71, %p72
      %p74 = scmp.ne.s32.totalorder %s65, %s66
      %p75 = scmp.eq.s32.totalorder %s34, 0
      %p76 = por %p74, %p75
      %p77 = scmp.ne.s32.totalorder %s65, %s66
      %p78 = scmp.eq.s32.totalorder %s35, 1
      %p79 = por %p77, %p78
      %p81 = scmp.ne.s32.totalorder %s66, %s80
      %p82 = scmp.eq.s32.totalorder %s35, 0
      %p83 = por %p81, %p82
      %s85 = sadd.s32 %s84, 1
      %p88 = scmp.eq.s32.totalorder %s29, 1
      %p89 = scmp.ne.s32.totalorder %s84, %s86
      %p90 = scmp.eq.s32.totalorder %s29, 0
      %p91 = por %p89, %p90
      %p92 = scmp.ne.s32.totalorder %s84, %s86
      %p93 = scmp.eq.s32.totalorder %s34, 1
      %p94 = por %p92, %p93
      %p95 = scmp.ne.s32.totalorder %s86, %s87
      %p96 = scmp.eq.s32.totalorder %s34, 0
      %p97 = por %p95, %p96
      %p98 = scmp.ne.s32.totalorder %s86, %s87
      %p99 = scmp.eq.s32.totalorder %s35, 1
      %p100 = por %p98, %p99
      %p102 = scmp.ne.s32.totalorder %s87, %s101
      %p103 = scmp.eq.s32.totalorder %s35, 0
      %p104 = por %p102, %p103
      %s106 = sadd.s32 %s105, 1
      %p109 = scmp.eq.s32.totalorder %s29, 1
      %p110 = scmp.ne.s32.totalorder %s105, %s107
      %p111 = scmp.eq.s32.totalorder %s29, 0
      %p112 = por %p110, %p111
      %p113 = scmp.ne.s32.totalorder %s105, %s107
      %p114 = scmp.eq.s32.totalorder %s34, 1
      %p115 = por %p113, %p114
      %p116 = scmp.ne.s32.totalorder %s107, %s108
      %p117 = scmp.eq.s32.totalorder %s34, 0
      %p118 = por %p116, %p117
      %p119 = scmp.ne.s32.totalorder %s107, %s108
      %p120 = scmp.eq.s32.totalorder %s35, 1
      %p121 = por %p119, %p120
      %p123 = scmp.ne.s32.totalorder %s108, %s122
      %p124 = scmp.eq.s32.totalorder %s35, 0
      %p125 = por %p123, %p124
      %s127 = sadd.s32 %s126, 1
      %p130 = scmp.eq.s32.totalorder %s29, 1
      %p131 = scmp.ne.s32.totalorder %s126, %s128
      %p132 = scmp.eq.s32.totalorder %s29, 0
      %p133 = por %p131, %p132
      %p134 = scmp.ne.s32.totalorder %s126, %s128
      %p135 = scmp.eq.s32.totalorder %s34, 1
      %p136 = por %p134, %p135
      %p137 = scmp.ne.s32.totalorder %s128, %s129
      %p138 = scmp.eq.s32.totalorder %s34, 0
      %p139 = por %p137, %p138
      %p140 = scmp.ne.s32.totalorder %s128, %s129
      %p141 = scmp.eq.s32.totalorder %s35, 1
      %p142 = por %p140, %p141
      %p144 = scmp.ne.s32.totalorder %s129, %s143
      %p145 = scmp.eq.s32.totalorder %s35, 0
      %p146 = por %p144, %p145
      %s148 = sadd.s32 %s147, 1
      %p151 = scmp.eq.s32.totalorder %s29, 1
      %p152 = scmp.ne.s32.totalorder %s147, %s149
      %p153 = scmp.eq.s32.totalorder %s29, 0
      %p154 = por %p152, %p153
      %p155 = scmp.ne.s32.totalorder %s147, %s149
      %p156 = scmp.eq.s32.totalorder %s34, 1
      %p157 = por %p155, %p156
      %p158 = scmp.ne.s32.totalorder %s149, %s150
      %p159 = scmp.eq.s32.totalorder %s34, 0
      %p160 = por %p158, %p159
      %p161 = scmp.ne.s32.totalorder %s149, %s150
      %p162 = scmp.eq.s32.totalorder %s35, 1
      %p163 = por %p161, %p162
      %p165 = scmp.ne.s32.totalorder %s150, %s164
      %p166 = scmp.eq.s32.totalorder %s35, 0
      %p167 = por %p165, %p166
      %s169 = sadd.s32 %s168, 1
      %p172 = scmp.eq.s32.totalorder %s29, 1
      %p173 = scmp.ne.s32.totalorder %s168, %s170
      %p174 = scmp.eq.s32.totalorder %s29, 0
      %p175 = por %p173, %p174
      %p176 = scmp.ne.s32.totalorder %s168, %s170
      %p177 = scmp.eq.s32.totalorder %s34, 1
      %p178 = por %p176, %p177
      %p179 = scmp.ne.s32.totalorder %s170, %s171
      %p180 = scmp.eq.s32.totalorder %s34, 0
      %p181 = por %p179, %p180
      %p182 = scmp.ne.s32.totalorder %s170, %s171
      %p183 = scmp.eq.s32.totalorder %s35, 1
      %p184 = por %p182, %p183
      %p186 = scmp.ne.s32.totalorder %s171, %s185
      %p187 = scmp.eq.s32.totalorder %s35, 0
      %p188 = por %p186, %p187
      %s190 = sadd.s32 %s189, 1
      %p193 = scmp.eq.s32.totalorder %s29, 1
      %p194 = scmp.ne.s32.totalorder %s189, %s191
      %p195 = scmp.eq.s32.totalorder %s29, 0
      %p196 = por %p194, %p195
      %p197 = scmp.ne.s32.totalorder %s189, %s191
      %p198 = scmp.eq.s32.totalorder %s34, 1
      %p199 = por %p197, %p198
      %p200 = scmp.ne.s32.totalorder %s191, %s192
      %p201 = scmp.eq.s32.totalorder %s34, 0
      %p202 = por %p200, %p201
      %p203 = scmp.ne.s32.totalorder %s191, %s192
      %p204 = scmp.eq.s32.totalorder %s35, 1
      %p205 = por %p203, %p204
      %p207 = scmp.ne.s32.totalorder %s192, %s206
      %p208 = scmp.eq.s32.totalorder %s35, 0
      %p209 = por %p207, %p208
      %s211 = sadd.s32 %s210, 1
      %p214 = scmp.eq.s32.totalorder %s29, 1
      %p215 = scmp.ne.s32.totalorder %s210, %s212
      %p216 = scmp.eq.s32.totalorder %s29, 0
      %p217 = por %p215, %p216
      %p218 = scmp.ne.s32.totalorder %s210, %s212
      %p219 = scmp.eq.s32.totalorder %s34, 1
      %p220 = por %p218, %p219
      %p221 = scmp.ne.s32.totalorder %s212, %s213
      %p222 = scmp.eq.s32.totalorder %s34, 0
      %p223 = por %p221, %p222
      %p224 = scmp.ne.s32.totalorder %s212, %s213
      %p225 = scmp.eq.s32.totalorder %s35, 1
      %p226 = por %p224, %p225
      %p228 = scmp.ne.s32.totalorder %s213, %s227
      %p229 = scmp.eq.s32.totalorder %s35, 0
      %p230 = por %p228, %p229
      %s232 = sadd.s32 %s231, 1
      %p235 = scmp.eq.s32.totalorder %s29, 1
      %p236 = scmp.ne.s32.totalorder %s231, %s233
      %p237 = scmp.eq.s32.totalorder %s29, 0
      %p238 = por %p236, %p237
      %p239 = scmp.ne.s32.totalorder %s231, %s233
      %p240 = scmp.eq.s32.totalorder %s34, 1
      %p241 = por %p239, %p240
      %p242 = scmp.ne.s32.totalorder %s233, %s234
      %p243 = scmp.eq.s32.totalorder %s34, 0
      %p244 = por %p242, %p243
      %p245 = scmp.ne.s32.totalorder %s233, %s234
      %p246 = scmp.eq.s32.totalorder %s35, 1
      %p247 = por %p245, %p246
      %p249 = scmp.ne.s32.totalorder %s234, %s248
      %p250 = scmp.eq.s32.totalorder %s35, 0
      %p251 = por %p249, %p250
      %s253 = sadd.s32 %s252, 1
      %p256 = scmp.eq.s32.totalorder %s29, 1
      %p257 = scmp.ne.s32.totalorder %s252, %s254
      %p258 = scmp.eq.s32.totalorder %s29, 0
      %p259 = por %p257, %p258
      %p260 = scmp.ne.s32.totalorder %s252, %s254
      %p261 = scmp.eq.s32.totalorder %s34, 1
      %p262 = por %p260, %p261
      %p263 = scmp.ne.s32.totalorder %s254, %s255
      %p264 = scmp.eq.s32.totalorder %s34, 0
      %p265 = por %p263, %p264
      %p266 = scmp.ne.s32.totalorder %s254, %s255
      %p267 = scmp.eq.s32.totalorder %s35, 1
      %p268 = por %p266, %p267
      %p270 = scmp.ne.s32.totalorder %s255, %s269
      %p271 = scmp.eq.s32.totalorder %s35, 0
      %p272 = por %p270, %p271
      %s274 = sadd.s32 %s273, 1
      %p277 = scmp.eq.s32.totalorder %s29, 1
      %p278 = scmp.ne.s32.totalorder %s273, %s275
      %p279 = scmp.eq.s32.totalorder %s29, 0
      %p280 = por %p278, %p279
      %p281 = scmp.ne.s32.totalorder %s273, %s275
      %p282 = scmp.eq.s32.totalorder %s34, 1
      %p283 = por %p281, %p282
      %p284 = scmp.ne.s32.totalorder %s275, %s276
      %p285 = scmp.eq.s32.totalorder %s34, 0
      %p286 = por %p284, %p285
      %p287 = scmp.ne.s32.totalorder %s275, %s276
      %p288 = scmp.eq.s32.totalorder %s35, 1
      %p289 = por %p287, %p288
      %p291 = scmp.ne.s32.totalorder %s276, %s290
      %p292 = scmp.eq.s32.totalorder %s35, 0
      %p293 = por %p291, %p292
      %s295 = sadd.s32 %s294, 1
      %p298 = scmp.eq.s32.totalorder %s29, 1
      %p299 = scmp.ne.s32.totalorder %s294, %s296
      %p300 = scmp.eq.s32.totalorder %s29, 0
      %p301 = por %p299, %p300
      %p302 = scmp.ne.s32.totalorder %s294, %s296
      %p303 = scmp.eq.s32.totalorder %s34, 1
      %p304 = por %p302, %p303
      %p305 = scmp.ne.s32.totalorder %s296, %s297
      %p306 = scmp.eq.s32.totalorder %s34, 0
      %p307 = por %p305, %p306
      %p308 = scmp.ne.s32.totalorder %s296, %s297
      %p309 = scmp.eq.s32.totalorder %s35, 1
      %p310 = por %p308, %p309
      %p312 = scmp.ne.s32.totalorder %s297, %s311
      %p313 = scmp.eq.s32.totalorder %s35, 0
      %p314 = por %p312, %p313
      %s315 = ssub.s32 %s29, %s36
      %p316 = scmp.eq.s32.totalorder %s315, 0
      %s318 = sadd.s32 %s317, 1
      %s319 = scalar_select %p316, %s317, %s318
      %p322 = pneg %p316
      %p323 = scmp.eq.s32.totalorder %s29, 1
      %p324 = por %p322, %p323
      %p325 = scmp.ne.s32.totalorder %s317, %s320
      %p326 = scmp.eq.s32.totalorder %s29, 0
      %p327 = por %p325, %p326
      %p328 = scmp.ne.s32.totalorder %s317, %s320
      %p329 = scmp.eq.s32.totalorder %s34, 1
      %p330 = por %p328, %p329
      %p331 = scmp.ne.s32.totalorder %s320, %s321
      %p332 = scmp.eq.s32.totalorder %s34, 0
      %p333 = por %p331, %p332
      %p334 = scmp.ne.s32.totalorder %s320, %s321
      %p335 = scmp.eq.s32.totalorder %s35, 1
      %p336 = por %p334, %p335
      %p338 = scmp.ne.s32.totalorder %s321, %s337
      %p339 = scmp.eq.s32.totalorder %s35, 0
      %p340 = por %p338, %p339
      %p341 = scmp.le.s32.totalorder 1, %s29
      %p342 = scmp.lt.s32.totalorder %s29, 3
      %p343 = pnand %p341, %p342
      %p344 = pneg %p343
      // Predicated region
      $region9: #{dpcnn4code1_forward.1} parent=5 // pred_check
        _
      $region10: #{dpcnn4code1_forward.1} parent=5 // pred_check_branch
        %346 = sbr.rel (%p343) target = $region12
      $region11: #{dpcnn4code1_forward.1} parent=5 // pred_region
        %s347 = ssub.s32 %s29, 1
        // Predicated region
        $region13: #{dpcnn4code1_forward.1} parent=11 // pred_check
          %p348 = pneg %p76
        $region14: #{dpcnn4code1_forward.1} parent=11 // pred_check_branch
          %350 = sbr.rel (%p348) target = $region16
        $region15: #{dpcnn4code1_forward.1} parent=11 // pred_region
          %352 = vsyncadd [#allocation3], 0
          %s353 = sshll.u32 %s1, 4
          %s354 = int_to_ptr.hbm [resolvable:$true] %s353
          %s355 = sshll.u32 [#allocation2], 4
          %s356 = int_to_ptr.vmem [resolvable:$true] %s355
          %361 = dma.hbm_to_vmem [thread:$0]  %s354, 1024, %s356, [#allocation3], 64, 64, 4
        $region16: #{dpcnn4code1_forward.1} parent=11 // pred_fallthru
          _
        // Predicated region
        $region17: #{dpcnn4code1_forward.1} parent=11 // pred_check
          %p362 = pneg %p97
        $region18: #{dpcnn4code1_forward.1} parent=11 // pred_check_branch
          %364 = sbr.rel (%p362) target = $region20
        $region19: #{dpcnn4code1_forward.1} parent=11 // pred_region
          %366 = vsyncadd [#allocation6], 0
          %s368 = sshll.u32 %s2, 4
          %s369 = int_to_ptr.hbm [resolvable:$true] %s368
          %s370 = sshll.u32 [#allocation5], 4
          %s371 = int_to_ptr.vmem [resolvable:$true] %s370
          %373 = dma.hbm_to_vmem [thread:$0]  %s369, 16, %s371, [#allocation6]
        $region20: #{dpcnn4code1_forward.1} parent=11 // pred_fallthru
          _
        // Predicated region
        $region21: #{dpcnn4code1_forward.1} parent=11 // pred_check
          %p374 = pneg %p118
        $region22: #{dpcnn4code1_forward.1} parent=11 // pred_check_branch
          %376 = sbr.rel (%p374) target = $region24
        $region23: #{dpcnn4code1_forward.1} parent=11 // pred_region
          %378 = vsyncadd [#allocation6], 0
          %s379 = sshll.u32 %s3, 4
          %s380 = int_to_ptr.hbm [resolvable:$true] %s379
          %s381 = sshll.u32 [#allocation7], 4
          %s382 = int_to_ptr.vmem [resolvable:$true] %s381
          %387 = dma.hbm_to_vmem [thread:$0]  %s380, 20480, %s382, [#allocation6], 64, 64, 4
        $region24: #{dpcnn4code1_forward.1} parent=11 // pred_fallthru
          _
        // Predicated region
        $region25: #{dpcnn4code1_forward.1} parent=11 // pred_check
          %p388 = pneg %p139
        $region26: #{dpcnn4code1_forward.1} parent=11 // pred_check_branch
          %390 = sbr.rel (%p388) target = $region28
        $region27: #{dpcnn4code1_forward.1} parent=11 // pred_region
          %392 = vsyncadd [#allocation9], 0
          %s393 = sshll.u32 %s4, 4
          %s394 = int_to_ptr.hbm [resolvable:$true] %s393
          %s395 = sshll.u32 [#allocation8], 4
          %s396 = int_to_ptr.vmem [resolvable:$true] %s395
          %401 = dma.hbm_to_vmem [thread:$0]  %s394, 64, %s396, [#allocation9], 16, 16, 1
        $region28: #{dpcnn4code1_forward.1} parent=11 // pred_fallthru
          _
        // Predicated region
        $region29: #{dpcnn4code1_forward.1} parent=11 // pred_check
          %p402 = pneg %p160
        $region30: #{dpcnn4code1_forward.1} parent=11 // pred_check_branch
          %404 = sbr.rel (%p402) target = $region32
        $region31: #{dpcnn4code1_forward.1} parent=11 // pred_region
          %406 = vsyncadd [#allocation9], 0
          %s407 = sshll.u32 %s5, 4
          %s408 = int_to_ptr.hbm [resolvable:$true] %s407
          %s409 = sshll.u32 [#allocation10], 4
          %s410 = int_to_ptr.vmem [resolvable:$true] %s409
          %415 = dma.hbm_to_vmem [thread:$0]  %s408, 20480, %s410, [#allocation9], 64, 64, 4
        $region32: #{dpcnn4code1_forward.1} parent=11 // pred_fallthru
          _
        // Predicated region
        $region33: #{dpcnn4code1_forward.1} parent=11 // pred_check
          %p416 = pneg %p181
        $region34: #{dpcnn4code1_forward.1} parent=11 // pred_check_branch
          %418 = sbr.rel (%p416) target = $region36
        $region35: #{dpcnn4code1_forward.1} parent=11 // pred_region
          %420 = vsyncadd [#allocation12], 0
          %s421 = sshll.u32 %s6, 4
          %s422 = int_to_ptr.hbm [resolvable:$true] %s421
          %s423 = sshll.u32 [#allocation11], 4
          %s424 = int_to_ptr.vmem [resolvable:$true] %s423
          %429 = dma.hbm_to_vmem [thread:$0]  %s422, 64, %s424, [#allocation12], 16, 16, 1
        $region36: #{dpcnn4code1_forward.1} parent=11 // pred_fallthru
          _
        // Predicated region
        $region37: #{dpcnn4code1_forward.1} parent=11 // pred_check
          %p430 = pneg %p202
        $region38: #{dpcnn4code1_forward.1} parent=11 // pred_check_branch
          %432 = sbr.rel (%p430) target = $region40
        $region39: #{dpcnn4code1_forward.1} parent=11 // pred_region
          %434 = vsyncadd [#allocation12], 0
          %s435 = sshll.u32 %s7, 4
          %s436 = int_to_ptr.hbm [resolvable:$true] %s435
          %s437 = sshll.u32 [#allocation13], 4
          %s438 = int_to_ptr.vmem [resolvable:$true] %s437
          %443 = dma.hbm_to_vmem [thread:$0]  %s436, 8192, %s438, [#allocation12], 512, 512, 32
        $region40: #{dpcnn4code1_forward.1} parent=11 // pred_fallthru
          _
        // Predicated region
        $region41: #{dpcnn4code1_forward.1} parent=11 // pred_check
          %p444 = pneg %p223
        $region42: #{dpcnn4code1_forward.1} parent=11 // pred_check_branch
          %446 = sbr.rel (%p444) target = $region44
        $region43: #{dpcnn4code1_forward.1} parent=11 // pred_region
          %448 = vsyncadd [#allocation15], 0
          %s450 = sshll.u32 %s8, 4
          %s451 = int_to_ptr.hbm [resolvable:$true] %s450
          %s452 = sshll.u32 [#allocation14], 4
          %s453 = int_to_ptr.vmem [resolvable:$true] %s452
          %455 = dma.hbm_to_vmem [thread:$0]  %s451, 128, %s453, [#allocation15]
        $region44: #{dpcnn4code1_forward.1} parent=11 // pred_fallthru
          _
        // Predicated region
        $region45: #{dpcnn4code1_forward.1} parent=11 // pred_check
          %p456 = pneg %p244
        $region46: #{dpcnn4code1_forward.1} parent=11 // pred_check_branch
          %458 = sbr.rel (%p456) target = $region48
        $region47: #{dpcnn4code1_forward.1} parent=11 // pred_region
          %460 = vsyncadd [#allocation15], 0
          %s461 = sshll.u32 %s9, 4
          %s462 = int_to_ptr.hbm [resolvable:$true] %s461
          %s463 = sshll.u32 [#allocation16], 4
          %s464 = int_to_ptr.vmem [resolvable:$true] %s463
          %469 = dma.hbm_to_vmem [thread:$0]  %s462, 65536, %s464, [#allocation15], 512, 512, 32
        $region48: #{dpcnn4code1_forward.1} parent=11 // pred_fallthru
          _
        // Predicated region
        $region49: #{dpcnn4code1_forward.1} parent=11 // pred_check
          %p470 = pneg %p265
        $region50: #{dpcnn4code1_forward.1} parent=11 // pred_check_branch
          %472 = sbr.rel (%p470) target = $region52
        $region51: #{dpcnn4code1_forward.1} parent=11 // pred_region
          %474 = vsyncadd [#allocation18], 0
          %s476 = sshll.u32 %s10, 4
          %s477 = int_to_ptr.hbm [resolvable:$true] %s476
          %s478 = sshll.u32 [#allocation17], 4
          %s479 = int_to_ptr.vmem [resolvable:$true] %s478
          %481 = dma.hbm_to_vmem [thread:$0]  %s477, 128, %s479, [#allocation18]
        $region52: #{dpcnn4code1_forward.1} parent=11 // pred_fallthru
          _
        // Predicated region
        $region53: #{dpcnn4code1_forward.1} parent=11 // pred_check
          %p482 = pneg %p286
        $region54: #{dpcnn4code1_forward.1} parent=11 // pred_check_branch
          %484 = sbr.rel (%p482) target = $region56
        $region55: #{dpcnn4code1_forward.1} parent=11 // pred_region
          %486 = vsyncadd [#allocation18], 0
          %s487 = sshll.u32 %s11, 4
          %s488 = int_to_ptr.hbm [resolvable:$true] %s487
          %s489 = sshll.u32 [#allocation19], 4
          %s490 = int_to_ptr.vmem [resolvable:$true] %s489
          %495 = dma.hbm_to_vmem [thread:$0]  %s488, 16384, %s490, [#allocation18], 128, 128, 8
        $region56: #{dpcnn4code1_forward.1} parent=11 // pred_fallthru
          _
        // Predicated region
        $region57: #{dpcnn4code1_forward.1} parent=11 // pred_check
          %p496 = pneg %p307
        $region58: #{dpcnn4code1_forward.1} parent=11 // pred_check_branch
          %498 = sbr.rel (%p496) target = $region60
        $region59: #{dpcnn4code1_forward.1} parent=11 // pred_region
          %500 = vsyncadd [#allocation21], 0
          %s502 = sshll.u32 %s12, 4
          %s503 = int_to_ptr.hbm [resolvable:$true] %s502
          %s504 = sshll.u32 [#allocation20], 4
          %s505 = int_to_ptr.vmem [resolvable:$true] %s504
          %507 = dma.hbm_to_vmem [thread:$0]  %s503, 32, %s505, [#allocation21]
        $region60: #{dpcnn4code1_forward.1} parent=11 // pred_fallthru
          _
      $region12: #{dpcnn4code1_forward.1} parent=5 // pred_fallthru
        _
      %p508 = scmp.lt.s32.totalorder %s29, 2
      // Predicated region
      $region61: #{dpcnn4code1_forward.1} parent=5 // pred_check
        %p509 = pneg %p508
      $region62: #{dpcnn4code1_forward.1} parent=5 // pred_check_branch
        %511 = sbr.rel (%p509) target = $region64
      $region63: #{dpcnn4code1_forward.1} parent=5 // pred_region
        // Predicated region
        $region65: #{dpcnn4code1_forward.1} parent=63 // pred_check
          %p512 = pneg %p49
        $region66: #{dpcnn4code1_forward.1} parent=63 // pred_check_branch
          %514 = sbr.rel (%p512) target = $region68
        $region67: #{dpcnn4code1_forward.1} parent=63 // pred_region
          %s515 = smul.u32 8, %s29
          %p516 = scmp.lt.s32.totalorder %s515, 15
          %s517 = scalar_select %p516, %s515, 15
          %s518 = smul.addr %s517, 4
          %s519 = scalar_lea.vmem %s0, %s518
          %s520 = smul.u32 8, %s29
        $region68: #{dpcnn4code1_forward.1} parent=63 // pred_fallthru
          _
      $region64: #{dpcnn4code1_forward.1} parent=5 // pred_fallthru
        _
      %p521 = scmp.le.s32.totalorder 1, %s29
      %p522 = scmp.lt.s32.totalorder %s29, 3
      %p523 = pnand %p521, %p522
      %p524 = pneg %p523
      // Predicated region
      $region69: #{dpcnn4code1_forward.1} parent=5 // pred_check
        _
      $region70: #{dpcnn4code1_forward.1} parent=5 // pred_check_branch
        %526 = sbr.rel (%p523) target = $region72
      $region71: #{dpcnn4code1_forward.1} parent=5 // pred_region
        %s527 = ssub.s32 %s29, 1
        // Predicated region
        $region73: #{dpcnn4code1_forward.1} parent=71 // pred_check
          %p528 = pneg %p76
        $region74: #{dpcnn4code1_forward.1} parent=71 // pred_check_branch
          %530 = sbr.rel (%p528) target = $region76
        $region75: #{dpcnn4code1_forward.1} parent=71 // pred_region
          %532 = dma.done [#allocation3], 1024
        $region76: #{dpcnn4code1_forward.1} parent=71 // pred_fallthru
          _
        // Predicated region
        $region77: #{dpcnn4code1_forward.1} parent=71 // pred_check
          %p533 = pneg %p97
        $region78: #{dpcnn4code1_forward.1} parent=71 // pred_check_branch
          %535 = sbr.rel (%p533) target = $region80
        $region79: #{dpcnn4code1_forward.1} parent=71 // pred_region
          %537 = dma.done [#allocation6], 16
        $region80: #{dpcnn4code1_forward.1} parent=71 // pred_fallthru
          _
        // Predicated region
        $region81: #{dpcnn4code1_forward.1} parent=71 // pred_check
          %p538 = pneg %p118
        $region82: #{dpcnn4code1_forward.1} parent=71 // pred_check_branch
          %540 = sbr.rel (%p538) target = $region84
        $region83: #{dpcnn4code1_forward.1} parent=71 // pred_region
          %542 = dma.done [#allocation6], 20480
        $region84: #{dpcnn4code1_forward.1} parent=71 // pred_fallthru
          _
        // Predicated region
        $region85: #{dpcnn4code1_forward.1} parent=71 // pred_check
          %p543 = pneg %p139
        $region86: #{dpcnn4code1_forward.1} parent=71 // pred_check_branch
          %545 = sbr.rel (%p543) target = $region88
        $region87: #{dpcnn4code1_forward.1} parent=71 // pred_region
          %547 = dma.done [#allocation9], 64
        $region88: #{dpcnn4code1_forward.1} parent=71 // pred_fallthru
          _
        // Predicated region
        $region89: #{dpcnn4code1_forward.1} parent=71 // pred_check
          %p548 = pneg %p160
        $region90: #{dpcnn4code1_forward.1} parent=71 // pred_check_branch
          %550 = sbr.rel (%p548) target = $region92
        $region91: #{dpcnn4code1_forward.1} parent=71 // pred_region
          %552 = dma.done [#allocation9], 20480
        $region92: #{dpcnn4code1_forward.1} parent=71 // pred_fallthru
          _
        // Predicated region
        $region93: #{dpcnn4code1_forward.1} parent=71 // pred_check
          %p553 = pneg %p181
        $region94: #{dpcnn4code1_forward.1} parent=71 // pred_check_branch
          %555 = sbr.rel (%p553) target = $region96
        $region95: #{dpcnn4code1_forward.1} parent=71 // pred_region
          %557 = dma.done [#allocation12], 64
        $region96: #{dpcnn4code1_forward.1} parent=71 // pred_fallthru
          _
        // Predicated region
        $region97: #{dpcnn4code1_forward.1} parent=71 // pred_check
          %p558 = pneg %p202
        $region98: #{dpcnn4code1_forward.1} parent=71 // pred_check_branch
          %560 = sbr.rel (%p558) target = $region100
        $region99: #{dpcnn4code1_forward.1} parent=71 // pred_region
          %562 = dma.done [#allocation12], 8192
        $region100: #{dpcnn4code1_forward.1} parent=71 // pred_fallthru
          _
        // Predicated region
        $region101: #{dpcnn4code1_forward.1} parent=71 // pred_check
          %p563 = pneg %p223
        $region102: #{dpcnn4code1_forward.1} parent=71 // pred_check_branch
          %565 = sbr.rel (%p563) target = $region104
        $region103: #{dpcnn4code1_forward.1} parent=71 // pred_region
          %567 = dma.done [#allocation15], 128
        $region104: #{dpcnn4code1_forward.1} parent=71 // pred_fallthru
          _
        // Predicated region
        $region105: #{dpcnn4code1_forward.1} parent=71 // pred_check
          %p568 = pneg %p244
        $region106: #{dpcnn4code1_forward.1} parent=71 // pred_check_branch
          %570 = sbr.rel (%p568) target = $region108
        $region107: #{dpcnn4code1_forward.1} parent=71 // pred_region
          %572 = dma.done [#allocation15], 65536
        $region108: #{dpcnn4code1_forward.1} parent=71 // pred_fallthru
          _
        // Predicated region
        $region109: #{dpcnn4code1_forward.1} parent=71 // pred_check
          %p573 = pneg %p265
        $region110: #{dpcnn4code1_forward.1} parent=71 // pred_check_branch
          %575 = sbr.rel (%p573) target = $region112
        $region111: #{dpcnn4code1_forward.1} parent=71 // pred_region
          %577 = dma.done [#allocation18], 128
        $region112: #{dpcnn4code1_forward.1} parent=71 // pred_fallthru
          _
        // Predicated region
        $region113: #{dpcnn4code1_forward.1} parent=71 // pred_check
          %p578 = pneg %p286
        $region114: #{dpcnn4code1_forward.1} parent=71 // pred_check_branch
          %580 = sbr.rel (%p578) target = $region116
        $region115: #{dpcnn4code1_forward.1} parent=71 // pred_region
          %582 = dma.done [#allocation18], 16384
        $region116: #{dpcnn4code1_forward.1} parent=71 // pred_fallthru
          _
        // Predicated region
        $region117: #{dpcnn4code1_forward.1} parent=71 // pred_check
          %p583 = pneg %p307
        $region118: #{dpcnn4code1_forward.1} parent=71 // pred_check_branch
          %585 = sbr.rel (%p583) target = $region120
        $region119: #{dpcnn4code1_forward.1} parent=71 // pred_region
          %587 = dma.done [#allocation21], 32
        $region120: #{dpcnn4code1_forward.1} parent=71 // pred_fallthru
          _
        %s588 = smul.u32 8, %s34
        %p589 = scmp.lt.s32.totalorder %s588, 15
        %s590 = scalar_select %p589, %s588, 15
        %s591 = smul.addr %s590, 4
        %s592 = scalar_lea.vmem %s0, %s591
        %p593 = pneg %p55
        %p594 = pneg %p52
        %p595 = pneg %p76
        %p596 = pneg %p73
        %p597 = pneg %p97
        %p598 = pneg %p94
        %p599 = pneg %p118
        %p600 = pneg %p115
        %p601 = pneg %p139
        %p602 = pneg %p136
        %p603 = pneg %p160
        %p604 = pneg %p157
        %p605 = pneg %p181
        %p606 = pneg %p178
        %p607 = pneg %p202
        %p608 = pneg %p199
        %p609 = pneg %p223
        %p610 = pneg %p220
        %p611 = pneg %p244
        %p612 = pneg %p241
        %p613 = pneg %p265
        %p614 = pneg %p262
        %p615 = pneg %p286
        %p616 = pneg %p283
        %p617 = pneg %p307
        %p618 = pneg %p304
        %p619 = pneg %p333
        %p620 = pneg %p330
        %s621 = sand.u32 %s320, 1
        %s622 = scalar_lea.sflag [#allocation4], %s621
        %s623 = sand.u32 %s320, 1
        %s624 = smul.addr %s623, 16
        %s625 = scalar_lea.vmem [#allocation22], %s624
        %s626 = smul.u32 8, %s34
        %p627 = scmp.lt.s32.totalorder %s626, 15
        %s628 = scalar_select %p627, %s626, 15
        %s629 = smul.addr %s628, 4
        %s630 = scalar_lea.vmem %s0, %s629
        %s631 = smul.u32 8, %s34
        %v633 = vld [vmem:[%s630] sm:$0xf]
        %v634 = vld [vmem:[%s630 + $0x4] sm:$0xf]
        %v635 = vld [vmem:[%s630 + $0x8] sm:$0xf]
        %v636 = vld [vmem:[%s630 + $0xc] sm:$0xf]
        %v637 = vld [vmem:[%s630 + $0x10] sm:$0xf]
        %v638 = vld [vmem:[%s630 + $0x14] sm:$0xf]
        %v639 = vld [vmem:[%s630 + $0x18] sm:$0xf]
        %v640 = vld [vmem:[%s630 + $0x1c] sm:$0xf]
        %v641 = vld [vmem:[#allocation2] sm:$0xf]
        %v642 = vld [vmem:[#allocation2 + $0x4] sm:$0xf]
        %v643 = vld [vmem:[#allocation2 + $0x8] sm:$0xf]
        %v644 = vld [vmem:[#allocation2 + $0xc] sm:$0xf]
        %v645 = vld [vmem:[#allocation2 + $0x10] sm:$0xf]
        %v646 = vld [vmem:[#allocation2 + $0x14] sm:$0xf]
        %v647 = vld [vmem:[#allocation2 + $0x18] sm:$0xf]
        %v648 = vld [vmem:[#allocation2 + $0x1c] sm:$0xf]
        %v649 = vld [vmem:[#allocation2 + $0x20] sm:$0xf]
        %v650 = vld [vmem:[#allocation2 + $0x24] sm:$0xf]
        %v651 = vld [vmem:[#allocation2 + $0x28] sm:$0xf]
        %v652 = vld [vmem:[#allocation2 + $0x2c] sm:$0xf]
        %v653 = vld [vmem:[#allocation2 + $0x30] sm:$0xf]
        %v654 = vld [vmem:[#allocation2 + $0x34] sm:$0xf]
        %v655 = vld [vmem:[#allocation2 + $0x38] sm:$0xf]
        %v656 = vld [vmem:[#allocation2 + $0x3c] sm:$0xf]
        %v657 = vld [vmem:[#allocation5] sm:$0x1]
        %v659 = vperm.slane %v657, 0
        %v669 = vunpack.c.l.b16 %v633
        %v670 = vunpack.c.l.b16 %v634
        %v671 = vunpack.c.l.b16 %v635
        %v672 = vunpack.c.l.b16 %v636
        %v673 = vunpack.c.l.b16 %v637
        %v674 = vunpack.c.l.b16 %v638
        %v675 = vunpack.c.l.b16 %v639
        %v676 = vunpack.c.l.b16 %v640
        %v677 = vpack.c.b16 %v670, %v669
        %v678 = vpack.c.b16 %v672, %v671
        %v679 = vpack.c.b16 %v674, %v673
        %v680 = vpack.c.b16 %v676, %v675
        %v701 = vunpack.c.l.b16 %v641
        %v702 = vunpack.c.l.b16 %v642
        %v703 = vunpack.c.l.b16 %v643
        %v704 = vunpack.c.l.b16 %v644
        %v705 = vunpack.c.l.b16 %v645
        %v706 = vunpack.c.l.b16 %v646
        %v707 = vunpack.c.l.b16 %v647
        %v708 = vunpack.c.l.b16 %v648
        %v709 = vunpack.c.l.b16 %v649
        %v710 = vunpack.c.l.b16 %v650
        %v711 = vunpack.c.l.b16 %v651
        %v712 = vunpack.c.l.b16 %v652
        %v713 = vunpack.c.l.b16 %v653
        %v714 = vunpack.c.l.b16 %v654
        %v715 = vunpack.c.l.b16 %v655
        %v716 = vunpack.c.l.b16 %v656
        %v717 = vpack.c.b16 %v702, %v701
        %v718 = vpack.c.b16 %v704, %v703
        %v719 = vpack.c.b16 %v706, %v705
        %v720 = vpack.c.b16 %v708, %v707
        %v721 = vpack.c.b16 %v710, %v709
        %v722 = vpack.c.b16 %v712, %v711
        %v723 = vpack.c.b16 %v714, %v713
        %v724 = vpack.c.b16 %v716, %v715
        %733 = vmatpush.bf16.msra.mxu0 %v724
        %734 = vmatpush.bf16.msra.mxu0 %v723
        %735 = vmatpush.bf16.msra.mxu0 %v722
        %736 = vmatpush.bf16.msra.mxu0 %v721
        %737 = vmatpush.bf16.msra.mxu0 %v720
        %738 = vmatpush.bf16.msra.mxu0 %v719
        %739 = vmatpush.bf16.msra.mxu0 %v718
        %740 = vmatpush.bf16.msra.mxu0 %v717
        %741 = vmatmul.bf16.gmra.mxu0 %v677
        %v742 = vpop.f32.mrf.mxu0
        %v743 = vadd.f32 %v659, %v742
        %v744 = vpop.f32.mrf.mxu0
        %v745 = vadd.f32 %v659, %v744
        %746 = vmatmul.bf16.gmra.mxu0 %v678
        %v747 = vpop.f32.mrf.mxu0
        %v748 = vadd.f32 %v659, %v747
        %v749 = vpop.f32.mrf.mxu0
        %v750 = vadd.f32 %v659, %v749
        %751 = vmatmul.bf16.gmra.mxu0 %v679
        %v752 = vpop.f32.mrf.mxu0
        %v753 = vadd.f32 %v659, %v752
        %v754 = vpop.f32.mrf.mxu0
        %v755 = vadd.f32 %v659, %v754
        %756 = vmatmul.bf16.gmra.mxu0 %v680
        %v757 = vpop.f32.mrf.mxu0
        %v758 = vadd.f32 %v659, %v757
        %v759 = vpop.f32.mrf.mxu0
        %v760 = vadd.f32 %v659, %v759
        %761 = vdwg.mxu0
        %v762 = vld [vmem:[#allocation7] sm:$0xf]
        %v763 = vld [vmem:[#allocation7 + $0x4] sm:$0xf]
        %v764 = vld [vmem:[#allocation7 + $0x8] sm:$0xf]
        %v765 = vld [vmem:[#allocation7 + $0xc] sm:$0xf]
        %v766 = vld [vmem:[#allocation7 + $0x10] sm:$0xf]
        %v767 = vld [vmem:[#allocation7 + $0x14] sm:$0xf]
        %v768 = vld [vmem:[#allocation7 + $0x18] sm:$0xf]
        %v769 = vld [vmem:[#allocation7 + $0x1c] sm:$0xf]
        %v770 = vld [vmem:[#allocation7 + $0x20] sm:$0xf]
        %v771 = vld [vmem:[#allocation7 + $0x24] sm:$0xf]
        %v772 = vld [vmem:[#allocation7 + $0x28] sm:$0xf]
        %v773 = vld [vmem:[#allocation7 + $0x2c] sm:$0xf]
        %v774 = vld [vmem:[#allocation7 + $0x30] sm:$0xf]
        %v775 = vld [vmem:[#allocation7 + $0x34] sm:$0xf]
        %v776 = vld [vmem:[#allocation7 + $0x38] sm:$0xf]
        %v777 = vld [vmem:[#allocation7 + $0x3c] sm:$0xf]
        %v778 = vld [vmem:[#allocation7 + $0x40] sm:$0xf]
        %v779 = vld [vmem:[#allocation7 + $0x44] sm:$0xf]
        %v780 = vld [vmem:[#allocation7 + $0x48] sm:$0xf]
        %v781 = vld [vmem:[#allocation7 + $0x4c] sm:$0xf]
        %v782 = vld [vmem:[#allocation7 + $0x50] sm:$0xf]
        %v783 = vld [vmem:[#allocation7 + $0x54] sm:$0xf]
        %v784 = vld [vmem:[#allocation7 + $0x58] sm:$0xf]
        %v785 = vld [vmem:[#allocation7 + $0x5c] sm:$0xf]
        %v786 = vld [vmem:[#allocation7 + $0x60] sm:$0xf]
        %v787 = vld [vmem:[#allocation7 + $0x64] sm:$0xf]
        %v788 = vld [vmem:[#allocation7 + $0x68] sm:$0xf]
        %v789 = vld [vmem:[#allocation7 + $0x6c] sm:$0xf]
        %v790 = vld [vmem:[#allocation7 + $0x70] sm:$0xf]
        %v791 = vld [vmem:[#allocation7 + $0x74] sm:$0xf]
        %v792 = vld [vmem:[#allocation7 + $0x78] sm:$0xf]
        %v793 = vld [vmem:[#allocation7 + $0x7c] sm:$0xf]
        %v794 = vld [vmem:[#allocation7 + $0x80] sm:$0xf]
        %v795 = vld [vmem:[#allocation7 + $0x84] sm:$0xf]
        %v796 = vld [vmem:[#allocation7 + $0x88] sm:$0xf]
        %v797 = vld [vmem:[#allocation7 + $0x8c] sm:$0xf]
        %v798 = vld [vmem:[#allocation7 + $0x90] sm:$0xf]
        %v799 = vld [vmem:[#allocation7 + $0x94] sm:$0xf]
        %v800 = vld [vmem:[#allocation7 + $0x98] sm:$0xf]
        %v801 = vld [vmem:[#allocation7 + $0x9c] sm:$0xf]
        %v802 = vld [vmem:[#allocation7 + $0xa0] sm:$0xf]
        %v803 = vld [vmem:[#allocation7 + $0xa4] sm:$0xf]
        %v804 = vld [vmem:[#allocation7 + $0xa8] sm:$0xf]
        %v805 = vld [vmem:[#allocation7 + $0xac] sm:$0xf]
        %v806 = vld [vmem:[#allocation7 + $0xb0] sm:$0xf]
        %v807 = vld [vmem:[#allocation7 + $0xb4] sm:$0xf]
        %v808 = vld [vmem:[#allocation7 + $0xb8] sm:$0xf]
        %v809 = vld [vmem:[#allocation7 + $0xbc] sm:$0xf]
        %v810 = vld [vmem:[#allocation7 + $0xc0] sm:$0xf]
        %v811 = vld [vmem:[#allocation7 + $0xc4] sm:$0xf]
        %v812 = vld [vmem:[#allocation7 + $0xc8] sm:$0xf]
        %v813 = vld [vmem:[#allocation7 + $0xcc] sm:$0xf]
        %v814 = vld [vmem:[#allocation7 + $0xd0] sm:$0xf]
        %v815 = vld [vmem:[#allocation7 + $0xd4] sm:$0xf]
        %v816 = vld [vmem:[#allocation7 + $0xd8] sm:$0xf]
        %v817 = vld [vmem:[#allocation7 + $0xdc] sm:$0xf]
        %v818 = vld [vmem:[#allocation7 + $0xe0] sm:$0xf]
        %v819 = vld [vmem:[#allocation7 + $0xe4] sm:$0xf]
        %v820 = vld [vmem:[#allocation7 + $0xe8] sm:$0xf]
        %v821 = vld [vmem:[#allocation7 + $0xec] sm:$0xf]
        %v822 = vld [vmem:[#allocation7 + $0xf0] sm:$0xf]
        %v823 = vld [vmem:[#allocation7 + $0xf4] sm:$0xf]
        %v824 = vld [vmem:[#allocation7 + $0xf8] sm:$0xf]
        %v825 = vld [vmem:[#allocation7 + $0xfc] sm:$0xf]
        %v826 = vld [vmem:[#allocation7 + $0x100] sm:$0xf]
        %v827 = vld [vmem:[#allocation7 + $0x104] sm:$0xf]
        %v828 = vld [vmem:[#allocation7 + $0x108] sm:$0xf]
        %v829 = vld [vmem:[#allocation7 + $0x10c] sm:$0xf]
        %v830 = vld [vmem:[#allocation7 + $0x110] sm:$0xf]
        %v831 = vld [vmem:[#allocation7 + $0x114] sm:$0xf]
        %v832 = vld [vmem:[#allocation7 + $0x118] sm:$0xf]
        %v833 = vld [vmem:[#allocation7 + $0x11c] sm:$0xf]
        %v834 = vld [vmem:[#allocation7 + $0x120] sm:$0xf]
        %v835 = vld [vmem:[#allocation7 + $0x124] sm:$0xf]
        %v836 = vld [vmem:[#allocation7 + $0x128] sm:$0xf]
        %v837 = vld [vmem:[#allocation7 + $0x12c] sm:$0xf]
        %v838 = vld [vmem:[#allocation7 + $0x130] sm:$0xf]
        %v839 = vld [vmem:[#allocation7 + $0x134] sm:$0xf]
        %v840 = vld [vmem:[#allocation7 + $0x138] sm:$0xf]
        %v841 = vld [vmem:[#allocation7 + $0x13c] sm:$0xf]
        %v842 = vld [vmem:[#allocation8] sm:$0x1]
        %v843 = vmax.f32 %v743, 0.0
        %v844 = vmax.f32 %v745, 0.0
        %v845 = vmax.f32 %v748, 0.0
        %v846 = vmax.f32 %v750, 0.0
        %v847 = vmax.f32 %v753, 0.0
        %v848 = vmax.f32 %v755, 0.0
        %v849 = vmax.f32 %v758, 0.0
        %v850 = vmax.f32 %v760, 0.0
        %v851 = vpack.c.bf16 %v843, %v843
        %v852 = vpack.c.bf16 %v844, %v844
        %v853 = vpack.c.bf16 %v845, %v845
        %v854 = vpack.c.bf16 %v846, %v846
        %v855 = vpack.c.bf16 %v847, %v847
        %v856 = vpack.c.bf16 %v848, %v848
        %v857 = vpack.c.bf16 %v849, %v849
        %v858 = vpack.c.bf16 %v850, %v850
        %v867 = vunpack.c.l.b16 %v851
        %v868 = vunpack.c.l.b16 %v852
        %v869 = vunpack.c.l.b16 %v853
        %v870 = vunpack.c.l.b16 %v854
        %v871 = vunpack.c.l.b16 %v855
        %v872 = vunpack.c.l.b16 %v856
        %v873 = vunpack.c.l.b16 %v857
        %v874 = vunpack.c.l.b16 %v858
        %v875 = vpack.c.b16 %v867, %v867
        %v876 = vpack.c.b16 %v868, %v868
        %v877 = vpack.c.b16 %v869, %v869
        %v878 = vpack.c.b16 %v870, %v870
        %v879 = vpack.c.b16 %v871, %v871
        %v880 = vpack.c.b16 %v872, %v872
        %v881 = vpack.c.b16 %v873, %v873
        %v882 = vpack.c.b16 %v874, %v874
        %v883 = vrot.slane %v875, 7
        %v884 = vrot.slane %v876, 7
        %v885 = vrot.slane %v877, 7
        %v886 = vrot.slane %v878, 7
        %v887 = vrot.slane %v879, 7
        %v888 = vrot.slane %v880, 7
        %v889 = vrot.slane %v881, 7
        %v890 = vrot.slane %v882, 7
        %vm891 = vcmask 1040384
        %v894 = vsel %vm891, 0, %v883
        %v896 = vsel %vm891, 0, %v884
        %v898 = vsel %vm891, 0, %v885
        %v900 = vsel %vm891, 0, %v886
        %v902 = vsel %vm891, 0, %v887
        %v904 = vsel %vm891, 0, %v888
        %v906 = vsel %vm891, 0, %v889
        %v908 = vsel %vm891, 0, %v890
        %vm909 = vcmask 1044480
        %v910 = vsel %vm909, %v894, 0
        %v911 = vsel %vm909, %v896, 0
        %v912 = vsel %vm909, %v898, 0
        %v913 = vsel %vm909, %v900, 0
        %v914 = vsel %vm909, %v902, 0
        %v915 = vsel %vm909, %v904, 0
        %v916 = vsel %vm909, %v906, 0
        %v917 = vsel %vm909, %v908, 0
        %v918 = vshrl.u32 %v910, 16
        %v920 = vshll.u32 %v910, 16
        %v922 = vrot.slane %v920, 1
        %v923 = vor.u32 %v918, %v922
        %v924 = vshrl.u32 %v911, 16
        %v926 = vshll.u32 %v911, 16
        %v928 = vrot.slane %v926, 1
        %v929 = vor.u32 %v924, %v928
        %v930 = vshrl.u32 %v912, 16
        %v932 = vshll.u32 %v912, 16
        %v934 = vrot.slane %v932, 1
        %v935 = vor.u32 %v930, %v934
        %v936 = vshrl.u32 %v913, 16
        %v938 = vshll.u32 %v913, 16
        %v940 = vrot.slane %v938, 1
        %v941 = vor.u32 %v936, %v940
        %v942 = vshrl.u32 %v914, 16
        %v944 = vshll.u32 %v914, 16
        %v946 = vrot.slane %v944, 1
        %v947 = vor.u32 %v942, %v946
        %v948 = vshrl.u32 %v915, 16
        %v950 = vshll.u32 %v915, 16
        %v952 = vrot.slane %v950, 1
        %v953 = vor.u32 %v948, %v952
        %v954 = vshrl.u32 %v916, 16
        %v956 = vshll.u32 %v916, 16
        %v958 = vrot.slane %v956, 1
        %v959 = vor.u32 %v954, %v958
        %v960 = vshrl.u32 %v917, 16
        %v962 = vshll.u32 %v917, 16
        %v964 = vrot.slane %v962, 1
        %v965 = vor.u32 %v960, %v964
        %v974 = vrot.slane %v910, 1
        %v975 = vrot.slane %v911, 1
        %v976 = vrot.slane %v912, 1
        %v977 = vrot.slane %v913, 1
        %v978 = vrot.slane %v914, 1
        %v979 = vrot.slane %v915, 1
        %v980 = vrot.slane %v916, 1
        %v981 = vrot.slane %v917, 1
        %v982 = vrot.slane %v918, 1
        %v983 = vrot.slane %v920, 2
        %v984 = vor.u32 %v982, %v983
        %v985 = vrot.slane %v924, 1
        %v986 = vrot.slane %v926, 2
        %v987 = vor.u32 %v985, %v986
        %v988 = vrot.slane %v930, 1
        %v989 = vrot.slane %v932, 2
        %v990 = vor.u32 %v988, %v989
        %v991 = vrot.slane %v936, 1
        %v992 = vrot.slane %v938, 2
        %v993 = vor.u32 %v991, %v992
        %v994 = vrot.slane %v942, 1
        %v995 = vrot.slane %v944, 2
        %v996 = vor.u32 %v994, %v995
        %v997 = vrot.slane %v948, 1
        %v998 = vrot.slane %v950, 2
        %v999 = vor.u32 %v997, %v998
        %v1000 = vrot.slane %v954, 1
        %v1001 = vrot.slane %v956, 2
        %v1002 = vor.u32 %v1000, %v1001
        %v1003 = vrot.slane %v960, 1
        %v1004 = vrot.slane %v962, 2
        %v1005 = vor.u32 %v1003, %v1004
        %v1006 = vrot.slane %v910, 2
        %v1007 = vrot.slane %v911, 2
        %v1008 = vrot.slane %v912, 2
        %v1009 = vrot.slane %v913, 2
        %v1010 = vrot.slane %v914, 2
        %v1011 = vrot.slane %v915, 2
        %v1012 = vrot.slane %v916, 2
        %v1013 = vrot.slane %v917, 2
        %v1014 = vunpack.c.l.b16 %v910
        %v1015 = vunpack.c.l.b16 %v923
        %v1016 = vunpack.c.l.b16 %v974
        %v1017 = vunpack.c.l.b16 %v984
        %v1018 = vunpack.c.l.b16 %v1006
        %v1019 = vunpack.c.l.b16 %v911
        %v1020 = vunpack.c.l.b16 %v929
        %v1021 = vunpack.c.l.b16 %v975
        %v1022 = vunpack.c.l.b16 %v987
        %v1023 = vunpack.c.l.b16 %v1007
        %v1024 = vunpack.c.l.b16 %v912
        %v1025 = vunpack.c.l.b16 %v935
        %v1026 = vunpack.c.l.b16 %v976
        %v1027 = vunpack.c.l.b16 %v990
        %v1028 = vunpack.c.l.b16 %v1008
        %v1029 = vunpack.c.l.b16 %v913
        %v1030 = vunpack.c.l.b16 %v941
        %v1031 = vunpack.c.l.b16 %v977
        %v1032 = vunpack.c.l.b16 %v993
        %v1033 = vunpack.c.l.b16 %v1009
        %v1034 = vunpack.c.l.b16 %v914
        %v1035 = vunpack.c.l.b16 %v947
        %v1036 = vunpack.c.l.b16 %v978
        %v1037 = vunpack.c.l.b16 %v996
        %v1038 = vunpack.c.l.b16 %v1010
        %v1039 = vunpack.c.l.b16 %v915
        %v1040 = vunpack.c.l.b16 %v953
        %v1041 = vunpack.c.l.b16 %v979
        %v1042 = vunpack.c.l.b16 %v999
        %v1043 = vunpack.c.l.b16 %v1011
        %v1044 = vunpack.c.l.b16 %v916
        %v1045 = vunpack.c.l.b16 %v959
        %v1046 = vunpack.c.l.b16 %v980
        %v1047 = vunpack.c.l.b16 %v1002
        %v1048 = vunpack.c.l.b16 %v1012
        %v1049 = vunpack.c.l.b16 %v917
        %v1050 = vunpack.c.l.b16 %v965
        %v1051 = vunpack.c.l.b16 %v981
        %v1052 = vunpack.c.l.b16 %v1005
        %v1053 = vunpack.c.l.b16 %v1013
        %v1055 = vperm.slane %v842, 0
        %v1057 = vpack.c.b16 %v1019, %v1014
        %v1058 = vpack.c.b16 %v1020, %v1015
        %v1059 = vpack.c.b16 %v1021, %v1016
        %v1060 = vpack.c.b16 %v1022, %v1017
        %v1061 = vpack.c.b16 %v1023, %v1018
        %v1062 = vpack.c.b16 %v1029, %v1024
        %v1063 = vpack.c.b16 %v1030, %v1025
        %v1064 = vpack.c.b16 %v1031, %v1026
        %v1065 = vpack.c.b16 %v1032, %v1027
        %v1066 = vpack.c.b16 %v1033, %v1028
        %v1067 = vpack.c.b16 %v1039, %v1034
        %v1068 = vpack.c.b16 %v1040, %v1035
        %v1069 = vpack.c.b16 %v1041, %v1036
        %v1070 = vpack.c.b16 %v1042, %v1037
        %v1071 = vpack.c.b16 %v1043, %v1038
        %v1072 = vpack.c.b16 %v1049, %v1044
        %v1073 = vpack.c.b16 %v1050, %v1045
        %v1074 = vpack.c.b16 %v1051, %v1046
        %v1075 = vpack.c.b16 %v1052, %v1047
        %v1076 = vpack.c.b16 %v1053, %v1048
        %v1177 = vunpack.c.l.b16 %v762
        %v1178 = vunpack.c.l.b16 %v763
        %v1179 = vunpack.c.l.b16 %v764
        %v1180 = vunpack.c.l.b16 %v765
        %v1181 = vunpack.c.l.b16 %v766
        %v1182 = vunpack.c.l.b16 %v767
        %v1183 = vunpack.c.l.b16 %v768
        %v1184 = vunpack.c.l.b16 %v769
        %v1185 = vunpack.c.l.b16 %v770
        %v1186 = vunpack.c.l.b16 %v771
        %v1187 = vunpack.c.l.b16 %v772
        %v1188 = vunpack.c.l.b16 %v773
        %v1189 = vunpack.c.l.b16 %v774
        %v1190 = vunpack.c.l.b16 %v775
        %v1191 = vunpack.c.l.b16 %v776
        %v1192 = vunpack.c.l.b16 %v777
        %v1193 = vunpack.c.l.b16 %v778
        %v1194 = vunpack.c.l.b16 %v779
        %v1195 = vunpack.c.l.b16 %v780
        %v1196 = vunpack.c.l.b16 %v781
        %v1197 = vunpack.c.l.b16 %v782
        %v1198 = vunpack.c.l.b16 %v783
        %v1199 = vunpack.c.l.b16 %v784
        %v1200 = vunpack.c.l.b16 %v785
        %v1201 = vunpack.c.l.b16 %v786
        %v1202 = vunpack.c.l.b16 %v787
        %v1203 = vunpack.c.l.b16 %v788
        %v1204 = vunpack.c.l.b16 %v789
        %v1205 = vunpack.c.l.b16 %v790
        %v1206 = vunpack.c.l.b16 %v791
        %v1207 = vunpack.c.l.b16 %v792
        %v1208 = vunpack.c.l.b16 %v793
        %v1209 = vunpack.c.l.b16 %v794
        %v1210 = vunpack.c.l.b16 %v795
        %v1211 = vunpack.c.l.b16 %v796
        %v1212 = vunpack.c.l.b16 %v797
        %v1213 = vunpack.c.l.b16 %v798
        %v1214 = vunpack.c.l.b16 %v799
        %v1215 = vunpack.c.l.b16 %v800
        %v1216 = vunpack.c.l.b16 %v801
        %v1217 = vunpack.c.l.b16 %v802
        %v1218 = vunpack.c.l.b16 %v803
        %v1219 = vunpack.c.l.b16 %v804
        %v1220 = vunpack.c.l.b16 %v805
        %v1221 = vunpack.c.l.b16 %v806
        %v1222 = vunpack.c.l.b16 %v807
        %v1223 = vunpack.c.l.b16 %v808
        %v1224 = vunpack.c.l.b16 %v809
        %v1225 = vunpack.c.l.b16 %v810
        %v1226 = vunpack.c.l.b16 %v811
        %v1227 = vunpack.c.l.b16 %v812
        %v1228 = vunpack.c.l.b16 %v813
        %v1229 = vunpack.c.l.b16 %v814
        %v1230 = vunpack.c.l.b16 %v815
        %v1231 = vunpack.c.l.b16 %v816
        %v1232 = vunpack.c.l.b16 %v817
        %v1233 = vunpack.c.l.b16 %v818
        %v1234 = vunpack.c.l.b16 %v819
        %v1235 = vunpack.c.l.b16 %v820
        %v1236 = vunpack.c.l.b16 %v821
        %v1237 = vunpack.c.l.b16 %v822
        %v1238 = vunpack.c.l.b16 %v823
        %v1239 = vunpack.c.l.b16 %v824
        %v1240 = vunpack.c.l.b16 %v825
        %v1241 = vunpack.c.l.b16 %v826
        %v1242 = vunpack.c.l.b16 %v827
        %v1243 = vunpack.c.l.b16 %v828
        %v1244 = vunpack.c.l.b16 %v829
        %v1245 = vunpack.c.l.b16 %v830
        %v1246 = vunpack.c.l.b16 %v831
        %v1247 = vunpack.c.l.b16 %v832
        %v1248 = vunpack.c.l.b16 %v833
        %v1249 = vunpack.c.l.b16 %v834
        %v1250 = vunpack.c.l.b16 %v835
        %v1251 = vunpack.c.l.b16 %v836
        %v1252 = vunpack.c.l.b16 %v837
        %v1253 = vunpack.c.l.b16 %v838
        %v1254 = vunpack.c.l.b16 %v839
        %v1255 = vunpack.c.l.b16 %v840
        %v1256 = vunpack.c.l.b16 %v841
        %v1257 = vpack.c.b16 %v1178, %v1177
        %v1258 = vpack.c.b16 %v1180, %v1179
        %v1259 = vpack.c.b16 %v1182, %v1181
        %v1260 = vpack.c.b16 %v1184, %v1183
        %v1261 = vpack.c.b16 %v1186, %v1185
        %v1262 = vpack.c.b16 %v1188, %v1187
        %v1263 = vpack.c.b16 %v1190, %v1189
        %v1264 = vpack.c.b16 %v1192, %v1191
        %v1265 = vpack.c.b16 %v1194, %v1193
        %v1266 = vpack.c.b16 %v1196, %v1195
        %v1267 = vpack.c.b16 %v1198, %v1197
        %v1268 = vpack.c.b16 %v1200, %v1199
        %v1269 = vpack.c.b16 %v1202, %v1201
        %v1270 = vpack.c.b16 %v1204, %v1203
        %v1271 = vpack.c.b16 %v1206, %v1205
        %v1272 = vpack.c.b16 %v1208, %v1207
        %v1273 = vpack.c.b16 %v1210, %v1209
        %v1274 = vpack.c.b16 %v1212, %v1211
        %v1275 = vpack.c.b16 %v1214, %v1213
        %v1276 = vpack.c.b16 %v1216, %v1215
        %v1277 = vpack.c.b16 %v1218, %v1217
        %v1278 = vpack.c.b16 %v1220, %v1219
        %v1279 = vpack.c.b16 %v1222, %v1221
        %v1280 = vpack.c.b16 %v1224, %v1223
        %v1281 = vpack.c.b16 %v1226, %v1225
        %v1282 = vpack.c.b16 %v1228, %v1227
        %v1283 = vpack.c.b16 %v1230, %v1229
        %v1284 = vpack.c.b16 %v1232, %v1231
        %v1285 = vpack.c.b16 %v1234, %v1233
        %v1286 = vpack.c.b16 %v1236, %v1235
        %v1287 = vpack.c.b16 %v1238, %v1237
        %v1288 = vpack.c.b16 %v1240, %v1239
        %v1289 = vpack.c.b16 %v1242, %v1241
        %v1290 = vpack.c.b16 %v1244, %v1243
        %v1291 = vpack.c.b16 %v1246, %v1245
        %v1292 = vpack.c.b16 %v1248, %v1247
        %v1293 = vpack.c.b16 %v1250, %v1249
        %v1294 = vpack.c.b16 %v1252, %v1251
        %v1295 = vpack.c.b16 %v1254, %v1253
        %v1296 = vpack.c.b16 %v1256, %v1255
        %1337 = vmatpush.bf16.msra.mxu0 %v1264
        %1338 = vmatpush.bf16.msra.mxu0 %v1263
        %1339 = vmatpush.bf16.msra.mxu0 %v1262
        %1340 = vmatpush.bf16.msra.mxu0 %v1261
        %1341 = vmatpush.bf16.msra.mxu0 %v1260
        %1342 = vmatpush.bf16.msra.mxu0 %v1259
        %1343 = vmatpush.bf16.msra.mxu0 %v1258
        %1344 = vmatpush.bf16.msra.mxu0 %v1257
        %1345 = vmatmul.bf16.gmra.mxu0 %v1057
        %v1346 = vpop.f32.mrf.mxu0
        %v1347 = vadd.f32 %v1055, %v1346
        %v1348 = vpop.f32.mrf.mxu0
        %v1349 = vadd.f32 %v1055, %v1348
        %1350 = vmatmul.bf16.gmra.mxu0 %v1062
        %v1351 = vpop.f32.mrf.mxu0
        %v1352 = vadd.f32 %v1055, %v1351
        %v1353 = vpop.f32.mrf.mxu0
        %v1354 = vadd.f32 %v1055, %v1353
        %1355 = vmatmul.bf16.gmra.mxu0 %v1067
        %v1356 = vpop.f32.mrf.mxu0
        %v1357 = vadd.f32 %v1055, %v1356
        %v1358 = vpop.f32.mrf.mxu0
        %v1359 = vadd.f32 %v1055, %v1358
        %1360 = vmatmul.bf16.gmra.mxu0 %v1072
        %v1361 = vpop.f32.mrf.mxu0
        %v1362 = vadd.f32 %v1055, %v1361
        %v1363 = vpop.f32.mrf.mxu0
        %v1364 = vadd.f32 %v1055, %v1363
        %1365 = vdwg.mxu0
        %1366 = vmatpush.bf16.msra.mxu0 %v1272
        %1367 = vmatpush.bf16.msra.mxu0 %v1271
        %1368 = vmatpush.bf16.msra.mxu0 %v1270
        %1369 = vmatpush.bf16.msra.mxu0 %v1269
        %1370 = vmatpush.bf16.msra.mxu0 %v1268
        %1371 = vmatpush.bf16.msra.mxu0 %v1267
        %1372 = vmatpush.bf16.msra.mxu0 %v1266
        %1373 = vmatpush.bf16.msra.mxu0 %v1265
        %1374 = vmatmul.bf16.gmra.mxu0 %v1058
        %v1375 = vpop.f32.mrf.mxu0
        %v1376 = vadd.f32 %v1347, %v1375
        %v1377 = vpop.f32.mrf.mxu0
        %v1378 = vadd.f32 %v1349, %v1377
        %1379 = vmatmul.bf16.gmra.mxu0 %v1063
        %v1380 = vpop.f32.mrf.mxu0
        %v1381 = vadd.f32 %v1352, %v1380
        %v1382 = vpop.f32.mrf.mxu0
        %v1383 = vadd.f32 %v1354, %v1382
        %1384 = vmatmul.bf16.gmra.mxu0 %v1068
        %v1385 = vpop.f32.mrf.mxu0
        %v1386 = vadd.f32 %v1357, %v1385
        %v1387 = vpop.f32.mrf.mxu0
        %v1388 = vadd.f32 %v1359, %v1387
        %1389 = vmatmul.bf16.gmra.mxu0 %v1073
        %v1390 = vpop.f32.mrf.mxu0
        %v1391 = vadd.f32 %v1362, %v1390
        %v1392 = vpop.f32.mrf.mxu0
        %v1393 = vadd.f32 %v1364, %v1392
        %1394 = vdwg.mxu0
        %1395 = vmatpush.bf16.msra.mxu0 %v1280
        %1396 = vmatpush.bf16.msra.mxu0 %v1279
        %1397 = vmatpush.bf16.msra.mxu0 %v1278
        %1398 = vmatpush.bf16.msra.mxu0 %v1277
        %1399 = vmatpush.bf16.msra.mxu0 %v1276
        %1400 = vmatpush.bf16.msra.mxu0 %v1275
        %1401 = vmatpush.bf16.msra.mxu0 %v1274
        %1402 = vmatpush.bf16.msra.mxu0 %v1273
        %1403 = vmatmul.bf16.gmra.mxu0 %v1059
        %v1404 = vpop.f32.mrf.mxu0
        %v1405 = vadd.f32 %v1376, %v1404
        %v1406 = vpop.f32.mrf.mxu0
        %v1407 = vadd.f32 %v1378, %v1406
        %1408 = vmatmul.bf16.gmra.mxu0 %v1064
        %v1409 = vpop.f32.mrf.mxu0
        %v1410 = vadd.f32 %v1381, %v1409
        %v1411 = vpop.f32.mrf.mxu0
        %v1412 = vadd.f32 %v1383, %v1411
        %1413 = vmatmul.bf16.gmra.mxu0 %v1069
        %v1414 = vpop.f32.mrf.mxu0
        %v1415 = vadd.f32 %v1386, %v1414
        %v1416 = vpop.f32.mrf.mxu0
        %v1417 = vadd.f32 %v1388, %v1416
        %1418 = vmatmul.bf16.gmra.mxu0 %v1074
        %v1419 = vpop.f32.mrf.mxu0
        %v1420 = vadd.f32 %v1391, %v1419
        %v1421 = vpop.f32.mrf.mxu0
        %v1422 = vadd.f32 %v1393, %v1421
        %1423 = vdwg.mxu0
        %1424 = vmatpush.bf16.msra.mxu0 %v1288
        %1425 = vmatpush.bf16.msra.mxu0 %v1287
        %1426 = vmatpush.bf16.msra.mxu0 %v1286
        %1427 = vmatpush.bf16.msra.mxu0 %v1285
        %1428 = vmatpush.bf16.msra.mxu0 %v1284
        %1429 = vmatpush.bf16.msra.mxu0 %v1283
        %1430 = vmatpush.bf16.msra.mxu0 %v1282
        %1431 = vmatpush.bf16.msra.mxu0 %v1281
        %1432 = vmatmul.bf16.gmra.mxu0 %v1060
        %v1433 = vpop.f32.mrf.mxu0
        %v1434 = vadd.f32 %v1405, %v1433
        %v1435 = vpop.f32.mrf.mxu0
        %v1436 = vadd.f32 %v1407, %v1435
        %1437 = vmatmul.bf16.gmra.mxu0 %v1065
        %v1438 = vpop.f32.mrf.mxu0
        %v1439 = vadd.f32 %v1410, %v1438
        %v1440 = vpop.f32.mrf.mxu0
        %v1441 = vadd.f32 %v1412, %v1440
        %1442 = vmatmul.bf16.gmra.mxu0 %v1070
        %v1443 = vpop.f32.mrf.mxu0
        %v1444 = vadd.f32 %v1415, %v1443
        %v1445 = vpop.f32.mrf.mxu0
        %v1446 = vadd.f32 %v1417, %v1445
        %1447 = vmatmul.bf16.gmra.mxu0 %v1075
        %v1448 = vpop.f32.mrf.mxu0
        %v1449 = vadd.f32 %v1420, %v1448
        %v1450 = vpop.f32.mrf.mxu0
        %v1451 = vadd.f32 %v1422, %v1450
        %1452 = vdwg.mxu0
        %1453 = vmatpush.bf16.msra.mxu0 %v1296
        %1454 = vmatpush.bf16.msra.mxu0 %v1295
        %1455 = vmatpush.bf16.msra.mxu0 %v1294
        %1456 = vmatpush.bf16.msra.mxu0 %v1293
        %1457 = vmatpush.bf16.msra.mxu0 %v1292
        %1458 = vmatpush.bf16.msra.mxu0 %v1291
        %1459 = vmatpush.bf16.msra.mxu0 %v1290
        %1460 = vmatpush.bf16.msra.mxu0 %v1289
        %1461 = vmatmul.bf16.gmra.mxu0 %v1061
        %v1462 = vpop.f32.mrf.mxu0
        %v1463 = vadd.f32 %v1434, %v1462
        %v1464 = vpop.f32.mrf.mxu0
        %v1465 = vadd.f32 %v1436, %v1464
        %1466 = vmatmul.bf16.gmra.mxu0 %v1066
        %v1467 = vpop.f32.mrf.mxu0
        %v1468 = vadd.f32 %v1439, %v1467
        %v1469 = vpop.f32.mrf.mxu0
        %v1470 = vadd.f32 %v1441, %v1469
        %1471 = vmatmul.bf16.gmra.mxu0 %v1071
        %v1472 = vpop.f32.mrf.mxu0
        %v1473 = vadd.f32 %v1444, %v1472
        %v1474 = vpop.f32.mrf.mxu0
        %v1475 = vadd.f32 %v1446, %v1474
        %1476 = vmatmul.bf16.gmra.mxu0 %v1076
        %v1477 = vpop.f32.mrf.mxu0
        %v1478 = vadd.f32 %v1449, %v1477
        %v1479 = vpop.f32.mrf.mxu0
        %v1480 = vadd.f32 %v1451, %v1479
        %1481 = vdwg.mxu0
        %v1482 = vld [vmem:[#allocation10] sm:$0xf]
        %v1483 = vld [vmem:[#allocation10 + $0x4] sm:$0xf]
        %v1484 = vld [vmem:[#allocation10 + $0x8] sm:$0xf]
        %v1485 = vld [vmem:[#allocation10 + $0xc] sm:$0xf]
        %v1486 = vld [vmem:[#allocation10 + $0x10] sm:$0xf]
        %v1487 = vld [vmem:[#allocation10 + $0x14] sm:$0xf]
        %v1488 = vld [vmem:[#allocation10 + $0x18] sm:$0xf]
        %v1489 = vld [vmem:[#allocation10 + $0x1c] sm:$0xf]
        %v1490 = vld [vmem:[#allocation10 + $0x20] sm:$0xf]
        %v1491 = vld [vmem:[#allocation10 + $0x24] sm:$0xf]
        %v1492 = vld [vmem:[#allocation10 + $0x28] sm:$0xf]
        %v1493 = vld [vmem:[#allocation10 + $0x2c] sm:$0xf]
        %v1494 = vld [vmem:[#allocation10 + $0x30] sm:$0xf]
        %v1495 = vld [vmem:[#allocation10 + $0x34] sm:$0xf]
        %v1496 = vld [vmem:[#allocation10 + $0x38] sm:$0xf]
        %v1497 = vld [vmem:[#allocation10 + $0x3c] sm:$0xf]
        %v1498 = vld [vmem:[#allocation10 + $0x40] sm:$0xf]
        %v1499 = vld [vmem:[#allocation10 + $0x44] sm:$0xf]
        %v1500 = vld [vmem:[#allocation10 + $0x48] sm:$0xf]
        %v1501 = vld [vmem:[#allocation10 + $0x4c] sm:$0xf]
        %v1502 = vld [vmem:[#allocation10 + $0x50] sm:$0xf]
        %v1503 = vld [vmem:[#allocation10 + $0x54] sm:$0xf]
        %v1504 = vld [vmem:[#allocation10 + $0x58] sm:$0xf]
        %v1505 = vld [vmem:[#allocation10 + $0x5c] sm:$0xf]
        %v1506 = vld [vmem:[#allocation10 + $0x60] sm:$0xf]
        %v1507 = vld [vmem:[#allocation10 + $0x64] sm:$0xf]
        %v1508 = vld [vmem:[#allocation10 + $0x68] sm:$0xf]
        %v1509 = vld [vmem:[#allocation10 + $0x6c] sm:$0xf]
        %v1510 = vld [vmem:[#allocation10 + $0x70] sm:$0xf]
        %v1511 = vld [vmem:[#allocation10 + $0x74] sm:$0xf]
        %v1512 = vld [vmem:[#allocation10 + $0x78] sm:$0xf]
        %v1513 = vld [vmem:[#allocation10 + $0x7c] sm:$0xf]
        %v1514 = vld [vmem:[#allocation10 + $0x80] sm:$0xf]
        %v1515 = vld [vmem:[#allocation10 + $0x84] sm:$0xf]
        %v1516 = vld [vmem:[#allocation10 + $0x88] sm:$0xf]
        %v1517 = vld [vmem:[#allocation10 + $0x8c] sm:$0xf]
        %v1518 = vld [vmem:[#allocation10 + $0x90] sm:$0xf]
        %v1519 = vld [vmem:[#allocation10 + $0x94] sm:$0xf]
        %v1520 = vld [vmem:[#allocation10 + $0x98] sm:$0xf]
        %v1521 = vld [vmem:[#allocation10 + $0x9c] sm:$0xf]
        %v1522 = vld [vmem:[#allocation10 + $0xa0] sm:$0xf]
        %v1523 = vld [vmem:[#allocation10 + $0xa4] sm:$0xf]
        %v1524 = vld [vmem:[#allocation10 + $0xa8] sm:$0xf]
        %v1525 = vld [vmem:[#allocation10 + $0xac] sm:$0xf]
        %v1526 = vld [vmem:[#allocation10 + $0xb0] sm:$0xf]
        %v1527 = vld [vmem:[#allocation10 + $0xb4] sm:$0xf]
        %v1528 = vld [vmem:[#allocation10 + $0xb8] sm:$0xf]
        %v1529 = vld [vmem:[#allocation10 + $0xbc] sm:$0xf]
        %v1530 = vld [vmem:[#allocation10 + $0xc0] sm:$0xf]
        %v1531 = vld [vmem:[#allocation10 + $0xc4] sm:$0xf]
        %v1532 = vld [vmem:[#allocation10 + $0xc8] sm:$0xf]
        %v1533 = vld [vmem:[#allocation10 + $0xcc] sm:$0xf]
        %v1534 = vld [vmem:[#allocation10 + $0xd0] sm:$0xf]
        %v1535 = vld [vmem:[#allocation10 + $0xd4] sm:$0xf]
        %v1536 = vld [vmem:[#allocation10 + $0xd8] sm:$0xf]
        %v1537 = vld [vmem:[#allocation10 + $0xdc] sm:$0xf]
        %v1538 = vld [vmem:[#allocation10 + $0xe0] sm:$0xf]
        %v1539 = vld [vmem:[#allocation10 + $0xe4] sm:$0xf]
        %v1540 = vld [vmem:[#allocation10 + $0xe8] sm:$0xf]
        %v1541 = vld [vmem:[#allocation10 + $0xec] sm:$0xf]
        %v1542 = vld [vmem:[#allocation10 + $0xf0] sm:$0xf]
        %v1543 = vld [vmem:[#allocation10 + $0xf4] sm:$0xf]
        %v1544 = vld [vmem:[#allocation10 + $0xf8] sm:$0xf]
        %v1545 = vld [vmem:[#allocation10 + $0xfc] sm:$0xf]
        %v1546 = vld [vmem:[#allocation10 + $0x100] sm:$0xf]
        %v1547 = vld [vmem:[#allocation10 + $0x104] sm:$0xf]
        %v1548 = vld [vmem:[#allocation10 + $0x108] sm:$0xf]
        %v1549 = vld [vmem:[#allocation10 + $0x10c] sm:$0xf]
        %v1550 = vld [vmem:[#allocation10 + $0x110] sm:$0xf]
        %v1551 = vld [vmem:[#allocation10 + $0x114] sm:$0xf]
        %v1552 = vld [vmem:[#allocation10 + $0x118] sm:$0xf]
        %v1553 = vld [vmem:[#allocation10 + $0x11c] sm:$0xf]
        %v1554 = vld [vmem:[#allocation10 + $0x120] sm:$0xf]
        %v1555 = vld [vmem:[#allocation10 + $0x124] sm:$0xf]
        %v1556 = vld [vmem:[#allocation10 + $0x128] sm:$0xf]
        %v1557 = vld [vmem:[#allocation10 + $0x12c] sm:$0xf]
        %v1558 = vld [vmem:[#allocation10 + $0x130] sm:$0xf]
        %v1559 = vld [vmem:[#allocation10 + $0x134] sm:$0xf]
        %v1560 = vld [vmem:[#allocation10 + $0x138] sm:$0xf]
        %v1561 = vld [vmem:[#allocation10 + $0x13c] sm:$0xf]
        %v1562 = vld [vmem:[#allocation11] sm:$0x1]
        %v1563 = vmax.f32 %v1463, 0.0
        %v1564 = vmax.f32 %v1465, 0.0
        %v1565 = vmax.f32 %v1468, 0.0
        %v1566 = vmax.f32 %v1470, 0.0
        %v1567 = vmax.f32 %v1473, 0.0
        %v1568 = vmax.f32 %v1475, 0.0
        %v1569 = vmax.f32 %v1478, 0.0
        %v1570 = vmax.f32 %v1480, 0.0
        %v1571 = vpack.c.bf16 %v1563, %v1563
        %v1572 = vpack.c.bf16 %v1564, %v1564
        %v1573 = vpack.c.bf16 %v1565, %v1565
        %v1574 = vpack.c.bf16 %v1566, %v1566
        %v1575 = vpack.c.bf16 %v1567, %v1567
        %v1576 = vpack.c.bf16 %v1568, %v1568
        %v1577 = vpack.c.bf16 %v1569, %v1569
        %v1578 = vpack.c.bf16 %v1570, %v1570
        %v1587 = vunpack.c.l.b16 %v1571
        %v1588 = vunpack.c.l.b16 %v1572
        %v1589 = vunpack.c.l.b16 %v1573
        %v1590 = vunpack.c.l.b16 %v1574
        %v1591 = vunpack.c.l.b16 %v1575
        %v1592 = vunpack.c.l.b16 %v1576
        %v1593 = vunpack.c.l.b16 %v1577
        %v1594 = vunpack.c.l.b16 %v1578
        %v1595 = vpack.c.b16 %v1587, %v1587
        %v1596 = vpack.c.b16 %v1588, %v1588
        %v1597 = vpack.c.b16 %v1589, %v1589
        %v1598 = vpack.c.b16 %v1590, %v1590
        %v1599 = vpack.c.b16 %v1591, %v1591
        %v1600 = vpack.c.b16 %v1592, %v1592
        %v1601 = vpack.c.b16 %v1593, %v1593
        %v1602 = vpack.c.b16 %v1594, %v1594
        %v1603 = vrot.slane %v1595, 7
        %v1604 = vrot.slane %v1596, 7
        %v1605 = vrot.slane %v1597, 7
        %v1606 = vrot.slane %v1598, 7
        %v1607 = vrot.slane %v1599, 7
        %v1608 = vrot.slane %v1600, 7
        %v1609 = vrot.slane %v1601, 7
        %v1610 = vrot.slane %v1602, 7
        %v1612 = vsel %vm891, 0, %v1603
        %v1614 = vsel %vm891, 0, %v1604
        %v1616 = vsel %vm891, 0, %v1605
        %v1618 = vsel %vm891, 0, %v1606
        %v1620 = vsel %vm891, 0, %v1607
        %v1622 = vsel %vm891, 0, %v1608
        %v1624 = vsel %vm891, 0, %v1609
        %v1626 = vsel %vm891, 0, %v1610
        %v1627 = vsel %vm909, %v1612, 0
        %v1628 = vsel %vm909, %v1614, 0
        %v1629 = vsel %vm909, %v1616, 0
        %v1630 = vsel %vm909, %v1618, 0
        %v1631 = vsel %vm909, %v1620, 0
        %v1632 = vsel %vm909, %v1622, 0
        %v1633 = vsel %vm909, %v1624, 0
        %v1634 = vsel %vm909, %v1626, 0
        %v1635 = vshrl.u32 %v1627, 16
        %v1637 = vshll.u32 %v1627, 16
        %v1639 = vrot.slane %v1637, 1
        %v1640 = vor.u32 %v1635, %v1639
        %v1641 = vshrl.u32 %v1628, 16
        %v1643 = vshll.u32 %v1628, 16
        %v1645 = vrot.slane %v1643, 1
        %v1646 = vor.u32 %v1641, %v1645
        %v1647 = vshrl.u32 %v1629, 16
        %v1649 = vshll.u32 %v1629, 16
        %v1651 = vrot.slane %v1649, 1
        %v1652 = vor.u32 %v1647, %v1651
        %v1653 = vshrl.u32 %v1630, 16
        %v1655 = vshll.u32 %v1630, 16
        %v1657 = vrot.slane %v1655, 1
        %v1658 = vor.u32 %v1653, %v1657
        %v1659 = vshrl.u32 %v1631, 16
        %v1661 = vshll.u32 %v1631, 16
        %v1663 = vrot.slane %v1661, 1
        %v1664 = vor.u32 %v1659, %v1663
        %v1665 = vshrl.u32 %v1632, 16
        %v1667 = vshll.u32 %v1632, 16
        %v1669 = vrot.slane %v1667, 1
        %v1670 = vor.u32 %v1665, %v1669
        %v1671 = vshrl.u32 %v1633, 16
        %v1673 = vshll.u32 %v1633, 16
        %v1675 = vrot.slane %v1673, 1
        %v1676 = vor.u32 %v1671, %v1675
        %v1677 = vshrl.u32 %v1634, 16
        %v1679 = vshll.u32 %v1634, 16
        %v1681 = vrot.slane %v1679, 1
        %v1682 = vor.u32 %v1677, %v1681
        %v1691 = vrot.slane %v1627, 1
        %v1692 = vrot.slane %v1628, 1
        %v1693 = vrot.slane %v1629, 1
        %v1694 = vrot.slane %v1630, 1
        %v1695 = vrot.slane %v1631, 1
        %v1696 = vrot.slane %v1632, 1
        %v1697 = vrot.slane %v1633, 1
        %v1698 = vrot.slane %v1634, 1
        %v1699 = vrot.slane %v1635, 1
        %v1700 = vrot.slane %v1637, 2
        %v1701 = vor.u32 %v1699, %v1700
        %v1702 = vrot.slane %v1641, 1
        %v1703 = vrot.slane %v1643, 2
        %v1704 = vor.u32 %v1702, %v1703
        %v1705 = vrot.slane %v1647, 1
        %v1706 = vrot.slane %v1649, 2
        %v1707 = vor.u32 %v1705, %v1706
        %v1708 = vrot.slane %v1653, 1
        %v1709 = vrot.slane %v1655, 2
        %v1710 = vor.u32 %v1708, %v1709
        %v1711 = vrot.slane %v1659, 1
        %v1712 = vrot.slane %v1661, 2
        %v1713 = vor.u32 %v1711, %v1712
        %v1714 = vrot.slane %v1665, 1
        %v1715 = vrot.slane %v1667, 2
        %v1716 = vor.u32 %v1714, %v1715
        %v1717 = vrot.slane %v1671, 1
        %v1718 = vrot.slane %v1673, 2
        %v1719 = vor.u32 %v1717, %v1718
        %v1720 = vrot.slane %v1677, 1
        %v1721 = vrot.slane %v1679, 2
        %v1722 = vor.u32 %v1720, %v1721
        %v1723 = vrot.slane %v1627, 2
        %v1724 = vrot.slane %v1628, 2
        %v1725 = vrot.slane %v1629, 2
        %v1726 = vrot.slane %v1630, 2
        %v1727 = vrot.slane %v1631, 2
        %v1728 = vrot.slane %v1632, 2
        %v1729 = vrot.slane %v1633, 2
        %v1730 = vrot.slane %v1634, 2
        %v1731 = vunpack.c.l.b16 %v1627
        %v1732 = vunpack.c.l.b16 %v1640
        %v1733 = vunpack.c.l.b16 %v1691
        %v1734 = vunpack.c.l.b16 %v1701
        %v1735 = vunpack.c.l.b16 %v1723
        %v1736 = vunpack.c.l.b16 %v1628
        %v1737 = vunpack.c.l.b16 %v1646
        %v1738 = vunpack.c.l.b16 %v1692
        %v1739 = vunpack.c.l.b16 %v1704
        %v1740 = vunpack.c.l.b16 %v1724
        %v1741 = vunpack.c.l.b16 %v1629
        %v1742 = vunpack.c.l.b16 %v1652
        %v1743 = vunpack.c.l.b16 %v1693
        %v1744 = vunpack.c.l.b16 %v1707
        %v1745 = vunpack.c.l.b16 %v1725
        %v1746 = vunpack.c.l.b16 %v1630
        %v1747 = vunpack.c.l.b16 %v1658
        %v1748 = vunpack.c.l.b16 %v1694
        %v1749 = vunpack.c.l.b16 %v1710
        %v1750 = vunpack.c.l.b16 %v1726
        %v1751 = vunpack.c.l.b16 %v1631
        %v1752 = vunpack.c.l.b16 %v1664
        %v1753 = vunpack.c.l.b16 %v1695
        %v1754 = vunpack.c.l.b16 %v1713
        %v1755 = vunpack.c.l.b16 %v1727
        %v1756 = vunpack.c.l.b16 %v1632
        %v1757 = vunpack.c.l.b16 %v1670
        %v1758 = vunpack.c.l.b16 %v1696
        %v1759 = vunpack.c.l.b16 %v1716
        %v1760 = vunpack.c.l.b16 %v1728
        %v1761 = vunpack.c.l.b16 %v1633
        %v1762 = vunpack.c.l.b16 %v1676
        %v1763 = vunpack.c.l.b16 %v1697
        %v1764 = vunpack.c.l.b16 %v1719
        %v1765 = vunpack.c.l.b16 %v1729
        %v1766 = vunpack.c.l.b16 %v1634
        %v1767 = vunpack.c.l.b16 %v1682
        %v1768 = vunpack.c.l.b16 %v1698
        %v1769 = vunpack.c.l.b16 %v1722
        %v1770 = vunpack.c.l.b16 %v1730
        %v1772 = vperm.slane %v1562, 0
        %v1774 = vpack.c.b16 %v1736, %v1731
        %v1775 = vpack.c.b16 %v1737, %v1732
        %v1776 = vpack.c.b16 %v1738, %v1733
        %v1777 = vpack.c.b16 %v1739, %v1734
        %v1778 = vpack.c.b16 %v1740, %v1735
        %v1779 = vpack.c.b16 %v1746, %v1741
        %v1780 = vpack.c.b16 %v1747, %v1742
        %v1781 = vpack.c.b16 %v1748, %v1743
        %v1782 = vpack.c.b16 %v1749, %v1744
        %v1783 = vpack.c.b16 %v1750, %v1745
        %v1784 = vpack.c.b16 %v1756, %v1751
        %v1785 = vpack.c.b16 %v1757, %v1752
        %v1786 = vpack.c.b16 %v1758, %v1753
        %v1787 = vpack.c.b16 %v1759, %v1754
        %v1788 = vpack.c.b16 %v1760, %v1755
        %v1789 = vpack.c.b16 %v1766, %v1761
        %v1790 = vpack.c.b16 %v1767, %v1762
        %v1791 = vpack.c.b16 %v1768, %v1763
        %v1792 = vpack.c.b16 %v1769, %v1764
        %v1793 = vpack.c.b16 %v1770, %v1765
        %v1894 = vunpack.c.l.b16 %v1482
        %v1895 = vunpack.c.l.b16 %v1483
        %v1896 = vunpack.c.l.b16 %v1484
        %v1897 = vunpack.c.l.b16 %v1485
        %v1898 = vunpack.c.l.b16 %v1486
        %v1899 = vunpack.c.l.b16 %v1487
        %v1900 = vunpack.c.l.b16 %v1488
        %v1901 = vunpack.c.l.b16 %v1489
        %v1902 = vunpack.c.l.b16 %v1490
        %v1903 = vunpack.c.l.b16 %v1491
        %v1904 = vunpack.c.l.b16 %v1492
        %v1905 = vunpack.c.l.b16 %v1493
        %v1906 = vunpack.c.l.b16 %v1494
        %v1907 = vunpack.c.l.b16 %v1495
        %v1908 = vunpack.c.l.b16 %v1496
        %v1909 = vunpack.c.l.b16 %v1497
        %v1910 = vunpack.c.l.b16 %v1498
        %v1911 = vunpack.c.l.b16 %v1499
        %v1912 = vunpack.c.l.b16 %v1500
        %v1913 = vunpack.c.l.b16 %v1501
        %v1914 = vunpack.c.l.b16 %v1502
        %v1915 = vunpack.c.l.b16 %v1503
        %v1916 = vunpack.c.l.b16 %v1504
        %v1917 = vunpack.c.l.b16 %v1505
        %v1918 = vunpack.c.l.b16 %v1506
        %v1919 = vunpack.c.l.b16 %v1507
        %v1920 = vunpack.c.l.b16 %v1508
        %v1921 = vunpack.c.l.b16 %v1509
        %v1922 = vunpack.c.l.b16 %v1510
        %v1923 = vunpack.c.l.b16 %v1511
        %v1924 = vunpack.c.l.b16 %v1512
        %v1925 = vunpack.c.l.b16 %v1513
        %v1926 = vunpack.c.l.b16 %v1514
        %v1927 = vunpack.c.l.b16 %v1515
        %v1928 = vunpack.c.l.b16 %v1516
        %v1929 = vunpack.c.l.b16 %v1517
        %v1930 = vunpack.c.l.b16 %v1518
        %v1931 = vunpack.c.l.b16 %v1519
        %v1932 = vunpack.c.l.b16 %v1520
        %v1933 = vunpack.c.l.b16 %v1521
        %v1934 = vunpack.c.l.b16 %v1522
        %v1935 = vunpack.c.l.b16 %v1523
        %v1936 = vunpack.c.l.b16 %v1524
        %v1937 = vunpack.c.l.b16 %v1525
        %v1938 = vunpack.c.l.b16 %v1526
        %v1939 = vunpack.c.l.b16 %v1527
        %v1940 = vunpack.c.l.b16 %v1528
        %v1941 = vunpack.c.l.b16 %v1529
        %v1942 = vunpack.c.l.b16 %v1530
        %v1943 = vunpack.c.l.b16 %v1531
        %v1944 = vunpack.c.l.b16 %v1532
        %v1945 = vunpack.c.l.b16 %v1533
        %v1946 = vunpack.c.l.b16 %v1534
        %v1947 = vunpack.c.l.b16 %v1535
        %v1948 = vunpack.c.l.b16 %v1536
        %v1949 = vunpack.c.l.b16 %v1537
        %v1950 = vunpack.c.l.b16 %v1538
        %v1951 = vunpack.c.l.b16 %v1539
        %v1952 = vunpack.c.l.b16 %v1540
        %v1953 = vunpack.c.l.b16 %v1541
        %v1954 = vunpack.c.l.b16 %v1542
        %v1955 = vunpack.c.l.b16 %v1543
        %v1956 = vunpack.c.l.b16 %v1544
        %v1957 = vunpack.c.l.b16 %v1545
        %v1958 = vunpack.c.l.b16 %v1546
        %v1959 = vunpack.c.l.b16 %v1547
        %v1960 = vunpack.c.l.b16 %v1548
        %v1961 = vunpack.c.l.b16 %v1549
        %v1962 = vunpack.c.l.b16 %v1550
        %v1963 = vunpack.c.l.b16 %v1551
        %v1964 = vunpack.c.l.b16 %v1552
        %v1965 = vunpack.c.l.b16 %v1553
        %v1966 = vunpack.c.l.b16 %v1554
        %v1967 = vunpack.c.l.b16 %v1555
        %v1968 = vunpack.c.l.b16 %v1556
        %v1969 = vunpack.c.l.b16 %v1557
        %v1970 = vunpack.c.l.b16 %v1558
        %v1971 = vunpack.c.l.b16 %v1559
        %v1972 = vunpack.c.l.b16 %v1560
        %v1973 = vunpack.c.l.b16 %v1561
        %v1974 = vpack.c.b16 %v1895, %v1894
        %v1975 = vpack.c.b16 %v1897, %v1896
        %v1976 = vpack.c.b16 %v1899, %v1898
        %v1977 = vpack.c.b16 %v1901, %v1900
        %v1978 = vpack.c.b16 %v1903, %v1902
        %v1979 = vpack.c.b16 %v1905, %v1904
        %v1980 = vpack.c.b16 %v1907, %v1906
        %v1981 = vpack.c.b16 %v1909, %v1908
        %v1982 = vpack.c.b16 %v1911, %v1910
        %v1983 = vpack.c.b16 %v1913, %v1912
        %v1984 = vpack.c.b16 %v1915, %v1914
        %v1985 = vpack.c.b16 %v1917, %v1916
        %v1986 = vpack.c.b16 %v1919, %v1918
        %v1987 = vpack.c.b16 %v1921, %v1920
        %v1988 = vpack.c.b16 %v1923, %v1922
        %v1989 = vpack.c.b16 %v1925, %v1924
        %v1990 = vpack.c.b16 %v1927, %v1926
        %v1991 = vpack.c.b16 %v1929, %v1928
        %v1992 = vpack.c.b16 %v1931, %v1930
        %v1993 = vpack.c.b16 %v1933, %v1932
        %v1994 = vpack.c.b16 %v1935, %v1934
        %v1995 = vpack.c.b16 %v1937, %v1936
        %v1996 = vpack.c.b16 %v1939, %v1938
        %v1997 = vpack.c.b16 %v1941, %v1940
        %v1998 = vpack.c.b16 %v1943, %v1942
        %v1999 = vpack.c.b16 %v1945, %v1944
        %v2000 = vpack.c.b16 %v1947, %v1946
        %v2001 = vpack.c.b16 %v1949, %v1948
        %v2002 = vpack.c.b16 %v1951, %v1950
        %v2003 = vpack.c.b16 %v1953, %v1952
        %v2004 = vpack.c.b16 %v1955, %v1954
        %v2005 = vpack.c.b16 %v1957, %v1956
        %v2006 = vpack.c.b16 %v1959, %v1958
        %v2007 = vpack.c.b16 %v1961, %v1960
        %v2008 = vpack.c.b16 %v1963, %v1962
        %v2009 = vpack.c.b16 %v1965, %v1964
        %v2010 = vpack.c.b16 %v1967, %v1966
        %v2011 = vpack.c.b16 %v1969, %v1968
        %v2012 = vpack.c.b16 %v1971, %v1970
        %v2013 = vpack.c.b16 %v1973, %v1972
        %2054 = vmatpush.bf16.msra.mxu0 %v1981
        %2055 = vmatpush.bf16.msra.mxu0 %v1980
        %2056 = vmatpush.bf16.msra.mxu0 %v1979
        %2057 = vmatpush.bf16.msra.mxu0 %v1978
        %2058 = vmatpush.bf16.msra.mxu0 %v1977
        %2059 = vmatpush.bf16.msra.mxu0 %v1976
        %2060 = vmatpush.bf16.msra.mxu0 %v1975
        %2061 = vmatpush.bf16.msra.mxu0 %v1974
        %2062 = vmatmul.bf16.gmra.mxu0 %v1774
        %v2063 = vpop.f32.mrf.mxu0
        %v2064 = vadd.f32 %v1772, %v2063
        %v2065 = vpop.f32.mrf.mxu0
        %v2066 = vadd.f32 %v1772, %v2065
        %2067 = vmatmul.bf16.gmra.mxu0 %v1779
        %v2068 = vpop.f32.mrf.mxu0
        %v2069 = vadd.f32 %v1772, %v2068
        %v2070 = vpop.f32.mrf.mxu0
        %v2071 = vadd.f32 %v1772, %v2070
        %2072 = vmatmul.bf16.gmra.mxu0 %v1784
        %v2073 = vpop.f32.mrf.mxu0
        %v2074 = vadd.f32 %v1772, %v2073
        %v2075 = vpop.f32.mrf.mxu0
        %v2076 = vadd.f32 %v1772, %v2075
        %2077 = vmatmul.bf16.gmra.mxu0 %v1789
        %v2078 = vpop.f32.mrf.mxu0
        %v2079 = vadd.f32 %v1772, %v2078
        %v2080 = vpop.f32.mrf.mxu0
        %v2081 = vadd.f32 %v1772, %v2080
        %2082 = vdwg.mxu0
        %2083 = vmatpush.bf16.msra.mxu0 %v1989
        %2084 = vmatpush.bf16.msra.mxu0 %v1988
        %2085 = vmatpush.bf16.msra.mxu0 %v1987
        %2086 = vmatpush.bf16.msra.mxu0 %v1986
        %2087 = vmatpush.bf16.msra.mxu0 %v1985
        %2088 = vmatpush.bf16.msra.mxu0 %v1984
        %2089 = vmatpush.bf16.msra.mxu0 %v1983
        %2090 = vmatpush.bf16.msra.mxu0 %v1982
        %2091 = vmatmul.bf16.gmra.mxu0 %v1775
        %v2092 = vpop.f32.mrf.mxu0
        %v2093 = vadd.f32 %v2064, %v2092
        %v2094 = vpop.f32.mrf.mxu0
        %v2095 = vadd.f32 %v2066, %v2094
        %2096 = vmatmul.bf16.gmra.mxu0 %v1780
        %v2097 = vpop.f32.mrf.mxu0
        %v2098 = vadd.f32 %v2069, %v2097
        %v2099 = vpop.f32.mrf.mxu0
        %v2100 = vadd.f32 %v2071, %v2099
        %2101 = vmatmul.bf16.gmra.mxu0 %v1785
        %v2102 = vpop.f32.mrf.mxu0
        %v2103 = vadd.f32 %v2074, %v2102
        %v2104 = vpop.f32.mrf.mxu0
        %v2105 = vadd.f32 %v2076, %v2104
        %2106 = vmatmul.bf16.gmra.mxu0 %v1790
        %v2107 = vpop.f32.mrf.mxu0
        %v2108 = vadd.f32 %v2079, %v2107
        %v2109 = vpop.f32.mrf.mxu0
        %v2110 = vadd.f32 %v2081, %v2109
        %2111 = vdwg.mxu0
        %2112 = vmatpush.bf16.msra.mxu0 %v1997
        %2113 = vmatpush.bf16.msra.mxu0 %v1996
        %2114 = vmatpush.bf16.msra.mxu0 %v1995
        %2115 = vmatpush.bf16.msra.mxu0 %v1994
        %2116 = vmatpush.bf16.msra.mxu0 %v1993
        %2117 = vmatpush.bf16.msra.mxu0 %v1992
        %2118 = vmatpush.bf16.msra.mxu0 %v1991
        %2119 = vmatpush.bf16.msra.mxu0 %v1990
        %2120 = vmatmul.bf16.gmra.mxu0 %v1776
        %v2121 = vpop.f32.mrf.mxu0
        %v2122 = vadd.f32 %v2093, %v2121
        %v2123 = vpop.f32.mrf.mxu0
        %v2124 = vadd.f32 %v2095, %v2123
        %2125 = vmatmul.bf16.gmra.mxu0 %v1781
        %v2126 = vpop.f32.mrf.mxu0
        %v2127 = vadd.f32 %v2098, %v2126
        %v2128 = vpop.f32.mrf.mxu0
        %v2129 = vadd.f32 %v2100, %v2128
        %2130 = vmatmul.bf16.gmra.mxu0 %v1786
        %v2131 = vpop.f32.mrf.mxu0
        %v2132 = vadd.f32 %v2103, %v2131
        %v2133 = vpop.f32.mrf.mxu0
        %v2134 = vadd.f32 %v2105, %v2133
        %2135 = vmatmul.bf16.gmra.mxu0 %v1791
        %v2136 = vpop.f32.mrf.mxu0
        %v2137 = vadd.f32 %v2108, %v2136
        %v2138 = vpop.f32.mrf.mxu0
        %v2139 = vadd.f32 %v2110, %v2138
        %2140 = vdwg.mxu0
        %2141 = vmatpush.bf16.msra.mxu0 %v2005
        %2142 = vmatpush.bf16.msra.mxu0 %v2004
        %2143 = vmatpush.bf16.msra.mxu0 %v2003
        %2144 = vmatpush.bf16.msra.mxu0 %v2002
        %2145 = vmatpush.bf16.msra.mxu0 %v2001
        %2146 = vmatpush.bf16.msra.mxu0 %v2000
        %2147 = vmatpush.bf16.msra.mxu0 %v1999
        %2148 = vmatpush.bf16.msra.mxu0 %v1998
        %2149 = vmatmul.bf16.gmra.mxu0 %v1777
        %v2150 = vpop.f32.mrf.mxu0
        %v2151 = vadd.f32 %v2122, %v2150
        %v2152 = vpop.f32.mrf.mxu0
        %v2153 = vadd.f32 %v2124, %v2152
        %2154 = vmatmul.bf16.gmra.mxu0 %v1782
        %v2155 = vpop.f32.mrf.mxu0
        %v2156 = vadd.f32 %v2127, %v2155
        %v2157 = vpop.f32.mrf.mxu0
        %v2158 = vadd.f32 %v2129, %v2157
        %2159 = vmatmul.bf16.gmra.mxu0 %v1787
        %v2160 = vpop.f32.mrf.mxu0
        %v2161 = vadd.f32 %v2132, %v2160
        %v2162 = vpop.f32.mrf.mxu0
        %v2163 = vadd.f32 %v2134, %v2162
        %2164 = vmatmul.bf16.gmra.mxu0 %v1792
        %v2165 = vpop.f32.mrf.mxu0
        %v2166 = vadd.f32 %v2137, %v2165
        %v2167 = vpop.f32.mrf.mxu0
        %v2168 = vadd.f32 %v2139, %v2167
        %2169 = vdwg.mxu0
        %2170 = vmatpush.bf16.msra.mxu0 %v2013
        %2171 = vmatpush.bf16.msra.mxu0 %v2012
        %2172 = vmatpush.bf16.msra.mxu0 %v2011
        %2173 = vmatpush.bf16.msra.mxu0 %v2010
        %2174 = vmatpush.bf16.msra.mxu0 %v2009
        %2175 = vmatpush.bf16.msra.mxu0 %v2008
        %2176 = vmatpush.bf16.msra.mxu0 %v2007
        %2177 = vmatpush.bf16.msra.mxu0 %v2006
        %2178 = vmatmul.bf16.gmra.mxu0 %v1778
        %v2179 = vpop.f32.mrf.mxu0
        %v2180 = vadd.f32 %v2151, %v2179
        %v2181 = vpop.f32.mrf.mxu0
        %v2182 = vadd.f32 %v2153, %v2181
        %2183 = vmatmul.bf16.gmra.mxu0 %v1783
        %v2184 = vpop.f32.mrf.mxu0
        %v2185 = vadd.f32 %v2156, %v2184
        %v2186 = vpop.f32.mrf.mxu0
        %v2187 = vadd.f32 %v2158, %v2186
        %2188 = vmatmul.bf16.gmra.mxu0 %v1788
        %v2189 = vpop.f32.mrf.mxu0
        %v2190 = vadd.f32 %v2161, %v2189
        %v2191 = vpop.f32.mrf.mxu0
        %v2192 = vadd.f32 %v2163, %v2191
        %2193 = vmatmul.bf16.gmra.mxu0 %v1793
        %v2194 = vpop.f32.mrf.mxu0
        %v2195 = vadd.f32 %v2166, %v2194
        %v2196 = vpop.f32.mrf.mxu0
        %v2197 = vadd.f32 %v2168, %v2196
        %2198 = vdwg.mxu0
        %v2199 = vadd.f32 %v743, %v2180
        %v2200 = vadd.f32 %v745, %v2182
        %v2201 = vadd.f32 %v748, %v2185
        %v2202 = vadd.f32 %v750, %v2187
        %v2203 = vadd.f32 %v753, %v2190
        %v2204 = vadd.f32 %v755, %v2192
        %v2205 = vadd.f32 %v758, %v2195
        %v2206 = vadd.f32 %v760, %v2197
        %v2215 = vrot.slane %v2199, 2
        %v2216 = vrot.slane %v2199, 4
        %v2217 = vrot.slane %v2199, 6
        %v2218 = vrot.slane %v2200, 2
        %v2219 = vrot.slane %v2200, 4
        %v2220 = vrot.slane %v2200, 6
        %v2221 = vrot.slane %v2201, 2
        %v2222 = vrot.slane %v2201, 4
        %v2223 = vrot.slane %v2201, 6
        %v2224 = vrot.slane %v2202, 2
        %v2225 = vrot.slane %v2202, 4
        %v2226 = vrot.slane %v2202, 6
        %v2227 = vrot.slane %v2203, 2
        %v2228 = vrot.slane %v2203, 4
        %v2229 = vrot.slane %v2203, 6
        %v2230 = vrot.slane %v2204, 2
        %v2231 = vrot.slane %v2204, 4
        %v2232 = vrot.slane %v2204, 6
        %v2233 = vrot.slane %v2205, 2
        %v2234 = vrot.slane %v2205, 4
        %v2235 = vrot.slane %v2205, 6
        %v2236 = vrot.slane %v2206, 2
        %v2237 = vrot.slane %v2206, 4
        %v2238 = vrot.slane %v2206, 6
        %vm2263 = vcmask 1041408
        %v2264 = vsel %vm2263, %v2199, -inf
        %v2265 = vrot.slane %v2264, 4
        %v2266 = vmax.f32 %v2264, %v2265
        %v2267 = vrot.slane %v2266, 2
        %v2268 = vmax.f32 %v2266, %v2267
        %v2269 = vrot.slane %v2268, 1
        %v2270 = vmax.f32 %v2268, %v2269
        %v2271 = vsel %vm2263, %v2215, -inf
        %v2272 = vrot.slane %v2271, 4
        %v2273 = vmax.f32 %v2271, %v2272
        %v2274 = vrot.slane %v2273, 2
        %v2275 = vmax.f32 %v2273, %v2274
        %v2276 = vrot.slane %v2275, 1
        %v2277 = vmax.f32 %v2275, %v2276
        %v2278 = vsel %vm2263, %v2216, -inf
        %v2279 = vrot.slane %v2278, 4
        %v2280 = vmax.f32 %v2278, %v2279
        %v2281 = vrot.slane %v2280, 2
        %v2282 = vmax.f32 %v2280, %v2281
        %v2283 = vrot.slane %v2282, 1
        %v2284 = vmax.f32 %v2282, %v2283
        %v2285 = vsel %vm2263, %v2217, -inf
        %v2286 = vrot.slane %v2285, 4
        %v2287 = vmax.f32 %v2285, %v2286
        %v2288 = vrot.slane %v2287, 2
        %v2289 = vmax.f32 %v2287, %v2288
        %v2290 = vrot.slane %v2289, 1
        %v2291 = vmax.f32 %v2289, %v2290
        %v2292 = vsel %vm2263, %v2200, -inf
        %v2293 = vrot.slane %v2292, 4
        %v2294 = vmax.f32 %v2292, %v2293
        %v2295 = vrot.slane %v2294, 2
        %v2296 = vmax.f32 %v2294, %v2295
        %v2297 = vrot.slane %v2296, 1
        %v2298 = vmax.f32 %v2296, %v2297
        %v2299 = vsel %vm2263, %v2218, -inf
        %v2300 = vrot.slane %v2299, 4
        %v2301 = vmax.f32 %v2299, %v2300
        %v2302 = vrot.slane %v2301, 2
        %v2303 = vmax.f32 %v2301, %v2302
        %v2304 = vrot.slane %v2303, 1
        %v2305 = vmax.f32 %v2303, %v2304
        %v2306 = vsel %vm2263, %v2219, -inf
        %v2307 = vrot.slane %v2306, 4
        %v2308 = vmax.f32 %v2306, %v2307
        %v2309 = vrot.slane %v2308, 2
        %v2310 = vmax.f32 %v2308, %v2309
        %v2311 = vrot.slane %v2310, 1
        %v2312 = vmax.f32 %v2310, %v2311
        %v2313 = vsel %vm2263, %v2220, -inf
        %v2314 = vrot.slane %v2313, 4
        %v2315 = vmax.f32 %v2313, %v2314
        %v2316 = vrot.slane %v2315, 2
        %v2317 = vmax.f32 %v2315, %v2316
        %v2318 = vrot.slane %v2317, 1
        %v2319 = vmax.f32 %v2317, %v2318
        %v2320 = vsel %vm2263, %v2201, -inf
        %v2321 = vrot.slane %v2320, 4
        %v2322 = vmax.f32 %v2320, %v2321
        %v2323 = vrot.slane %v2322, 2
        %v2324 = vmax.f32 %v2322, %v2323
        %v2325 = vrot.slane %v2324, 1
        %v2326 = vmax.f32 %v2324, %v2325
        %v2327 = vsel %vm2263, %v2221, -inf
        %v2328 = vrot.slane %v2327, 4
        %v2329 = vmax.f32 %v2327, %v2328
        %v2330 = vrot.slane %v2329, 2
        %v2331 = vmax.f32 %v2329, %v2330
        %v2332 = vrot.slane %v2331, 1
        %v2333 = vmax.f32 %v2331, %v2332
        %v2334 = vsel %vm2263, %v2222, -inf
        %v2335 = vrot.slane %v2334, 4
        %v2336 = vmax.f32 %v2334, %v2335
        %v2337 = vrot.slane %v2336, 2
        %v2338 = vmax.f32 %v2336, %v2337
        %v2339 = vrot.slane %v2338, 1
        %v2340 = vmax.f32 %v2338, %v2339
        %v2341 = vsel %vm2263, %v2223, -inf
        %v2342 = vrot.slane %v2341, 4
        %v2343 = vmax.f32 %v2341, %v2342
        %v2344 = vrot.slane %v2343, 2
        %v2345 = vmax.f32 %v2343, %v2344
        %v2346 = vrot.slane %v2345, 1
        %v2347 = vmax.f32 %v2345, %v2346
        %v2348 = vsel %vm2263, %v2202, -inf
        %v2349 = vrot.slane %v2348, 4
        %v2350 = vmax.f32 %v2348, %v2349
        %v2351 = vrot.slane %v2350, 2
        %v2352 = vmax.f32 %v2350, %v2351
        %v2353 = vrot.slane %v2352, 1
        %v2354 = vmax.f32 %v2352, %v2353
        %v2355 = vsel %vm2263, %v2224, -inf
        %v2356 = vrot.slane %v2355, 4
        %v2357 = vmax.f32 %v2355, %v2356
        %v2358 = vrot.slane %v2357, 2
        %v2359 = vmax.f32 %v2357, %v2358
        %v2360 = vrot.slane %v2359, 1
        %v2361 = vmax.f32 %v2359, %v2360
        %v2362 = vsel %vm2263, %v2225, -inf
        %v2363 = vrot.slane %v2362, 4
        %v2364 = vmax.f32 %v2362, %v2363
        %v2365 = vrot.slane %v2364, 2
        %v2366 = vmax.f32 %v2364, %v2365
        %v2367 = vrot.slane %v2366, 1
        %v2368 = vmax.f32 %v2366, %v2367
        %v2369 = vsel %vm2263, %v2226, -inf
        %v2370 = vrot.slane %v2369, 4
        %v2371 = vmax.f32 %v2369, %v2370
        %v2372 = vrot.slane %v2371, 2
        %v2373 = vmax.f32 %v2371, %v2372
        %v2374 = vrot.slane %v2373, 1
        %v2375 = vmax.f32 %v2373, %v2374
        %v2376 = vsel %vm2263, %v2203, -inf
        %v2377 = vrot.slane %v2376, 4
        %v2378 = vmax.f32 %v2376, %v2377
        %v2379 = vrot.slane %v2378, 2
        %v2380 = vmax.f32 %v2378, %v2379
        %v2381 = vrot.slane %v2380, 1
        %v2382 = vmax.f32 %v2380, %v2381
        %v2383 = vsel %vm2263, %v2227, -inf
        %v2384 = vrot.slane %v2383, 4
        %v2385 = vmax.f32 %v2383, %v2384
        %v2386 = vrot.slane %v2385, 2
        %v2387 = vmax.f32 %v2385, %v2386
        %v2388 = vrot.slane %v2387, 1
        %v2389 = vmax.f32 %v2387, %v2388
        %v2390 = vsel %vm2263, %v2228, -inf
        %v2391 = vrot.slane %v2390, 4
        %v2392 = vmax.f32 %v2390, %v2391
        %v2393 = vrot.slane %v2392, 2
        %v2394 = vmax.f32 %v2392, %v2393
        %v2395 = vrot.slane %v2394, 1
        %v2396 = vmax.f32 %v2394, %v2395
        %v2397 = vsel %vm2263, %v2229, -inf
        %v2398 = vrot.slane %v2397, 4
        %v2399 = vmax.f32 %v2397, %v2398
        %v2400 = vrot.slane %v2399, 2
        %v2401 = vmax.f32 %v2399, %v2400
        %v2402 = vrot.slane %v2401, 1
        %v2403 = vmax.f32 %v2401, %v2402
        %v2404 = vsel %vm2263, %v2204, -inf
        %v2405 = vrot.slane %v2404, 4
        %v2406 = vmax.f32 %v2404, %v2405
        %v2407 = vrot.slane %v2406, 2
        %v2408 = vmax.f32 %v2406, %v2407
        %v2409 = vrot.slane %v2408, 1
        %v2410 = vmax.f32 %v2408, %v2409
        %v2411 = vsel %vm2263, %v2230, -inf
        %v2412 = vrot.slane %v2411, 4
        %v2413 = vmax.f32 %v2411, %v2412
        %v2414 = vrot.slane %v2413, 2
        %v2415 = vmax.f32 %v2413, %v2414
        %v2416 = vrot.slane %v2415, 1
        %v2417 = vmax.f32 %v2415, %v2416
        %v2418 = vsel %vm2263, %v2231, -inf
        %v2419 = vrot.slane %v2418, 4
        %v2420 = vmax.f32 %v2418, %v2419
        %v2421 = vrot.slane %v2420, 2
        %v2422 = vmax.f32 %v2420, %v2421
        %v2423 = vrot.slane %v2422, 1
        %v2424 = vmax.f32 %v2422, %v2423
        %v2425 = vsel %vm2263, %v2232, -inf
        %v2426 = vrot.slane %v2425, 4
        %v2427 = vmax.f32 %v2425, %v2426
        %v2428 = vrot.slane %v2427, 2
        %v2429 = vmax.f32 %v2427, %v2428
        %v2430 = vrot.slane %v2429, 1
        %v2431 = vmax.f32 %v2429, %v2430
        %v2432 = vsel %vm2263, %v2205, -inf
        %v2433 = vrot.slane %v2432, 4
        %v2434 = vmax.f32 %v2432, %v2433
        %v2435 = vrot.slane %v2434, 2
        %v2436 = vmax.f32 %v2434, %v2435
        %v2437 = vrot.slane %v2436, 1
        %v2438 = vmax.f32 %v2436, %v2437
        %v2439 = vsel %vm2263, %v2233, -inf
        %v2440 = vrot.slane %v2439, 4
        %v2441 = vmax.f32 %v2439, %v2440
        %v2442 = vrot.slane %v2441, 2
        %v2443 = vmax.f32 %v2441, %v2442
        %v2444 = vrot.slane %v2443, 1
        %v2445 = vmax.f32 %v2443, %v2444
        %v2446 = vsel %vm2263, %v2234, -inf
        %v2447 = vrot.slane %v2446, 4
        %v2448 = vmax.f32 %v2446, %v2447
        %v2449 = vrot.slane %v2448, 2
        %v2450 = vmax.f32 %v2448, %v2449
        %v2451 = vrot.slane %v2450, 1
        %v2452 = vmax.f32 %v2450, %v2451
        %v2453 = vsel %vm2263, %v2235, -inf
        %v2454 = vrot.slane %v2453, 4
        %v2455 = vmax.f32 %v2453, %v2454
        %v2456 = vrot.slane %v2455, 2
        %v2457 = vmax.f32 %v2455, %v2456
        %v2458 = vrot.slane %v2457, 1
        %v2459 = vmax.f32 %v2457, %v2458
        %v2460 = vsel %vm2263, %v2206, -inf
        %v2461 = vrot.slane %v2460, 4
        %v2462 = vmax.f32 %v2460, %v2461
        %v2463 = vrot.slane %v2462, 2
        %v2464 = vmax.f32 %v2462, %v2463
        %v2465 = vrot.slane %v2464, 1
        %v2466 = vmax.f32 %v2464, %v2465
        %v2467 = vsel %vm2263, %v2236, -inf
        %v2468 = vrot.slane %v2467, 4
        %v2469 = vmax.f32 %v2467, %v2468
        %v2470 = vrot.slane %v2469, 2
        %v2471 = vmax.f32 %v2469, %v2470
        %v2472 = vrot.slane %v2471, 1
        %v2473 = vmax.f32 %v2471, %v2472
        %v2474 = vsel %vm2263, %v2237, -inf
        %v2475 = vrot.slane %v2474, 4
        %v2476 = vmax.f32 %v2474, %v2475
        %v2477 = vrot.slane %v2476, 2
        %v2478 = vmax.f32 %v2476, %v2477
        %v2479 = vrot.slane %v2478, 1
        %v2480 = vmax.f32 %v2478, %v2479
        %v2481 = vsel %vm2263, %v2238, -inf
        %v2482 = vrot.slane %v2481, 4
        %v2483 = vmax.f32 %v2481, %v2482
        %v2484 = vrot.slane %v2483, 2
        %v2485 = vmax.f32 %v2483, %v2484
        %v2486 = vrot.slane %v2485, 1
        %v2487 = vmax.f32 %v2485, %v2486
        %s2488 = scalar_lea.vmem [#allocation7], 320
        %v2489 = vld [vmem:[%s2488] sm:$0xf]
        %v2490 = vld [vmem:[%s2488 + $0x4] sm:$0xf]
        %v2491 = vld [vmem:[%s2488 + $0x8] sm:$0xf]
        %v2492 = vld [vmem:[%s2488 + $0xc] sm:$0xf]
        %v2493 = vld [vmem:[%s2488 + $0x10] sm:$0xf]
        %v2494 = vld [vmem:[%s2488 + $0x14] sm:$0xf]
        %v2495 = vld [vmem:[%s2488 + $0x18] sm:$0xf]
        %v2496 = vld [vmem:[%s2488 + $0x1c] sm:$0xf]
        %v2497 = vld [vmem:[%s2488 + $0x20] sm:$0xf]
        %v2498 = vld [vmem:[%s2488 + $0x24] sm:$0xf]
        %v2499 = vld [vmem:[%s2488 + $0x28] sm:$0xf]
        %v2500 = vld [vmem:[%s2488 + $0x2c] sm:$0xf]
        %v2501 = vld [vmem:[%s2488 + $0x30] sm:$0xf]
        %v2502 = vld [vmem:[%s2488 + $0x34] sm:$0xf]
        %v2503 = vld [vmem:[%s2488 + $0x38] sm:$0xf]
        %v2504 = vld [vmem:[%s2488 + $0x3c] sm:$0xf]
        %v2505 = vld [vmem:[%s2488 + $0x40] sm:$0xf]
        %v2506 = vld [vmem:[%s2488 + $0x44] sm:$0xf]
        %v2507 = vld [vmem:[%s2488 + $0x48] sm:$0xf]
        %v2508 = vld [vmem:[%s2488 + $0x4c] sm:$0xf]
        %v2509 = vld [vmem:[%s2488 + $0x50] sm:$0xf]
        %v2510 = vld [vmem:[%s2488 + $0x54] sm:$0xf]
        %v2511 = vld [vmem:[%s2488 + $0x58] sm:$0xf]
        %v2512 = vld [vmem:[%s2488 + $0x5c] sm:$0xf]
        %v2513 = vld [vmem:[%s2488 + $0x60] sm:$0xf]
        %v2514 = vld [vmem:[%s2488 + $0x64] sm:$0xf]
        %v2515 = vld [vmem:[%s2488 + $0x68] sm:$0xf]
        %v2516 = vld [vmem:[%s2488 + $0x6c] sm:$0xf]
        %v2517 = vld [vmem:[%s2488 + $0x70] sm:$0xf]
        %v2518 = vld [vmem:[%s2488 + $0x74] sm:$0xf]
        %v2519 = vld [vmem:[%s2488 + $0x78] sm:$0xf]
        %v2520 = vld [vmem:[%s2488 + $0x7c] sm:$0xf]
        %v2521 = vld [vmem:[%s2488 + $0x80] sm:$0xf]
        %v2522 = vld [vmem:[%s2488 + $0x84] sm:$0xf]
        %v2523 = vld [vmem:[%s2488 + $0x88] sm:$0xf]
        %v2524 = vld [vmem:[%s2488 + $0x8c] sm:$0xf]
        %v2525 = vld [vmem:[%s2488 + $0x90] sm:$0xf]
        %v2526 = vld [vmem:[%s2488 + $0x94] sm:$0xf]
        %v2527 = vld [vmem:[%s2488 + $0x98] sm:$0xf]
        %v2528 = vld [vmem:[%s2488 + $0x9c] sm:$0xf]
        %v2529 = vld [vmem:[%s2488 + $0xa0] sm:$0xf]
        %v2530 = vld [vmem:[%s2488 + $0xa4] sm:$0xf]
        %v2531 = vld [vmem:[%s2488 + $0xa8] sm:$0xf]
        %v2532 = vld [vmem:[%s2488 + $0xac] sm:$0xf]
        %v2533 = vld [vmem:[%s2488 + $0xb0] sm:$0xf]
        %v2534 = vld [vmem:[%s2488 + $0xb4] sm:$0xf]
        %v2535 = vld [vmem:[%s2488 + $0xb8] sm:$0xf]
        %v2536 = vld [vmem:[%s2488 + $0xbc] sm:$0xf]
        %v2537 = vld [vmem:[%s2488 + $0xc0] sm:$0xf]
        %v2538 = vld [vmem:[%s2488 + $0xc4] sm:$0xf]
        %v2539 = vld [vmem:[%s2488 + $0xc8] sm:$0xf]
        %v2540 = vld [vmem:[%s2488 + $0xcc] sm:$0xf]
        %v2541 = vld [vmem:[%s2488 + $0xd0] sm:$0xf]
        %v2542 = vld [vmem:[%s2488 + $0xd4] sm:$0xf]
        %v2543 = vld [vmem:[%s2488 + $0xd8] sm:$0xf]
        %v2544 = vld [vmem:[%s2488 + $0xdc] sm:$0xf]
        %v2545 = vld [vmem:[%s2488 + $0xe0] sm:$0xf]
        %v2546 = vld [vmem:[%s2488 + $0xe4] sm:$0xf]
        %v2547 = vld [vmem:[%s2488 + $0xe8] sm:$0xf]
        %v2548 = vld [vmem:[%s2488 + $0xec] sm:$0xf]
        %v2549 = vld [vmem:[%s2488 + $0xf0] sm:$0xf]
        %v2550 = vld [vmem:[%s2488 + $0xf4] sm:$0xf]
        %v2551 = vld [vmem:[%s2488 + $0xf8] sm:$0xf]
        %v2552 = vld [vmem:[%s2488 + $0xfc] sm:$0xf]
        %v2553 = vld [vmem:[%s2488 + $0x100] sm:$0xf]
        %v2554 = vld [vmem:[%s2488 + $0x104] sm:$0xf]
        %v2555 = vld [vmem:[%s2488 + $0x108] sm:$0xf]
        %v2556 = vld [vmem:[%s2488 + $0x10c] sm:$0xf]
        %v2557 = vld [vmem:[%s2488 + $0x110] sm:$0xf]
        %v2558 = vld [vmem:[%s2488 + $0x114] sm:$0xf]
        %v2559 = vld [vmem:[%s2488 + $0x118] sm:$0xf]
        %v2560 = vld [vmem:[%s2488 + $0x11c] sm:$0xf]
        %v2561 = vld [vmem:[%s2488 + $0x120] sm:$0xf]
        %v2562 = vld [vmem:[%s2488 + $0x124] sm:$0xf]
        %v2563 = vld [vmem:[%s2488 + $0x128] sm:$0xf]
        %v2564 = vld [vmem:[%s2488 + $0x12c] sm:$0xf]
        %v2565 = vld [vmem:[%s2488 + $0x130] sm:$0xf]
        %v2566 = vld [vmem:[%s2488 + $0x134] sm:$0xf]
        %v2567 = vld [vmem:[%s2488 + $0x138] sm:$0xf]
        %v2568 = vld [vmem:[%s2488 + $0x13c] sm:$0xf]
        %s2569 = scalar_lea.vmem [#allocation8], 1
        %v2570 = vld [vmem:[%s2569] sm:$0x1]
        %v2571 = vmax.f32 %v2270, 0.0
        %v2572 = vmax.f32 %v2277, 0.0
        %v2573 = vmax.f32 %v2284, 0.0
        %v2574 = vmax.f32 %v2291, 0.0
        %v2575 = vmax.f32 %v2298, 0.0
        %v2576 = vmax.f32 %v2305, 0.0
        %v2577 = vmax.f32 %v2312, 0.0
        %v2578 = vmax.f32 %v2319, 0.0
        %v2579 = vmax.f32 %v2326, 0.0
        %v2580 = vmax.f32 %v2333, 0.0
        %v2581 = vmax.f32 %v2340, 0.0
        %v2582 = vmax.f32 %v2347, 0.0
        %v2583 = vmax.f32 %v2354, 0.0
        %v2584 = vmax.f32 %v2361, 0.0
        %v2585 = vmax.f32 %v2368, 0.0
        %v2586 = vmax.f32 %v2375, 0.0
        %v2587 = vmax.f32 %v2382, 0.0
        %v2588 = vmax.f32 %v2389, 0.0
        %v2589 = vmax.f32 %v2396, 0.0
        %v2590 = vmax.f32 %v2403, 0.0
        %v2591 = vmax.f32 %v2410, 0.0
        %v2592 = vmax.f32 %v2417, 0.0
        %v2593 = vmax.f32 %v2424, 0.0
        %v2594 = vmax.f32 %v2431, 0.0
        %v2595 = vmax.f32 %v2438, 0.0
        %v2596 = vmax.f32 %v2445, 0.0
        %v2597 = vmax.f32 %v2452, 0.0
        %v2598 = vmax.f32 %v2459, 0.0
        %v2599 = vmax.f32 %v2466, 0.0
        %v2600 = vmax.f32 %v2473, 0.0
        %v2601 = vmax.f32 %v2480, 0.0
        %v2602 = vmax.f32 %v2487, 0.0
        %v2603 = vpack.c.bf16 %v2571, %v2571
        %v2604 = vpack.c.bf16 %v2572, %v2572
        %v2605 = vpack.c.bf16 %v2573, %v2573
        %v2606 = vpack.c.bf16 %v2574, %v2574
        %v2607 = vpack.c.bf16 %v2575, %v2575
        %v2608 = vpack.c.bf16 %v2576, %v2576
        %v2609 = vpack.c.bf16 %v2577, %v2577
        %v2610 = vpack.c.bf16 %v2578, %v2578
        %v2611 = vpack.c.bf16 %v2579, %v2579
        %v2612 = vpack.c.bf16 %v2580, %v2580
        %v2613 = vpack.c.bf16 %v2581, %v2581
        %v2614 = vpack.c.bf16 %v2582, %v2582
        %v2615 = vpack.c.bf16 %v2583, %v2583
        %v2616 = vpack.c.bf16 %v2584, %v2584
        %v2617 = vpack.c.bf16 %v2585, %v2585
        %v2618 = vpack.c.bf16 %v2586, %v2586
        %v2619 = vpack.c.bf16 %v2587, %v2587
        %v2620 = vpack.c.bf16 %v2588, %v2588
        %v2621 = vpack.c.bf16 %v2589, %v2589
        %v2622 = vpack.c.bf16 %v2590, %v2590
        %v2623 = vpack.c.bf16 %v2591, %v2591
        %v2624 = vpack.c.bf16 %v2592, %v2592
        %v2625 = vpack.c.bf16 %v2593, %v2593
        %v2626 = vpack.c.bf16 %v2594, %v2594
        %v2627 = vpack.c.bf16 %v2595, %v2595
        %v2628 = vpack.c.bf16 %v2596, %v2596
        %v2629 = vpack.c.bf16 %v2597, %v2597
        %v2630 = vpack.c.bf16 %v2598, %v2598
        %v2631 = vpack.c.bf16 %v2599, %v2599
        %v2632 = vpack.c.bf16 %v2600, %v2600
        %v2633 = vpack.c.bf16 %v2601, %v2601
        %v2634 = vpack.c.bf16 %v2602, %v2602
        %v2667 = vperm.slane %v2603, 0
        %v2668 = vperm.slane %v2604, 0
        %v2669 = vperm.slane %v2605, 0
        %v2670 = vperm.slane %v2606, 0
        %v2671 = vperm.slane %v2607, 0
        %v2672 = vperm.slane %v2608, 0
        %v2673 = vperm.slane %v2609, 0
        %v2674 = vperm.slane %v2610, 0
        %v2675 = vperm.slane %v2611, 0
        %v2676 = vperm.slane %v2612, 0
        %v2677 = vperm.slane %v2613, 0
        %v2678 = vperm.slane %v2614, 0
        %v2679 = vperm.slane %v2615, 0
        %v2680 = vperm.slane %v2616, 0
        %v2681 = vperm.slane %v2617, 0
        %v2682 = vperm.slane %v2618, 0
        %v2683 = vperm.slane %v2619, 0
        %v2684 = vperm.slane %v2620, 0
        %v2685 = vperm.slane %v2621, 0
        %v2686 = vperm.slane %v2622, 0
        %v2687 = vperm.slane %v2623, 0
        %v2688 = vperm.slane %v2624, 0
        %v2689 = vperm.slane %v2625, 0
        %v2690 = vperm.slane %v2626, 0
        %v2691 = vperm.slane %v2627, 0
        %v2692 = vperm.slane %v2628, 0
        %v2693 = vperm.slane %v2629, 0
        %v2694 = vperm.slane %v2630, 0
        %v2695 = vperm.slane %v2631, 0
        %v2696 = vperm.slane %v2632, 0
        %v2697 = vperm.slane %v2633, 0
        %v2698 = vperm.slane %v2634, 0
        %v2699 = vunpack.c.l.b16 %v2667
        %v2700 = vunpack.c.l.b16 %v2668
        %v2701 = vunpack.c.l.b16 %v2669
        %v2702 = vunpack.c.l.b16 %v2670
        %v2703 = vunpack.c.l.b16 %v2671
        %v2704 = vunpack.c.l.b16 %v2672
        %v2705 = vunpack.c.l.b16 %v2673
        %v2706 = vunpack.c.l.b16 %v2674
        %v2707 = vunpack.c.l.b16 %v2675
        %v2708 = vunpack.c.l.b16 %v2676
        %v2709 = vunpack.c.l.b16 %v2677
        %v2710 = vunpack.c.l.b16 %v2678
        %v2711 = vunpack.c.l.b16 %v2679
        %v2712 = vunpack.c.l.b16 %v2680
        %v2713 = vunpack.c.l.b16 %v2681
        %v2714 = vunpack.c.l.b16 %v2682
        %v2715 = vunpack.c.l.b16 %v2683
        %v2716 = vunpack.c.l.b16 %v2684
        %v2717 = vunpack.c.l.b16 %v2685
        %v2718 = vunpack.c.l.b16 %v2686
        %v2719 = vunpack.c.l.b16 %v2687
        %v2720 = vunpack.c.l.b16 %v2688
        %v2721 = vunpack.c.l.b16 %v2689
        %v2722 = vunpack.c.l.b16 %v2690
        %v2723 = vunpack.c.l.b16 %v2691
        %v2724 = vunpack.c.l.b16 %v2692
        %v2725 = vunpack.c.l.b16 %v2693
        %v2726 = vunpack.c.l.b16 %v2694
        %v2727 = vunpack.c.l.b16 %v2695
        %v2728 = vunpack.c.l.b16 %v2696
        %v2729 = vunpack.c.l.b16 %v2697
        %v2730 = vunpack.c.l.b16 %v2698
        %vm2731 = vcmask 1043459
        %v2732 = vsel %vm2731, %v2700, %v2699
        %vm2733 = vcmask 1044484
        %v2734 = vsel %vm2733, %v2701, %v2732
        %vm2735 = vcmask 1045509
        %v2736 = vsel %vm2735, %v2702, %v2734
        %v2737 = vsel %vm2731, %v2704, %v2703
        %v2738 = vsel %vm2733, %v2705, %v2737
        %v2739 = vsel %vm2735, %v2706, %v2738
        %v2740 = vsel %vm2731, %v2708, %v2707
        %v2741 = vsel %vm2733, %v2709, %v2740
        %v2742 = vsel %vm2735, %v2710, %v2741
        %v2743 = vsel %vm2731, %v2712, %v2711
        %v2744 = vsel %vm2733, %v2713, %v2743
        %v2745 = vsel %vm2735, %v2714, %v2744
        %v2746 = vsel %vm2731, %v2716, %v2715
        %v2747 = vsel %vm2733, %v2717, %v2746
        %v2748 = vsel %vm2735, %v2718, %v2747
        %v2749 = vsel %vm2731, %v2720, %v2719
        %v2750 = vsel %vm2733, %v2721, %v2749
        %v2751 = vsel %vm2735, %v2722, %v2750
        %v2752 = vsel %vm2731, %v2724, %v2723
        %v2753 = vsel %vm2733, %v2725, %v2752
        %v2754 = vsel %vm2735, %v2726, %v2753
        %v2755 = vsel %vm2731, %v2728, %v2727
        %v2756 = vsel %vm2733, %v2729, %v2755
        %v2757 = vsel %vm2735, %v2730, %v2756
        %v2758 = vpack.c.b16 %v2736, %v2736
        %v2759 = vpack.c.b16 %v2739, %v2739
        %v2760 = vpack.c.b16 %v2742, %v2742
        %v2761 = vpack.c.b16 %v2745, %v2745
        %v2762 = vpack.c.b16 %v2748, %v2748
        %v2763 = vpack.c.b16 %v2751, %v2751
        %v2764 = vpack.c.b16 %v2754, %v2754
        %v2765 = vpack.c.b16 %v2757, %v2757
        %v2767 = vsel %vm891, 0, %v2758
        %v2769 = vsel %vm891, 0, %v2759
        %v2771 = vsel %vm891, 0, %v2760
        %v2773 = vsel %vm891, 0, %v2761
        %v2775 = vsel %vm891, 0, %v2762
        %v2777 = vsel %vm891, 0, %v2763
        %v2779 = vsel %vm891, 0, %v2764
        %v2781 = vsel %vm891, 0, %v2765
        %vm2782 = vcmask 1042432
        %v2783 = vsel %vm2782, %v2767, 0
        %v2784 = vsel %vm2782, %v2769, 0
        %v2785 = vsel %vm2782, %v2771, 0
        %v2786 = vsel %vm2782, %v2773, 0
        %v2787 = vsel %vm2782, %v2775, 0
        %v2788 = vsel %vm2782, %v2777, 0
        %v2789 = vsel %vm2782, %v2779, 0
        %v2790 = vsel %vm2782, %v2781, 0
        %v2791 = vshrl.u32 %v2783, 16
        %v2793 = vshll.u32 %v2783, 16
        %v2795 = vrot.slane %v2793, 1
        %v2796 = vor.u32 %v2791, %v2795
        %v2797 = vshrl.u32 %v2784, 16
        %v2799 = vshll.u32 %v2784, 16
        %v2801 = vrot.slane %v2799, 1
        %v2802 = vor.u32 %v2797, %v2801
        %v2803 = vshrl.u32 %v2785, 16
        %v2805 = vshll.u32 %v2785, 16
        %v2807 = vrot.slane %v2805, 1
        %v2808 = vor.u32 %v2803, %v2807
        %v2809 = vshrl.u32 %v2786, 16
        %v2811 = vshll.u32 %v2786, 16
        %v2813 = vrot.slane %v2811, 1
        %v2814 = vor.u32 %v2809, %v2813
        %v2815 = vshrl.u32 %v2787, 16
        %v2817 = vshll.u32 %v2787, 16
        %v2819 = vrot.slane %v2817, 1
        %v2820 = vor.u32 %v2815, %v2819
        %v2821 = vshrl.u32 %v2788, 16
        %v2823 = vshll.u32 %v2788, 16
        %v2825 = vrot.slane %v2823, 1
        %v2826 = vor.u32 %v2821, %v2825
        %v2827 = vshrl.u32 %v2789, 16
        %v2829 = vshll.u32 %v2789, 16
        %v2831 = vrot.slane %v2829, 1
        %v2832 = vor.u32 %v2827, %v2831
        %v2833 = vshrl.u32 %v2790, 16
        %v2835 = vshll.u32 %v2790, 16
        %v2837 = vrot.slane %v2835, 1
        %v2838 = vor.u32 %v2833, %v2837
        %v2847 = vrot.slane %v2783, 1
        %v2848 = vrot.slane %v2784, 1
        %v2849 = vrot.slane %v2785, 1
        %v2850 = vrot.slane %v2786, 1
        %v2851 = vrot.slane %v2787, 1
        %v2852 = vrot.slane %v2788, 1
        %v2853 = vrot.slane %v2789, 1
        %v2854 = vrot.slane %v2790, 1
        %v2855 = vrot.slane %v2791, 1
        %v2856 = vrot.slane %v2793, 2
        %v2857 = vor.u32 %v2855, %v2856
        %v2858 = vrot.slane %v2797, 1
        %v2859 = vrot.slane %v2799, 2
        %v2860 = vor.u32 %v2858, %v2859
        %v2861 = vrot.slane %v2803, 1
        %v2862 = vrot.slane %v2805, 2
        %v2863 = vor.u32 %v2861, %v2862
        %v2864 = vrot.slane %v2809, 1
        %v2865 = vrot.slane %v2811, 2
        %v2866 = vor.u32 %v2864, %v2865
        %v2867 = vrot.slane %v2815, 1
        %v2868 = vrot.slane %v2817, 2
        %v2869 = vor.u32 %v2867, %v2868
        %v2870 = vrot.slane %v2821, 1
        %v2871 = vrot.slane %v2823, 2
        %v2872 = vor.u32 %v2870, %v2871
        %v2873 = vrot.slane %v2827, 1
        %v2874 = vrot.slane %v2829, 2
        %v2875 = vor.u32 %v2873, %v2874
        %v2876 = vrot.slane %v2833, 1
        %v2877 = vrot.slane %v2835, 2
        %v2878 = vor.u32 %v2876, %v2877
        %v2879 = vrot.slane %v2783, 2
        %v2880 = vrot.slane %v2784, 2
        %v2881 = vrot.slane %v2785, 2
        %v2882 = vrot.slane %v2786, 2
        %v2883 = vrot.slane %v2787, 2
        %v2884 = vrot.slane %v2788, 2
        %v2885 = vrot.slane %v2789, 2
        %v2886 = vrot.slane %v2790, 2
        %v2887 = vrot.slane %v2796, 6
        %v2888 = vrot.slane %v2847, 4
        %v2889 = vrot.slane %v2857, 2
        %v2890 = vrot.slane %v2802, 6
        %v2891 = vrot.slane %v2848, 4
        %v2892 = vrot.slane %v2860, 2
        %v2893 = vrot.slane %v2808, 6
        %v2894 = vrot.slane %v2849, 4
        %v2895 = vrot.slane %v2863, 2
        %v2896 = vrot.slane %v2814, 6
        %v2897 = vrot.slane %v2850, 4
        %v2898 = vrot.slane %v2866, 2
        %v2899 = vrot.slane %v2820, 6
        %v2900 = vrot.slane %v2851, 4
        %v2901 = vrot.slane %v2869, 2
        %v2902 = vrot.slane %v2826, 6
        %v2903 = vrot.slane %v2852, 4
        %v2904 = vrot.slane %v2872, 2
        %v2905 = vrot.slane %v2832, 6
        %v2906 = vrot.slane %v2853, 4
        %v2907 = vrot.slane %v2875, 2
        %v2908 = vrot.slane %v2838, 6
        %v2909 = vrot.slane %v2854, 4
        %v2910 = vrot.slane %v2878, 2
        %v2912 = vsel %vm2263, %v2783, %v2887
        %vm2913 = vcmask 1045508
        %v2916 = vsel %vm2913, %v2888, %v2889
        %vm2917 = vcmask 1043456
        %v2918 = vsel %vm2917, %v2912, %v2916
        %v2920 = vsel %vm2263, %v2784, %v2890
        %v2923 = vsel %vm2913, %v2891, %v2892
        %v2924 = vsel %vm2917, %v2920, %v2923
        %v2926 = vsel %vm2263, %v2785, %v2893
        %v2929 = vsel %vm2913, %v2894, %v2895
        %v2930 = vsel %vm2917, %v2926, %v2929
        %v2932 = vsel %vm2263, %v2786, %v2896
        %v2935 = vsel %vm2913, %v2897, %v2898
        %v2936 = vsel %vm2917, %v2932, %v2935
        %v2938 = vsel %vm2263, %v2787, %v2899
        %v2941 = vsel %vm2913, %v2900, %v2901
        %v2942 = vsel %vm2917, %v2938, %v2941
        %v2944 = vsel %vm2263, %v2788, %v2902
        %v2947 = vsel %vm2913, %v2903, %v2904
        %v2948 = vsel %vm2917, %v2944, %v2947
        %v2950 = vsel %vm2263, %v2789, %v2905
        %v2953 = vsel %vm2913, %v2906, %v2907
        %v2954 = vsel %vm2917, %v2950, %v2953
        %v2956 = vsel %vm2263, %v2790, %v2908
        %v2959 = vsel %vm2913, %v2909, %v2910
        %v2960 = vsel %vm2917, %v2956, %v2959
        %v2962 = vperm.slane %v2570, 0
        %2964 = vst [vmem:[#allocation1] ss:$4 sm:$0xff] %v2918
        %s2965 = scalar_lea.vmem [#allocation1], 1
        %2966 = vst [vmem:[%s2965] ss:$4 sm:$0xff] %v2924
        %s2967 = scalar_lea.vmem [#allocation1], 2
        %2968 = vst [vmem:[%s2967] ss:$4 sm:$0xff] %v2930
        %s2969 = scalar_lea.vmem [#allocation1], 3
        %2970 = vst [vmem:[%s2969] ss:$4 sm:$0xff] %v2936
        %s2972 = scalar_lea.vmem [#allocation1], 32
        %2973 = vst [vmem:[%s2972] ss:$4 sm:$0xff] %v2879
        %s2975 = scalar_lea.vmem [#allocation1], 33
        %2976 = vst [vmem:[%s2975] ss:$4 sm:$0xff] %v2880
        %s2978 = scalar_lea.vmem [#allocation1], 34
        %2979 = vst [vmem:[%s2978] ss:$4 sm:$0xff] %v2881
        %s2981 = scalar_lea.vmem [#allocation1], 35
        %2982 = vst [vmem:[%s2981] ss:$4 sm:$0xff] %v2882
        %v2983 = vld.sshfl [vmem:[#allocation1] sm:$0xff pattern:$0x73625140]
        %v2984 = vld.sshfl [vmem:[#allocation1 + $0x8] sm:$0xff pattern:$0x73625140]
        %v2985 = vld.sshfl [vmem:[#allocation1 + $0x10] sm:$0xff pattern:$0x73625140]
        %v2986 = vld.sshfl [vmem:[#allocation1 + $0x18] sm:$0xff pattern:$0x73625140]
        %v2987 = vld.sshfl [vmem:[#allocation1 + $0x20] sm:$0xff pattern:$0x73625140]
        %2988 = vst [vmem:[#allocation1] ss:$4 sm:$0xff] %v2942
        %2989 = vst [vmem:[%s2965] ss:$4 sm:$0xff] %v2948
        %2990 = vst [vmem:[%s2967] ss:$4 sm:$0xff] %v2954
        %2991 = vst [vmem:[%s2969] ss:$4 sm:$0xff] %v2960
        %2993 = vst [vmem:[%s2972] ss:$4 sm:$0xff] %v2883
        %2995 = vst [vmem:[%s2975] ss:$4 sm:$0xff] %v2884
        %2997 = vst [vmem:[%s2978] ss:$4 sm:$0xff] %v2885
        %2999 = vst [vmem:[%s2981] ss:$4 sm:$0xff] %v2886
        %v3000 = vld.sshfl [vmem:[#allocation1] sm:$0xff pattern:$0x73625140]
        %v3001 = vld.sshfl [vmem:[#allocation1 + $0x8] sm:$0xff pattern:$0x73625140]
        %v3002 = vld.sshfl [vmem:[#allocation1 + $0x10] sm:$0xff pattern:$0x73625140]
        %v3003 = vld.sshfl [vmem:[#allocation1 + $0x18] sm:$0xff pattern:$0x73625140]
        %v3004 = vld.sshfl [vmem:[#allocation1 + $0x20] sm:$0xff pattern:$0x73625140]
        %v3095 = vunpack.c.l.b16 %v2489
        %v3096 = vunpack.c.l.b16 %v2490
        %v3097 = vunpack.c.l.b16 %v2491
        %v3098 = vunpack.c.l.b16 %v2492
        %v3099 = vunpack.c.l.b16 %v2493
        %v3100 = vunpack.c.l.b16 %v2494
        %v3101 = vunpack.c.l.b16 %v2495
        %v3102 = vunpack.c.l.b16 %v2496
        %v3103 = vunpack.c.l.b16 %v2497
        %v3104 = vunpack.c.l.b16 %v2498
        %v3105 = vunpack.c.l.b16 %v2499
        %v3106 = vunpack.c.l.b16 %v2500
        %v3107 = vunpack.c.l.b16 %v2501
        %v3108 = vunpack.c.l.b16 %v2502
        %v3109 = vunpack.c.l.b16 %v2503
        %v3110 = vunpack.c.l.b16 %v2504
        %v3111 = vunpack.c.l.b16 %v2505
        %v3112 = vunpack.c.l.b16 %v2506
        %v3113 = vunpack.c.l.b16 %v2507
        %v3114 = vunpack.c.l.b16 %v2508
        %v3115 = vunpack.c.l.b16 %v2509
        %v3116 = vunpack.c.l.b16 %v2510
        %v3117 = vunpack.c.l.b16 %v2511
        %v3118 = vunpack.c.l.b16 %v2512
        %v3119 = vunpack.c.l.b16 %v2513
        %v3120 = vunpack.c.l.b16 %v2514
        %v3121 = vunpack.c.l.b16 %v2515
        %v3122 = vunpack.c.l.b16 %v2516
        %v3123 = vunpack.c.l.b16 %v2517
        %v3124 = vunpack.c.l.b16 %v2518
        %v3125 = vunpack.c.l.b16 %v2519
        %v3126 = vunpack.c.l.b16 %v2520
        %v3127 = vunpack.c.l.b16 %v2521
        %v3128 = vunpack.c.l.b16 %v2522
        %v3129 = vunpack.c.l.b16 %v2523
        %v3130 = vunpack.c.l.b16 %v2524
        %v3131 = vunpack.c.l.b16 %v2525
        %v3132 = vunpack.c.l.b16 %v2526
        %v3133 = vunpack.c.l.b16 %v2527
        %v3134 = vunpack.c.l.b16 %v2528
        %v3135 = vunpack.c.l.b16 %v2529
        %v3136 = vunpack.c.l.b16 %v2530
        %v3137 = vunpack.c.l.b16 %v2531
        %v3138 = vunpack.c.l.b16 %v2532
        %v3139 = vunpack.c.l.b16 %v2533
        %v3140 = vunpack.c.l.b16 %v2534
        %v3141 = vunpack.c.l.b16 %v2535
        %v3142 = vunpack.c.l.b16 %v2536
        %v3143 = vunpack.c.l.b16 %v2537
        %v3144 = vunpack.c.l.b16 %v2538
        %v3145 = vunpack.c.l.b16 %v2539
        %v3146 = vunpack.c.l.b16 %v2540
        %v3147 = vunpack.c.l.b16 %v2541
        %v3148 = vunpack.c.l.b16 %v2542
        %v3149 = vunpack.c.l.b16 %v2543
        %v3150 = vunpack.c.l.b16 %v2544
        %v3151 = vunpack.c.l.b16 %v2545
        %v3152 = vunpack.c.l.b16 %v2546
        %v3153 = vunpack.c.l.b16 %v2547
        %v3154 = vunpack.c.l.b16 %v2548
        %v3155 = vunpack.c.l.b16 %v2549
        %v3156 = vunpack.c.l.b16 %v2550
        %v3157 = vunpack.c.l.b16 %v2551
        %v3158 = vunpack.c.l.b16 %v2552
        %v3159 = vunpack.c.l.b16 %v2553
        %v3160 = vunpack.c.l.b16 %v2554
        %v3161 = vunpack.c.l.b16 %v2555
        %v3162 = vunpack.c.l.b16 %v2556
        %v3163 = vunpack.c.l.b16 %v2557
        %v3164 = vunpack.c.l.b16 %v2558
        %v3165 = vunpack.c.l.b16 %v2559
        %v3166 = vunpack.c.l.b16 %v2560
        %v3167 = vunpack.c.l.b16 %v2561
        %v3168 = vunpack.c.l.b16 %v2562
        %v3169 = vunpack.c.l.b16 %v2563
        %v3170 = vunpack.c.l.b16 %v2564
        %v3171 = vunpack.c.l.b16 %v2565
        %v3172 = vunpack.c.l.b16 %v2566
        %v3173 = vunpack.c.l.b16 %v2567
        %v3174 = vunpack.c.l.b16 %v2568
        %v3175 = vpack.c.b16 %v3096, %v3095
        %v3176 = vpack.c.b16 %v3098, %v3097
        %v3177 = vpack.c.b16 %v3100, %v3099
        %v3178 = vpack.c.b16 %v3102, %v3101
        %v3179 = vpack.c.b16 %v3104, %v3103
        %v3180 = vpack.c.b16 %v3106, %v3105
        %v3181 = vpack.c.b16 %v3108, %v3107
        %v3182 = vpack.c.b16 %v3110, %v3109
        %v3183 = vpack.c.b16 %v3112, %v3111
        %v3184 = vpack.c.b16 %v3114, %v3113
        %v3185 = vpack.c.b16 %v3116, %v3115
        %v3186 = vpack.c.b16 %v3118, %v3117
        %v3187 = vpack.c.b16 %v3120, %v3119
        %v3188 = vpack.c.b16 %v3122, %v3121
        %v3189 = vpack.c.b16 %v3124, %v3123
        %v3190 = vpack.c.b16 %v3126, %v3125
        %v3191 = vpack.c.b16 %v3128, %v3127
        %v3192 = vpack.c.b16 %v3130, %v3129
        %v3193 = vpack.c.b16 %v3132, %v3131
        %v3194 = vpack.c.b16 %v3134, %v3133
        %v3195 = vpack.c.b16 %v3136, %v3135
        %v3196 = vpack.c.b16 %v3138, %v3137
        %v3197 = vpack.c.b16 %v3140, %v3139
        %v3198 = vpack.c.b16 %v3142, %v3141
        %v3199 = vpack.c.b16 %v3144, %v3143
        %v3200 = vpack.c.b16 %v3146, %v3145
        %v3201 = vpack.c.b16 %v3148, %v3147
        %v3202 = vpack.c.b16 %v3150, %v3149
        %v3203 = vpack.c.b16 %v3152, %v3151
        %v3204 = vpack.c.b16 %v3154, %v3153
        %v3205 = vpack.c.b16 %v3156, %v3155
        %v3206 = vpack.c.b16 %v3158, %v3157
        %v3207 = vpack.c.b16 %v3160, %v3159
        %v3208 = vpack.c.b16 %v3162, %v3161
        %v3209 = vpack.c.b16 %v3164, %v3163
        %v3210 = vpack.c.b16 %v3166, %v3165
        %v3211 = vpack.c.b16 %v3168, %v3167
        %v3212 = vpack.c.b16 %v3170, %v3169
        %v3213 = vpack.c.b16 %v3172, %v3171
        %v3214 = vpack.c.b16 %v3174, %v3173
        %3255 = vmatpush.bf16.msra.mxu0 %v3182
        %3256 = vmatpush.bf16.msra.mxu0 %v3181
        %3257 = vmatpush.bf16.msra.mxu0 %v3180
        %3258 = vmatpush.bf16.msra.mxu0 %v3179
        %3259 = vmatpush.bf16.msra.mxu0 %v3178
        %3260 = vmatpush.bf16.msra.mxu0 %v3177
        %3261 = vmatpush.bf16.msra.mxu0 %v3176
        %3262 = vmatpush.bf16.msra.mxu0 %v3175
        %3263 = vmatmul.bf16.gmra.mxu0 %v2983
        %v3264 = vpop.f32.mrf.mxu0
        %v3265 = vadd.f32 %v2962, %v3264
        %v3266 = vpop.f32.mrf.mxu0
        %v3267 = vadd.f32 %v2962, %v3266
        %3268 = vmatmul.bf16.gmra.mxu0 %v3000
        %v3269 = vpop.f32.mrf.mxu0
        %v3270 = vadd.f32 %v2962, %v3269
        %v3271 = vpop.f32.mrf.mxu0
        %v3272 = vadd.f32 %v2962, %v3271
        %3273 = vdwg.mxu0
        %3274 = vmatpush.bf16.msra.mxu0 %v3190
        %3275 = vmatpush.bf16.msra.mxu0 %v3189
        %3276 = vmatpush.bf16.msra.mxu0 %v3188
        %3277 = vmatpush.bf16.msra.mxu0 %v3187
        %3278 = vmatpush.bf16.msra.mxu0 %v3186
        %3279 = vmatpush.bf16.msra.mxu0 %v3185
        %3280 = vmatpush.bf16.msra.mxu0 %v3184
        %3281 = vmatpush.bf16.msra.mxu0 %v3183
        %3282 = vmatmul.bf16.gmra.mxu0 %v2984
        %v3283 = vpop.f32.mrf.mxu0
        %v3284 = vadd.f32 %v3265, %v3283
        %v3285 = vpop.f32.mrf.mxu0
        %v3286 = vadd.f32 %v3267, %v3285
        %3287 = vmatmul.bf16.gmra.mxu0 %v3001
        %v3288 = vpop.f32.mrf.mxu0
        %v3289 = vadd.f32 %v3270, %v3288
        %v3290 = vpop.f32.mrf.mxu0
        %v3291 = vadd.f32 %v3272, %v3290
        %3292 = vdwg.mxu0
        %3293 = vmatpush.bf16.msra.mxu0 %v3198
        %3294 = vmatpush.bf16.msra.mxu0 %v3197
        %3295 = vmatpush.bf16.msra.mxu0 %v3196
        %3296 = vmatpush.bf16.msra.mxu0 %v3195
        %3297 = vmatpush.bf16.msra.mxu0 %v3194
        %3298 = vmatpush.bf16.msra.mxu0 %v3193
        %3299 = vmatpush.bf16.msra.mxu0 %v3192
        %3300 = vmatpush.bf16.msra.mxu0 %v3191
        %3301 = vmatmul.bf16.gmra.mxu0 %v2985
        %v3302 = vpop.f32.mrf.mxu0
        %v3303 = vadd.f32 %v3284, %v3302
        %v3304 = vpop.f32.mrf.mxu0
        %v3305 = vadd.f32 %v3286, %v3304
        %3306 = vmatmul.bf16.gmra.mxu0 %v3002
        %v3307 = vpop.f32.mrf.mxu0
        %v3308 = vadd.f32 %v3289, %v3307
        %v3309 = vpop.f32.mrf.mxu0
        %v3310 = vadd.f32 %v3291, %v3309
        %3311 = vdwg.mxu0
        %3312 = vmatpush.bf16.msra.mxu0 %v3206
        %3313 = vmatpush.bf16.msra.mxu0 %v3205
        %3314 = vmatpush.bf16.msra.mxu0 %v3204
        %3315 = vmatpush.bf16.msra.mxu0 %v3203
        %3316 = vmatpush.bf16.msra.mxu0 %v3202
        %3317 = vmatpush.bf16.msra.mxu0 %v3201
        %3318 = vmatpush.bf16.msra.mxu0 %v3200
        %3319 = vmatpush.bf16.msra.mxu0 %v3199
        %3320 = vmatmul.bf16.gmra.mxu0 %v2986
        %v3321 = vpop.f32.mrf.mxu0
        %v3322 = vadd.f32 %v3303, %v3321
        %v3323 = vpop.f32.mrf.mxu0
        %v3324 = vadd.f32 %v3305, %v3323
        %3325 = vmatmul.bf16.gmra.mxu0 %v3003
        %v3326 = vpop.f32.mrf.mxu0
        %v3327 = vadd.f32 %v3308, %v3326
        %v3328 = vpop.f32.mrf.mxu0
        %v3329 = vadd.f32 %v3310, %v3328
        %3330 = vdwg.mxu0
        %3331 = vmatpush.bf16.msra.mxu0 %v3214
        %3332 = vmatpush.bf16.msra.mxu0 %v3213
        %3333 = vmatpush.bf16.msra.mxu0 %v3212
        %3334 = vmatpush.bf16.msra.mxu0 %v3211
        %3335 = vmatpush.bf16.msra.mxu0 %v3210
        %3336 = vmatpush.bf16.msra.mxu0 %v3209
        %3337 = vmatpush.bf16.msra.mxu0 %v3208
        %3338 = vmatpush.bf16.msra.mxu0 %v3207
        %3339 = vmatmul.bf16.gmra.mxu0 %v2987
        %v3340 = vpop.f32.mrf.mxu0
        %v3341 = vadd.f32 %v3322, %v3340
        %v3342 = vpop.f32.mrf.mxu0
        %v3343 = vadd.f32 %v3324, %v3342
        %3344 = vmatmul.bf16.gmra.mxu0 %v3004
        %v3345 = vpop.f32.mrf.mxu0
        %v3346 = vadd.f32 %v3327, %v3345
        %v3347 = vpop.f32.mrf.mxu0
        %v3348 = vadd.f32 %v3329, %v3347
        %3349 = vdwg.mxu0
        %v3354 = vrot.slane %v3341, 4
        %v3355 = vrot.slane %v3343, 4
        %v3356 = vrot.slane %v3346, 4
        %v3357 = vrot.slane %v3348, 4
        %s3362 = scalar_lea.vmem [#allocation10], 320
        %v3363 = vld [vmem:[%s3362] sm:$0xf]
        %v3364 = vld [vmem:[%s3362 + $0x4] sm:$0xf]
        %v3365 = vld [vmem:[%s3362 + $0x8] sm:$0xf]
        %v3366 = vld [vmem:[%s3362 + $0xc] sm:$0xf]
        %v3367 = vld [vmem:[%s3362 + $0x10] sm:$0xf]
        %v3368 = vld [vmem:[%s3362 + $0x14] sm:$0xf]
        %v3369 = vld [vmem:[%s3362 + $0x18] sm:$0xf]
        %v3370 = vld [vmem:[%s3362 + $0x1c] sm:$0xf]
        %v3371 = vld [vmem:[%s3362 + $0x20] sm:$0xf]
        %v3372 = vld [vmem:[%s3362 + $0x24] sm:$0xf]
        %v3373 = vld [vmem:[%s3362 + $0x28] sm:$0xf]
        %v3374 = vld [vmem:[%s3362 + $0x2c] sm:$0xf]
        %v3375 = vld [vmem:[%s3362 + $0x30] sm:$0xf]
        %v3376 = vld [vmem:[%s3362 + $0x34] sm:$0xf]
        %v3377 = vld [vmem:[%s3362 + $0x38] sm:$0xf]
        %v3378 = vld [vmem:[%s3362 + $0x3c] sm:$0xf]
        %v3379 = vld [vmem:[%s3362 + $0x40] sm:$0xf]
        %v3380 = vld [vmem:[%s3362 + $0x44] sm:$0xf]
        %v3381 = vld [vmem:[%s3362 + $0x48] sm:$0xf]
        %v3382 = vld [vmem:[%s3362 + $0x4c] sm:$0xf]
        %v3383 = vld [vmem:[%s3362 + $0x50] sm:$0xf]
        %v3384 = vld [vmem:[%s3362 + $0x54] sm:$0xf]
        %v3385 = vld [vmem:[%s3362 + $0x58] sm:$0xf]
        %v3386 = vld [vmem:[%s3362 + $0x5c] sm:$0xf]
        %v3387 = vld [vmem:[%s3362 + $0x60] sm:$0xf]
        %v3388 = vld [vmem:[%s3362 + $0x64] sm:$0xf]
        %v3389 = vld [vmem:[%s3362 + $0x68] sm:$0xf]
        %v3390 = vld [vmem:[%s3362 + $0x6c] sm:$0xf]
        %v3391 = vld [vmem:[%s3362 + $0x70] sm:$0xf]
        %v3392 = vld [vmem:[%s3362 + $0x74] sm:$0xf]
        %v3393 = vld [vmem:[%s3362 + $0x78] sm:$0xf]
        %v3394 = vld [vmem:[%s3362 + $0x7c] sm:$0xf]
        %v3395 = vld [vmem:[%s3362 + $0x80] sm:$0xf]
        %v3396 = vld [vmem:[%s3362 + $0x84] sm:$0xf]
        %v3397 = vld [vmem:[%s3362 + $0x88] sm:$0xf]
        %v3398 = vld [vmem:[%s3362 + $0x8c] sm:$0xf]
        %v3399 = vld [vmem:[%s3362 + $0x90] sm:$0xf]
        %v3400 = vld [vmem:[%s3362 + $0x94] sm:$0xf]
        %v3401 = vld [vmem:[%s3362 + $0x98] sm:$0xf]
        %v3402 = vld [vmem:[%s3362 + $0x9c] sm:$0xf]
        %v3403 = vld [vmem:[%s3362 + $0xa0] sm:$0xf]
        %v3404 = vld [vmem:[%s3362 + $0xa4] sm:$0xf]
        %v3405 = vld [vmem:[%s3362 + $0xa8] sm:$0xf]
        %v3406 = vld [vmem:[%s3362 + $0xac] sm:$0xf]
        %v3407 = vld [vmem:[%s3362 + $0xb0] sm:$0xf]
        %v3408 = vld [vmem:[%s3362 + $0xb4] sm:$0xf]
        %v3409 = vld [vmem:[%s3362 + $0xb8] sm:$0xf]
        %v3410 = vld [vmem:[%s3362 + $0xbc] sm:$0xf]
        %v3411 = vld [vmem:[%s3362 + $0xc0] sm:$0xf]
        %v3412 = vld [vmem:[%s3362 + $0xc4] sm:$0xf]
        %v3413 = vld [vmem:[%s3362 + $0xc8] sm:$0xf]
        %v3414 = vld [vmem:[%s3362 + $0xcc] sm:$0xf]
        %v3415 = vld [vmem:[%s3362 + $0xd0] sm:$0xf]
        %v3416 = vld [vmem:[%s3362 + $0xd4] sm:$0xf]
        %v3417 = vld [vmem:[%s3362 + $0xd8] sm:$0xf]
        %v3418 = vld [vmem:[%s3362 + $0xdc] sm:$0xf]
        %v3419 = vld [vmem:[%s3362 + $0xe0] sm:$0xf]
        %v3420 = vld [vmem:[%s3362 + $0xe4] sm:$0xf]
        %v3421 = vld [vmem:[%s3362 + $0xe8] sm:$0xf]
        %v3422 = vld [vmem:[%s3362 + $0xec] sm:$0xf]
        %v3423 = vld [vmem:[%s3362 + $0xf0] sm:$0xf]
        %v3424 = vld [vmem:[%s3362 + $0xf4] sm:$0xf]
        %v3425 = vld [vmem:[%s3362 + $0xf8] sm:$0xf]
        %v3426 = vld [vmem:[%s3362 + $0xfc] sm:$0xf]
        %v3427 = vld [vmem:[%s3362 + $0x100] sm:$0xf]
        %v3428 = vld [vmem:[%s3362 + $0x104] sm:$0xf]
        %v3429 = vld [vmem:[%s3362 + $0x108] sm:$0xf]
        %v3430 = vld [vmem:[%s3362 + $0x10c] sm:$0xf]
        %v3431 = vld [vmem:[%s3362 + $0x110] sm:$0xf]
        %v3432 = vld [vmem:[%s3362 + $0x114] sm:$0xf]
        %v3433 = vld [vmem:[%s3362 + $0x118] sm:$0xf]
        %v3434 = vld [vmem:[%s3362 + $0x11c] sm:$0xf]
        %v3435 = vld [vmem:[%s3362 + $0x120] sm:$0xf]
        %v3436 = vld [vmem:[%s3362 + $0x124] sm:$0xf]
        %v3437 = vld [vmem:[%s3362 + $0x128] sm:$0xf]
        %v3438 = vld [vmem:[%s3362 + $0x12c] sm:$0xf]
        %v3439 = vld [vmem:[%s3362 + $0x130] sm:$0xf]
        %v3440 = vld [vmem:[%s3362 + $0x134] sm:$0xf]
        %v3441 = vld [vmem:[%s3362 + $0x138] sm:$0xf]
        %v3442 = vld [vmem:[%s3362 + $0x13c] sm:$0xf]
        %s3443 = scalar_lea.vmem [#allocation11], 1
        %v3444 = vld [vmem:[%s3443] sm:$0x1]
        %v3445 = vmax.f32 %v3341, 0.0
        %v3446 = vmax.f32 %v3354, 0.0
        %v3447 = vmax.f32 %v3343, 0.0
        %v3448 = vmax.f32 %v3355, 0.0
        %v3449 = vmax.f32 %v3346, 0.0
        %v3450 = vmax.f32 %v3356, 0.0
        %v3451 = vmax.f32 %v3348, 0.0
        %v3452 = vmax.f32 %v3357, 0.0
        %v3453 = vpack.c.bf16 %v3445, %v3445
        %v3454 = vpack.c.bf16 %v3446, %v3446
        %v3455 = vpack.c.bf16 %v3447, %v3447
        %v3456 = vpack.c.bf16 %v3448, %v3448
        %v3457 = vpack.c.bf16 %v3449, %v3449
        %v3458 = vpack.c.bf16 %v3450, %v3450
        %v3459 = vpack.c.bf16 %v3451, %v3451
        %v3460 = vpack.c.bf16 %v3452, %v3452
        %v3469 = vunpack.c.l.b16 %v3453
        %v3470 = vunpack.c.l.b16 %v3454
        %v3471 = vunpack.c.l.b16 %v3455
        %v3472 = vunpack.c.l.b16 %v3456
        %v3473 = vunpack.c.l.b16 %v3457
        %v3474 = vunpack.c.l.b16 %v3458
        %v3475 = vunpack.c.l.b16 %v3459
        %v3476 = vunpack.c.l.b16 %v3460
        %v3477 = vpack.c.b16 %v3469, %v3469
        %v3478 = vpack.c.b16 %v3470, %v3470
        %v3479 = vpack.c.b16 %v3471, %v3471
        %v3480 = vpack.c.b16 %v3472, %v3472
        %v3481 = vpack.c.b16 %v3473, %v3473
        %v3482 = vpack.c.b16 %v3474, %v3474
        %v3483 = vpack.c.b16 %v3475, %v3475
        %v3484 = vpack.c.b16 %v3476, %v3476
        %v3485 = vrot.slane %v3477, 7
        %v3486 = vrot.slane %v3478, 7
        %v3487 = vrot.slane %v3479, 7
        %v3488 = vrot.slane %v3480, 7
        %v3489 = vrot.slane %v3481, 7
        %v3490 = vrot.slane %v3482, 7
        %v3491 = vrot.slane %v3483, 7
        %v3492 = vrot.slane %v3484, 7
        %v3494 = vsel %vm891, 0, %v3485
        %v3496 = vsel %vm891, 0, %v3486
        %v3498 = vsel %vm891, 0, %v3487
        %v3500 = vsel %vm891, 0, %v3488
        %v3502 = vsel %vm891, 0, %v3489
        %v3504 = vsel %vm891, 0, %v3490
        %v3506 = vsel %vm891, 0, %v3491
        %v3508 = vsel %vm891, 0, %v3492
        %v3509 = vsel %vm2782, %v3494, 0
        %v3510 = vsel %vm2782, %v3496, 0
        %v3511 = vsel %vm2782, %v3498, 0
        %v3512 = vsel %vm2782, %v3500, 0
        %v3513 = vsel %vm2782, %v3502, 0
        %v3514 = vsel %vm2782, %v3504, 0
        %v3515 = vsel %vm2782, %v3506, 0
        %v3516 = vsel %vm2782, %v3508, 0
        %v3517 = vshrl.u32 %v3509, 16
        %v3519 = vshll.u32 %v3509, 16
        %v3521 = vrot.slane %v3519, 1
        %v3522 = vor.u32 %v3517, %v3521
        %v3523 = vshrl.u32 %v3510, 16
        %v3525 = vshll.u32 %v3510, 16
        %v3527 = vrot.slane %v3525, 1
        %v3528 = vor.u32 %v3523, %v3527
        %v3529 = vshrl.u32 %v3511, 16
        %v3531 = vshll.u32 %v3511, 16
        %v3533 = vrot.slane %v3531, 1
        %v3534 = vor.u32 %v3529, %v3533
        %v3535 = vshrl.u32 %v3512, 16
        %v3537 = vshll.u32 %v3512, 16
        %v3539 = vrot.slane %v3537, 1
        %v3540 = vor.u32 %v3535, %v3539
        %v3541 = vshrl.u32 %v3513, 16
        %v3543 = vshll.u32 %v3513, 16
        %v3545 = vrot.slane %v3543, 1
        %v3546 = vor.u32 %v3541, %v3545
        %v3547 = vshrl.u32 %v3514, 16
        %v3549 = vshll.u32 %v3514, 16
        %v3551 = vrot.slane %v3549, 1
        %v3552 = vor.u32 %v3547, %v3551
        %v3553 = vshrl.u32 %v3515, 16
        %v3555 = vshll.u32 %v3515, 16
        %v3557 = vrot.slane %v3555, 1
        %v3558 = vor.u32 %v3553, %v3557
        %v3559 = vshrl.u32 %v3516, 16
        %v3561 = vshll.u32 %v3516, 16
        %v3563 = vrot.slane %v3561, 1
        %v3564 = vor.u32 %v3559, %v3563
        %v3573 = vrot.slane %v3509, 1
        %v3574 = vrot.slane %v3510, 1
        %v3575 = vrot.slane %v3511, 1
        %v3576 = vrot.slane %v3512, 1
        %v3577 = vrot.slane %v3513, 1
        %v3578 = vrot.slane %v3514, 1
        %v3579 = vrot.slane %v3515, 1
        %v3580 = vrot.slane %v3516, 1
        %v3581 = vrot.slane %v3517, 1
        %v3582 = vrot.slane %v3519, 2
        %v3583 = vor.u32 %v3581, %v3582
        %v3584 = vrot.slane %v3523, 1
        %v3585 = vrot.slane %v3525, 2
        %v3586 = vor.u32 %v3584, %v3585
        %v3587 = vrot.slane %v3529, 1
        %v3588 = vrot.slane %v3531, 2
        %v3589 = vor.u32 %v3587, %v3588
        %v3590 = vrot.slane %v3535, 1
        %v3591 = vrot.slane %v3537, 2
        %v3592 = vor.u32 %v3590, %v3591
        %v3593 = vrot.slane %v3541, 1
        %v3594 = vrot.slane %v3543, 2
        %v3595 = vor.u32 %v3593, %v3594
        %v3596 = vrot.slane %v3547, 1
        %v3597 = vrot.slane %v3549, 2
        %v3598 = vor.u32 %v3596, %v3597
        %v3599 = vrot.slane %v3553, 1
        %v3600 = vrot.slane %v3555, 2
        %v3601 = vor.u32 %v3599, %v3600
        %v3602 = vrot.slane %v3559, 1
        %v3603 = vrot.slane %v3561, 2
        %v3604 = vor.u32 %v3602, %v3603
        %v3605 = vrot.slane %v3509, 2
        %v3606 = vrot.slane %v3510, 2
        %v3607 = vrot.slane %v3511, 2
        %v3608 = vrot.slane %v3512, 2
        %v3609 = vrot.slane %v3513, 2
        %v3610 = vrot.slane %v3514, 2
        %v3611 = vrot.slane %v3515, 2
        %v3612 = vrot.slane %v3516, 2
        %v3613 = vrot.slane %v3522, 6
        %v3614 = vrot.slane %v3573, 4
        %v3615 = vrot.slane %v3583, 2
        %v3616 = vrot.slane %v3528, 6
        %v3617 = vrot.slane %v3574, 4
        %v3618 = vrot.slane %v3586, 2
        %v3619 = vrot.slane %v3534, 6
        %v3620 = vrot.slane %v3575, 4
        %v3621 = vrot.slane %v3589, 2
        %v3622 = vrot.slane %v3540, 6
        %v3623 = vrot.slane %v3576, 4
        %v3624 = vrot.slane %v3592, 2
        %v3625 = vrot.slane %v3546, 6
        %v3626 = vrot.slane %v3577, 4
        %v3627 = vrot.slane %v3595, 2
        %v3628 = vrot.slane %v3552, 6
        %v3629 = vrot.slane %v3578, 4
        %v3630 = vrot.slane %v3598, 2
        %v3631 = vrot.slane %v3558, 6
        %v3632 = vrot.slane %v3579, 4
        %v3633 = vrot.slane %v3601, 2
        %v3634 = vrot.slane %v3564, 6
        %v3635 = vrot.slane %v3580, 4
        %v3636 = vrot.slane %v3604, 2
        %v3638 = vsel %vm2263, %v3509, %v3613
        %v3641 = vsel %vm2913, %v3614, %v3615
        %v3642 = vsel %vm2917, %v3638, %v3641
        %v3644 = vsel %vm2263, %v3510, %v3616
        %v3647 = vsel %vm2913, %v3617, %v3618
        %v3648 = vsel %vm2917, %v3644, %v3647
        %v3650 = vsel %vm2263, %v3511, %v3619
        %v3653 = vsel %vm2913, %v3620, %v3621
        %v3654 = vsel %vm2917, %v3650, %v3653
        %v3656 = vsel %vm2263, %v3512, %v3622
        %v3659 = vsel %vm2913, %v3623, %v3624
        %v3660 = vsel %vm2917, %v3656, %v3659
        %v3662 = vsel %vm2263, %v3513, %v3625
        %v3665 = vsel %vm2913, %v3626, %v3627
        %v3666 = vsel %vm2917, %v3662, %v3665
        %v3668 = vsel %vm2263, %v3514, %v3628
        %v3671 = vsel %vm2913, %v3629, %v3630
        %v3672 = vsel %vm2917, %v3668, %v3671
        %v3674 = vsel %vm2263, %v3515, %v3631
        %v3677 = vsel %vm2913, %v3632, %v3633
        %v3678 = vsel %vm2917, %v3674, %v3677
        %v3680 = vsel %vm2263, %v3516, %v3634
        %v3683 = vsel %vm2913, %v3635, %v3636
        %v3684 = vsel %vm2917, %v3680, %v3683
        %v3686 = vperm.slane %v3444, 0
        %3688 = vst [vmem:[#allocation1] ss:$4 sm:$0xff] %v3642
        %s3689 = scalar_lea.vmem [#allocation1], 1
        %3690 = vst [vmem:[%s3689] ss:$4 sm:$0xff] %v3648
        %s3691 = scalar_lea.vmem [#allocation1], 2
        %3692 = vst [vmem:[%s3691] ss:$4 sm:$0xff] %v3654
        %s3693 = scalar_lea.vmem [#allocation1], 3
        %3694 = vst [vmem:[%s3693] ss:$4 sm:$0xff] %v3660
        %s3696 = scalar_lea.vmem [#allocation1], 32
        %3697 = vst [vmem:[%s3696] ss:$4 sm:$0xff] %v3605
        %s3699 = scalar_lea.vmem [#allocation1], 33
        %3700 = vst [vmem:[%s3699] ss:$4 sm:$0xff] %v3606
        %s3702 = scalar_lea.vmem [#allocation1], 34
        %3703 = vst [vmem:[%s3702] ss:$4 sm:$0xff] %v3607
        %s3705 = scalar_lea.vmem [#allocation1], 35
        %3706 = vst [vmem:[%s3705] ss:$4 sm:$0xff] %v3608
        %v3707 = vld.sshfl [vmem:[#allocation1] sm:$0xff pattern:$0x73625140]
        %v3708 = vld.sshfl [vmem:[#allocation1 + $0x8] sm:$0xff pattern:$0x73625140]
        %v3709 = vld.sshfl [vmem:[#allocation1 + $0x10] sm:$0xff pattern:$0x73625140]
        %v3710 = vld.sshfl [vmem:[#allocation1 + $0x18] sm:$0xff pattern:$0x73625140]
        %v3711 = vld.sshfl [vmem:[#allocation1 + $0x20] sm:$0xff pattern:$0x73625140]
        %3712 = vst [vmem:[#allocation1] ss:$4 sm:$0xff] %v3666
        %3713 = vst [vmem:[%s3689] ss:$4 sm:$0xff] %v3672
        %3714 = vst [vmem:[%s3691] ss:$4 sm:$0xff] %v3678
        %3715 = vst [vmem:[%s3693] ss:$4 sm:$0xff] %v3684
        %3717 = vst [vmem:[%s3696] ss:$4 sm:$0xff] %v3609
        %3719 = vst [vmem:[%s3699] ss:$4 sm:$0xff] %v3610
        %3721 = vst [vmem:[%s3702] ss:$4 sm:$0xff] %v3611
        %3723 = vst [vmem:[%s3705] ss:$4 sm:$0xff] %v3612
        %v3724 = vld.sshfl [vmem:[#allocation1] sm:$0xff pattern:$0x73625140]
        %v3725 = vld.sshfl [vmem:[#allocation1 + $0x8] sm:$0xff pattern:$0x73625140]
        %v3726 = vld.sshfl [vmem:[#allocation1 + $0x10] sm:$0xff pattern:$0x73625140]
        %v3727 = vld.sshfl [vmem:[#allocation1 + $0x18] sm:$0xff pattern:$0x73625140]
        %v3728 = vld.sshfl [vmem:[#allocation1 + $0x20] sm:$0xff pattern:$0x73625140]
        %v3819 = vunpack.c.l.b16 %v3363
        %v3820 = vunpack.c.l.b16 %v3364
        %v3821 = vunpack.c.l.b16 %v3365
        %v3822 = vunpack.c.l.b16 %v3366
        %v3823 = vunpack.c.l.b16 %v3367
        %v3824 = vunpack.c.l.b16 %v3368
        %v3825 = vunpack.c.l.b16 %v3369
        %v3826 = vunpack.c.l.b16 %v3370
        %v3827 = vunpack.c.l.b16 %v3371
        %v3828 = vunpack.c.l.b16 %v3372
        %v3829 = vunpack.c.l.b16 %v3373
        %v3830 = vunpack.c.l.b16 %v3374
        %v3831 = vunpack.c.l.b16 %v3375
        %v3832 = vunpack.c.l.b16 %v3376
        %v3833 = vunpack.c.l.b16 %v3377
        %v3834 = vunpack.c.l.b16 %v3378
        %v3835 = vunpack.c.l.b16 %v3379
        %v3836 = vunpack.c.l.b16 %v3380
        %v3837 = vunpack.c.l.b16 %v3381
        %v3838 = vunpack.c.l.b16 %v3382
        %v3839 = vunpack.c.l.b16 %v3383
        %v3840 = vunpack.c.l.b16 %v3384
        %v3841 = vunpack.c.l.b16 %v3385
        %v3842 = vunpack.c.l.b16 %v3386
        %v3843 = vunpack.c.l.b16 %v3387
        %v3844 = vunpack.c.l.b16 %v3388
        %v3845 = vunpack.c.l.b16 %v3389
        %v3846 = vunpack.c.l.b16 %v3390
        %v3847 = vunpack.c.l.b16 %v3391
        %v3848 = vunpack.c.l.b16 %v3392
        %v3849 = vunpack.c.l.b16 %v3393
        %v3850 = vunpack.c.l.b16 %v3394
        %v3851 = vunpack.c.l.b16 %v3395
        %v3852 = vunpack.c.l.b16 %v3396
        %v3853 = vunpack.c.l.b16 %v3397
        %v3854 = vunpack.c.l.b16 %v3398
        %v3855 = vunpack.c.l.b16 %v3399
        %v3856 = vunpack.c.l.b16 %v3400
        %v3857 = vunpack.c.l.b16 %v3401
        %v3858 = vunpack.c.l.b16 %v3402
        %v3859 = vunpack.c.l.b16 %v3403
        %v3860 = vunpack.c.l.b16 %v3404
        %v3861 = vunpack.c.l.b16 %v3405
        %v3862 = vunpack.c.l.b16 %v3406
        %v3863 = vunpack.c.l.b16 %v3407
        %v3864 = vunpack.c.l.b16 %v3408
        %v3865 = vunpack.c.l.b16 %v3409
        %v3866 = vunpack.c.l.b16 %v3410
        %v3867 = vunpack.c.l.b16 %v3411
        %v3868 = vunpack.c.l.b16 %v3412
        %v3869 = vunpack.c.l.b16 %v3413
        %v3870 = vunpack.c.l.b16 %v3414
        %v3871 = vunpack.c.l.b16 %v3415
        %v3872 = vunpack.c.l.b16 %v3416
        %v3873 = vunpack.c.l.b16 %v3417
        %v3874 = vunpack.c.l.b16 %v3418
        %v3875 = vunpack.c.l.b16 %v3419
        %v3876 = vunpack.c.l.b16 %v3420
        %v3877 = vunpack.c.l.b16 %v3421
        %v3878 = vunpack.c.l.b16 %v3422
        %v3879 = vunpack.c.l.b16 %v3423
        %v3880 = vunpack.c.l.b16 %v3424
        %v3881 = vunpack.c.l.b16 %v3425
        %v3882 = vunpack.c.l.b16 %v3426
        %v3883 = vunpack.c.l.b16 %v3427
        %v3884 = vunpack.c.l.b16 %v3428
        %v3885 = vunpack.c.l.b16 %v3429
        %v3886 = vunpack.c.l.b16 %v3430
        %v3887 = vunpack.c.l.b16 %v3431
        %v3888 = vunpack.c.l.b16 %v3432
        %v3889 = vunpack.c.l.b16 %v3433
        %v3890 = vunpack.c.l.b16 %v3434
        %v3891 = vunpack.c.l.b16 %v3435
        %v3892 = vunpack.c.l.b16 %v3436
        %v3893 = vunpack.c.l.b16 %v3437
        %v3894 = vunpack.c.l.b16 %v3438
        %v3895 = vunpack.c.l.b16 %v3439
        %v3896 = vunpack.c.l.b16 %v3440
        %v3897 = vunpack.c.l.b16 %v3441
        %v3898 = vunpack.c.l.b16 %v3442
        %v3899 = vpack.c.b16 %v3820, %v3819
        %v3900 = vpack.c.b16 %v3822, %v3821
        %v3901 = vpack.c.b16 %v3824, %v3823
        %v3902 = vpack.c.b16 %v3826, %v3825
        %v3903 = vpack.c.b16 %v3828, %v3827
        %v3904 = vpack.c.b16 %v3830, %v3829
        %v3905 = vpack.c.b16 %v3832, %v3831
        %v3906 = vpack.c.b16 %v3834, %v3833
        %v3907 = vpack.c.b16 %v3836, %v3835
        %v3908 = vpack.c.b16 %v3838, %v3837
        %v3909 = vpack.c.b16 %v3840, %v3839
        %v3910 = vpack.c.b16 %v3842, %v3841
        %v3911 = vpack.c.b16 %v3844, %v3843
        %v3912 = vpack.c.b16 %v3846, %v3845
        %v3913 = vpack.c.b16 %v3848, %v3847
        %v3914 = vpack.c.b16 %v3850, %v3849
        %v3915 = vpack.c.b16 %v3852, %v3851
        %v3916 = vpack.c.b16 %v3854, %v3853
        %v3917 = vpack.c.b16 %v3856, %v3855
        %v3918 = vpack.c.b16 %v3858, %v3857
        %v3919 = vpack.c.b16 %v3860, %v3859
        %v3920 = vpack.c.b16 %v3862, %v3861
        %v3921 = vpack.c.b16 %v3864, %v3863
        %v3922 = vpack.c.b16 %v3866, %v3865
        %v3923 = vpack.c.b16 %v3868, %v3867
        %v3924 = vpack.c.b16 %v3870, %v3869
        %v3925 = vpack.c.b16 %v3872, %v3871
        %v3926 = vpack.c.b16 %v3874, %v3873
        %v3927 = vpack.c.b16 %v3876, %v3875
        %v3928 = vpack.c.b16 %v3878, %v3877
        %v3929 = vpack.c.b16 %v3880, %v3879
        %v3930 = vpack.c.b16 %v3882, %v3881
        %v3931 = vpack.c.b16 %v3884, %v3883
        %v3932 = vpack.c.b16 %v3886, %v3885
        %v3933 = vpack.c.b16 %v3888, %v3887
        %v3934 = vpack.c.b16 %v3890, %v3889
        %v3935 = vpack.c.b16 %v3892, %v3891
        %v3936 = vpack.c.b16 %v3894, %v3893
        %v3937 = vpack.c.b16 %v3896, %v3895
        %v3938 = vpack.c.b16 %v3898, %v3897
        %3979 = vmatpush.bf16.msra.mxu0 %v3906
        %3980 = vmatpush.bf16.msra.mxu0 %v3905
        %3981 = vmatpush.bf16.msra.mxu0 %v3904
        %3982 = vmatpush.bf16.msra.mxu0 %v3903
        %3983 = vmatpush.bf16.msra.mxu0 %v3902
        %3984 = vmatpush.bf16.msra.mxu0 %v3901
        %3985 = vmatpush.bf16.msra.mxu0 %v3900
        %3986 = vmatpush.bf16.msra.mxu0 %v3899
        %3987 = vmatmul.bf16.gmra.mxu0 %v3707
        %v3988 = vpop.f32.mrf.mxu0
        %v3989 = vadd.f32 %v3686, %v3988
        %v3990 = vpop.f32.mrf.mxu0
        %v3991 = vadd.f32 %v3686, %v3990
        %3992 = vmatmul.bf16.gmra.mxu0 %v3724
        %v3993 = vpop.f32.mrf.mxu0
        %v3994 = vadd.f32 %v3686, %v3993
        %v3995 = vpop.f32.mrf.mxu0
        %v3996 = vadd.f32 %v3686, %v3995
        %3997 = vdwg.mxu0
        %3998 = vmatpush.bf16.msra.mxu0 %v3914
        %3999 = vmatpush.bf16.msra.mxu0 %v3913
        %4000 = vmatpush.bf16.msra.mxu0 %v3912
        %4001 = vmatpush.bf16.msra.mxu0 %v3911
        %4002 = vmatpush.bf16.msra.mxu0 %v3910
        %4003 = vmatpush.bf16.msra.mxu0 %v3909
        %4004 = vmatpush.bf16.msra.mxu0 %v3908
        %4005 = vmatpush.bf16.msra.mxu0 %v3907
        %4006 = vmatmul.bf16.gmra.mxu0 %v3708
        %v4007 = vpop.f32.mrf.mxu0
        %v4008 = vadd.f32 %v3989, %v4007
        %v4009 = vpop.f32.mrf.mxu0
        %v4010 = vadd.f32 %v3991, %v4009
        %4011 = vmatmul.bf16.gmra.mxu0 %v3725
        %v4012 = vpop.f32.mrf.mxu0
        %v4013 = vadd.f32 %v3994, %v4012
        %v4014 = vpop.f32.mrf.mxu0
        %v4015 = vadd.f32 %v3996, %v4014
        %4016 = vdwg.mxu0
        %4017 = vmatpush.bf16.msra.mxu0 %v3922
        %4018 = vmatpush.bf16.msra.mxu0 %v3921
        %4019 = vmatpush.bf16.msra.mxu0 %v3920
        %4020 = vmatpush.bf16.msra.mxu0 %v3919
        %4021 = vmatpush.bf16.msra.mxu0 %v3918
        %4022 = vmatpush.bf16.msra.mxu0 %v3917
        %4023 = vmatpush.bf16.msra.mxu0 %v3916
        %4024 = vmatpush.bf16.msra.mxu0 %v3915
        %4025 = vmatmul.bf16.gmra.mxu0 %v3709
        %v4026 = vpop.f32.mrf.mxu0
        %v4027 = vadd.f32 %v4008, %v4026
        %v4028 = vpop.f32.mrf.mxu0
        %v4029 = vadd.f32 %v4010, %v4028
        %4030 = vmatmul.bf16.gmra.mxu0 %v3726
        %v4031 = vpop.f32.mrf.mxu0
        %v4032 = vadd.f32 %v4013, %v4031
        %v4033 = vpop.f32.mrf.mxu0
        %v4034 = vadd.f32 %v4015, %v4033
        %4035 = vdwg.mxu0
        %4036 = vmatpush.bf16.msra.mxu0 %v3930
        %4037 = vmatpush.bf16.msra.mxu0 %v3929
        %4038 = vmatpush.bf16.msra.mxu0 %v3928
        %4039 = vmatpush.bf16.msra.mxu0 %v3927
        %4040 = vmatpush.bf16.msra.mxu0 %v3926
        %4041 = vmatpush.bf16.msra.mxu0 %v3925
        %4042 = vmatpush.bf16.msra.mxu0 %v3924
        %4043 = vmatpush.bf16.msra.mxu0 %v3923
        %4044 = vmatmul.bf16.gmra.mxu0 %v3710
        %v4045 = vpop.f32.mrf.mxu0
        %v4046 = vadd.f32 %v4027, %v4045
        %v4047 = vpop.f32.mrf.mxu0
        %v4048 = vadd.f32 %v4029, %v4047
        %4049 = vmatmul.bf16.gmra.mxu0 %v3727
        %v4050 = vpop.f32.mrf.mxu0
        %v4051 = vadd.f32 %v4032, %v4050
        %v4052 = vpop.f32.mrf.mxu0
        %v4053 = vadd.f32 %v4034, %v4052
        %4054 = vdwg.mxu0
        %4055 = vmatpush.bf16.msra.mxu0 %v3938
        %4056 = vmatpush.bf16.msra.mxu0 %v3937
        %4057 = vmatpush.bf16.msra.mxu0 %v3936
        %4058 = vmatpush.bf16.msra.mxu0 %v3935
        %4059 = vmatpush.bf16.msra.mxu0 %v3934
        %4060 = vmatpush.bf16.msra.mxu0 %v3933
        %4061 = vmatpush.bf16.msra.mxu0 %v3932
        %4062 = vmatpush.bf16.msra.mxu0 %v3931
        %4063 = vmatmul.bf16.gmra.mxu0 %v3711
        %v4064 = vpop.f32.mrf.mxu0
        %v4065 = vadd.f32 %v4046, %v4064
        %v4066 = vpop.f32.mrf.mxu0
        %v4067 = vadd.f32 %v4048, %v4066
        %4068 = vmatmul.bf16.gmra.mxu0 %v3728
        %v4069 = vpop.f32.mrf.mxu0
        %v4070 = vadd.f32 %v4051, %v4069
        %v4071 = vpop.f32.mrf.mxu0
        %v4072 = vadd.f32 %v4053, %v4071
        %4073 = vdwg.mxu0
        %v4078 = vrot.slane %v4065, 4
        %v4079 = vrot.slane %v4067, 4
        %v4080 = vrot.slane %v4070, 4
        %v4081 = vrot.slane %v4072, 4
        %4082 = vst [vmem:[#allocation1] ss:$2 sm:$0xff] %v4065
        %v4083 = vld.sshfl [vmem:[#allocation1] sm:$0xff pattern:$0x75316420]
        %s4084 = scalar_lea.vmem [#allocation1], 16
        %4085 = vst [vmem:[%s4084] ss:$2 sm:$0xff] %v4078
        %v4086 = vld.sshfl [vmem:[#allocation1 + $0x10] sm:$0xff pattern:$0x75316420]
        %s4087 = scalar_lea.vmem [#allocation1], 32
        %4088 = vst [vmem:[%s4087] ss:$2 sm:$0xff] %v4067
        %v4089 = vld.sshfl [vmem:[#allocation1 + $0x20] sm:$0xff pattern:$0x75316420]
        %s4090 = scalar_lea.vmem [#allocation1], 48
        %4091 = vst [vmem:[%s4090] ss:$2 sm:$0xff] %v4079
        %v4092 = vld.sshfl [vmem:[#allocation1 + $0x30] sm:$0xff pattern:$0x75316420]
        %4093 = vst [vmem:[#allocation1] ss:$2 sm:$0xff] %v4070
        %v4094 = vld.sshfl [vmem:[#allocation1] sm:$0xff pattern:$0x75316420]
        %4095 = vst [vmem:[%s4084] ss:$2 sm:$0xff] %v4080
        %v4096 = vld.sshfl [vmem:[#allocation1 + $0x10] sm:$0xff pattern:$0x75316420]
        %4097 = vst [vmem:[%s4087] ss:$2 sm:$0xff] %v4072
        %v4098 = vld.sshfl [vmem:[#allocation1 + $0x20] sm:$0xff pattern:$0x75316420]
        %4099 = vst [vmem:[%s4090] ss:$2 sm:$0xff] %v4081
        %v4100 = vld.sshfl [vmem:[#allocation1 + $0x30] sm:$0xff pattern:$0x75316420]
        %v4101 = vrot.slane %v4083, 1
        %v4102 = vrot.slane %v4083, 2
        %v4103 = vrot.slane %v4083, 3
        %v4104 = vrot.slane %v4086, 1
        %v4105 = vrot.slane %v4086, 2
        %v4106 = vrot.slane %v4086, 3
        %v4107 = vrot.slane %v4089, 1
        %v4108 = vrot.slane %v4089, 2
        %v4109 = vrot.slane %v4089, 3
        %v4110 = vrot.slane %v4092, 1
        %v4111 = vrot.slane %v4092, 2
        %v4112 = vrot.slane %v4092, 3
        %v4113 = vrot.slane %v4094, 1
        %v4114 = vrot.slane %v4094, 2
        %v4115 = vrot.slane %v4094, 3
        %v4116 = vrot.slane %v4096, 1
        %v4117 = vrot.slane %v4096, 2
        %v4118 = vrot.slane %v4096, 3
        %v4119 = vrot.slane %v4098, 1
        %v4120 = vrot.slane %v4098, 2
        %v4121 = vrot.slane %v4098, 3
        %v4122 = vrot.slane %v4100, 1
        %v4123 = vrot.slane %v4100, 2
        %v4124 = vrot.slane %v4100, 3
        %v4157 = vadd.f32 %v2270, %v4083
        %v4158 = vadd.f32 %v2277, %v4101
        %v4159 = vadd.f32 %v2284, %v4102
        %v4160 = vadd.f32 %v2291, %v4103
        %v4161 = vadd.f32 %v2298, %v4086
        %v4162 = vadd.f32 %v2305, %v4104
        %v4163 = vadd.f32 %v2312, %v4105
        %v4164 = vadd.f32 %v2319, %v4106
        %v4165 = vadd.f32 %v2326, %v4089
        %v4166 = vadd.f32 %v2333, %v4107
        %v4167 = vadd.f32 %v2340, %v4108
        %v4168 = vadd.f32 %v2347, %v4109
        %v4169 = vadd.f32 %v2354, %v4092
        %v4170 = vadd.f32 %v2361, %v4110
        %v4171 = vadd.f32 %v2368, %v4111
        %v4172 = vadd.f32 %v2375, %v4112
        %v4173 = vadd.f32 %v2382, %v4094
        %v4174 = vadd.f32 %v2389, %v4113
        %v4175 = vadd.f32 %v2396, %v4114
        %v4176 = vadd.f32 %v2403, %v4115
        %v4177 = vadd.f32 %v2410, %v4096
        %v4178 = vadd.f32 %v2417, %v4116
        %v4179 = vadd.f32 %v2424, %v4117
        %v4180 = vadd.f32 %v2431, %v4118
        %v4181 = vadd.f32 %v2438, %v4098
        %v4182 = vadd.f32 %v2445, %v4119
        %v4183 = vadd.f32 %v2452, %v4120
        %v4184 = vadd.f32 %v2459, %v4121
        %v4185 = vadd.f32 %v2466, %v4100
        %v4186 = vadd.f32 %v2473, %v4122
        %v4187 = vadd.f32 %v2480, %v4123
        %v4188 = vadd.f32 %v2487, %v4124
        %v4189 = vsel %vm891, %v4157, -inf
        %v4190 = vsel %vm891, %v4158, -inf
        %v4191 = vmax.f32 %v4189, %v4190
        %v4192 = vsel %vm891, %v4159, -inf
        %v4193 = vsel %vm891, %v4160, -inf
        %v4194 = vmax.f32 %v4192, %v4193
        %v4195 = vsel %vm891, %v4161, -inf
        %v4196 = vsel %vm891, %v4162, -inf
        %v4197 = vmax.f32 %v4195, %v4196
        %v4198 = vsel %vm891, %v4163, -inf
        %v4199 = vsel %vm891, %v4164, -inf
        %v4200 = vmax.f32 %v4198, %v4199
        %v4201 = vsel %vm891, %v4165, -inf
        %v4202 = vsel %vm891, %v4166, -inf
        %v4203 = vmax.f32 %v4201, %v4202
        %v4204 = vsel %vm891, %v4167, -inf
        %v4205 = vsel %vm891, %v4168, -inf
        %v4206 = vmax.f32 %v4204, %v4205
        %v4207 = vsel %vm891, %v4169, -inf
        %v4208 = vsel %vm891, %v4170, -inf
        %v4209 = vmax.f32 %v4207, %v4208
        %v4210 = vsel %vm891, %v4171, -inf
        %v4211 = vsel %vm891, %v4172, -inf
        %v4212 = vmax.f32 %v4210, %v4211
        %v4213 = vsel %vm891, %v4173, -inf
        %v4214 = vsel %vm891, %v4174, -inf
        %v4215 = vmax.f32 %v4213, %v4214
        %v4216 = vsel %vm891, %v4175, -inf
        %v4217 = vsel %vm891, %v4176, -inf
        %v4218 = vmax.f32 %v4216, %v4217
        %v4219 = vsel %vm891, %v4177, -inf
        %v4220 = vsel %vm891, %v4178, -inf
        %v4221 = vmax.f32 %v4219, %v4220
        %v4222 = vsel %vm891, %v4179, -inf
        %v4223 = vsel %vm891, %v4180, -inf
        %v4224 = vmax.f32 %v4222, %v4223
        %v4225 = vsel %vm891, %v4181, -inf
        %v4226 = vsel %vm891, %v4182, -inf
        %v4227 = vmax.f32 %v4225, %v4226
        %v4228 = vsel %vm891, %v4183, -inf
        %v4229 = vsel %vm891, %v4184, -inf
        %v4230 = vmax.f32 %v4228, %v4229
        %v4231 = vsel %vm891, %v4185, -inf
        %v4232 = vsel %vm891, %v4186, -inf
        %v4233 = vmax.f32 %v4231, %v4232
        %v4234 = vsel %vm891, %v4187, -inf
        %v4235 = vsel %vm891, %v4188, -inf
        %v4236 = vmax.f32 %v4234, %v4235
        %s4237 = scalar_lea.vmem [#allocation7], 640
        %v4238 = vld [vmem:[%s4237] sm:$0xf]
        %v4239 = vld [vmem:[%s4237 + $0x4] sm:$0xf]
        %v4240 = vld [vmem:[%s4237 + $0x8] sm:$0xf]
        %v4241 = vld [vmem:[%s4237 + $0xc] sm:$0xf]
        %v4242 = vld [vmem:[%s4237 + $0x10] sm:$0xf]
        %v4243 = vld [vmem:[%s4237 + $0x14] sm:$0xf]
        %v4244 = vld [vmem:[%s4237 + $0x18] sm:$0xf]
        %v4245 = vld [vmem:[%s4237 + $0x1c] sm:$0xf]
        %v4246 = vld [vmem:[%s4237 + $0x20] sm:$0xf]
        %v4247 = vld [vmem:[%s4237 + $0x24] sm:$0xf]
        %v4248 = vld [vmem:[%s4237 + $0x28] sm:$0xf]
        %v4249 = vld [vmem:[%s4237 + $0x2c] sm:$0xf]
        %v4250 = vld [vmem:[%s4237 + $0x30] sm:$0xf]
        %v4251 = vld [vmem:[%s4237 + $0x34] sm:$0xf]
        %v4252 = vld [vmem:[%s4237 + $0x38] sm:$0xf]
        %v4253 = vld [vmem:[%s4237 + $0x3c] sm:$0xf]
        %v4254 = vld [vmem:[%s4237 + $0x40] sm:$0xf]
        %v4255 = vld [vmem:[%s4237 + $0x44] sm:$0xf]
        %v4256 = vld [vmem:[%s4237 + $0x48] sm:$0xf]
        %v4257 = vld [vmem:[%s4237 + $0x4c] sm:$0xf]
        %v4258 = vld [vmem:[%s4237 + $0x50] sm:$0xf]
        %v4259 = vld [vmem:[%s4237 + $0x54] sm:$0xf]
        %v4260 = vld [vmem:[%s4237 + $0x58] sm:$0xf]
        %v4261 = vld [vmem:[%s4237 + $0x5c] sm:$0xf]
        %v4262 = vld [vmem:[%s4237 + $0x60] sm:$0xf]
        %v4263 = vld [vmem:[%s4237 + $0x64] sm:$0xf]
        %v4264 = vld [vmem:[%s4237 + $0x68] sm:$0xf]
        %v4265 = vld [vmem:[%s4237 + $0x6c] sm:$0xf]
        %v4266 = vld [vmem:[%s4237 + $0x70] sm:$0xf]
        %v4267 = vld [vmem:[%s4237 + $0x74] sm:$0xf]
        %v4268 = vld [vmem:[%s4237 + $0x78] sm:$0xf]
        %v4269 = vld [vmem:[%s4237 + $0x7c] sm:$0xf]
        %v4270 = vld [vmem:[%s4237 + $0x80] sm:$0xf]
        %v4271 = vld [vmem:[%s4237 + $0x84] sm:$0xf]
        %v4272 = vld [vmem:[%s4237 + $0x88] sm:$0xf]
        %v4273 = vld [vmem:[%s4237 + $0x8c] sm:$0xf]
        %v4274 = vld [vmem:[%s4237 + $0x90] sm:$0xf]
        %v4275 = vld [vmem:[%s4237 + $0x94] sm:$0xf]
        %v4276 = vld [vmem:[%s4237 + $0x98] sm:$0xf]
        %v4277 = vld [vmem:[%s4237 + $0x9c] sm:$0xf]
        %v4278 = vld [vmem:[%s4237 + $0xa0] sm:$0xf]
        %v4279 = vld [vmem:[%s4237 + $0xa4] sm:$0xf]
        %v4280 = vld [vmem:[%s4237 + $0xa8] sm:$0xf]
        %v4281 = vld [vmem:[%s4237 + $0xac] sm:$0xf]
        %v4282 = vld [vmem:[%s4237 + $0xb0] sm:$0xf]
        %v4283 = vld [vmem:[%s4237 + $0xb4] sm:$0xf]
        %v4284 = vld [vmem:[%s4237 + $0xb8] sm:$0xf]
        %v4285 = vld [vmem:[%s4237 + $0xbc] sm:$0xf]
        %v4286 = vld [vmem:[%s4237 + $0xc0] sm:$0xf]
        %v4287 = vld [vmem:[%s4237 + $0xc4] sm:$0xf]
        %v4288 = vld [vmem:[%s4237 + $0xc8] sm:$0xf]
        %v4289 = vld [vmem:[%s4237 + $0xcc] sm:$0xf]
        %v4290 = vld [vmem:[%s4237 + $0xd0] sm:$0xf]
        %v4291 = vld [vmem:[%s4237 + $0xd4] sm:$0xf]
        %v4292 = vld [vmem:[%s4237 + $0xd8] sm:$0xf]
        %v4293 = vld [vmem:[%s4237 + $0xdc] sm:$0xf]
        %v4294 = vld [vmem:[%s4237 + $0xe0] sm:$0xf]
        %v4295 = vld [vmem:[%s4237 + $0xe4] sm:$0xf]
        %v4296 = vld [vmem:[%s4237 + $0xe8] sm:$0xf]
        %v4297 = vld [vmem:[%s4237 + $0xec] sm:$0xf]
        %v4298 = vld [vmem:[%s4237 + $0xf0] sm:$0xf]
        %v4299 = vld [vmem:[%s4237 + $0xf4] sm:$0xf]
        %v4300 = vld [vmem:[%s4237 + $0xf8] sm:$0xf]
        %v4301 = vld [vmem:[%s4237 + $0xfc] sm:$0xf]
        %v4302 = vld [vmem:[%s4237 + $0x100] sm:$0xf]
        %v4303 = vld [vmem:[%s4237 + $0x104] sm:$0xf]
        %v4304 = vld [vmem:[%s4237 + $0x108] sm:$0xf]
        %v4305 = vld [vmem:[%s4237 + $0x10c] sm:$0xf]
        %v4306 = vld [vmem:[%s4237 + $0x110] sm:$0xf]
        %v4307 = vld [vmem:[%s4237 + $0x114] sm:$0xf]
        %v4308 = vld [vmem:[%s4237 + $0x118] sm:$0xf]
        %v4309 = vld [vmem:[%s4237 + $0x11c] sm:$0xf]
        %v4310 = vld [vmem:[%s4237 + $0x120] sm:$0xf]
        %v4311 = vld [vmem:[%s4237 + $0x124] sm:$0xf]
        %v4312 = vld [vmem:[%s4237 + $0x128] sm:$0xf]
        %v4313 = vld [vmem:[%s4237 + $0x12c] sm:$0xf]
        %v4314 = vld [vmem:[%s4237 + $0x130] sm:$0xf]
        %v4315 = vld [vmem:[%s4237 + $0x134] sm:$0xf]
        %v4316 = vld [vmem:[%s4237 + $0x138] sm:$0xf]
        %v4317 = vld [vmem:[%s4237 + $0x13c] sm:$0xf]
        %s4318 = scalar_lea.vmem [#allocation8], 2
        %v4319 = vld [vmem:[%s4318] sm:$0x1]
        %v4320 = vmax.f32 %v4191, 0.0
        %v4321 = vmax.f32 %v4194, 0.0
        %v4322 = vmax.f32 %v4197, 0.0
        %v4323 = vmax.f32 %v4200, 0.0
        %v4324 = vmax.f32 %v4203, 0.0
        %v4325 = vmax.f32 %v4206, 0.0
        %v4326 = vmax.f32 %v4209, 0.0
        %v4327 = vmax.f32 %v4212, 0.0
        %v4328 = vmax.f32 %v4215, 0.0
        %v4329 = vmax.f32 %v4218, 0.0
        %v4330 = vmax.f32 %v4221, 0.0
        %v4331 = vmax.f32 %v4224, 0.0
        %v4332 = vmax.f32 %v4227, 0.0
        %v4333 = vmax.f32 %v4230, 0.0
        %v4334 = vmax.f32 %v4233, 0.0
        %v4335 = vmax.f32 %v4236, 0.0
        %v4336 = vpack.c.bf16 %v4320, %v4320
        %v4337 = vpack.c.bf16 %v4321, %v4321
        %v4338 = vpack.c.bf16 %v4322, %v4322
        %v4339 = vpack.c.bf16 %v4323, %v4323
        %v4340 = vpack.c.bf16 %v4324, %v4324
        %v4341 = vpack.c.bf16 %v4325, %v4325
        %v4342 = vpack.c.bf16 %v4326, %v4326
        %v4343 = vpack.c.bf16 %v4327, %v4327
        %v4344 = vpack.c.bf16 %v4328, %v4328
        %v4345 = vpack.c.bf16 %v4329, %v4329
        %v4346 = vpack.c.bf16 %v4330, %v4330
        %v4347 = vpack.c.bf16 %v4331, %v4331
        %v4348 = vpack.c.bf16 %v4332, %v4332
        %v4349 = vpack.c.bf16 %v4333, %v4333
        %v4350 = vpack.c.bf16 %v4334, %v4334
        %v4351 = vpack.c.bf16 %v4335, %v4335
        %v4368 = vunpack.c.l.b16 %v4336
        %v4369 = vunpack.c.l.b16 %v4337
        %v4370 = vunpack.c.l.b16 %v4338
        %v4371 = vunpack.c.l.b16 %v4339
        %v4372 = vunpack.c.l.b16 %v4340
        %v4373 = vunpack.c.l.b16 %v4341
        %v4374 = vunpack.c.l.b16 %v4342
        %v4375 = vunpack.c.l.b16 %v4343
        %v4376 = vunpack.c.l.b16 %v4344
        %v4377 = vunpack.c.l.b16 %v4345
        %v4378 = vunpack.c.l.b16 %v4346
        %v4379 = vunpack.c.l.b16 %v4347
        %v4380 = vunpack.c.l.b16 %v4348
        %v4381 = vunpack.c.l.b16 %v4349
        %v4382 = vunpack.c.l.b16 %v4350
        %v4383 = vunpack.c.l.b16 %v4351
        %v4384 = vpack.c.b16 %v4368, %v4368
        %v4385 = vpack.c.b16 %v4369, %v4369
        %v4386 = vpack.c.b16 %v4370, %v4370
        %v4387 = vpack.c.b16 %v4371, %v4371
        %v4388 = vpack.c.b16 %v4372, %v4372
        %v4389 = vpack.c.b16 %v4373, %v4373
        %v4390 = vpack.c.b16 %v4374, %v4374
        %v4391 = vpack.c.b16 %v4375, %v4375
        %v4392 = vpack.c.b16 %v4376, %v4376
        %v4393 = vpack.c.b16 %v4377, %v4377
        %v4394 = vpack.c.b16 %v4378, %v4378
        %v4395 = vpack.c.b16 %v4379, %v4379
        %v4396 = vpack.c.b16 %v4380, %v4380
        %v4397 = vpack.c.b16 %v4381, %v4381
        %v4398 = vpack.c.b16 %v4382, %v4382
        %v4399 = vpack.c.b16 %v4383, %v4383
        %v4400 = vunpack.c.l.b16 %v4384
        %v4401 = vunpack.c.l.b16 %v4385
        %v4402 = vunpack.c.l.b16 %v4386
        %v4403 = vunpack.c.l.b16 %v4387
        %v4404 = vunpack.c.l.b16 %v4388
        %v4405 = vunpack.c.l.b16 %v4389
        %v4406 = vunpack.c.l.b16 %v4390
        %v4407 = vunpack.c.l.b16 %v4391
        %v4408 = vunpack.c.l.b16 %v4392
        %v4409 = vunpack.c.l.b16 %v4393
        %v4410 = vunpack.c.l.b16 %v4394
        %v4411 = vunpack.c.l.b16 %v4395
        %v4412 = vunpack.c.l.b16 %v4396
        %v4413 = vunpack.c.l.b16 %v4397
        %v4414 = vunpack.c.l.b16 %v4398
        %v4415 = vunpack.c.l.b16 %v4399
        %v4416 = vrot.slane %v4400, 6
        %v4417 = vrot.slane %v4401, 5
        %v4418 = vsel %vm2731, %v4417, %v4416
        %v4419 = vrot.slane %v4402, 6
        %v4420 = vrot.slane %v4403, 5
        %v4421 = vsel %vm2731, %v4420, %v4419
        %v4422 = vrot.slane %v4404, 6
        %v4423 = vrot.slane %v4405, 5
        %v4424 = vsel %vm2731, %v4423, %v4422
        %v4425 = vrot.slane %v4406, 6
        %v4426 = vrot.slane %v4407, 5
        %v4427 = vsel %vm2731, %v4426, %v4425
        %v4428 = vrot.slane %v4408, 6
        %v4429 = vrot.slane %v4409, 5
        %v4430 = vsel %vm2731, %v4429, %v4428
        %v4431 = vrot.slane %v4410, 6
        %v4432 = vrot.slane %v4411, 5
        %v4433 = vsel %vm2731, %v4432, %v4431
        %v4434 = vrot.slane %v4412, 6
        %v4435 = vrot.slane %v4413, 5
        %v4436 = vsel %vm2731, %v4435, %v4434
        %v4437 = vrot.slane %v4414, 6
        %v4438 = vrot.slane %v4415, 5
        %v4439 = vsel %vm2731, %v4438, %v4437
        %v4440 = vpack.c.b16 %v4418, %v4418
        %v4441 = vpack.c.b16 %v4421, %v4421
        %v4442 = vpack.c.b16 %v4424, %v4424
        %v4443 = vpack.c.b16 %v4427, %v4427
        %v4444 = vpack.c.b16 %v4430, %v4430
        %v4445 = vpack.c.b16 %v4433, %v4433
        %v4446 = vpack.c.b16 %v4436, %v4436
        %v4447 = vpack.c.b16 %v4439, %v4439
        %v4449 = vsel %vm891, 0, %v4440
        %v4451 = vsel %vm891, 0, %v4441
        %v4453 = vsel %vm891, 0, %v4442
        %v4455 = vsel %vm891, 0, %v4443
        %v4457 = vsel %vm891, 0, %v4444
        %v4459 = vsel %vm891, 0, %v4445
        %v4461 = vsel %vm891, 0, %v4446
        %v4463 = vsel %vm891, 0, %v4447
        %v4464 = vsel %vm2263, %v4449, 0
        %v4465 = vsel %vm2263, %v4451, 0
        %v4466 = vsel %vm2263, %v4453, 0
        %v4467 = vsel %vm2263, %v4455, 0
        %v4468 = vsel %vm2263, %v4457, 0
        %v4469 = vsel %vm2263, %v4459, 0
        %v4470 = vsel %vm2263, %v4461, 0
        %v4471 = vsel %vm2263, %v4463, 0
        %v4472 = vshrl.u32 %v4464, 16
        %v4474 = vshll.u32 %v4464, 16
        %v4476 = vrot.slane %v4474, 1
        %v4477 = vor.u32 %v4472, %v4476
        %v4478 = vshrl.u32 %v4465, 16
        %v4480 = vshll.u32 %v4465, 16
        %v4482 = vrot.slane %v4480, 1
        %v4483 = vor.u32 %v4478, %v4482
        %v4484 = vshrl.u32 %v4466, 16
        %v4486 = vshll.u32 %v4466, 16
        %v4488 = vrot.slane %v4486, 1
        %v4489 = vor.u32 %v4484, %v4488
        %v4490 = vshrl.u32 %v4467, 16
        %v4492 = vshll.u32 %v4467, 16
        %v4494 = vrot.slane %v4492, 1
        %v4495 = vor.u32 %v4490, %v4494
        %v4496 = vshrl.u32 %v4468, 16
        %v4498 = vshll.u32 %v4468, 16
        %v4500 = vrot.slane %v4498, 1
        %v4501 = vor.u32 %v4496, %v4500
        %v4502 = vshrl.u32 %v4469, 16
        %v4504 = vshll.u32 %v4469, 16
        %v4506 = vrot.slane %v4504, 1
        %v4507 = vor.u32 %v4502, %v4506
        %v4508 = vshrl.u32 %v4470, 16
        %v4510 = vshll.u32 %v4470, 16
        %v4512 = vrot.slane %v4510, 1
        %v4513 = vor.u32 %v4508, %v4512
        %v4514 = vshrl.u32 %v4471, 16
        %v4516 = vshll.u32 %v4471, 16
        %v4518 = vrot.slane %v4516, 1
        %v4519 = vor.u32 %v4514, %v4518
        %v4528 = vrot.slane %v4464, 1
        %v4529 = vrot.slane %v4465, 1
        %v4530 = vrot.slane %v4466, 1
        %v4531 = vrot.slane %v4467, 1
        %v4532 = vrot.slane %v4468, 1
        %v4533 = vrot.slane %v4469, 1
        %v4534 = vrot.slane %v4470, 1
        %v4535 = vrot.slane %v4471, 1
        %v4536 = vrot.slane %v4472, 1
        %v4537 = vrot.slane %v4474, 2
        %v4538 = vor.u32 %v4536, %v4537
        %v4539 = vrot.slane %v4478, 1
        %v4540 = vrot.slane %v4480, 2
        %v4541 = vor.u32 %v4539, %v4540
        %v4542 = vrot.slane %v4484, 1
        %v4543 = vrot.slane %v4486, 2
        %v4544 = vor.u32 %v4542, %v4543
        %v4545 = vrot.slane %v4490, 1
        %v4546 = vrot.slane %v4492, 2
        %v4547 = vor.u32 %v4545, %v4546
        %v4548 = vrot.slane %v4496, 1
        %v4549 = vrot.slane %v4498, 2
        %v4550 = vor.u32 %v4548, %v4549
        %v4551 = vrot.slane %v4502, 1
        %v4552 = vrot.slane %v4504, 2
        %v4553 = vor.u32 %v4551, %v4552
        %v4554 = vrot.slane %v4508, 1
        %v4555 = vrot.slane %v4510, 2
        %v4556 = vor.u32 %v4554, %v4555
        %v4557 = vrot.slane %v4514, 1
        %v4558 = vrot.slane %v4516, 2
        %v4559 = vor.u32 %v4557, %v4558
        %v4560 = vrot.slane %v4464, 2
        %v4561 = vrot.slane %v4465, 2
        %v4562 = vrot.slane %v4466, 2
        %v4563 = vrot.slane %v4467, 2
        %v4564 = vrot.slane %v4468, 2
        %v4565 = vrot.slane %v4469, 2
        %v4566 = vrot.slane %v4470, 2
        %v4567 = vrot.slane %v4471, 2
        %v4568 = vrot.slane %v4477, 7
        %v4569 = vrot.slane %v4528, 6
        %v4570 = vrot.slane %v4538, 5
        %v4571 = vrot.slane %v4560, 4
        %v4572 = vrot.slane %v4483, 7
        %v4573 = vrot.slane %v4529, 6
        %v4574 = vrot.slane %v4541, 5
        %v4575 = vrot.slane %v4561, 4
        %v4576 = vrot.slane %v4489, 7
        %v4577 = vrot.slane %v4530, 6
        %v4578 = vrot.slane %v4544, 5
        %v4579 = vrot.slane %v4562, 4
        %v4580 = vrot.slane %v4495, 7
        %v4581 = vrot.slane %v4531, 6
        %v4582 = vrot.slane %v4547, 5
        %v4583 = vrot.slane %v4563, 4
        %v4584 = vrot.slane %v4501, 7
        %v4585 = vrot.slane %v4532, 6
        %v4586 = vrot.slane %v4550, 5
        %v4587 = vrot.slane %v4564, 4
        %v4588 = vrot.slane %v4507, 7
        %v4589 = vrot.slane %v4533, 6
        %v4590 = vrot.slane %v4553, 5
        %v4591 = vrot.slane %v4565, 4
        %v4592 = vrot.slane %v4513, 7
        %v4593 = vrot.slane %v4534, 6
        %v4594 = vrot.slane %v4556, 5
        %v4595 = vrot.slane %v4566, 4
        %v4596 = vrot.slane %v4519, 7
        %v4597 = vrot.slane %v4535, 6
        %v4598 = vrot.slane %v4559, 5
        %v4599 = vrot.slane %v4567, 4
        %v4601 = vsel %vm891, %v4464, %v4568
        %v4603 = vsel %vm2263, %v4601, %v4569
        %v4606 = vsel %vm2731, %v4570, %v4571
        %v4607 = vsel %vm2782, %v4603, %v4606
        %v4609 = vsel %vm891, %v4465, %v4572
        %v4611 = vsel %vm2263, %v4609, %v4573
        %v4614 = vsel %vm2731, %v4574, %v4575
        %v4615 = vsel %vm2782, %v4611, %v4614
        %v4617 = vsel %vm891, %v4466, %v4576
        %v4619 = vsel %vm2263, %v4617, %v4577
        %v4622 = vsel %vm2731, %v4578, %v4579
        %v4623 = vsel %vm2782, %v4619, %v4622
        %v4625 = vsel %vm891, %v4467, %v4580
        %v4627 = vsel %vm2263, %v4625, %v4581
        %v4630 = vsel %vm2731, %v4582, %v4583
        %v4631 = vsel %vm2782, %v4627, %v4630
        %v4633 = vsel %vm891, %v4468, %v4584
        %v4635 = vsel %vm2263, %v4633, %v4585
        %v4638 = vsel %vm2731, %v4586, %v4587
        %v4639 = vsel %vm2782, %v4635, %v4638
        %v4641 = vsel %vm891, %v4469, %v4588
        %v4643 = vsel %vm2263, %v4641, %v4589
        %v4646 = vsel %vm2731, %v4590, %v4591
        %v4647 = vsel %vm2782, %v4643, %v4646
        %v4649 = vsel %vm891, %v4470, %v4592
        %v4651 = vsel %vm2263, %v4649, %v4593
        %v4654 = vsel %vm2731, %v4594, %v4595
        %v4655 = vsel %vm2782, %v4651, %v4654
        %v4657 = vsel %vm891, %v4471, %v4596
        %v4659 = vsel %vm2263, %v4657, %v4597
        %v4662 = vsel %vm2731, %v4598, %v4599
        %v4663 = vsel %vm2782, %v4659, %v4662
        %v4665 = vperm.slane %v4319, 0
        %4667 = vst [vmem:[#allocation1] ss:$9 sm:$0xff] %v4607
        %s4668 = scalar_lea.vmem [#allocation1], 1
        %4669 = vst [vmem:[%s4668] ss:$9 sm:$0xff] %v4615
        %s4670 = scalar_lea.vmem [#allocation1], 2
        %4671 = vst [vmem:[%s4670] ss:$9 sm:$0xff] %v4623
        %s4672 = scalar_lea.vmem [#allocation1], 3
        %4673 = vst [vmem:[%s4672] ss:$9 sm:$0xff] %v4631
        %s4674 = scalar_lea.vmem [#allocation1], 4
        %4675 = vst [vmem:[%s4674] ss:$9 sm:$0xff] %v4639
        %s4676 = scalar_lea.vmem [#allocation1], 5
        %4677 = vst [vmem:[%s4676] ss:$9 sm:$0xff] %v4647
        %s4678 = scalar_lea.vmem [#allocation1], 6
        %4679 = vst [vmem:[%s4678] ss:$9 sm:$0xff] %v4655
        %s4680 = scalar_lea.vmem [#allocation1], 7
        %4681 = vst [vmem:[%s4680] ss:$9 sm:$0xff] %v4663
        %v4682 = vld [vmem:[#allocation1] sm:$0xff]
        %v4683 = vld [vmem:[#allocation1 + $0x9] sm:$0xff]
        %v4684 = vld [vmem:[#allocation1 + $0x12] sm:$0xff]
        %v4685 = vld [vmem:[#allocation1 + $0x1b] sm:$0xff]
        %v4686 = vld [vmem:[#allocation1 + $0x24] sm:$0xff]
        %v4772 = vunpack.c.l.b16 %v4238
        %v4773 = vunpack.c.l.b16 %v4239
        %v4774 = vunpack.c.l.b16 %v4240
        %v4775 = vunpack.c.l.b16 %v4241
        %v4776 = vunpack.c.l.b16 %v4242
        %v4777 = vunpack.c.l.b16 %v4243
        %v4778 = vunpack.c.l.b16 %v4244
        %v4779 = vunpack.c.l.b16 %v4245
        %v4780 = vunpack.c.l.b16 %v4246
        %v4781 = vunpack.c.l.b16 %v4247
        %v4782 = vunpack.c.l.b16 %v4248
        %v4783 = vunpack.c.l.b16 %v4249
        %v4784 = vunpack.c.l.b16 %v4250
        %v4785 = vunpack.c.l.b16 %v4251
        %v4786 = vunpack.c.l.b16 %v4252
        %v4787 = vunpack.c.l.b16 %v4253
        %v4788 = vunpack.c.l.b16 %v4254
        %v4789 = vunpack.c.l.b16 %v4255
        %v4790 = vunpack.c.l.b16 %v4256
        %v4791 = vunpack.c.l.b16 %v4257
        %v4792 = vunpack.c.l.b16 %v4258
        %v4793 = vunpack.c.l.b16 %v4259
        %v4794 = vunpack.c.l.b16 %v4260
        %v4795 = vunpack.c.l.b16 %v4261
        %v4796 = vunpack.c.l.b16 %v4262
        %v4797 = vunpack.c.l.b16 %v4263
        %v4798 = vunpack.c.l.b16 %v4264
        %v4799 = vunpack.c.l.b16 %v4265
        %v4800 = vunpack.c.l.b16 %v4266
        %v4801 = vunpack.c.l.b16 %v4267
        %v4802 = vunpack.c.l.b16 %v4268
        %v4803 = vunpack.c.l.b16 %v4269
        %v4804 = vunpack.c.l.b16 %v4270
        %v4805 = vunpack.c.l.b16 %v4271
        %v4806 = vunpack.c.l.b16 %v4272
        %v4807 = vunpack.c.l.b16 %v4273
        %v4808 = vunpack.c.l.b16 %v4274
        %v4809 = vunpack.c.l.b16 %v4275
        %v4810 = vunpack.c.l.b16 %v4276
        %v4811 = vunpack.c.l.b16 %v4277
        %v4812 = vunpack.c.l.b16 %v4278
        %v4813 = vunpack.c.l.b16 %v4279
        %v4814 = vunpack.c.l.b16 %v4280
        %v4815 = vunpack.c.l.b16 %v4281
        %v4816 = vunpack.c.l.b16 %v4282
        %v4817 = vunpack.c.l.b16 %v4283
        %v4818 = vunpack.c.l.b16 %v4284
        %v4819 = vunpack.c.l.b16 %v4285
        %v4820 = vunpack.c.l.b16 %v4286
        %v4821 = vunpack.c.l.b16 %v4287
        %v4822 = vunpack.c.l.b16 %v4288
        %v4823 = vunpack.c.l.b16 %v4289
        %v4824 = vunpack.c.l.b16 %v4290
        %v4825 = vunpack.c.l.b16 %v4291
        %v4826 = vunpack.c.l.b16 %v4292
        %v4827 = vunpack.c.l.b16 %v4293
        %v4828 = vunpack.c.l.b16 %v4294
        %v4829 = vunpack.c.l.b16 %v4295
        %v4830 = vunpack.c.l.b16 %v4296
        %v4831 = vunpack.c.l.b16 %v4297
        %v4832 = vunpack.c.l.b16 %v4298
        %v4833 = vunpack.c.l.b16 %v4299
        %v4834 = vunpack.c.l.b16 %v4300
        %v4835 = vunpack.c.l.b16 %v4301
        %v4836 = vunpack.c.l.b16 %v4302
        %v4837 = vunpack.c.l.b16 %v4303
        %v4838 = vunpack.c.l.b16 %v4304
        %v4839 = vunpack.c.l.b16 %v4305
        %v4840 = vunpack.c.l.b16 %v4306
        %v4841 = vunpack.c.l.b16 %v4307
        %v4842 = vunpack.c.l.b16 %v4308
        %v4843 = vunpack.c.l.b16 %v4309
        %v4844 = vunpack.c.l.b16 %v4310
        %v4845 = vunpack.c.l.b16 %v4311
        %v4846 = vunpack.c.l.b16 %v4312
        %v4847 = vunpack.c.l.b16 %v4313
        %v4848 = vunpack.c.l.b16 %v4314
        %v4849 = vunpack.c.l.b16 %v4315
        %v4850 = vunpack.c.l.b16 %v4316
        %v4851 = vunpack.c.l.b16 %v4317
        %v4852 = vpack.c.b16 %v4773, %v4772
        %v4853 = vpack.c.b16 %v4775, %v4774
        %v4854 = vpack.c.b16 %v4777, %v4776
        %v4855 = vpack.c.b16 %v4779, %v4778
        %v4856 = vpack.c.b16 %v4781, %v4780
        %v4857 = vpack.c.b16 %v4783, %v4782
        %v4858 = vpack.c.b16 %v4785, %v4784
        %v4859 = vpack.c.b16 %v4787, %v4786
        %v4860 = vpack.c.b16 %v4789, %v4788
        %v4861 = vpack.c.b16 %v4791, %v4790
        %v4862 = vpack.c.b16 %v4793, %v4792
        %v4863 = vpack.c.b16 %v4795, %v4794
        %v4864 = vpack.c.b16 %v4797, %v4796
        %v4865 = vpack.c.b16 %v4799, %v4798
        %v4866 = vpack.c.b16 %v4801, %v4800
        %v4867 = vpack.c.b16 %v4803, %v4802
        %v4868 = vpack.c.b16 %v4805, %v4804
        %v4869 = vpack.c.b16 %v4807, %v4806
        %v4870 = vpack.c.b16 %v4809, %v4808
        %v4871 = vpack.c.b16 %v4811, %v4810
        %v4872 = vpack.c.b16 %v4813, %v4812
        %v4873 = vpack.c.b16 %v4815, %v4814
        %v4874 = vpack.c.b16 %v4817, %v4816
        %v4875 = vpack.c.b16 %v4819, %v4818
        %v4876 = vpack.c.b16 %v4821, %v4820
        %v4877 = vpack.c.b16 %v4823, %v4822
        %v4878 = vpack.c.b16 %v4825, %v4824
        %v4879 = vpack.c.b16 %v4827, %v4826
        %v4880 = vpack.c.b16 %v4829, %v4828
        %v4881 = vpack.c.b16 %v4831, %v4830
        %v4882 = vpack.c.b16 %v4833, %v4832
        %v4883 = vpack.c.b16 %v4835, %v4834
        %v4884 = vpack.c.b16 %v4837, %v4836
        %v4885 = vpack.c.b16 %v4839, %v4838
        %v4886 = vpack.c.b16 %v4841, %v4840
        %v4887 = vpack.c.b16 %v4843, %v4842
        %v4888 = vpack.c.b16 %v4845, %v4844
        %v4889 = vpack.c.b16 %v4847, %v4846
        %v4890 = vpack.c.b16 %v4849, %v4848
        %v4891 = vpack.c.b16 %v4851, %v4850
        %4932 = vmatpush.bf16.msra.mxu0 %v4859
        %4933 = vmatpush.bf16.msra.mxu0 %v4858
        %4934 = vmatpush.bf16.msra.mxu0 %v4857
        %4935 = vmatpush.bf16.msra.mxu0 %v4856
        %4936 = vmatpush.bf16.msra.mxu0 %v4855
        %4937 = vmatpush.bf16.msra.mxu0 %v4854
        %4938 = vmatpush.bf16.msra.mxu0 %v4853
        %4939 = vmatpush.bf16.msra.mxu0 %v4852
        %4940 = vmatmul.bf16.gmra.mxu0 %v4682
        %v4941 = vpop.f32.mrf.mxu0
        %v4942 = vadd.f32 %v4665, %v4941
        %v4943 = vpop.f32.mrf.mxu0
        %v4944 = vadd.f32 %v4665, %v4943
        %4945 = vdwg.mxu0
        %4946 = vmatpush.bf16.msra.mxu0 %v4867
        %4947 = vmatpush.bf16.msra.mxu0 %v4866
        %4948 = vmatpush.bf16.msra.mxu0 %v4865
        %4949 = vmatpush.bf16.msra.mxu0 %v4864
        %4950 = vmatpush.bf16.msra.mxu0 %v4863
        %4951 = vmatpush.bf16.msra.mxu0 %v4862
        %4952 = vmatpush.bf16.msra.mxu0 %v4861
        %4953 = vmatpush.bf16.msra.mxu0 %v4860
        %4954 = vmatmul.bf16.gmra.mxu0 %v4683
        %v4955 = vpop.f32.mrf.mxu0
        %v4956 = vadd.f32 %v4942, %v4955
        %v4957 = vpop.f32.mrf.mxu0
        %v4958 = vadd.f32 %v4944, %v4957
        %4959 = vdwg.mxu0
        %4960 = vmatpush.bf16.msra.mxu0 %v4875
        %4961 = vmatpush.bf16.msra.mxu0 %v4874
        %4962 = vmatpush.bf16.msra.mxu0 %v4873
        %4963 = vmatpush.bf16.msra.mxu0 %v4872
        %4964 = vmatpush.bf16.msra.mxu0 %v4871
        %4965 = vmatpush.bf16.msra.mxu0 %v4870
        %4966 = vmatpush.bf16.msra.mxu0 %v4869
        %4967 = vmatpush.bf16.msra.mxu0 %v4868
        %4968 = vmatmul.bf16.gmra.mxu0 %v4684
        %v4969 = vpop.f32.mrf.mxu0
        %v4970 = vadd.f32 %v4956, %v4969
        %v4971 = vpop.f32.mrf.mxu0
        %v4972 = vadd.f32 %v4958, %v4971
        %4973 = vdwg.mxu0
        %4974 = vmatpush.bf16.msra.mxu0 %v4883
        %4975 = vmatpush.bf16.msra.mxu0 %v4882
        %4976 = vmatpush.bf16.msra.mxu0 %v4881
        %4977 = vmatpush.bf16.msra.mxu0 %v4880
        %4978 = vmatpush.bf16.msra.mxu0 %v4879
        %4979 = vmatpush.bf16.msra.mxu0 %v4878
        %4980 = vmatpush.bf16.msra.mxu0 %v4877
        %4981 = vmatpush.bf16.msra.mxu0 %v4876
        %4982 = vmatmul.bf16.gmra.mxu0 %v4685
        %v4983 = vpop.f32.mrf.mxu0
        %v4984 = vadd.f32 %v4970, %v4983
        %v4985 = vpop.f32.mrf.mxu0
        %v4986 = vadd.f32 %v4972, %v4985
        %4987 = vdwg.mxu0
        %4988 = vmatpush.bf16.msra.mxu0 %v4891
        %4989 = vmatpush.bf16.msra.mxu0 %v4890
        %4990 = vmatpush.bf16.msra.mxu0 %v4889
        %4991 = vmatpush.bf16.msra.mxu0 %v4888
        %4992 = vmatpush.bf16.msra.mxu0 %v4887
        %4993 = vmatpush.bf16.msra.mxu0 %v4886
        %4994 = vmatpush.bf16.msra.mxu0 %v4885
        %4995 = vmatpush.bf16.msra.mxu0 %v4884
        %4996 = vmatmul.bf16.gmra.mxu0 %v4686
        %v4997 = vpop.f32.mrf.mxu0
        %v4998 = vadd.f32 %v4984, %v4997
        %v4999 = vpop.f32.mrf.mxu0
        %v5000 = vadd.f32 %v4986, %v4999
        %5001 = vdwg.mxu0
        %v5004 = vrot.slane %v4998, 2
        %v5005 = vrot.slane %v4998, 4
        %v5006 = vrot.slane %v4998, 6
        %v5007 = vrot.slane %v5000, 2
        %v5008 = vrot.slane %v5000, 4
        %v5009 = vrot.slane %v5000, 6
        %s5016 = scalar_lea.vmem [#allocation10], 640
        %v5017 = vld [vmem:[%s5016] sm:$0xf]
        %v5018 = vld [vmem:[%s5016 + $0x4] sm:$0xf]
        %v5019 = vld [vmem:[%s5016 + $0x8] sm:$0xf]
        %v5020 = vld [vmem:[%s5016 + $0xc] sm:$0xf]
        %v5021 = vld [vmem:[%s5016 + $0x10] sm:$0xf]
        %v5022 = vld [vmem:[%s5016 + $0x14] sm:$0xf]
        %v5023 = vld [vmem:[%s5016 + $0x18] sm:$0xf]
        %v5024 = vld [vmem:[%s5016 + $0x1c] sm:$0xf]
        %v5025 = vld [vmem:[%s5016 + $0x20] sm:$0xf]
        %v5026 = vld [vmem:[%s5016 + $0x24] sm:$0xf]
        %v5027 = vld [vmem:[%s5016 + $0x28] sm:$0xf]
        %v5028 = vld [vmem:[%s5016 + $0x2c] sm:$0xf]
        %v5029 = vld [vmem:[%s5016 + $0x30] sm:$0xf]
        %v5030 = vld [vmem:[%s5016 + $0x34] sm:$0xf]
        %v5031 = vld [vmem:[%s5016 + $0x38] sm:$0xf]
        %v5032 = vld [vmem:[%s5016 + $0x3c] sm:$0xf]
        %v5033 = vld [vmem:[%s5016 + $0x40] sm:$0xf]
        %v5034 = vld [vmem:[%s5016 + $0x44] sm:$0xf]
        %v5035 = vld [vmem:[%s5016 + $0x48] sm:$0xf]
        %v5036 = vld [vmem:[%s5016 + $0x4c] sm:$0xf]
        %v5037 = vld [vmem:[%s5016 + $0x50] sm:$0xf]
        %v5038 = vld [vmem:[%s5016 + $0x54] sm:$0xf]
        %v5039 = vld [vmem:[%s5016 + $0x58] sm:$0xf]
        %v5040 = vld [vmem:[%s5016 + $0x5c] sm:$0xf]
        %v5041 = vld [vmem:[%s5016 + $0x60] sm:$0xf]
        %v5042 = vld [vmem:[%s5016 + $0x64] sm:$0xf]
        %v5043 = vld [vmem:[%s5016 + $0x68] sm:$0xf]
        %v5044 = vld [vmem:[%s5016 + $0x6c] sm:$0xf]
        %v5045 = vld [vmem:[%s5016 + $0x70] sm:$0xf]
        %v5046 = vld [vmem:[%s5016 + $0x74] sm:$0xf]
        %v5047 = vld [vmem:[%s5016 + $0x78] sm:$0xf]
        %v5048 = vld [vmem:[%s5016 + $0x7c] sm:$0xf]
        %v5049 = vld [vmem:[%s5016 + $0x80] sm:$0xf]
        %v5050 = vld [vmem:[%s5016 + $0x84] sm:$0xf]
        %v5051 = vld [vmem:[%s5016 + $0x88] sm:$0xf]
        %v5052 = vld [vmem:[%s5016 + $0x8c] sm:$0xf]
        %v5053 = vld [vmem:[%s5016 + $0x90] sm:$0xf]
        %v5054 = vld [vmem:[%s5016 + $0x94] sm:$0xf]
        %v5055 = vld [vmem:[%s5016 + $0x98] sm:$0xf]
        %v5056 = vld [vmem:[%s5016 + $0x9c] sm:$0xf]
        %v5057 = vld [vmem:[%s5016 + $0xa0] sm:$0xf]
        %v5058 = vld [vmem:[%s5016 + $0xa4] sm:$0xf]
        %v5059 = vld [vmem:[%s5016 + $0xa8] sm:$0xf]
        %v5060 = vld [vmem:[%s5016 + $0xac] sm:$0xf]
        %v5061 = vld [vmem:[%s5016 + $0xb0] sm:$0xf]
        %v5062 = vld [vmem:[%s5016 + $0xb4] sm:$0xf]
        %v5063 = vld [vmem:[%s5016 + $0xb8] sm:$0xf]
        %v5064 = vld [vmem:[%s5016 + $0xbc] sm:$0xf]
        %v5065 = vld [vmem:[%s5016 + $0xc0] sm:$0xf]
        %v5066 = vld [vmem:[%s5016 + $0xc4] sm:$0xf]
        %v5067 = vld [vmem:[%s5016 + $0xc8] sm:$0xf]
        %v5068 = vld [vmem:[%s5016 + $0xcc] sm:$0xf]
        %v5069 = vld [vmem:[%s5016 + $0xd0] sm:$0xf]
        %v5070 = vld [vmem:[%s5016 + $0xd4] sm:$0xf]
        %v5071 = vld [vmem:[%s5016 + $0xd8] sm:$0xf]
        %v5072 = vld [vmem:[%s5016 + $0xdc] sm:$0xf]
        %v5073 = vld [vmem:[%s5016 + $0xe0] sm:$0xf]
        %v5074 = vld [vmem:[%s5016 + $0xe4] sm:$0xf]
        %v5075 = vld [vmem:[%s5016 + $0xe8] sm:$0xf]
        %v5076 = vld [vmem:[%s5016 + $0xec] sm:$0xf]
        %v5077 = vld [vmem:[%s5016 + $0xf0] sm:$0xf]
        %v5078 = vld [vmem:[%s5016 + $0xf4] sm:$0xf]
        %v5079 = vld [vmem:[%s5016 + $0xf8] sm:$0xf]
        %v5080 = vld [vmem:[%s5016 + $0xfc] sm:$0xf]
        %v5081 = vld [vmem:[%s5016 + $0x100] sm:$0xf]
        %v5082 = vld [vmem:[%s5016 + $0x104] sm:$0xf]
        %v5083 = vld [vmem:[%s5016 + $0x108] sm:$0xf]
        %v5084 = vld [vmem:[%s5016 + $0x10c] sm:$0xf]
        %v5085 = vld [vmem:[%s5016 + $0x110] sm:$0xf]
        %v5086 = vld [vmem:[%s5016 + $0x114] sm:$0xf]
        %v5087 = vld [vmem:[%s5016 + $0x118] sm:$0xf]
        %v5088 = vld [vmem:[%s5016 + $0x11c] sm:$0xf]
        %v5089 = vld [vmem:[%s5016 + $0x120] sm:$0xf]
        %v5090 = vld [vmem:[%s5016 + $0x124] sm:$0xf]
        %v5091 = vld [vmem:[%s5016 + $0x128] sm:$0xf]
        %v5092 = vld [vmem:[%s5016 + $0x12c] sm:$0xf]
        %v5093 = vld [vmem:[%s5016 + $0x130] sm:$0xf]
        %v5094 = vld [vmem:[%s5016 + $0x134] sm:$0xf]
        %v5095 = vld [vmem:[%s5016 + $0x138] sm:$0xf]
        %v5096 = vld [vmem:[%s5016 + $0x13c] sm:$0xf]
        %s5097 = scalar_lea.vmem [#allocation11], 2
        %v5098 = vld [vmem:[%s5097] sm:$0x1]
        %v5099 = vmax.f32 %v4998, 0.0
        %v5100 = vmax.f32 %v5004, 0.0
        %v5101 = vmax.f32 %v5005, 0.0
        %v5102 = vmax.f32 %v5006, 0.0
        %v5103 = vmax.f32 %v5000, 0.0
        %v5104 = vmax.f32 %v5007, 0.0
        %v5105 = vmax.f32 %v5008, 0.0
        %v5106 = vmax.f32 %v5009, 0.0
        %v5107 = vpack.c.bf16 %v5099, %v5099
        %v5108 = vpack.c.bf16 %v5100, %v5100
        %v5109 = vpack.c.bf16 %v5101, %v5101
        %v5110 = vpack.c.bf16 %v5102, %v5102
        %v5111 = vpack.c.bf16 %v5103, %v5103
        %v5112 = vpack.c.bf16 %v5104, %v5104
        %v5113 = vpack.c.bf16 %v5105, %v5105
        %v5114 = vpack.c.bf16 %v5106, %v5106
        %v5123 = vunpack.c.l.b16 %v5107
        %v5124 = vunpack.c.l.b16 %v5108
        %v5125 = vunpack.c.l.b16 %v5109
        %v5126 = vunpack.c.l.b16 %v5110
        %v5127 = vunpack.c.l.b16 %v5111
        %v5128 = vunpack.c.l.b16 %v5112
        %v5129 = vunpack.c.l.b16 %v5113
        %v5130 = vunpack.c.l.b16 %v5114
        %v5131 = vpack.c.b16 %v5123, %v5123
        %v5132 = vpack.c.b16 %v5124, %v5124
        %v5133 = vpack.c.b16 %v5125, %v5125
        %v5134 = vpack.c.b16 %v5126, %v5126
        %v5135 = vpack.c.b16 %v5127, %v5127
        %v5136 = vpack.c.b16 %v5128, %v5128
        %v5137 = vpack.c.b16 %v5129, %v5129
        %v5138 = vpack.c.b16 %v5130, %v5130
        %v5139 = vrot.slane %v5131, 7
        %v5140 = vrot.slane %v5132, 7
        %v5141 = vrot.slane %v5133, 7
        %v5142 = vrot.slane %v5134, 7
        %v5143 = vrot.slane %v5135, 7
        %v5144 = vrot.slane %v5136, 7
        %v5145 = vrot.slane %v5137, 7
        %v5146 = vrot.slane %v5138, 7
        %v5148 = vsel %vm891, 0, %v5139
        %v5150 = vsel %vm891, 0, %v5140
        %v5152 = vsel %vm891, 0, %v5141
        %v5154 = vsel %vm891, 0, %v5142
        %v5156 = vsel %vm891, 0, %v5143
        %v5158 = vsel %vm891, 0, %v5144
        %v5160 = vsel %vm891, 0, %v5145
        %v5162 = vsel %vm891, 0, %v5146
        %v5163 = vsel %vm2263, %v5148, 0
        %v5164 = vsel %vm2263, %v5150, 0
        %v5165 = vsel %vm2263, %v5152, 0
        %v5166 = vsel %vm2263, %v5154, 0
        %v5167 = vsel %vm2263, %v5156, 0
        %v5168 = vsel %vm2263, %v5158, 0
        %v5169 = vsel %vm2263, %v5160, 0
        %v5170 = vsel %vm2263, %v5162, 0
        %v5171 = vshrl.u32 %v5163, 16
        %v5173 = vshll.u32 %v5163, 16
        %v5175 = vrot.slane %v5173, 1
        %v5176 = vor.u32 %v5171, %v5175
        %v5177 = vshrl.u32 %v5164, 16
        %v5179 = vshll.u32 %v5164, 16
        %v5181 = vrot.slane %v5179, 1
        %v5182 = vor.u32 %v5177, %v5181
        %v5183 = vshrl.u32 %v5165, 16
        %v5185 = vshll.u32 %v5165, 16
        %v5187 = vrot.slane %v5185, 1
        %v5188 = vor.u32 %v5183, %v5187
        %v5189 = vshrl.u32 %v5166, 16
        %v5191 = vshll.u32 %v5166, 16
        %v5193 = vrot.slane %v5191, 1
        %v5194 = vor.u32 %v5189, %v5193
        %v5195 = vshrl.u32 %v5167, 16
        %v5197 = vshll.u32 %v5167, 16
        %v5199 = vrot.slane %v5197, 1
        %v5200 = vor.u32 %v5195, %v5199
        %v5201 = vshrl.u32 %v5168, 16
        %v5203 = vshll.u32 %v5168, 16
        %v5205 = vrot.slane %v5203, 1
        %v5206 = vor.u32 %v5201, %v5205
        %v5207 = vshrl.u32 %v5169, 16
        %v5209 = vshll.u32 %v5169, 16
        %v5211 = vrot.slane %v5209, 1
        %v5212 = vor.u32 %v5207, %v5211
        %v5213 = vshrl.u32 %v5170, 16
        %v5215 = vshll.u32 %v5170, 16
        %v5217 = vrot.slane %v5215, 1
        %v5218 = vor.u32 %v5213, %v5217
        %v5227 = vrot.slane %v5163, 1
        %v5228 = vrot.slane %v5164, 1
        %v5229 = vrot.slane %v5165, 1
        %v5230 = vrot.slane %v5166, 1
        %v5231 = vrot.slane %v5167, 1
        %v5232 = vrot.slane %v5168, 1
        %v5233 = vrot.slane %v5169, 1
        %v5234 = vrot.slane %v5170, 1
        %v5235 = vrot.slane %v5171, 1
        %v5236 = vrot.slane %v5173, 2
        %v5237 = vor.u32 %v5235, %v5236
        %v5238 = vrot.slane %v5177, 1
        %v5239 = vrot.slane %v5179, 2
        %v5240 = vor.u32 %v5238, %v5239
        %v5241 = vrot.slane %v5183, 1
        %v5242 = vrot.slane %v5185, 2
        %v5243 = vor.u32 %v5241, %v5242
        %v5244 = vrot.slane %v5189, 1
        %v5245 = vrot.slane %v5191, 2
        %v5246 = vor.u32 %v5244, %v5245
        %v5247 = vrot.slane %v5195, 1
        %v5248 = vrot.slane %v5197, 2
        %v5249 = vor.u32 %v5247, %v5248
        %v5250 = vrot.slane %v5201, 1
        %v5251 = vrot.slane %v5203, 2
        %v5252 = vor.u32 %v5250, %v5251
        %v5253 = vrot.slane %v5207, 1
        %v5254 = vrot.slane %v5209, 2
        %v5255 = vor.u32 %v5253, %v5254
        %v5256 = vrot.slane %v5213, 1
        %v5257 = vrot.slane %v5215, 2
        %v5258 = vor.u32 %v5256, %v5257
        %v5259 = vrot.slane %v5163, 2
        %v5260 = vrot.slane %v5164, 2
        %v5261 = vrot.slane %v5165, 2
        %v5262 = vrot.slane %v5166, 2
        %v5263 = vrot.slane %v5167, 2
        %v5264 = vrot.slane %v5168, 2
        %v5265 = vrot.slane %v5169, 2
        %v5266 = vrot.slane %v5170, 2
        %v5267 = vrot.slane %v5176, 7
        %v5268 = vrot.slane %v5227, 6
        %v5269 = vrot.slane %v5237, 5
        %v5270 = vrot.slane %v5259, 4
        %v5271 = vrot.slane %v5182, 7
        %v5272 = vrot.slane %v5228, 6
        %v5273 = vrot.slane %v5240, 5
        %v5274 = vrot.slane %v5260, 4
        %v5275 = vrot.slane %v5188, 7
        %v5276 = vrot.slane %v5229, 6
        %v5277 = vrot.slane %v5243, 5
        %v5278 = vrot.slane %v5261, 4
        %v5279 = vrot.slane %v5194, 7
        %v5280 = vrot.slane %v5230, 6
        %v5281 = vrot.slane %v5246, 5
        %v5282 = vrot.slane %v5262, 4
        %v5283 = vrot.slane %v5200, 7
        %v5284 = vrot.slane %v5231, 6
        %v5285 = vrot.slane %v5249, 5
        %v5286 = vrot.slane %v5263, 4
        %v5287 = vrot.slane %v5206, 7
        %v5288 = vrot.slane %v5232, 6
        %v5289 = vrot.slane %v5252, 5
        %v5290 = vrot.slane %v5264, 4
        %v5291 = vrot.slane %v5212, 7
        %v5292 = vrot.slane %v5233, 6
        %v5293 = vrot.slane %v5255, 5
        %v5294 = vrot.slane %v5265, 4
        %v5295 = vrot.slane %v5218, 7
        %v5296 = vrot.slane %v5234, 6
        %v5297 = vrot.slane %v5258, 5
        %v5298 = vrot.slane %v5266, 4
        %v5300 = vsel %vm891, %v5163, %v5267
        %v5302 = vsel %vm2263, %v5300, %v5268
        %v5305 = vsel %vm2731, %v5269, %v5270
        %v5306 = vsel %vm2782, %v5302, %v5305
        %v5308 = vsel %vm891, %v5164, %v5271
        %v5310 = vsel %vm2263, %v5308, %v5272
        %v5313 = vsel %vm2731, %v5273, %v5274
        %v5314 = vsel %vm2782, %v5310, %v5313
        %v5316 = vsel %vm891, %v5165, %v5275
        %v5318 = vsel %vm2263, %v5316, %v5276
        %v5321 = vsel %vm2731, %v5277, %v5278
        %v5322 = vsel %vm2782, %v5318, %v5321
        %v5324 = vsel %vm891, %v5166, %v5279
        %v5326 = vsel %vm2263, %v5324, %v5280
        %v5329 = vsel %vm2731, %v5281, %v5282
        %v5330 = vsel %vm2782, %v5326, %v5329
        %v5332 = vsel %vm891, %v5167, %v5283
        %v5334 = vsel %vm2263, %v5332, %v5284
        %v5337 = vsel %vm2731, %v5285, %v5286
        %v5338 = vsel %vm2782, %v5334, %v5337
        %v5340 = vsel %vm891, %v5168, %v5287
        %v5342 = vsel %vm2263, %v5340, %v5288
        %v5345 = vsel %vm2731, %v5289, %v5290
        %v5346 = vsel %vm2782, %v5342, %v5345
        %v5348 = vsel %vm891, %v5169, %v5291
        %v5350 = vsel %vm2263, %v5348, %v5292
        %v5353 = vsel %vm2731, %v5293, %v5294
        %v5354 = vsel %vm2782, %v5350, %v5353
        %v5356 = vsel %vm891, %v5170, %v5295
        %v5358 = vsel %vm2263, %v5356, %v5296
        %v5361 = vsel %vm2731, %v5297, %v5298
        %v5362 = vsel %vm2782, %v5358, %v5361
        %v5364 = vperm.slane %v5098, 0
        %5366 = vst [vmem:[#allocation1] ss:$9 sm:$0xff] %v5306
        %s5367 = scalar_lea.vmem [#allocation1], 1
        %5368 = vst [vmem:[%s5367] ss:$9 sm:$0xff] %v5314
        %s5369 = scalar_lea.vmem [#allocation1], 2
        %5370 = vst [vmem:[%s5369] ss:$9 sm:$0xff] %v5322
        %s5371 = scalar_lea.vmem [#allocation1], 3
        %5372 = vst [vmem:[%s5371] ss:$9 sm:$0xff] %v5330
        %s5373 = scalar_lea.vmem [#allocation1], 4
        %5374 = vst [vmem:[%s5373] ss:$9 sm:$0xff] %v5338
        %s5375 = scalar_lea.vmem [#allocation1], 5
        %5376 = vst [vmem:[%s5375] ss:$9 sm:$0xff] %v5346
        %s5377 = scalar_lea.vmem [#allocation1], 6
        %5378 = vst [vmem:[%s5377] ss:$9 sm:$0xff] %v5354
        %s5379 = scalar_lea.vmem [#allocation1], 7
        %5380 = vst [vmem:[%s5379] ss:$9 sm:$0xff] %v5362
        %v5381 = vld [vmem:[#allocation1] sm:$0xff]
        %v5382 = vld [vmem:[#allocation1 + $0x9] sm:$0xff]
        %v5383 = vld [vmem:[#allocation1 + $0x12] sm:$0xff]
        %v5384 = vld [vmem:[#allocation1 + $0x1b] sm:$0xff]
        %v5385 = vld [vmem:[#allocation1 + $0x24] sm:$0xff]
        %v5471 = vunpack.c.l.b16 %v5017
        %v5472 = vunpack.c.l.b16 %v5018
        %v5473 = vunpack.c.l.b16 %v5019
        %v5474 = vunpack.c.l.b16 %v5020
        %v5475 = vunpack.c.l.b16 %v5021
        %v5476 = vunpack.c.l.b16 %v5022
        %v5477 = vunpack.c.l.b16 %v5023
        %v5478 = vunpack.c.l.b16 %v5024
        %v5479 = vunpack.c.l.b16 %v5025
        %v5480 = vunpack.c.l.b16 %v5026
        %v5481 = vunpack.c.l.b16 %v5027
        %v5482 = vunpack.c.l.b16 %v5028
        %v5483 = vunpack.c.l.b16 %v5029
        %v5484 = vunpack.c.l.b16 %v5030
        %v5485 = vunpack.c.l.b16 %v5031
        %v5486 = vunpack.c.l.b16 %v5032
        %v5487 = vunpack.c.l.b16 %v5033
        %v5488 = vunpack.c.l.b16 %v5034
        %v5489 = vunpack.c.l.b16 %v5035
        %v5490 = vunpack.c.l.b16 %v5036
        %v5491 = vunpack.c.l.b16 %v5037
        %v5492 = vunpack.c.l.b16 %v5038
        %v5493 = vunpack.c.l.b16 %v5039
        %v5494 = vunpack.c.l.b16 %v5040
        %v5495 = vunpack.c.l.b16 %v5041
        %v5496 = vunpack.c.l.b16 %v5042
        %v5497 = vunpack.c.l.b16 %v5043
        %v5498 = vunpack.c.l.b16 %v5044
        %v5499 = vunpack.c.l.b16 %v5045
        %v5500 = vunpack.c.l.b16 %v5046
        %v5501 = vunpack.c.l.b16 %v5047
        %v5502 = vunpack.c.l.b16 %v5048
        %v5503 = vunpack.c.l.b16 %v5049
        %v5504 = vunpack.c.l.b16 %v5050
        %v5505 = vunpack.c.l.b16 %v5051
        %v5506 = vunpack.c.l.b16 %v5052
        %v5507 = vunpack.c.l.b16 %v5053
        %v5508 = vunpack.c.l.b16 %v5054
        %v5509 = vunpack.c.l.b16 %v5055
        %v5510 = vunpack.c.l.b16 %v5056
        %v5511 = vunpack.c.l.b16 %v5057
        %v5512 = vunpack.c.l.b16 %v5058
        %v5513 = vunpack.c.l.b16 %v5059
        %v5514 = vunpack.c.l.b16 %v5060
        %v5515 = vunpack.c.l.b16 %v5061
        %v5516 = vunpack.c.l.b16 %v5062
        %v5517 = vunpack.c.l.b16 %v5063
        %v5518 = vunpack.c.l.b16 %v5064
        %v5519 = vunpack.c.l.b16 %v5065
        %v5520 = vunpack.c.l.b16 %v5066
        %v5521 = vunpack.c.l.b16 %v5067
        %v5522 = vunpack.c.l.b16 %v5068
        %v5523 = vunpack.c.l.b16 %v5069
        %v5524 = vunpack.c.l.b16 %v5070
        %v5525 = vunpack.c.l.b16 %v5071
        %v5526 = vunpack.c.l.b16 %v5072
        %v5527 = vunpack.c.l.b16 %v5073
        %v5528 = vunpack.c.l.b16 %v5074
        %v5529 = vunpack.c.l.b16 %v5075
        %v5530 = vunpack.c.l.b16 %v5076
        %v5531 = vunpack.c.l.b16 %v5077
        %v5532 = vunpack.c.l.b16 %v5078
        %v5533 = vunpack.c.l.b16 %v5079
        %v5534 = vunpack.c.l.b16 %v5080
        %v5535 = vunpack.c.l.b16 %v5081
        %v5536 = vunpack.c.l.b16 %v5082
        %v5537 = vunpack.c.l.b16 %v5083
        %v5538 = vunpack.c.l.b16 %v5084
        %v5539 = vunpack.c.l.b16 %v5085
        %v5540 = vunpack.c.l.b16 %v5086
        %v5541 = vunpack.c.l.b16 %v5087
        %v5542 = vunpack.c.l.b16 %v5088
        %v5543 = vunpack.c.l.b16 %v5089
        %v5544 = vunpack.c.l.b16 %v5090
        %v5545 = vunpack.c.l.b16 %v5091
        %v5546 = vunpack.c.l.b16 %v5092
        %v5547 = vunpack.c.l.b16 %v5093
        %v5548 = vunpack.c.l.b16 %v5094
        %v5549 = vunpack.c.l.b16 %v5095
        %v5550 = vunpack.c.l.b16 %v5096
        %v5551 = vpack.c.b16 %v5472, %v5471
        %v5552 = vpack.c.b16 %v5474, %v5473
        %v5553 = vpack.c.b16 %v5476, %v5475
        %v5554 = vpack.c.b16 %v5478, %v5477
        %v5555 = vpack.c.b16 %v5480, %v5479
        %v5556 = vpack.c.b16 %v5482, %v5481
        %v5557 = vpack.c.b16 %v5484, %v5483
        %v5558 = vpack.c.b16 %v5486, %v5485
        %v5559 = vpack.c.b16 %v5488, %v5487
        %v5560 = vpack.c.b16 %v5490, %v5489
        %v5561 = vpack.c.b16 %v5492, %v5491
        %v5562 = vpack.c.b16 %v5494, %v5493
        %v5563 = vpack.c.b16 %v5496, %v5495
        %v5564 = vpack.c.b16 %v5498, %v5497
        %v5565 = vpack.c.b16 %v5500, %v5499
        %v5566 = vpack.c.b16 %v5502, %v5501
        %v5567 = vpack.c.b16 %v5504, %v5503
        %v5568 = vpack.c.b16 %v5506, %v5505
        %v5569 = vpack.c.b16 %v5508, %v5507
        %v5570 = vpack.c.b16 %v5510, %v5509
        %v5571 = vpack.c.b16 %v5512, %v5511
        %v5572 = vpack.c.b16 %v5514, %v5513
        %v5573 = vpack.c.b16 %v5516, %v5515
        %v5574 = vpack.c.b16 %v5518, %v5517
        %v5575 = vpack.c.b16 %v5520, %v5519
        %v5576 = vpack.c.b16 %v5522, %v5521
        %v5577 = vpack.c.b16 %v5524, %v5523
        %v5578 = vpack.c.b16 %v5526, %v5525
        %v5579 = vpack.c.b16 %v5528, %v5527
        %v5580 = vpack.c.b16 %v5530, %v5529
        %v5581 = vpack.c.b16 %v5532, %v5531
        %v5582 = vpack.c.b16 %v5534, %v5533
        %v5583 = vpack.c.b16 %v5536, %v5535
        %v5584 = vpack.c.b16 %v5538, %v5537
        %v5585 = vpack.c.b16 %v5540, %v5539
        %v5586 = vpack.c.b16 %v5542, %v5541
        %v5587 = vpack.c.b16 %v5544, %v5543
        %v5588 = vpack.c.b16 %v5546, %v5545
        %v5589 = vpack.c.b16 %v5548, %v5547
        %v5590 = vpack.c.b16 %v5550, %v5549
        %5631 = vmatpush.bf16.msra.mxu0 %v5558
        %5632 = vmatpush.bf16.msra.mxu0 %v5557
        %5633 = vmatpush.bf16.msra.mxu0 %v5556
        %5634 = vmatpush.bf16.msra.mxu0 %v5555
        %5635 = vmatpush.bf16.msra.mxu0 %v5554
        %5636 = vmatpush.bf16.msra.mxu0 %v5553
        %5637 = vmatpush.bf16.msra.mxu0 %v5552
        %5638 = vmatpush.bf16.msra.mxu0 %v5551
        %5639 = vmatmul.bf16.gmra.mxu0 %v5381
        %v5640 = vpop.f32.mrf.mxu0
        %v5641 = vadd.f32 %v5364, %v5640
        %v5642 = vpop.f32.mrf.mxu0
        %v5643 = vadd.f32 %v5364, %v5642
        %5644 = vdwg.mxu0
        %5645 = vmatpush.bf16.msra.mxu0 %v5566
        %5646 = vmatpush.bf16.msra.mxu0 %v5565
        %5647 = vmatpush.bf16.msra.mxu0 %v5564
        %5648 = vmatpush.bf16.msra.mxu0 %v5563
        %5649 = vmatpush.bf16.msra.mxu0 %v5562
        %5650 = vmatpush.bf16.msra.mxu0 %v5561
        %5651 = vmatpush.bf16.msra.mxu0 %v5560
        %5652 = vmatpush.bf16.msra.mxu0 %v5559
        %5653 = vmatmul.bf16.gmra.mxu0 %v5382
        %v5654 = vpop.f32.mrf.mxu0
        %v5655 = vadd.f32 %v5641, %v5654
        %v5656 = vpop.f32.mrf.mxu0
        %v5657 = vadd.f32 %v5643, %v5656
        %5658 = vdwg.mxu0
        %5659 = vmatpush.bf16.msra.mxu0 %v5574
        %5660 = vmatpush.bf16.msra.mxu0 %v5573
        %5661 = vmatpush.bf16.msra.mxu0 %v5572
        %5662 = vmatpush.bf16.msra.mxu0 %v5571
        %5663 = vmatpush.bf16.msra.mxu0 %v5570
        %5664 = vmatpush.bf16.msra.mxu0 %v5569
        %5665 = vmatpush.bf16.msra.mxu0 %v5568
        %5666 = vmatpush.bf16.msra.mxu0 %v5567
        %5667 = vmatmul.bf16.gmra.mxu0 %v5383
        %v5668 = vpop.f32.mrf.mxu0
        %v5669 = vadd.f32 %v5655, %v5668
        %v5670 = vpop.f32.mrf.mxu0
        %v5671 = vadd.f32 %v5657, %v5670
        %5672 = vdwg.mxu0
        %5673 = vmatpush.bf16.msra.mxu0 %v5582
        %5674 = vmatpush.bf16.msra.mxu0 %v5581
        %5675 = vmatpush.bf16.msra.mxu0 %v5580
        %5676 = vmatpush.bf16.msra.mxu0 %v5579
        %5677 = vmatpush.bf16.msra.mxu0 %v5578
        %5678 = vmatpush.bf16.msra.mxu0 %v5577
        %5679 = vmatpush.bf16.msra.mxu0 %v5576
        %5680 = vmatpush.bf16.msra.mxu0 %v5575
        %5681 = vmatmul.bf16.gmra.mxu0 %v5384
        %v5682 = vpop.f32.mrf.mxu0
        %v5683 = vadd.f32 %v5669, %v5682
        %v5684 = vpop.f32.mrf.mxu0
        %v5685 = vadd.f32 %v5671, %v5684
        %5686 = vdwg.mxu0
        %5687 = vmatpush.bf16.msra.mxu0 %v5590
        %5688 = vmatpush.bf16.msra.mxu0 %v5589
        %5689 = vmatpush.bf16.msra.mxu0 %v5588
        %5690 = vmatpush.bf16.msra.mxu0 %v5587
        %5691 = vmatpush.bf16.msra.mxu0 %v5586
        %5692 = vmatpush.bf16.msra.mxu0 %v5585
        %5693 = vmatpush.bf16.msra.mxu0 %v5584
        %5694 = vmatpush.bf16.msra.mxu0 %v5583
        %5695 = vmatmul.bf16.gmra.mxu0 %v5385
        %v5696 = vpop.f32.mrf.mxu0
        %v5697 = vadd.f32 %v5683, %v5696
        %v5698 = vpop.f32.mrf.mxu0
        %v5699 = vadd.f32 %v5685, %v5698
        %5700 = vdwg.mxu0
        %v5703 = vrot.slane %v5697, 2
        %v5704 = vrot.slane %v5697, 4
        %v5705 = vrot.slane %v5697, 6
        %v5706 = vrot.slane %v5699, 2
        %v5707 = vrot.slane %v5699, 4
        %v5708 = vrot.slane %v5699, 6
        %5709 = vst [vmem:[#allocation1] ss:$4 sm:$0xff] %v5697
        %v5710 = vld.sshfl [vmem:[#allocation1] sm:$0xff pattern:$0x73625140]
        %s5711 = scalar_lea.vmem [#allocation1], 32
        %5712 = vst [vmem:[%s5711] ss:$4 sm:$0xff] %v5703
        %v5713 = vld.sshfl [vmem:[#allocation1 + $0x20] sm:$0xff pattern:$0x73625140]
        %5714 = vst [vmem:[#allocation1] ss:$4 sm:$0xff] %v5704
        %v5715 = vld.sshfl [vmem:[#allocation1] sm:$0xff pattern:$0x73625140]
        %5716 = vst [vmem:[%s5711] ss:$4 sm:$0xff] %v5705
        %v5717 = vld.sshfl [vmem:[#allocation1 + $0x20] sm:$0xff pattern:$0x73625140]
        %5718 = vst [vmem:[#allocation1] ss:$4 sm:$0xff] %v5699
        %v5719 = vld.sshfl [vmem:[#allocation1] sm:$0xff pattern:$0x73625140]
        %5720 = vst [vmem:[%s5711] ss:$4 sm:$0xff] %v5706
        %v5721 = vld.sshfl [vmem:[#allocation1 + $0x20] sm:$0xff pattern:$0x73625140]
        %5722 = vst [vmem:[#allocation1] ss:$4 sm:$0xff] %v5707
        %v5723 = vld.sshfl [vmem:[#allocation1] sm:$0xff pattern:$0x73625140]
        %5724 = vst [vmem:[%s5711] ss:$4 sm:$0xff] %v5708
        %v5725 = vld.sshfl [vmem:[#allocation1 + $0x20] sm:$0xff pattern:$0x73625140]
        %v5726 = vrot.slane %v5710, 1
        %v5727 = vrot.slane %v5713, 1
        %v5728 = vrot.slane %v5715, 1
        %v5729 = vrot.slane %v5717, 1
        %v5730 = vrot.slane %v5719, 1
        %v5731 = vrot.slane %v5721, 1
        %v5732 = vrot.slane %v5723, 1
        %v5733 = vrot.slane %v5725, 1
        %v5750 = vadd.f32 %v4191, %v5710
        %v5751 = vadd.f32 %v4194, %v5726
        %v5752 = vadd.f32 %v4197, %v5713
        %v5753 = vadd.f32 %v4200, %v5727
        %v5754 = vadd.f32 %v4203, %v5715
        %v5755 = vadd.f32 %v4206, %v5728
        %v5756 = vadd.f32 %v4209, %v5717
        %v5757 = vadd.f32 %v4212, %v5729
        %v5758 = vadd.f32 %v4215, %v5719
        %v5759 = vadd.f32 %v4218, %v5730
        %v5760 = vadd.f32 %v4221, %v5721
        %v5761 = vadd.f32 %v4224, %v5731
        %v5762 = vadd.f32 %v4227, %v5723
        %v5763 = vadd.f32 %v4230, %v5732
        %v5764 = vadd.f32 %v4233, %v5725
        %v5765 = vadd.f32 %v4236, %v5733
        %v5766 = vsel %vm891, %v5750, -inf
        %v5767 = vsel %vm891, %v5751, -inf
        %v5768 = vmax.f32 %v5766, %v5767
        %v5769 = vsel %vm891, %v5752, -inf
        %v5770 = vsel %vm891, %v5753, -inf
        %v5771 = vmax.f32 %v5769, %v5770
        %v5772 = vsel %vm891, %v5754, -inf
        %v5773 = vsel %vm891, %v5755, -inf
        %v5774 = vmax.f32 %v5772, %v5773
        %v5775 = vsel %vm891, %v5756, -inf
        %v5776 = vsel %vm891, %v5757, -inf
        %v5777 = vmax.f32 %v5775, %v5776
        %v5778 = vsel %vm891, %v5758, -inf
        %v5779 = vsel %vm891, %v5759, -inf
        %v5780 = vmax.f32 %v5778, %v5779
        %v5781 = vsel %vm891, %v5760, -inf
        %v5782 = vsel %vm891, %v5761, -inf
        %v5783 = vmax.f32 %v5781, %v5782
        %v5784 = vsel %vm891, %v5762, -inf
        %v5785 = vsel %vm891, %v5763, -inf
        %v5786 = vmax.f32 %v5784, %v5785
        %v5787 = vsel %vm891, %v5764, -inf
        %v5788 = vsel %vm891, %v5765, -inf
        %v5789 = vmax.f32 %v5787, %v5788
        %s5790 = scalar_lea.vmem [#allocation7], 960
        %v5791 = vld [vmem:[%s5790] sm:$0xf]
        %v5792 = vld [vmem:[%s5790 + $0x4] sm:$0xf]
        %v5793 = vld [vmem:[%s5790 + $0x8] sm:$0xf]
        %v5794 = vld [vmem:[%s5790 + $0xc] sm:$0xf]
        %v5795 = vld [vmem:[%s5790 + $0x10] sm:$0xf]
        %v5796 = vld [vmem:[%s5790 + $0x14] sm:$0xf]
        %v5797 = vld [vmem:[%s5790 + $0x18] sm:$0xf]
        %v5798 = vld [vmem:[%s5790 + $0x1c] sm:$0xf]
        %v5799 = vld [vmem:[%s5790 + $0x20] sm:$0xf]
        %v5800 = vld [vmem:[%s5790 + $0x24] sm:$0xf]
        %v5801 = vld [vmem:[%s5790 + $0x28] sm:$0xf]
        %v5802 = vld [vmem:[%s5790 + $0x2c] sm:$0xf]
        %v5803 = vld [vmem:[%s5790 + $0x30] sm:$0xf]
        %v5804 = vld [vmem:[%s5790 + $0x34] sm:$0xf]
        %v5805 = vld [vmem:[%s5790 + $0x38] sm:$0xf]
        %v5806 = vld [vmem:[%s5790 + $0x3c] sm:$0xf]
        %v5807 = vld [vmem:[%s5790 + $0x40] sm:$0xf]
        %v5808 = vld [vmem:[%s5790 + $0x44] sm:$0xf]
        %v5809 = vld [vmem:[%s5790 + $0x48] sm:$0xf]
        %v5810 = vld [vmem:[%s5790 + $0x4c] sm:$0xf]
        %v5811 = vld [vmem:[%s5790 + $0x50] sm:$0xf]
        %v5812 = vld [vmem:[%s5790 + $0x54] sm:$0xf]
        %v5813 = vld [vmem:[%s5790 + $0x58] sm:$0xf]
        %v5814 = vld [vmem:[%s5790 + $0x5c] sm:$0xf]
        %v5815 = vld [vmem:[%s5790 + $0x60] sm:$0xf]
        %v5816 = vld [vmem:[%s5790 + $0x64] sm:$0xf]
        %v5817 = vld [vmem:[%s5790 + $0x68] sm:$0xf]
        %v5818 = vld [vmem:[%s5790 + $0x6c] sm:$0xf]
        %v5819 = vld [vmem:[%s5790 + $0x70] sm:$0xf]
        %v5820 = vld [vmem:[%s5790 + $0x74] sm:$0xf]
        %v5821 = vld [vmem:[%s5790 + $0x78] sm:$0xf]
        %v5822 = vld [vmem:[%s5790 + $0x7c] sm:$0xf]
        %v5823 = vld [vmem:[%s5790 + $0x80] sm:$0xf]
        %v5824 = vld [vmem:[%s5790 + $0x84] sm:$0xf]
        %v5825 = vld [vmem:[%s5790 + $0x88] sm:$0xf]
        %v5826 = vld [vmem:[%s5790 + $0x8c] sm:$0xf]
        %v5827 = vld [vmem:[%s5790 + $0x90] sm:$0xf]
        %v5828 = vld [vmem:[%s5790 + $0x94] sm:$0xf]
        %v5829 = vld [vmem:[%s5790 + $0x98] sm:$0xf]
        %v5830 = vld [vmem:[%s5790 + $0x9c] sm:$0xf]
        %v5831 = vld [vmem:[%s5790 + $0xa0] sm:$0xf]
        %v5832 = vld [vmem:[%s5790 + $0xa4] sm:$0xf]
        %v5833 = vld [vmem:[%s5790 + $0xa8] sm:$0xf]
        %v5834 = vld [vmem:[%s5790 + $0xac] sm:$0xf]
        %v5835 = vld [vmem:[%s5790 + $0xb0] sm:$0xf]
        %v5836 = vld [vmem:[%s5790 + $0xb4] sm:$0xf]
        %v5837 = vld [vmem:[%s5790 + $0xb8] sm:$0xf]
        %v5838 = vld [vmem:[%s5790 + $0xbc] sm:$0xf]
        %v5839 = vld [vmem:[%s5790 + $0xc0] sm:$0xf]
        %v5840 = vld [vmem:[%s5790 + $0xc4] sm:$0xf]
        %v5841 = vld [vmem:[%s5790 + $0xc8] sm:$0xf]
        %v5842 = vld [vmem:[%s5790 + $0xcc] sm:$0xf]
        %v5843 = vld [vmem:[%s5790 + $0xd0] sm:$0xf]
        %v5844 = vld [vmem:[%s5790 + $0xd4] sm:$0xf]
        %v5845 = vld [vmem:[%s5790 + $0xd8] sm:$0xf]
        %v5846 = vld [vmem:[%s5790 + $0xdc] sm:$0xf]
        %v5847 = vld [vmem:[%s5790 + $0xe0] sm:$0xf]
        %v5848 = vld [vmem:[%s5790 + $0xe4] sm:$0xf]
        %v5849 = vld [vmem:[%s5790 + $0xe8] sm:$0xf]
        %v5850 = vld [vmem:[%s5790 + $0xec] sm:$0xf]
        %v5851 = vld [vmem:[%s5790 + $0xf0] sm:$0xf]
        %v5852 = vld [vmem:[%s5790 + $0xf4] sm:$0xf]
        %v5853 = vld [vmem:[%s5790 + $0xf8] sm:$0xf]
        %v5854 = vld [vmem:[%s5790 + $0xfc] sm:$0xf]
        %v5855 = vld [vmem:[%s5790 + $0x100] sm:$0xf]
        %v5856 = vld [vmem:[%s5790 + $0x104] sm:$0xf]
        %v5857 = vld [vmem:[%s5790 + $0x108] sm:$0xf]
        %v5858 = vld [vmem:[%s5790 + $0x10c] sm:$0xf]
        %v5859 = vld [vmem:[%s5790 + $0x110] sm:$0xf]
        %v5860 = vld [vmem:[%s5790 + $0x114] sm:$0xf]
        %v5861 = vld [vmem:[%s5790 + $0x118] sm:$0xf]
        %v5862 = vld [vmem:[%s5790 + $0x11c] sm:$0xf]
        %v5863 = vld [vmem:[%s5790 + $0x120] sm:$0xf]
        %v5864 = vld [vmem:[%s5790 + $0x124] sm:$0xf]
        %v5865 = vld [vmem:[%s5790 + $0x128] sm:$0xf]
        %v5866 = vld [vmem:[%s5790 + $0x12c] sm:$0xf]
        %v5867 = vld [vmem:[%s5790 + $0x130] sm:$0xf]
        %v5868 = vld [vmem:[%s5790 + $0x134] sm:$0xf]
        %v5869 = vld [vmem:[%s5790 + $0x138] sm:$0xf]
        %v5870 = vld [vmem:[%s5790 + $0x13c] sm:$0xf]
        %s5871 = scalar_lea.vmem [#allocation8], 3
        %v5872 = vld [vmem:[%s5871] sm:$0x1]
        %v5873 = vmax.f32 %v5768, 0.0
        %v5874 = vmax.f32 %v5771, 0.0
        %v5875 = vmax.f32 %v5774, 0.0
        %v5876 = vmax.f32 %v5777, 0.0
        %v5877 = vmax.f32 %v5780, 0.0
        %v5878 = vmax.f32 %v5783, 0.0
        %v5879 = vmax.f32 %v5786, 0.0
        %v5880 = vmax.f32 %v5789, 0.0
        %v5881 = vpack.c.bf16 %v5873, %v5873
        %v5882 = vpack.c.bf16 %v5874, %v5874
        %v5883 = vpack.c.bf16 %v5875, %v5875
        %v5884 = vpack.c.bf16 %v5876, %v5876
        %v5885 = vpack.c.bf16 %v5877, %v5877
        %v5886 = vpack.c.bf16 %v5878, %v5878
        %v5887 = vpack.c.bf16 %v5879, %v5879
        %v5888 = vpack.c.bf16 %v5880, %v5880
        %v5897 = vunpack.c.l.b16 %v5881
        %v5898 = vunpack.c.l.b16 %v5882
        %v5899 = vunpack.c.l.b16 %v5883
        %v5900 = vunpack.c.l.b16 %v5884
        %v5901 = vunpack.c.l.b16 %v5885
        %v5902 = vunpack.c.l.b16 %v5886
        %v5903 = vunpack.c.l.b16 %v5887
        %v5904 = vunpack.c.l.b16 %v5888
        %v5905 = vpack.c.b16 %v5897, %v5897
        %v5906 = vpack.c.b16 %v5898, %v5898
        %v5907 = vpack.c.b16 %v5899, %v5899
        %v5908 = vpack.c.b16 %v5900, %v5900
        %v5909 = vpack.c.b16 %v5901, %v5901
        %v5910 = vpack.c.b16 %v5902, %v5902
        %v5911 = vpack.c.b16 %v5903, %v5903
        %v5912 = vpack.c.b16 %v5904, %v5904
        %v5913 = vrot.slane %v5905, 7
        %v5914 = vrot.slane %v5906, 7
        %v5915 = vrot.slane %v5907, 7
        %v5916 = vrot.slane %v5908, 7
        %v5917 = vrot.slane %v5909, 7
        %v5918 = vrot.slane %v5910, 7
        %v5919 = vrot.slane %v5911, 7
        %v5920 = vrot.slane %v5912, 7
        %v5922 = vsel %vm891, 0, %v5913
        %v5925 = vsel %vm891, 0, %v5914
        %v5928 = vsel %vm891, 0, %v5915
        %v5931 = vsel %vm891, 0, %v5916
        %v5934 = vsel %vm891, 0, %v5917
        %v5937 = vsel %vm891, 0, %v5918
        %v5940 = vsel %vm891, 0, %v5919
        %v5943 = vsel %vm891, 0, %v5920
        %vm5945 = vcmask 1041408
        %vm5946 = vsmask.f32 1280
        %vm5947 = vmand %vm5945, %vm5946
        %v5948 = vsel %vm5947, %v5922, 0
        %v5949 = vsel %vm5947, %v5925, 0
        %v5950 = vsel %vm5947, %v5928, 0
        %v5951 = vsel %vm5947, %v5931, 0
        %v5952 = vsel %vm5947, %v5934, 0
        %v5953 = vsel %vm5947, %v5937, 0
        %v5954 = vsel %vm5947, %v5940, 0
        %v5955 = vsel %vm5947, %v5943, 0
        %v5957 = vshrl.u32 %v5948, 16
        %v5960 = vshrl.u32 %v5949, 16
        %v5963 = vshrl.u32 %v5950, 16
        %v5966 = vshrl.u32 %v5951, 16
        %v5969 = vshrl.u32 %v5952, 16
        %v5972 = vshrl.u32 %v5953, 16
        %v5975 = vshrl.u32 %v5954, 16
        %v5978 = vshrl.u32 %v5955, 16
        %v5988 = vrot.slane %v5948, 1
        %v5989 = vrot.slane %v5949, 1
        %v5990 = vrot.slane %v5950, 1
        %v5991 = vrot.slane %v5951, 1
        %v5992 = vrot.slane %v5952, 1
        %v5993 = vrot.slane %v5953, 1
        %v5994 = vrot.slane %v5954, 1
        %v5995 = vrot.slane %v5955, 1
        %v5996 = vrot.slane %v5957, 1
        %v5997 = vrot.slane %v5960, 1
        %v5998 = vrot.slane %v5963, 1
        %v5999 = vrot.slane %v5966, 1
        %v6000 = vrot.slane %v5969, 1
        %v6001 = vrot.slane %v5972, 1
        %v6002 = vrot.slane %v5975, 1
        %v6003 = vrot.slane %v5978, 1
        %v6004 = vrot.slane %v5948, 2
        %v6005 = vrot.slane %v5949, 2
        %v6006 = vrot.slane %v5950, 2
        %v6007 = vrot.slane %v5951, 2
        %v6008 = vrot.slane %v5952, 2
        %v6009 = vrot.slane %v5953, 2
        %v6010 = vrot.slane %v5954, 2
        %v6011 = vrot.slane %v5955, 2
        %v6013 = vperm.slane %v5872, 0
        %v6015 = vunpack.c.l.b16 %v5948
        %v6016 = vunpack.c.l.b16 %v5957
        %v6017 = vunpack.c.l.b16 %v5988
        %v6018 = vunpack.c.l.b16 %v5996
        %v6019 = vunpack.c.l.b16 %v6004
        %v6020 = vunpack.c.l.b16 %v5949
        %v6021 = vunpack.c.l.b16 %v5960
        %v6022 = vunpack.c.l.b16 %v5989
        %v6023 = vunpack.c.l.b16 %v5997
        %v6024 = vunpack.c.l.b16 %v6005
        %v6025 = vunpack.c.l.b16 %v5950
        %v6026 = vunpack.c.l.b16 %v5963
        %v6027 = vunpack.c.l.b16 %v5990
        %v6028 = vunpack.c.l.b16 %v5998
        %v6029 = vunpack.c.l.b16 %v6006
        %v6030 = vunpack.c.l.b16 %v5951
        %v6031 = vunpack.c.l.b16 %v5966
        %v6032 = vunpack.c.l.b16 %v5991
        %v6033 = vunpack.c.l.b16 %v5999
        %v6034 = vunpack.c.l.b16 %v6007
        %v6035 = vunpack.c.l.b16 %v5952
        %v6036 = vunpack.c.l.b16 %v5969
        %v6037 = vunpack.c.l.b16 %v5992
        %v6038 = vunpack.c.l.b16 %v6000
        %v6039 = vunpack.c.l.b16 %v6008
        %v6040 = vunpack.c.l.b16 %v5953
        %v6041 = vunpack.c.l.b16 %v5972
        %v6042 = vunpack.c.l.b16 %v5993
        %v6043 = vunpack.c.l.b16 %v6001
        %v6044 = vunpack.c.l.b16 %v6009
        %v6045 = vunpack.c.l.b16 %v5954
        %v6046 = vunpack.c.l.b16 %v5975
        %v6047 = vunpack.c.l.b16 %v5994
        %v6048 = vunpack.c.l.b16 %v6002
        %v6049 = vunpack.c.l.b16 %v6010
        %v6050 = vunpack.c.l.b16 %v5955
        %v6051 = vunpack.c.l.b16 %v5978
        %v6052 = vunpack.c.l.b16 %v5995
        %v6053 = vunpack.c.l.b16 %v6003
        %v6054 = vunpack.c.l.b16 %v6011
        %v6055 = vrot.slane %v6020, 7
        %vm6056 = vcmask 1041409
        %v6057 = vsel %vm6056, %v6055, %v6015
        %v6058 = vrot.slane %v6025, 6
        %vm6059 = vcmask 1042434
        %v6060 = vsel %vm6059, %v6058, %v6057
        %v6061 = vrot.slane %v6030, 5
        %v6062 = vsel %vm2731, %v6061, %v6060
        %v6063 = vrot.slane %v6035, 4
        %v6064 = vsel %vm2733, %v6063, %v6062
        %v6065 = vrot.slane %v6040, 3
        %v6066 = vsel %vm2735, %v6065, %v6064
        %v6067 = vrot.slane %v6045, 2
        %vm6068 = vcmask 1046534
        %v6069 = vsel %vm6068, %v6067, %v6066
        %v6070 = vrot.slane %v6050, 1
        %vm6071 = vcmask 1047559
        %v6072 = vsel %vm6071, %v6070, %v6069
        %v6073 = vrot.slane %v6021, 7
        %v6074 = vsel %vm6056, %v6073, %v6016
        %v6075 = vrot.slane %v6026, 6
        %v6076 = vsel %vm6059, %v6075, %v6074
        %v6077 = vrot.slane %v6031, 5
        %v6078 = vsel %vm2731, %v6077, %v6076
        %v6079 = vrot.slane %v6036, 4
        %v6080 = vsel %vm2733, %v6079, %v6078
        %v6081 = vrot.slane %v6041, 3
        %v6082 = vsel %vm2735, %v6081, %v6080
        %v6083 = vrot.slane %v6046, 2
        %v6084 = vsel %vm6068, %v6083, %v6082
        %v6085 = vrot.slane %v6051, 1
        %v6086 = vsel %vm6071, %v6085, %v6084
        %v6087 = vrot.slane %v6022, 7
        %v6088 = vsel %vm6056, %v6087, %v6017
        %v6089 = vrot.slane %v6027, 6
        %v6090 = vsel %vm6059, %v6089, %v6088
        %v6091 = vrot.slane %v6032, 5
        %v6092 = vsel %vm2731, %v6091, %v6090
        %v6093 = vrot.slane %v6037, 4
        %v6094 = vsel %vm2733, %v6093, %v6092
        %v6095 = vrot.slane %v6042, 3
        %v6096 = vsel %vm2735, %v6095, %v6094
        %v6097 = vrot.slane %v6047, 2
        %v6098 = vsel %vm6068, %v6097, %v6096
        %v6099 = vrot.slane %v6052, 1
        %v6100 = vsel %vm6071, %v6099, %v6098
        %v6101 = vrot.slane %v6023, 7
        %v6102 = vsel %vm6056, %v6101, %v6018
        %v6103 = vrot.slane %v6028, 6
        %v6104 = vsel %vm6059, %v6103, %v6102
        %v6105 = vrot.slane %v6033, 5
        %v6106 = vsel %vm2731, %v6105, %v6104
        %v6107 = vrot.slane %v6038, 4
        %v6108 = vsel %vm2733, %v6107, %v6106
        %v6109 = vrot.slane %v6043, 3
        %v6110 = vsel %vm2735, %v6109, %v6108
        %v6111 = vrot.slane %v6048, 2
        %v6112 = vsel %vm6068, %v6111, %v6110
        %v6113 = vrot.slane %v6053, 1
        %v6114 = vsel %vm6071, %v6113, %v6112
        %v6115 = vrot.slane %v6024, 7
        %v6116 = vsel %vm6056, %v6115, %v6019
        %v6117 = vrot.slane %v6029, 6
        %v6118 = vsel %vm6059, %v6117, %v6116
        %v6119 = vrot.slane %v6034, 5
        %v6120 = vsel %vm2731, %v6119, %v6118
        %v6121 = vrot.slane %v6039, 4
        %v6122 = vsel %vm2733, %v6121, %v6120
        %v6123 = vrot.slane %v6044, 3
        %v6124 = vsel %vm2735, %v6123, %v6122
        %v6125 = vrot.slane %v6049, 2
        %v6126 = vsel %vm6068, %v6125, %v6124
        %v6127 = vrot.slane %v6054, 1
        %v6128 = vsel %vm6071, %v6127, %v6126
        %v6129 = vpack.c.b16 %v6072, %v6072
        %v6130 = vpack.c.b16 %v6086, %v6086
        %v6131 = vpack.c.b16 %v6100, %v6100
        %v6132 = vpack.c.b16 %v6114, %v6114
        %v6133 = vpack.c.b16 %v6128, %v6128
        %v6219 = vunpack.c.l.b16 %v5791
        %v6220 = vunpack.c.l.b16 %v5792
        %v6221 = vunpack.c.l.b16 %v5793
        %v6222 = vunpack.c.l.b16 %v5794
        %v6223 = vunpack.c.l.b16 %v5795
        %v6224 = vunpack.c.l.b16 %v5796
        %v6225 = vunpack.c.l.b16 %v5797
        %v6226 = vunpack.c.l.b16 %v5798
        %v6227 = vunpack.c.l.b16 %v5799
        %v6228 = vunpack.c.l.b16 %v5800
        %v6229 = vunpack.c.l.b16 %v5801
        %v6230 = vunpack.c.l.b16 %v5802
        %v6231 = vunpack.c.l.b16 %v5803
        %v6232 = vunpack.c.l.b16 %v5804
        %v6233 = vunpack.c.l.b16 %v5805
        %v6234 = vunpack.c.l.b16 %v5806
        %v6235 = vunpack.c.l.b16 %v5807
        %v6236 = vunpack.c.l.b16 %v5808
        %v6237 = vunpack.c.l.b16 %v5809
        %v6238 = vunpack.c.l.b16 %v5810
        %v6239 = vunpack.c.l.b16 %v5811
        %v6240 = vunpack.c.l.b16 %v5812
        %v6241 = vunpack.c.l.b16 %v5813
        %v6242 = vunpack.c.l.b16 %v5814
        %v6243 = vunpack.c.l.b16 %v5815
        %v6244 = vunpack.c.l.b16 %v5816
        %v6245 = vunpack.c.l.b16 %v5817
        %v6246 = vunpack.c.l.b16 %v5818
        %v6247 = vunpack.c.l.b16 %v5819
        %v6248 = vunpack.c.l.b16 %v5820
        %v6249 = vunpack.c.l.b16 %v5821
        %v6250 = vunpack.c.l.b16 %v5822
        %v6251 = vunpack.c.l.b16 %v5823
        %v6252 = vunpack.c.l.b16 %v5824
        %v6253 = vunpack.c.l.b16 %v5825
        %v6254 = vunpack.c.l.b16 %v5826
        %v6255 = vunpack.c.l.b16 %v5827
        %v6256 = vunpack.c.l.b16 %v5828
        %v6257 = vunpack.c.l.b16 %v5829
        %v6258 = vunpack.c.l.b16 %v5830
        %v6259 = vunpack.c.l.b16 %v5831
        %v6260 = vunpack.c.l.b16 %v5832
        %v6261 = vunpack.c.l.b16 %v5833
        %v6262 = vunpack.c.l.b16 %v5834
        %v6263 = vunpack.c.l.b16 %v5835
        %v6264 = vunpack.c.l.b16 %v5836
        %v6265 = vunpack.c.l.b16 %v5837
        %v6266 = vunpack.c.l.b16 %v5838
        %v6267 = vunpack.c.l.b16 %v5839
        %v6268 = vunpack.c.l.b16 %v5840
        %v6269 = vunpack.c.l.b16 %v5841
        %v6270 = vunpack.c.l.b16 %v5842
        %v6271 = vunpack.c.l.b16 %v5843
        %v6272 = vunpack.c.l.b16 %v5844
        %v6273 = vunpack.c.l.b16 %v5845
        %v6274 = vunpack.c.l.b16 %v5846
        %v6275 = vunpack.c.l.b16 %v5847
        %v6276 = vunpack.c.l.b16 %v5848
        %v6277 = vunpack.c.l.b16 %v5849
        %v6278 = vunpack.c.l.b16 %v5850
        %v6279 = vunpack.c.l.b16 %v5851
        %v6280 = vunpack.c.l.b16 %v5852
        %v6281 = vunpack.c.l.b16 %v5853
        %v6282 = vunpack.c.l.b16 %v5854
        %v6283 = vunpack.c.l.b16 %v5855
        %v6284 = vunpack.c.l.b16 %v5856
        %v6285 = vunpack.c.l.b16 %v5857
        %v6286 = vunpack.c.l.b16 %v5858
        %v6287 = vunpack.c.l.b16 %v5859
        %v6288 = vunpack.c.l.b16 %v5860
        %v6289 = vunpack.c.l.b16 %v5861
        %v6290 = vunpack.c.l.b16 %v5862
        %v6291 = vunpack.c.l.b16 %v5863
        %v6292 = vunpack.c.l.b16 %v5864
        %v6293 = vunpack.c.l.b16 %v5865
        %v6294 = vunpack.c.l.b16 %v5866
        %v6295 = vunpack.c.l.b16 %v5867
        %v6296 = vunpack.c.l.b16 %v5868
        %v6297 = vunpack.c.l.b16 %v5869
        %v6298 = vunpack.c.l.b16 %v5870
        %v6299 = vpack.c.b16 %v6220, %v6219
        %v6300 = vpack.c.b16 %v6222, %v6221
        %v6301 = vpack.c.b16 %v6224, %v6223
        %v6302 = vpack.c.b16 %v6226, %v6225
        %v6303 = vpack.c.b16 %v6228, %v6227
        %v6304 = vpack.c.b16 %v6230, %v6229
        %v6305 = vpack.c.b16 %v6232, %v6231
        %v6306 = vpack.c.b16 %v6234, %v6233
        %v6307 = vpack.c.b16 %v6236, %v6235
        %v6308 = vpack.c.b16 %v6238, %v6237
        %v6309 = vpack.c.b16 %v6240, %v6239
        %v6310 = vpack.c.b16 %v6242, %v6241
        %v6311 = vpack.c.b16 %v6244, %v6243
        %v6312 = vpack.c.b16 %v6246, %v6245
        %v6313 = vpack.c.b16 %v6248, %v6247
        %v6314 = vpack.c.b16 %v6250, %v6249
        %v6315 = vpack.c.b16 %v6252, %v6251
        %v6316 = vpack.c.b16 %v6254, %v6253
        %v6317 = vpack.c.b16 %v6256, %v6255
        %v6318 = vpack.c.b16 %v6258, %v6257
        %v6319 = vpack.c.b16 %v6260, %v6259
        %v6320 = vpack.c.b16 %v6262, %v6261
        %v6321 = vpack.c.b16 %v6264, %v6263
        %v6322 = vpack.c.b16 %v6266, %v6265
        %v6323 = vpack.c.b16 %v6268, %v6267
        %v6324 = vpack.c.b16 %v6270, %v6269
        %v6325 = vpack.c.b16 %v6272, %v6271
        %v6326 = vpack.c.b16 %v6274, %v6273
        %v6327 = vpack.c.b16 %v6276, %v6275
        %v6328 = vpack.c.b16 %v6278, %v6277
        %v6329 = vpack.c.b16 %v6280, %v6279
        %v6330 = vpack.c.b16 %v6282, %v6281
        %v6331 = vpack.c.b16 %v6284, %v6283
        %v6332 = vpack.c.b16 %v6286, %v6285
        %v6333 = vpack.c.b16 %v6288, %v6287
        %v6334 = vpack.c.b16 %v6290, %v6289
        %v6335 = vpack.c.b16 %v6292, %v6291
        %v6336 = vpack.c.b16 %v6294, %v6293
        %v6337 = vpack.c.b16 %v6296, %v6295
        %v6338 = vpack.c.b16 %v6298, %v6297
        %6379 = vmatpush.bf16.msra.mxu0 %v6306
        %6380 = vmatpush.bf16.msra.mxu0 %v6305
        %6381 = vmatpush.bf16.msra.mxu0 %v6304
        %6382 = vmatpush.bf16.msra.mxu0 %v6303
        %6383 = vmatpush.bf16.msra.mxu0 %v6302
        %6384 = vmatpush.bf16.msra.mxu0 %v6301
        %6385 = vmatpush.bf16.msra.mxu0 %v6300
        %6386 = vmatpush.bf16.msra.mxu0 %v6299
        %6387 = vmatmul.bf16.gmra.mxu0 %v6129
        %v6388 = vpop.f32.mrf.mxu0
        %v6389 = vadd.f32 %v6013, %v6388
        %v6390 = vpop.f32.mrf.mxu0
        %6391 = vdwg.mxu0
        %6392 = vmatpush.bf16.msra.mxu0 %v6314
        %6393 = vmatpush.bf16.msra.mxu0 %v6313
        %6394 = vmatpush.bf16.msra.mxu0 %v6312
        %6395 = vmatpush.bf16.msra.mxu0 %v6311
        %6396 = vmatpush.bf16.msra.mxu0 %v6310
        %6397 = vmatpush.bf16.msra.mxu0 %v6309
        %6398 = vmatpush.bf16.msra.mxu0 %v6308
        %6399 = vmatpush.bf16.msra.mxu0 %v6307
        %6400 = vmatmul.bf16.gmra.mxu0 %v6130
        %v6401 = vpop.f32.mrf.mxu0
        %v6402 = vadd.f32 %v6389, %v6401
        %v6403 = vpop.f32.mrf.mxu0
        %6404 = vdwg.mxu0
        %6405 = vmatpush.bf16.msra.mxu0 %v6322
        %6406 = vmatpush.bf16.msra.mxu0 %v6321
        %6407 = vmatpush.bf16.msra.mxu0 %v6320
        %6408 = vmatpush.bf16.msra.mxu0 %v6319
        %6409 = vmatpush.bf16.msra.mxu0 %v6318
        %6410 = vmatpush.bf16.msra.mxu0 %v6317
        %6411 = vmatpush.bf16.msra.mxu0 %v6316
        %6412 = vmatpush.bf16.msra.mxu0 %v6315
        %6413 = vmatmul.bf16.gmra.mxu0 %v6131
        %v6414 = vpop.f32.mrf.mxu0
        %v6415 = vadd.f32 %v6402, %v6414
        %v6416 = vpop.f32.mrf.mxu0
        %6417 = vdwg.mxu0
        %6418 = vmatpush.bf16.msra.mxu0 %v6330
        %6419 = vmatpush.bf16.msra.mxu0 %v6329
        %6420 = vmatpush.bf16.msra.mxu0 %v6328
        %6421 = vmatpush.bf16.msra.mxu0 %v6327
        %6422 = vmatpush.bf16.msra.mxu0 %v6326
        %6423 = vmatpush.bf16.msra.mxu0 %v6325
        %6424 = vmatpush.bf16.msra.mxu0 %v6324
        %6425 = vmatpush.bf16.msra.mxu0 %v6323
        %6426 = vmatmul.bf16.gmra.mxu0 %v6132
        %v6427 = vpop.f32.mrf.mxu0
        %v6428 = vadd.f32 %v6415, %v6427
        %v6429 = vpop.f32.mrf.mxu0
        %6430 = vdwg.mxu0
        %6431 = vmatpush.bf16.msra.mxu0 %v6338
        %6432 = vmatpush.bf16.msra.mxu0 %v6337
        %6433 = vmatpush.bf16.msra.mxu0 %v6336
        %6434 = vmatpush.bf16.msra.mxu0 %v6335
        %6435 = vmatpush.bf16.msra.mxu0 %v6334
        %6436 = vmatpush.bf16.msra.mxu0 %v6333
        %6437 = vmatpush.bf16.msra.mxu0 %v6332
        %6438 = vmatpush.bf16.msra.mxu0 %v6331
        %6439 = vmatmul.bf16.gmra.mxu0 %v6133
        %v6440 = vpop.f32.mrf.mxu0
        %v6441 = vadd.f32 %v6428, %v6440
        %v6442 = vpop.f32.mrf.mxu0
        %6443 = vdwg.mxu0
        %v6445 = vrot.slane %v6441, 1
        %v6446 = vrot.slane %v6441, 2
        %v6447 = vrot.slane %v6441, 3
        %v6448 = vrot.slane %v6441, 4
        %v6449 = vrot.slane %v6441, 5
        %v6450 = vrot.slane %v6441, 6
        %v6451 = vrot.slane %v6441, 7
        %s6459 = scalar_lea.vmem [#allocation10], 960
        %v6460 = vld [vmem:[%s6459] sm:$0xf]
        %v6461 = vld [vmem:[%s6459 + $0x4] sm:$0xf]
        %v6462 = vld [vmem:[%s6459 + $0x8] sm:$0xf]
        %v6463 = vld [vmem:[%s6459 + $0xc] sm:$0xf]
        %v6464 = vld [vmem:[%s6459 + $0x10] sm:$0xf]
        %v6465 = vld [vmem:[%s6459 + $0x14] sm:$0xf]
        %v6466 = vld [vmem:[%s6459 + $0x18] sm:$0xf]
        %v6467 = vld [vmem:[%s6459 + $0x1c] sm:$0xf]
        %v6468 = vld [vmem:[%s6459 + $0x20] sm:$0xf]
        %v6469 = vld [vmem:[%s6459 + $0x24] sm:$0xf]
        %v6470 = vld [vmem:[%s6459 + $0x28] sm:$0xf]
        %v6471 = vld [vmem:[%s6459 + $0x2c] sm:$0xf]
        %v6472 = vld [vmem:[%s6459 + $0x30] sm:$0xf]
        %v6473 = vld [vmem:[%s6459 + $0x34] sm:$0xf]
        %v6474 = vld [vmem:[%s6459 + $0x38] sm:$0xf]
        %v6475 = vld [vmem:[%s6459 + $0x3c] sm:$0xf]
        %v6476 = vld [vmem:[%s6459 + $0x40] sm:$0xf]
        %v6477 = vld [vmem:[%s6459 + $0x44] sm:$0xf]
        %v6478 = vld [vmem:[%s6459 + $0x48] sm:$0xf]
        %v6479 = vld [vmem:[%s6459 + $0x4c] sm:$0xf]
        %v6480 = vld [vmem:[%s6459 + $0x50] sm:$0xf]
        %v6481 = vld [vmem:[%s6459 + $0x54] sm:$0xf]
        %v6482 = vld [vmem:[%s6459 + $0x58] sm:$0xf]
        %v6483 = vld [vmem:[%s6459 + $0x5c] sm:$0xf]
        %v6484 = vld [vmem:[%s6459 + $0x60] sm:$0xf]
        %v6485 = vld [vmem:[%s6459 + $0x64] sm:$0xf]
        %v6486 = vld [vmem:[%s6459 + $0x68] sm:$0xf]
        %v6487 = vld [vmem:[%s6459 + $0x6c] sm:$0xf]
        %v6488 = vld [vmem:[%s6459 + $0x70] sm:$0xf]
        %v6489 = vld [vmem:[%s6459 + $0x74] sm:$0xf]
        %v6490 = vld [vmem:[%s6459 + $0x78] sm:$0xf]
        %v6491 = vld [vmem:[%s6459 + $0x7c] sm:$0xf]
        %v6492 = vld [vmem:[%s6459 + $0x80] sm:$0xf]
        %v6493 = vld [vmem:[%s6459 + $0x84] sm:$0xf]
        %v6494 = vld [vmem:[%s6459 + $0x88] sm:$0xf]
        %v6495 = vld [vmem:[%s6459 + $0x8c] sm:$0xf]
        %v6496 = vld [vmem:[%s6459 + $0x90] sm:$0xf]
        %v6497 = vld [vmem:[%s6459 + $0x94] sm:$0xf]
        %v6498 = vld [vmem:[%s6459 + $0x98] sm:$0xf]
        %v6499 = vld [vmem:[%s6459 + $0x9c] sm:$0xf]
        %v6500 = vld [vmem:[%s6459 + $0xa0] sm:$0xf]
        %v6501 = vld [vmem:[%s6459 + $0xa4] sm:$0xf]
        %v6502 = vld [vmem:[%s6459 + $0xa8] sm:$0xf]
        %v6503 = vld [vmem:[%s6459 + $0xac] sm:$0xf]
        %v6504 = vld [vmem:[%s6459 + $0xb0] sm:$0xf]
        %v6505 = vld [vmem:[%s6459 + $0xb4] sm:$0xf]
        %v6506 = vld [vmem:[%s6459 + $0xb8] sm:$0xf]
        %v6507 = vld [vmem:[%s6459 + $0xbc] sm:$0xf]
        %v6508 = vld [vmem:[%s6459 + $0xc0] sm:$0xf]
        %v6509 = vld [vmem:[%s6459 + $0xc4] sm:$0xf]
        %v6510 = vld [vmem:[%s6459 + $0xc8] sm:$0xf]
        %v6511 = vld [vmem:[%s6459 + $0xcc] sm:$0xf]
        %v6512 = vld [vmem:[%s6459 + $0xd0] sm:$0xf]
        %v6513 = vld [vmem:[%s6459 + $0xd4] sm:$0xf]
        %v6514 = vld [vmem:[%s6459 + $0xd8] sm:$0xf]
        %v6515 = vld [vmem:[%s6459 + $0xdc] sm:$0xf]
        %v6516 = vld [vmem:[%s6459 + $0xe0] sm:$0xf]
        %v6517 = vld [vmem:[%s6459 + $0xe4] sm:$0xf]
        %v6518 = vld [vmem:[%s6459 + $0xe8] sm:$0xf]
        %v6519 = vld [vmem:[%s6459 + $0xec] sm:$0xf]
        %v6520 = vld [vmem:[%s6459 + $0xf0] sm:$0xf]
        %v6521 = vld [vmem:[%s6459 + $0xf4] sm:$0xf]
        %v6522 = vld [vmem:[%s6459 + $0xf8] sm:$0xf]
        %v6523 = vld [vmem:[%s6459 + $0xfc] sm:$0xf]
        %v6524 = vld [vmem:[%s6459 + $0x100] sm:$0xf]
        %v6525 = vld [vmem:[%s6459 + $0x104] sm:$0xf]
        %v6526 = vld [vmem:[%s6459 + $0x108] sm:$0xf]
        %v6527 = vld [vmem:[%s6459 + $0x10c] sm:$0xf]
        %v6528 = vld [vmem:[%s6459 + $0x110] sm:$0xf]
        %v6529 = vld [vmem:[%s6459 + $0x114] sm:$0xf]
        %v6530 = vld [vmem:[%s6459 + $0x118] sm:$0xf]
        %v6531 = vld [vmem:[%s6459 + $0x11c] sm:$0xf]
        %v6532 = vld [vmem:[%s6459 + $0x120] sm:$0xf]
        %v6533 = vld [vmem:[%s6459 + $0x124] sm:$0xf]
        %v6534 = vld [vmem:[%s6459 + $0x128] sm:$0xf]
        %v6535 = vld [vmem:[%s6459 + $0x12c] sm:$0xf]
        %v6536 = vld [vmem:[%s6459 + $0x130] sm:$0xf]
        %v6537 = vld [vmem:[%s6459 + $0x134] sm:$0xf]
        %v6538 = vld [vmem:[%s6459 + $0x138] sm:$0xf]
        %v6539 = vld [vmem:[%s6459 + $0x13c] sm:$0xf]
        %s6540 = scalar_lea.vmem [#allocation11], 3
        %v6541 = vld [vmem:[%s6540] sm:$0x1]
        %v6542 = vmax.f32 %v6441, 0.0
        %v6543 = vmax.f32 %v6445, 0.0
        %v6544 = vmax.f32 %v6446, 0.0
        %v6545 = vmax.f32 %v6447, 0.0
        %v6546 = vmax.f32 %v6448, 0.0
        %v6547 = vmax.f32 %v6449, 0.0
        %v6548 = vmax.f32 %v6450, 0.0
        %v6549 = vmax.f32 %v6451, 0.0
        %v6550 = vpack.c.bf16 %v6542, %v6542
        %v6551 = vpack.c.bf16 %v6543, %v6543
        %v6552 = vpack.c.bf16 %v6544, %v6544
        %v6553 = vpack.c.bf16 %v6545, %v6545
        %v6554 = vpack.c.bf16 %v6546, %v6546
        %v6555 = vpack.c.bf16 %v6547, %v6547
        %v6556 = vpack.c.bf16 %v6548, %v6548
        %v6557 = vpack.c.bf16 %v6549, %v6549
        %v6566 = vunpack.c.l.b16 %v6550
        %v6567 = vunpack.c.l.b16 %v6551
        %v6568 = vunpack.c.l.b16 %v6552
        %v6569 = vunpack.c.l.b16 %v6553
        %v6570 = vunpack.c.l.b16 %v6554
        %v6571 = vunpack.c.l.b16 %v6555
        %v6572 = vunpack.c.l.b16 %v6556
        %v6573 = vunpack.c.l.b16 %v6557
        %v6574 = vpack.c.b16 %v6566, %v6566
        %v6575 = vpack.c.b16 %v6567, %v6567
        %v6576 = vpack.c.b16 %v6568, %v6568
        %v6577 = vpack.c.b16 %v6569, %v6569
        %v6578 = vpack.c.b16 %v6570, %v6570
        %v6579 = vpack.c.b16 %v6571, %v6571
        %v6580 = vpack.c.b16 %v6572, %v6572
        %v6581 = vpack.c.b16 %v6573, %v6573
        %v6582 = vrot.slane %v6574, 7
        %v6583 = vrot.slane %v6575, 7
        %v6584 = vrot.slane %v6576, 7
        %v6585 = vrot.slane %v6577, 7
        %v6586 = vrot.slane %v6578, 7
        %v6587 = vrot.slane %v6579, 7
        %v6588 = vrot.slane %v6580, 7
        %v6589 = vrot.slane %v6581, 7
        %v6591 = vsel %vm891, 0, %v6582
        %v6594 = vsel %vm891, 0, %v6583
        %v6597 = vsel %vm891, 0, %v6584
        %v6600 = vsel %vm891, 0, %v6585
        %v6603 = vsel %vm891, 0, %v6586
        %v6606 = vsel %vm891, 0, %v6587
        %v6609 = vsel %vm891, 0, %v6588
        %v6612 = vsel %vm891, 0, %v6589
        %v6614 = vsel %vm5947, %v6591, 0
        %v6615 = vsel %vm5947, %v6594, 0
        %v6616 = vsel %vm5947, %v6597, 0
        %v6617 = vsel %vm5947, %v6600, 0
        %v6618 = vsel %vm5947, %v6603, 0
        %v6619 = vsel %vm5947, %v6606, 0
        %v6620 = vsel %vm5947, %v6609, 0
        %v6621 = vsel %vm5947, %v6612, 0
        %v6623 = vshrl.u32 %v6614, 16
        %v6626 = vshrl.u32 %v6615, 16
        %v6629 = vshrl.u32 %v6616, 16
        %v6632 = vshrl.u32 %v6617, 16
        %v6635 = vshrl.u32 %v6618, 16
        %v6638 = vshrl.u32 %v6619, 16
        %v6641 = vshrl.u32 %v6620, 16
        %v6644 = vshrl.u32 %v6621, 16
        %v6654 = vrot.slane %v6614, 1
        %v6655 = vrot.slane %v6615, 1
        %v6656 = vrot.slane %v6616, 1
        %v6657 = vrot.slane %v6617, 1
        %v6658 = vrot.slane %v6618, 1
        %v6659 = vrot.slane %v6619, 1
        %v6660 = vrot.slane %v6620, 1
        %v6661 = vrot.slane %v6621, 1
        %v6662 = vrot.slane %v6623, 1
        %v6663 = vrot.slane %v6626, 1
        %v6664 = vrot.slane %v6629, 1
        %v6665 = vrot.slane %v6632, 1
        %v6666 = vrot.slane %v6635, 1
        %v6667 = vrot.slane %v6638, 1
        %v6668 = vrot.slane %v6641, 1
        %v6669 = vrot.slane %v6644, 1
        %v6670 = vrot.slane %v6614, 2
        %v6671 = vrot.slane %v6615, 2
        %v6672 = vrot.slane %v6616, 2
        %v6673 = vrot.slane %v6617, 2
        %v6674 = vrot.slane %v6618, 2
        %v6675 = vrot.slane %v6619, 2
        %v6676 = vrot.slane %v6620, 2
        %v6677 = vrot.slane %v6621, 2
        %v6679 = vperm.slane %v6541, 0
        %v6681 = vunpack.c.l.b16 %v6614
        %v6682 = vunpack.c.l.b16 %v6623
        %v6683 = vunpack.c.l.b16 %v6654
        %v6684 = vunpack.c.l.b16 %v6662
        %v6685 = vunpack.c.l.b16 %v6670
        %v6686 = vunpack.c.l.b16 %v6615
        %v6687 = vunpack.c.l.b16 %v6626
        %v6688 = vunpack.c.l.b16 %v6655
        %v6689 = vunpack.c.l.b16 %v6663
        %v6690 = vunpack.c.l.b16 %v6671
        %v6691 = vunpack.c.l.b16 %v6616
        %v6692 = vunpack.c.l.b16 %v6629
        %v6693 = vunpack.c.l.b16 %v6656
        %v6694 = vunpack.c.l.b16 %v6664
        %v6695 = vunpack.c.l.b16 %v6672
        %v6696 = vunpack.c.l.b16 %v6617
        %v6697 = vunpack.c.l.b16 %v6632
        %v6698 = vunpack.c.l.b16 %v6657
        %v6699 = vunpack.c.l.b16 %v6665
        %v6700 = vunpack.c.l.b16 %v6673
        %v6701 = vunpack.c.l.b16 %v6618
        %v6702 = vunpack.c.l.b16 %v6635
        %v6703 = vunpack.c.l.b16 %v6658
        %v6704 = vunpack.c.l.b16 %v6666
        %v6705 = vunpack.c.l.b16 %v6674
        %v6706 = vunpack.c.l.b16 %v6619
        %v6707 = vunpack.c.l.b16 %v6638
        %v6708 = vunpack.c.l.b16 %v6659
        %v6709 = vunpack.c.l.b16 %v6667
        %v6710 = vunpack.c.l.b16 %v6675
        %v6711 = vunpack.c.l.b16 %v6620
        %v6712 = vunpack.c.l.b16 %v6641
        %v6713 = vunpack.c.l.b16 %v6660
        %v6714 = vunpack.c.l.b16 %v6668
        %v6715 = vunpack.c.l.b16 %v6676
        %v6716 = vunpack.c.l.b16 %v6621
        %v6717 = vunpack.c.l.b16 %v6644
        %v6718 = vunpack.c.l.b16 %v6661
        %v6719 = vunpack.c.l.b16 %v6669
        %v6720 = vunpack.c.l.b16 %v6677
        %v6721 = vrot.slane %v6686, 7
        %v6722 = vsel %vm6056, %v6721, %v6681
        %v6723 = vrot.slane %v6691, 6
        %v6724 = vsel %vm6059, %v6723, %v6722
        %v6725 = vrot.slane %v6696, 5
        %v6726 = vsel %vm2731, %v6725, %v6724
        %v6727 = vrot.slane %v6701, 4
        %v6728 = vsel %vm2733, %v6727, %v6726
        %v6729 = vrot.slane %v6706, 3
        %v6730 = vsel %vm2735, %v6729, %v6728
        %v6731 = vrot.slane %v6711, 2
        %v6732 = vsel %vm6068, %v6731, %v6730
        %v6733 = vrot.slane %v6716, 1
        %v6734 = vsel %vm6071, %v6733, %v6732
        %v6735 = vrot.slane %v6687, 7
        %v6736 = vsel %vm6056, %v6735, %v6682
        %v6737 = vrot.slane %v6692, 6
        %v6738 = vsel %vm6059, %v6737, %v6736
        %v6739 = vrot.slane %v6697, 5
        %v6740 = vsel %vm2731, %v6739, %v6738
        %v6741 = vrot.slane %v6702, 4
        %v6742 = vsel %vm2733, %v6741, %v6740
        %v6743 = vrot.slane %v6707, 3
        %v6744 = vsel %vm2735, %v6743, %v6742
        %v6745 = vrot.slane %v6712, 2
        %v6746 = vsel %vm6068, %v6745, %v6744
        %v6747 = vrot.slane %v6717, 1
        %v6748 = vsel %vm6071, %v6747, %v6746
        %v6749 = vrot.slane %v6688, 7
        %v6750 = vsel %vm6056, %v6749, %v6683
        %v6751 = vrot.slane %v6693, 6
        %v6752 = vsel %vm6059, %v6751, %v6750
        %v6753 = vrot.slane %v6698, 5
        %v6754 = vsel %vm2731, %v6753, %v6752
        %v6755 = vrot.slane %v6703, 4
        %v6756 = vsel %vm2733, %v6755, %v6754
        %v6757 = vrot.slane %v6708, 3
        %v6758 = vsel %vm2735, %v6757, %v6756
        %v6759 = vrot.slane %v6713, 2
        %v6760 = vsel %vm6068, %v6759, %v6758
        %v6761 = vrot.slane %v6718, 1
        %v6762 = vsel %vm6071, %v6761, %v6760
        %v6763 = vrot.slane %v6689, 7
        %v6764 = vsel %vm6056, %v6763, %v6684
        %v6765 = vrot.slane %v6694, 6
        %v6766 = vsel %vm6059, %v6765, %v6764
        %v6767 = vrot.slane %v6699, 5
        %v6768 = vsel %vm2731, %v6767, %v6766
        %v6769 = vrot.slane %v6704, 4
        %v6770 = vsel %vm2733, %v6769, %v6768
        %v6771 = vrot.slane %v6709, 3
        %v6772 = vsel %vm2735, %v6771, %v6770
        %v6773 = vrot.slane %v6714, 2
        %v6774 = vsel %vm6068, %v6773, %v6772
        %v6775 = vrot.slane %v6719, 1
        %v6776 = vsel %vm6071, %v6775, %v6774
        %v6777 = vrot.slane %v6690, 7
        %v6778 = vsel %vm6056, %v6777, %v6685
        %v6779 = vrot.slane %v6695, 6
        %v6780 = vsel %vm6059, %v6779, %v6778
        %v6781 = vrot.slane %v6700, 5
        %v6782 = vsel %vm2731, %v6781, %v6780
        %v6783 = vrot.slane %v6705, 4
        %v6784 = vsel %vm2733, %v6783, %v6782
        %v6785 = vrot.slane %v6710, 3
        %v6786 = vsel %vm2735, %v6785, %v6784
        %v6787 = vrot.slane %v6715, 2
        %v6788 = vsel %vm6068, %v6787, %v6786
        %v6789 = vrot.slane %v6720, 1
        %v6790 = vsel %vm6071, %v6789, %v6788
        %v6791 = vpack.c.b16 %v6734, %v6734
        %v6792 = vpack.c.b16 %v6748, %v6748
        %v6793 = vpack.c.b16 %v6762, %v6762
        %v6794 = vpack.c.b16 %v6776, %v6776
        %v6795 = vpack.c.b16 %v6790, %v6790
        %v6881 = vunpack.c.l.b16 %v6460
        %v6882 = vunpack.c.l.b16 %v6461
        %v6883 = vunpack.c.l.b16 %v6462
        %v6884 = vunpack.c.l.b16 %v6463
        %v6885 = vunpack.c.l.b16 %v6464
        %v6886 = vunpack.c.l.b16 %v6465
        %v6887 = vunpack.c.l.b16 %v6466
        %v6888 = vunpack.c.l.b16 %v6467
        %v6889 = vunpack.c.l.b16 %v6468
        %v6890 = vunpack.c.l.b16 %v6469
        %v6891 = vunpack.c.l.b16 %v6470
        %v6892 = vunpack.c.l.b16 %v6471
        %v6893 = vunpack.c.l.b16 %v6472
        %v6894 = vunpack.c.l.b16 %v6473
        %v6895 = vunpack.c.l.b16 %v6474
        %v6896 = vunpack.c.l.b16 %v6475
        %v6897 = vunpack.c.l.b16 %v6476
        %v6898 = vunpack.c.l.b16 %v6477
        %v6899 = vunpack.c.l.b16 %v6478
        %v6900 = vunpack.c.l.b16 %v6479
        %v6901 = vunpack.c.l.b16 %v6480
        %v6902 = vunpack.c.l.b16 %v6481
        %v6903 = vunpack.c.l.b16 %v6482
        %v6904 = vunpack.c.l.b16 %v6483
        %v6905 = vunpack.c.l.b16 %v6484
        %v6906 = vunpack.c.l.b16 %v6485
        %v6907 = vunpack.c.l.b16 %v6486
        %v6908 = vunpack.c.l.b16 %v6487
        %v6909 = vunpack.c.l.b16 %v6488
        %v6910 = vunpack.c.l.b16 %v6489
        %v6911 = vunpack.c.l.b16 %v6490
        %v6912 = vunpack.c.l.b16 %v6491
        %v6913 = vunpack.c.l.b16 %v6492
        %v6914 = vunpack.c.l.b16 %v6493
        %v6915 = vunpack.c.l.b16 %v6494
        %v6916 = vunpack.c.l.b16 %v6495
        %v6917 = vunpack.c.l.b16 %v6496
        %v6918 = vunpack.c.l.b16 %v6497
        %v6919 = vunpack.c.l.b16 %v6498
        %v6920 = vunpack.c.l.b16 %v6499
        %v6921 = vunpack.c.l.b16 %v6500
        %v6922 = vunpack.c.l.b16 %v6501
        %v6923 = vunpack.c.l.b16 %v6502
        %v6924 = vunpack.c.l.b16 %v6503
        %v6925 = vunpack.c.l.b16 %v6504
        %v6926 = vunpack.c.l.b16 %v6505
        %v6927 = vunpack.c.l.b16 %v6506
        %v6928 = vunpack.c.l.b16 %v6507
        %v6929 = vunpack.c.l.b16 %v6508
        %v6930 = vunpack.c.l.b16 %v6509
        %v6931 = vunpack.c.l.b16 %v6510
        %v6932 = vunpack.c.l.b16 %v6511
        %v6933 = vunpack.c.l.b16 %v6512
        %v6934 = vunpack.c.l.b16 %v6513
        %v6935 = vunpack.c.l.b16 %v6514
        %v6936 = vunpack.c.l.b16 %v6515
        %v6937 = vunpack.c.l.b16 %v6516
        %v6938 = vunpack.c.l.b16 %v6517
        %v6939 = vunpack.c.l.b16 %v6518
        %v6940 = vunpack.c.l.b16 %v6519
        %v6941 = vunpack.c.l.b16 %v6520
        %v6942 = vunpack.c.l.b16 %v6521
        %v6943 = vunpack.c.l.b16 %v6522
        %v6944 = vunpack.c.l.b16 %v6523
        %v6945 = vunpack.c.l.b16 %v6524
        %v6946 = vunpack.c.l.b16 %v6525
        %v6947 = vunpack.c.l.b16 %v6526
        %v6948 = vunpack.c.l.b16 %v6527
        %v6949 = vunpack.c.l.b16 %v6528
        %v6950 = vunpack.c.l.b16 %v6529
        %v6951 = vunpack.c.l.b16 %v6530
        %v6952 = vunpack.c.l.b16 %v6531
        %v6953 = vunpack.c.l.b16 %v6532
        %v6954 = vunpack.c.l.b16 %v6533
        %v6955 = vunpack.c.l.b16 %v6534
        %v6956 = vunpack.c.l.b16 %v6535
        %v6957 = vunpack.c.l.b16 %v6536
        %v6958 = vunpack.c.l.b16 %v6537
        %v6959 = vunpack.c.l.b16 %v6538
        %v6960 = vunpack.c.l.b16 %v6539
        %v6961 = vpack.c.b16 %v6882, %v6881
        %v6962 = vpack.c.b16 %v6884, %v6883
        %v6963 = vpack.c.b16 %v6886, %v6885
        %v6964 = vpack.c.b16 %v6888, %v6887
        %v6965 = vpack.c.b16 %v6890, %v6889
        %v6966 = vpack.c.b16 %v6892, %v6891
        %v6967 = vpack.c.b16 %v6894, %v6893
        %v6968 = vpack.c.b16 %v6896, %v6895
        %v6969 = vpack.c.b16 %v6898, %v6897
        %v6970 = vpack.c.b16 %v6900, %v6899
        %v6971 = vpack.c.b16 %v6902, %v6901
        %v6972 = vpack.c.b16 %v6904, %v6903
        %v6973 = vpack.c.b16 %v6906, %v6905
        %v6974 = vpack.c.b16 %v6908, %v6907
        %v6975 = vpack.c.b16 %v6910, %v6909
        %v6976 = vpack.c.b16 %v6912, %v6911
        %v6977 = vpack.c.b16 %v6914, %v6913
        %v6978 = vpack.c.b16 %v6916, %v6915
        %v6979 = vpack.c.b16 %v6918, %v6917
        %v6980 = vpack.c.b16 %v6920, %v6919
        %v6981 = vpack.c.b16 %v6922, %v6921
        %v6982 = vpack.c.b16 %v6924, %v6923
        %v6983 = vpack.c.b16 %v6926, %v6925
        %v6984 = vpack.c.b16 %v6928, %v6927
        %v6985 = vpack.c.b16 %v6930, %v6929
        %v6986 = vpack.c.b16 %v6932, %v6931
        %v6987 = vpack.c.b16 %v6934, %v6933
        %v6988 = vpack.c.b16 %v6936, %v6935
        %v6989 = vpack.c.b16 %v6938, %v6937
        %v6990 = vpack.c.b16 %v6940, %v6939
        %v6991 = vpack.c.b16 %v6942, %v6941
        %v6992 = vpack.c.b16 %v6944, %v6943
        %v6993 = vpack.c.b16 %v6946, %v6945
        %v6994 = vpack.c.b16 %v6948, %v6947
        %v6995 = vpack.c.b16 %v6950, %v6949
        %v6996 = vpack.c.b16 %v6952, %v6951
        %v6997 = vpack.c.b16 %v6954, %v6953
        %v6998 = vpack.c.b16 %v6956, %v6955
        %v6999 = vpack.c.b16 %v6958, %v6957
        %v7000 = vpack.c.b16 %v6960, %v6959
        %7041 = vmatpush.bf16.msra.mxu0 %v6968
        %7042 = vmatpush.bf16.msra.mxu0 %v6967
        %7043 = vmatpush.bf16.msra.mxu0 %v6966
        %7044 = vmatpush.bf16.msra.mxu0 %v6965
        %7045 = vmatpush.bf16.msra.mxu0 %v6964
        %7046 = vmatpush.bf16.msra.mxu0 %v6963
        %7047 = vmatpush.bf16.msra.mxu0 %v6962
        %7048 = vmatpush.bf16.msra.mxu0 %v6961
        %7049 = vmatmul.bf16.gmra.mxu0 %v6791
        %v7050 = vpop.f32.mrf.mxu0
        %v7051 = vadd.f32 %v6679, %v7050
        %v7052 = vpop.f32.mrf.mxu0
        %7053 = vdwg.mxu0
        %7054 = vmatpush.bf16.msra.mxu0 %v6976
        %7055 = vmatpush.bf16.msra.mxu0 %v6975
        %7056 = vmatpush.bf16.msra.mxu0 %v6974
        %7057 = vmatpush.bf16.msra.mxu0 %v6973
        %7058 = vmatpush.bf16.msra.mxu0 %v6972
        %7059 = vmatpush.bf16.msra.mxu0 %v6971
        %7060 = vmatpush.bf16.msra.mxu0 %v6970
        %7061 = vmatpush.bf16.msra.mxu0 %v6969
        %7062 = vmatmul.bf16.gmra.mxu0 %v6792
        %v7063 = vpop.f32.mrf.mxu0
        %v7064 = vadd.f32 %v7051, %v7063
        %v7065 = vpop.f32.mrf.mxu0
        %7066 = vdwg.mxu0
        %7067 = vmatpush.bf16.msra.mxu0 %v6984
        %7068 = vmatpush.bf16.msra.mxu0 %v6983
        %7069 = vmatpush.bf16.msra.mxu0 %v6982
        %7070 = vmatpush.bf16.msra.mxu0 %v6981
        %7071 = vmatpush.bf16.msra.mxu0 %v6980
        %7072 = vmatpush.bf16.msra.mxu0 %v6979
        %7073 = vmatpush.bf16.msra.mxu0 %v6978
        %7074 = vmatpush.bf16.msra.mxu0 %v6977
        %7075 = vmatmul.bf16.gmra.mxu0 %v6793
        %v7076 = vpop.f32.mrf.mxu0
        %v7077 = vadd.f32 %v7064, %v7076
        %v7078 = vpop.f32.mrf.mxu0
        %7079 = vdwg.mxu0
        %7080 = vmatpush.bf16.msra.mxu0 %v6992
        %7081 = vmatpush.bf16.msra.mxu0 %v6991
        %7082 = vmatpush.bf16.msra.mxu0 %v6990
        %7083 = vmatpush.bf16.msra.mxu0 %v6989
        %7084 = vmatpush.bf16.msra.mxu0 %v6988
        %7085 = vmatpush.bf16.msra.mxu0 %v6987
        %7086 = vmatpush.bf16.msra.mxu0 %v6986
        %7087 = vmatpush.bf16.msra.mxu0 %v6985
        %7088 = vmatmul.bf16.gmra.mxu0 %v6794
        %v7089 = vpop.f32.mrf.mxu0
        %v7090 = vadd.f32 %v7077, %v7089
        %v7091 = vpop.f32.mrf.mxu0
        %7092 = vdwg.mxu0
        %7093 = vmatpush.bf16.msra.mxu0 %v7000
        %7094 = vmatpush.bf16.msra.mxu0 %v6999
        %7095 = vmatpush.bf16.msra.mxu0 %v6998
        %7096 = vmatpush.bf16.msra.mxu0 %v6997
        %7097 = vmatpush.bf16.msra.mxu0 %v6996
        %7098 = vmatpush.bf16.msra.mxu0 %v6995
        %7099 = vmatpush.bf16.msra.mxu0 %v6994
        %7100 = vmatpush.bf16.msra.mxu0 %v6993
        %7101 = vmatmul.bf16.gmra.mxu0 %v6795
        %v7102 = vpop.f32.mrf.mxu0
        %v7103 = vadd.f32 %v7090, %v7102
        %v7104 = vpop.f32.mrf.mxu0
        %7105 = vdwg.mxu0
        %v7107 = vrot.slane %v7103, 1
        %v7108 = vrot.slane %v7103, 2
        %v7109 = vrot.slane %v7103, 3
        %v7110 = vrot.slane %v7103, 4
        %v7111 = vrot.slane %v7103, 5
        %v7112 = vrot.slane %v7103, 6
        %v7113 = vrot.slane %v7103, 7
        %v7121 = vadd.f32 %v5768, %v7103
        %v7122 = vadd.f32 %v5771, %v7107
        %v7123 = vadd.f32 %v5774, %v7108
        %v7124 = vadd.f32 %v5777, %v7109
        %v7125 = vadd.f32 %v5780, %v7110
        %v7126 = vadd.f32 %v5783, %v7111
        %v7127 = vadd.f32 %v5786, %v7112
        %v7128 = vadd.f32 %v5789, %v7113
        %v7129 = vpack.c.bf16 %v7121, %v7121
        %v7130 = vpack.c.bf16 %v7122, %v7122
        %v7131 = vpack.c.bf16 %v7123, %v7123
        %v7132 = vpack.c.bf16 %v7124, %v7124
        %v7133 = vpack.c.bf16 %v7125, %v7125
        %v7134 = vpack.c.bf16 %v7126, %v7126
        %v7135 = vpack.c.bf16 %v7127, %v7127
        %v7136 = vpack.c.bf16 %v7128, %v7128
        %v7137 = vld [vmem:[#allocation13] sm:$0xff]
        %v7138 = vld [vmem:[#allocation13 + $0x8] sm:$0xff]
        %v7139 = vld [vmem:[#allocation13 + $0x10] sm:$0xff]
        %v7140 = vld [vmem:[#allocation13 + $0x18] sm:$0xff]
        %v7141 = vld [vmem:[#allocation13 + $0x20] sm:$0xff]
        %v7142 = vld [vmem:[#allocation13 + $0x28] sm:$0xff]
        %v7143 = vld [vmem:[#allocation13 + $0x30] sm:$0xff]
        %v7144 = vld [vmem:[#allocation13 + $0x38] sm:$0xff]
        %v7145 = vld [vmem:[#allocation13 + $0x40] sm:$0xff]
        %v7146 = vld [vmem:[#allocation13 + $0x48] sm:$0xff]
        %v7147 = vld [vmem:[#allocation13 + $0x50] sm:$0xff]
        %v7148 = vld [vmem:[#allocation13 + $0x58] sm:$0xff]
        %v7149 = vld [vmem:[#allocation13 + $0x60] sm:$0xff]
        %v7150 = vld [vmem:[#allocation13 + $0x68] sm:$0xff]
        %v7151 = vld [vmem:[#allocation13 + $0x70] sm:$0xff]
        %v7152 = vld [vmem:[#allocation13 + $0x78] sm:$0xff]
        %v7153 = vld [vmem:[#allocation13 + $0x80] sm:$0xff]
        %v7154 = vld [vmem:[#allocation13 + $0x88] sm:$0xff]
        %v7155 = vld [vmem:[#allocation13 + $0x90] sm:$0xff]
        %v7156 = vld [vmem:[#allocation13 + $0x98] sm:$0xff]
        %v7157 = vld [vmem:[#allocation13 + $0xa0] sm:$0xff]
        %v7158 = vld [vmem:[#allocation13 + $0xa8] sm:$0xff]
        %v7159 = vld [vmem:[#allocation13 + $0xb0] sm:$0xff]
        %v7160 = vld [vmem:[#allocation13 + $0xb8] sm:$0xff]
        %v7161 = vld [vmem:[#allocation13 + $0xc0] sm:$0xff]
        %v7162 = vld [vmem:[#allocation13 + $0xc8] sm:$0xff]
        %v7163 = vld [vmem:[#allocation13 + $0xd0] sm:$0xff]
        %v7164 = vld [vmem:[#allocation13 + $0xd8] sm:$0xff]
        %v7165 = vld [vmem:[#allocation13 + $0xe0] sm:$0xff]
        %v7166 = vld [vmem:[#allocation13 + $0xe8] sm:$0xff]
        %v7167 = vld [vmem:[#allocation13 + $0xf0] sm:$0xff]
        %v7168 = vld [vmem:[#allocation13 + $0xf8] sm:$0xff]
        %v7169 = vld [vmem:[#allocation13 + $0x100] sm:$0xff]
        %v7170 = vld [vmem:[#allocation13 + $0x108] sm:$0xff]
        %v7171 = vld [vmem:[#allocation13 + $0x110] sm:$0xff]
        %v7172 = vld [vmem:[#allocation13 + $0x118] sm:$0xff]
        %v7173 = vld [vmem:[#allocation13 + $0x120] sm:$0xff]
        %v7174 = vld [vmem:[#allocation13 + $0x128] sm:$0xff]
        %v7175 = vld [vmem:[#allocation13 + $0x130] sm:$0xff]
        %v7176 = vld [vmem:[#allocation13 + $0x138] sm:$0xff]
        %v7177 = vld [vmem:[#allocation13 + $0x140] sm:$0xff]
        %v7178 = vld [vmem:[#allocation13 + $0x148] sm:$0xff]
        %v7179 = vld [vmem:[#allocation13 + $0x150] sm:$0xff]
        %v7180 = vld [vmem:[#allocation13 + $0x158] sm:$0xff]
        %v7181 = vld [vmem:[#allocation13 + $0x160] sm:$0xff]
        %v7182 = vld [vmem:[#allocation13 + $0x168] sm:$0xff]
        %v7183 = vld [vmem:[#allocation13 + $0x170] sm:$0xff]
        %v7184 = vld [vmem:[#allocation13 + $0x178] sm:$0xff]
        %v7185 = vld [vmem:[#allocation13 + $0x180] sm:$0xff]
        %v7186 = vld [vmem:[#allocation13 + $0x188] sm:$0xff]
        %v7187 = vld [vmem:[#allocation13 + $0x190] sm:$0xff]
        %v7188 = vld [vmem:[#allocation13 + $0x198] sm:$0xff]
        %v7189 = vld [vmem:[#allocation13 + $0x1a0] sm:$0xff]
        %v7190 = vld [vmem:[#allocation13 + $0x1a8] sm:$0xff]
        %v7191 = vld [vmem:[#allocation13 + $0x1b0] sm:$0xff]
        %v7192 = vld [vmem:[#allocation13 + $0x1b8] sm:$0xff]
        %v7193 = vld [vmem:[#allocation13 + $0x1c0] sm:$0xff]
        %v7194 = vld [vmem:[#allocation13 + $0x1c8] sm:$0xff]
        %v7195 = vld [vmem:[#allocation13 + $0x1d0] sm:$0xff]
        %v7196 = vld [vmem:[#allocation13 + $0x1d8] sm:$0xff]
        %v7197 = vld [vmem:[#allocation13 + $0x1e0] sm:$0xff]
        %v7198 = vld [vmem:[#allocation13 + $0x1e8] sm:$0xff]
        %v7199 = vld [vmem:[#allocation13 + $0x1f0] sm:$0xff]
        %v7200 = vld [vmem:[#allocation13 + $0x1f8] sm:$0xff]
        %v7201 = vld [vmem:[#allocation14] sm:$0xff]
        %v7203 = vperm.slane %v7201, 0
        %v7204 = vperm.slane %v7201, 1
        %v7205 = vperm.slane %v7201, 2
        %v7206 = vperm.slane %v7201, 3
        %v7207 = vperm.slane %v7201, 4
        %v7208 = vperm.slane %v7201, 5
        %v7209 = vperm.slane %v7201, 6
        %v7210 = vperm.slane %v7201, 7
        %v7227 = vunpack.c.l.b16 %v7129
        %v7228 = vunpack.c.l.b16 %v7130
        %v7229 = vunpack.c.l.b16 %v7131
        %v7230 = vunpack.c.l.b16 %v7132
        %v7231 = vunpack.c.l.b16 %v7133
        %v7232 = vunpack.c.l.b16 %v7134
        %v7233 = vunpack.c.l.b16 %v7135
        %v7234 = vunpack.c.l.b16 %v7136
        %v7235 = vrot.slane %v7228, 7
        %v7236 = vsel %vm6056, %v7235, %v7227
        %v7237 = vrot.slane %v7229, 6
        %v7238 = vsel %vm6059, %v7237, %v7236
        %v7239 = vrot.slane %v7230, 5
        %v7240 = vsel %vm2731, %v7239, %v7238
        %v7241 = vrot.slane %v7231, 4
        %v7242 = vsel %vm2733, %v7241, %v7240
        %v7243 = vrot.slane %v7232, 3
        %v7244 = vsel %vm2735, %v7243, %v7242
        %v7245 = vrot.slane %v7233, 2
        %v7246 = vsel %vm6068, %v7245, %v7244
        %v7247 = vrot.slane %v7234, 1
        %v7248 = vsel %vm6071, %v7247, %v7246
        %v7249 = vpack.c.b16 %v7248, %v7248
        %v7315 = vunpack.c.l.b16 %v7137
        %v7316 = vunpack.c.h.b16 %v7137
        %v7317 = vunpack.c.l.b16 %v7138
        %v7318 = vunpack.c.h.b16 %v7138
        %v7319 = vunpack.c.l.b16 %v7139
        %v7320 = vunpack.c.h.b16 %v7139
        %v7321 = vunpack.c.l.b16 %v7140
        %v7322 = vunpack.c.h.b16 %v7140
        %v7323 = vunpack.c.l.b16 %v7141
        %v7324 = vunpack.c.h.b16 %v7141
        %v7325 = vunpack.c.l.b16 %v7142
        %v7326 = vunpack.c.h.b16 %v7142
        %v7327 = vunpack.c.l.b16 %v7143
        %v7328 = vunpack.c.h.b16 %v7143
        %v7329 = vunpack.c.l.b16 %v7144
        %v7330 = vunpack.c.h.b16 %v7144
        %v7331 = vunpack.c.l.b16 %v7145
        %v7332 = vunpack.c.h.b16 %v7145
        %v7333 = vunpack.c.l.b16 %v7146
        %v7334 = vunpack.c.h.b16 %v7146
        %v7335 = vunpack.c.l.b16 %v7147
        %v7336 = vunpack.c.h.b16 %v7147
        %v7337 = vunpack.c.l.b16 %v7148
        %v7338 = vunpack.c.h.b16 %v7148
        %v7339 = vunpack.c.l.b16 %v7149
        %v7340 = vunpack.c.h.b16 %v7149
        %v7341 = vunpack.c.l.b16 %v7150
        %v7342 = vunpack.c.h.b16 %v7150
        %v7343 = vunpack.c.l.b16 %v7151
        %v7344 = vunpack.c.h.b16 %v7151
        %v7345 = vunpack.c.l.b16 %v7152
        %v7346 = vunpack.c.h.b16 %v7152
        %v7347 = vunpack.c.l.b16 %v7153
        %v7348 = vunpack.c.h.b16 %v7153
        %v7349 = vunpack.c.l.b16 %v7154
        %v7350 = vunpack.c.h.b16 %v7154
        %v7351 = vunpack.c.l.b16 %v7155
        %v7352 = vunpack.c.h.b16 %v7155
        %v7353 = vunpack.c.l.b16 %v7156
        %v7354 = vunpack.c.h.b16 %v7156
        %v7355 = vunpack.c.l.b16 %v7157
        %v7356 = vunpack.c.h.b16 %v7157
        %v7357 = vunpack.c.l.b16 %v7158
        %v7358 = vunpack.c.h.b16 %v7158
        %v7359 = vunpack.c.l.b16 %v7159
        %v7360 = vunpack.c.h.b16 %v7159
        %v7361 = vunpack.c.l.b16 %v7160
        %v7362 = vunpack.c.h.b16 %v7160
        %v7363 = vunpack.c.l.b16 %v7161
        %v7364 = vunpack.c.h.b16 %v7161
        %v7365 = vunpack.c.l.b16 %v7162
        %v7366 = vunpack.c.h.b16 %v7162
        %v7367 = vunpack.c.l.b16 %v7163
        %v7368 = vunpack.c.h.b16 %v7163
        %v7369 = vunpack.c.l.b16 %v7164
        %v7370 = vunpack.c.h.b16 %v7164
        %v7371 = vunpack.c.l.b16 %v7165
        %v7372 = vunpack.c.h.b16 %v7165
        %v7373 = vunpack.c.l.b16 %v7166
        %v7374 = vunpack.c.h.b16 %v7166
        %v7375 = vunpack.c.l.b16 %v7167
        %v7376 = vunpack.c.h.b16 %v7167
        %v7377 = vunpack.c.l.b16 %v7168
        %v7378 = vunpack.c.h.b16 %v7168
        %v7379 = vunpack.c.l.b16 %v7169
        %v7380 = vunpack.c.h.b16 %v7169
        %v7381 = vunpack.c.l.b16 %v7170
        %v7382 = vunpack.c.h.b16 %v7170
        %v7383 = vunpack.c.l.b16 %v7171
        %v7384 = vunpack.c.h.b16 %v7171
        %v7385 = vunpack.c.l.b16 %v7172
        %v7386 = vunpack.c.h.b16 %v7172
        %v7387 = vunpack.c.l.b16 %v7173
        %v7388 = vunpack.c.h.b16 %v7173
        %v7389 = vunpack.c.l.b16 %v7174
        %v7390 = vunpack.c.h.b16 %v7174
        %v7391 = vunpack.c.l.b16 %v7175
        %v7392 = vunpack.c.h.b16 %v7175
        %v7393 = vunpack.c.l.b16 %v7176
        %v7394 = vunpack.c.h.b16 %v7176
        %v7395 = vunpack.c.l.b16 %v7177
        %v7396 = vunpack.c.h.b16 %v7177
        %v7397 = vunpack.c.l.b16 %v7178
        %v7398 = vunpack.c.h.b16 %v7178
        %v7399 = vunpack.c.l.b16 %v7179
        %v7400 = vunpack.c.h.b16 %v7179
        %v7401 = vunpack.c.l.b16 %v7180
        %v7402 = vunpack.c.h.b16 %v7180
        %v7403 = vunpack.c.l.b16 %v7181
        %v7404 = vunpack.c.h.b16 %v7181
        %v7405 = vunpack.c.l.b16 %v7182
        %v7406 = vunpack.c.h.b16 %v7182
        %v7407 = vunpack.c.l.b16 %v7183
        %v7408 = vunpack.c.h.b16 %v7183
        %v7409 = vunpack.c.l.b16 %v7184
        %v7410 = vunpack.c.h.b16 %v7184
        %v7411 = vunpack.c.l.b16 %v7185
        %v7412 = vunpack.c.h.b16 %v7185
        %v7413 = vunpack.c.l.b16 %v7186
        %v7414 = vunpack.c.h.b16 %v7186
        %v7415 = vunpack.c.l.b16 %v7187
        %v7416 = vunpack.c.h.b16 %v7187
        %v7417 = vunpack.c.l.b16 %v7188
        %v7418 = vunpack.c.h.b16 %v7188
        %v7419 = vunpack.c.l.b16 %v7189
        %v7420 = vunpack.c.h.b16 %v7189
        %v7421 = vunpack.c.l.b16 %v7190
        %v7422 = vunpack.c.h.b16 %v7190
        %v7423 = vunpack.c.l.b16 %v7191
        %v7424 = vunpack.c.h.b16 %v7191
        %v7425 = vunpack.c.l.b16 %v7192
        %v7426 = vunpack.c.h.b16 %v7192
        %v7427 = vunpack.c.l.b16 %v7193
        %v7428 = vunpack.c.h.b16 %v7193
        %v7429 = vunpack.c.l.b16 %v7194
        %v7430 = vunpack.c.h.b16 %v7194
        %v7431 = vunpack.c.l.b16 %v7195
        %v7432 = vunpack.c.h.b16 %v7195
        %v7433 = vunpack.c.l.b16 %v7196
        %v7434 = vunpack.c.h.b16 %v7196
        %v7435 = vunpack.c.l.b16 %v7197
        %v7436 = vunpack.c.h.b16 %v7197
        %v7437 = vunpack.c.l.b16 %v7198
        %v7438 = vunpack.c.h.b16 %v7198
        %v7439 = vunpack.c.l.b16 %v7199
        %v7440 = vunpack.c.h.b16 %v7199
        %v7441 = vunpack.c.l.b16 %v7200
        %v7442 = vunpack.c.h.b16 %v7200
        %v7443 = vpack.c.b16 %v7323, %v7315
        %v7444 = vpack.c.b16 %v7324, %v7316
        %v7445 = vpack.c.b16 %v7325, %v7317
        %v7446 = vpack.c.b16 %v7326, %v7318
        %v7447 = vpack.c.b16 %v7327, %v7319
        %v7448 = vpack.c.b16 %v7328, %v7320
        %v7449 = vpack.c.b16 %v7329, %v7321
        %v7450 = vpack.c.b16 %v7330, %v7322
        %v7451 = vpack.c.b16 %v7339, %v7331
        %v7452 = vpack.c.b16 %v7340, %v7332
        %v7453 = vpack.c.b16 %v7341, %v7333
        %v7454 = vpack.c.b16 %v7342, %v7334
        %v7455 = vpack.c.b16 %v7343, %v7335
        %v7456 = vpack.c.b16 %v7344, %v7336
        %v7457 = vpack.c.b16 %v7345, %v7337
        %v7458 = vpack.c.b16 %v7346, %v7338
        %v7459 = vpack.c.b16 %v7355, %v7347
        %v7460 = vpack.c.b16 %v7356, %v7348
        %v7461 = vpack.c.b16 %v7357, %v7349
        %v7462 = vpack.c.b16 %v7358, %v7350
        %v7463 = vpack.c.b16 %v7359, %v7351
        %v7464 = vpack.c.b16 %v7360, %v7352
        %v7465 = vpack.c.b16 %v7361, %v7353
        %v7466 = vpack.c.b16 %v7362, %v7354
        %v7467 = vpack.c.b16 %v7371, %v7363
        %v7468 = vpack.c.b16 %v7372, %v7364
        %v7469 = vpack.c.b16 %v7373, %v7365
        %v7470 = vpack.c.b16 %v7374, %v7366
        %v7471 = vpack.c.b16 %v7375, %v7367
        %v7472 = vpack.c.b16 %v7376, %v7368
        %v7473 = vpack.c.b16 %v7377, %v7369
        %v7474 = vpack.c.b16 %v7378, %v7370
        %v7475 = vpack.c.b16 %v7387, %v7379
        %v7476 = vpack.c.b16 %v7388, %v7380
        %v7477 = vpack.c.b16 %v7389, %v7381
        %v7478 = vpack.c.b16 %v7390, %v7382
        %v7479 = vpack.c.b16 %v7391, %v7383
        %v7480 = vpack.c.b16 %v7392, %v7384
        %v7481 = vpack.c.b16 %v7393, %v7385
        %v7482 = vpack.c.b16 %v7394, %v7386
        %v7483 = vpack.c.b16 %v7403, %v7395
        %v7484 = vpack.c.b16 %v7404, %v7396
        %v7485 = vpack.c.b16 %v7405, %v7397
        %v7486 = vpack.c.b16 %v7406, %v7398
        %v7487 = vpack.c.b16 %v7407, %v7399
        %v7488 = vpack.c.b16 %v7408, %v7400
        %v7489 = vpack.c.b16 %v7409, %v7401
        %v7490 = vpack.c.b16 %v7410, %v7402
        %v7491 = vpack.c.b16 %v7419, %v7411
        %v7492 = vpack.c.b16 %v7420, %v7412
        %v7493 = vpack.c.b16 %v7421, %v7413
        %v7494 = vpack.c.b16 %v7422, %v7414
        %v7495 = vpack.c.b16 %v7423, %v7415
        %v7496 = vpack.c.b16 %v7424, %v7416
        %v7497 = vpack.c.b16 %v7425, %v7417
        %v7498 = vpack.c.b16 %v7426, %v7418
        %v7499 = vpack.c.b16 %v7435, %v7427
        %v7500 = vpack.c.b16 %v7436, %v7428
        %v7501 = vpack.c.b16 %v7437, %v7429
        %v7502 = vpack.c.b16 %v7438, %v7430
        %v7503 = vpack.c.b16 %v7439, %v7431
        %v7504 = vpack.c.b16 %v7440, %v7432
        %v7505 = vpack.c.b16 %v7441, %v7433
        %v7506 = vpack.c.b16 %v7442, %v7434
        %7571 = vmatpush.bf16.msra.mxu0 %v7499
        %7572 = vmatpush.bf16.msra.mxu0 %v7491
        %7573 = vmatpush.bf16.msra.mxu0 %v7483
        %7574 = vmatpush.bf16.msra.mxu0 %v7475
        %7575 = vmatpush.bf16.msra.mxu0 %v7467
        %7576 = vmatpush.bf16.msra.mxu0 %v7459
        %7577 = vmatpush.bf16.msra.mxu0 %v7451
        %7578 = vmatpush.bf16.msra.mxu0 %v7443
        %7579 = vmatmul.bf16.gmra.mxu0 %v7249
        %v7580 = vpop.f32.mrf.mxu0
        %v7581 = vadd.f32 %v7203, %v7580
        %v7582 = vpop.f32.mrf.mxu0
        %7583 = vdwg.mxu0
        %7584 = vmatpush.bf16.msra.mxu0 %v7500
        %7585 = vmatpush.bf16.msra.mxu0 %v7492
        %7586 = vmatpush.bf16.msra.mxu0 %v7484
        %7587 = vmatpush.bf16.msra.mxu0 %v7476
        %7588 = vmatpush.bf16.msra.mxu0 %v7468
        %7589 = vmatpush.bf16.msra.mxu0 %v7460
        %7590 = vmatpush.bf16.msra.mxu0 %v7452
        %7591 = vmatpush.bf16.msra.mxu0 %v7444
        %7592 = vmatmul.bf16.gmra.mxu0 %v7249
        %v7593 = vpop.f32.mrf.mxu0
        %v7594 = vadd.f32 %v7204, %v7593
        %v7595 = vpop.f32.mrf.mxu0
        %7596 = vdwg.mxu0
        %7597 = vmatpush.bf16.msra.mxu0 %v7501
        %7598 = vmatpush.bf16.msra.mxu0 %v7493
        %7599 = vmatpush.bf16.msra.mxu0 %v7485
        %7600 = vmatpush.bf16.msra.mxu0 %v7477
        %7601 = vmatpush.bf16.msra.mxu0 %v7469
        %7602 = vmatpush.bf16.msra.mxu0 %v7461
        %7603 = vmatpush.bf16.msra.mxu0 %v7453
        %7604 = vmatpush.bf16.msra.mxu0 %v7445
        %7605 = vmatmul.bf16.gmra.mxu0 %v7249
        %v7606 = vpop.f32.mrf.mxu0
        %v7607 = vadd.f32 %v7205, %v7606
        %v7608 = vpop.f32.mrf.mxu0
        %7609 = vdwg.mxu0
        %7610 = vmatpush.bf16.msra.mxu0 %v7502
        %7611 = vmatpush.bf16.msra.mxu0 %v7494
        %7612 = vmatpush.bf16.msra.mxu0 %v7486
        %7613 = vmatpush.bf16.msra.mxu0 %v7478
        %7614 = vmatpush.bf16.msra.mxu0 %v7470
        %7615 = vmatpush.bf16.msra.mxu0 %v7462
        %7616 = vmatpush.bf16.msra.mxu0 %v7454
        %7617 = vmatpush.bf16.msra.mxu0 %v7446
        %7618 = vmatmul.bf16.gmra.mxu0 %v7249
        %v7619 = vpop.f32.mrf.mxu0
        %v7620 = vadd.f32 %v7206, %v7619
        %v7621 = vpop.f32.mrf.mxu0
        %7622 = vdwg.mxu0
        %7623 = vmatpush.bf16.msra.mxu0 %v7503
        %7624 = vmatpush.bf16.msra.mxu0 %v7495
        %7625 = vmatpush.bf16.msra.mxu0 %v7487
        %7626 = vmatpush.bf16.msra.mxu0 %v7479
        %7627 = vmatpush.bf16.msra.mxu0 %v7471
        %7628 = vmatpush.bf16.msra.mxu0 %v7463
        %7629 = vmatpush.bf16.msra.mxu0 %v7455
        %7630 = vmatpush.bf16.msra.mxu0 %v7447
        %7631 = vmatmul.bf16.gmra.mxu0 %v7249
        %v7632 = vpop.f32.mrf.mxu0
        %v7633 = vadd.f32 %v7207, %v7632
        %v7634 = vpop.f32.mrf.mxu0
        %7635 = vdwg.mxu0
        %7636 = vmatpush.bf16.msra.mxu0 %v7504
        %7637 = vmatpush.bf16.msra.mxu0 %v7496
        %7638 = vmatpush.bf16.msra.mxu0 %v7488
        %7639 = vmatpush.bf16.msra.mxu0 %v7480
        %7640 = vmatpush.bf16.msra.mxu0 %v7472
        %7641 = vmatpush.bf16.msra.mxu0 %v7464
        %7642 = vmatpush.bf16.msra.mxu0 %v7456
        %7643 = vmatpush.bf16.msra.mxu0 %v7448
        %7644 = vmatmul.bf16.gmra.mxu0 %v7249
        %v7645 = vpop.f32.mrf.mxu0
        %v7646 = vadd.f32 %v7208, %v7645
        %v7647 = vpop.f32.mrf.mxu0
        %7648 = vdwg.mxu0
        %7649 = vmatpush.bf16.msra.mxu0 %v7505
        %7650 = vmatpush.bf16.msra.mxu0 %v7497
        %7651 = vmatpush.bf16.msra.mxu0 %v7489
        %7652 = vmatpush.bf16.msra.mxu0 %v7481
        %7653 = vmatpush.bf16.msra.mxu0 %v7473
        %7654 = vmatpush.bf16.msra.mxu0 %v7465
        %7655 = vmatpush.bf16.msra.mxu0 %v7457
        %7656 = vmatpush.bf16.msra.mxu0 %v7449
        %7657 = vmatmul.bf16.gmra.mxu0 %v7249
        %v7658 = vpop.f32.mrf.mxu0
        %v7659 = vadd.f32 %v7209, %v7658
        %v7660 = vpop.f32.mrf.mxu0
        %7661 = vdwg.mxu0
        %7662 = vmatpush.bf16.msra.mxu0 %v7506
        %7663 = vmatpush.bf16.msra.mxu0 %v7498
        %7664 = vmatpush.bf16.msra.mxu0 %v7490
        %7665 = vmatpush.bf16.msra.mxu0 %v7482
        %7666 = vmatpush.bf16.msra.mxu0 %v7474
        %7667 = vmatpush.bf16.msra.mxu0 %v7466
        %7668 = vmatpush.bf16.msra.mxu0 %v7458
        %7669 = vmatpush.bf16.msra.mxu0 %v7450
        %7670 = vmatmul.bf16.gmra.mxu0 %v7249
        %v7671 = vpop.f32.mrf.mxu0
        %v7672 = vadd.f32 %v7210, %v7671
        %v7673 = vpop.f32.mrf.mxu0
        %7674 = vdwg.mxu0
        %v7675 = vmax.f32 %v7581, 0.0
        %v7676 = vmax.f32 %v7594, 0.0
        %v7677 = vmax.f32 %v7607, 0.0
        %v7678 = vmax.f32 %v7620, 0.0
        %v7679 = vmax.f32 %v7633, 0.0
        %v7680 = vmax.f32 %v7646, 0.0
        %v7681 = vmax.f32 %v7659, 0.0
        %v7682 = vmax.f32 %v7672, 0.0
        %v7683 = vpack.c.bf16 %v7675, %v7675
        %v7684 = vpack.c.bf16 %v7676, %v7676
        %v7685 = vpack.c.bf16 %v7677, %v7677
        %v7686 = vpack.c.bf16 %v7678, %v7678
        %v7687 = vpack.c.bf16 %v7679, %v7679
        %v7688 = vpack.c.bf16 %v7680, %v7680
        %v7689 = vpack.c.bf16 %v7681, %v7681
        %v7690 = vpack.c.bf16 %v7682, %v7682
        %v7691 = vld [vmem:[#allocation16] sm:$0xff]
        %v7692 = vld [vmem:[#allocation16 + $0x8] sm:$0xff]
        %v7693 = vld [vmem:[#allocation16 + $0x10] sm:$0xff]
        %v7694 = vld [vmem:[#allocation16 + $0x18] sm:$0xff]
        %v7695 = vld [vmem:[#allocation16 + $0x20] sm:$0xff]
        %v7696 = vld [vmem:[#allocation16 + $0x28] sm:$0xff]
        %v7697 = vld [vmem:[#allocation16 + $0x30] sm:$0xff]
        %v7698 = vld [vmem:[#allocation16 + $0x38] sm:$0xff]
        %v7699 = vld [vmem:[#allocation16 + $0x40] sm:$0xff]
        %v7700 = vld [vmem:[#allocation16 + $0x48] sm:$0xff]
        %v7701 = vld [vmem:[#allocation16 + $0x50] sm:$0xff]
        %v7702 = vld [vmem:[#allocation16 + $0x58] sm:$0xff]
        %v7703 = vld [vmem:[#allocation16 + $0x60] sm:$0xff]
        %v7704 = vld [vmem:[#allocation16 + $0x68] sm:$0xff]
        %v7705 = vld [vmem:[#allocation16 + $0x70] sm:$0xff]
        %v7706 = vld [vmem:[#allocation16 + $0x78] sm:$0xff]
        %v7707 = vld [vmem:[#allocation16 + $0x80] sm:$0xff]
        %v7708 = vld [vmem:[#allocation16 + $0x88] sm:$0xff]
        %v7709 = vld [vmem:[#allocation16 + $0x90] sm:$0xff]
        %v7710 = vld [vmem:[#allocation16 + $0x98] sm:$0xff]
        %v7711 = vld [vmem:[#allocation16 + $0xa0] sm:$0xff]
        %v7712 = vld [vmem:[#allocation16 + $0xa8] sm:$0xff]
        %v7713 = vld [vmem:[#allocation16 + $0xb0] sm:$0xff]
        %v7714 = vld [vmem:[#allocation16 + $0xb8] sm:$0xff]
        %v7715 = vld [vmem:[#allocation16 + $0xc0] sm:$0xff]
        %v7716 = vld [vmem:[#allocation16 + $0xc8] sm:$0xff]
        %v7717 = vld [vmem:[#allocation16 + $0xd0] sm:$0xff]
        %v7718 = vld [vmem:[#allocation16 + $0xd8] sm:$0xff]
        %v7719 = vld [vmem:[#allocation16 + $0xe0] sm:$0xff]
        %v7720 = vld [vmem:[#allocation16 + $0xe8] sm:$0xff]
        %v7721 = vld [vmem:[#allocation16 + $0xf0] sm:$0xff]
        %v7722 = vld [vmem:[#allocation16 + $0xf8] sm:$0xff]
        %v7723 = vld [vmem:[#allocation16 + $0x100] sm:$0xff]
        %v7724 = vld [vmem:[#allocation16 + $0x108] sm:$0xff]
        %v7725 = vld [vmem:[#allocation16 + $0x110] sm:$0xff]
        %v7726 = vld [vmem:[#allocation16 + $0x118] sm:$0xff]
        %v7727 = vld [vmem:[#allocation16 + $0x120] sm:$0xff]
        %v7728 = vld [vmem:[#allocation16 + $0x128] sm:$0xff]
        %v7729 = vld [vmem:[#allocation16 + $0x130] sm:$0xff]
        %v7730 = vld [vmem:[#allocation16 + $0x138] sm:$0xff]
        %v7731 = vld [vmem:[#allocation16 + $0x140] sm:$0xff]
        %v7732 = vld [vmem:[#allocation16 + $0x148] sm:$0xff]
        %v7733 = vld [vmem:[#allocation16 + $0x150] sm:$0xff]
        %v7734 = vld [vmem:[#allocation16 + $0x158] sm:$0xff]
        %v7735 = vld [vmem:[#allocation16 + $0x160] sm:$0xff]
        %v7736 = vld [vmem:[#allocation16 + $0x168] sm:$0xff]
        %v7737 = vld [vmem:[#allocation16 + $0x170] sm:$0xff]
        %v7738 = vld [vmem:[#allocation16 + $0x178] sm:$0xff]
        %v7739 = vld [vmem:[#allocation16 + $0x180] sm:$0xff]
        %v7740 = vld [vmem:[#allocation16 + $0x188] sm:$0xff]
        %v7741 = vld [vmem:[#allocation16 + $0x190] sm:$0xff]
        %v7742 = vld [vmem:[#allocation16 + $0x198] sm:$0xff]
        %v7743 = vld [vmem:[#allocation16 + $0x1a0] sm:$0xff]
        %v7744 = vld [vmem:[#allocation16 + $0x1a8] sm:$0xff]
        %v7745 = vld [vmem:[#allocation16 + $0x1b0] sm:$0xff]
        %v7746 = vld [vmem:[#allocation16 + $0x1b8] sm:$0xff]
        %v7747 = vld [vmem:[#allocation16 + $0x1c0] sm:$0xff]
        %v7748 = vld [vmem:[#allocation16 + $0x1c8] sm:$0xff]
        %v7749 = vld [vmem:[#allocation16 + $0x1d0] sm:$0xff]
        %v7750 = vld [vmem:[#allocation16 + $0x1d8] sm:$0xff]
        %v7751 = vld [vmem:[#allocation16 + $0x1e0] sm:$0xff]
        %v7752 = vld [vmem:[#allocation16 + $0x1e8] sm:$0xff]
        %v7753 = vld [vmem:[#allocation16 + $0x1f0] sm:$0xff]
        %v7754 = vld [vmem:[#allocation16 + $0x1f8] sm:$0xff]
        %v7755 = vld [vmem:[#allocation16 + $0x200] sm:$0xff]
        %v7756 = vld [vmem:[#allocation16 + $0x208] sm:$0xff]
        %v7757 = vld [vmem:[#allocation16 + $0x210] sm:$0xff]
        %v7758 = vld [vmem:[#allocation16 + $0x218] sm:$0xff]
        %v7759 = vld [vmem:[#allocation16 + $0x220] sm:$0xff]
        %v7760 = vld [vmem:[#allocation16 + $0x228] sm:$0xff]
        %v7761 = vld [vmem:[#allocation16 + $0x230] sm:$0xff]
        %v7762 = vld [vmem:[#allocation16 + $0x238] sm:$0xff]
        %v7763 = vld [vmem:[#allocation16 + $0x240] sm:$0xff]
        %v7764 = vld [vmem:[#allocation16 + $0x248] sm:$0xff]
        %v7765 = vld [vmem:[#allocation16 + $0x250] sm:$0xff]
        %v7766 = vld [vmem:[#allocation16 + $0x258] sm:$0xff]
        %v7767 = vld [vmem:[#allocation16 + $0x260] sm:$0xff]
        %v7768 = vld [vmem:[#allocation16 + $0x268] sm:$0xff]
        %v7769 = vld [vmem:[#allocation16 + $0x270] sm:$0xff]
        %v7770 = vld [vmem:[#allocation16 + $0x278] sm:$0xff]
        %v7771 = vld [vmem:[#allocation16 + $0x280] sm:$0xff]
        %v7772 = vld [vmem:[#allocation16 + $0x288] sm:$0xff]
        %v7773 = vld [vmem:[#allocation16 + $0x290] sm:$0xff]
        %v7774 = vld [vmem:[#allocation16 + $0x298] sm:$0xff]
        %v7775 = vld [vmem:[#allocation16 + $0x2a0] sm:$0xff]
        %v7776 = vld [vmem:[#allocation16 + $0x2a8] sm:$0xff]
        %v7777 = vld [vmem:[#allocation16 + $0x2b0] sm:$0xff]
        %v7778 = vld [vmem:[#allocation16 + $0x2b8] sm:$0xff]
        %v7779 = vld [vmem:[#allocation16 + $0x2c0] sm:$0xff]
        %v7780 = vld [vmem:[#allocation16 + $0x2c8] sm:$0xff]
        %v7781 = vld [vmem:[#allocation16 + $0x2d0] sm:$0xff]
        %v7782 = vld [vmem:[#allocation16 + $0x2d8] sm:$0xff]
        %v7783 = vld [vmem:[#allocation16 + $0x2e0] sm:$0xff]
        %v7784 = vld [vmem:[#allocation16 + $0x2e8] sm:$0xff]
        %v7785 = vld [vmem:[#allocation16 + $0x2f0] sm:$0xff]
        %v7786 = vld [vmem:[#allocation16 + $0x2f8] sm:$0xff]
        %v7787 = vld [vmem:[#allocation16 + $0x300] sm:$0xff]
        %v7788 = vld [vmem:[#allocation16 + $0x308] sm:$0xff]
        %v7789 = vld [vmem:[#allocation16 + $0x310] sm:$0xff]
        %v7790 = vld [vmem:[#allocation16 + $0x318] sm:$0xff]
        %v7791 = vld [vmem:[#allocation16 + $0x320] sm:$0xff]
        %v7792 = vld [vmem:[#allocation16 + $0x328] sm:$0xff]
        %v7793 = vld [vmem:[#allocation16 + $0x330] sm:$0xff]
        %v7794 = vld [vmem:[#allocation16 + $0x338] sm:$0xff]
        %v7795 = vld [vmem:[#allocation16 + $0x340] sm:$0xff]
        %v7796 = vld [vmem:[#allocation16 + $0x348] sm:$0xff]
        %v7797 = vld [vmem:[#allocation16 + $0x350] sm:$0xff]
        %v7798 = vld [vmem:[#allocation16 + $0x358] sm:$0xff]
        %v7799 = vld [vmem:[#allocation16 + $0x360] sm:$0xff]
        %v7800 = vld [vmem:[#allocation16 + $0x368] sm:$0xff]
        %v7801 = vld [vmem:[#allocation16 + $0x370] sm:$0xff]
        %v7802 = vld [vmem:[#allocation16 + $0x378] sm:$0xff]
        %v7803 = vld [vmem:[#allocation16 + $0x380] sm:$0xff]
        %v7804 = vld [vmem:[#allocation16 + $0x388] sm:$0xff]
        %v7805 = vld [vmem:[#allocation16 + $0x390] sm:$0xff]
        %v7806 = vld [vmem:[#allocation16 + $0x398] sm:$0xff]
        %v7807 = vld [vmem:[#allocation16 + $0x3a0] sm:$0xff]
        %v7808 = vld [vmem:[#allocation16 + $0x3a8] sm:$0xff]
        %v7809 = vld [vmem:[#allocation16 + $0x3b0] sm:$0xff]
        %v7810 = vld [vmem:[#allocation16 + $0x3b8] sm:$0xff]
        %v7811 = vld [vmem:[#allocation16 + $0x3c0] sm:$0xff]
        %v7812 = vld [vmem:[#allocation16 + $0x3c8] sm:$0xff]
        %v7813 = vld [vmem:[#allocation16 + $0x3d0] sm:$0xff]
        %v7814 = vld [vmem:[#allocation16 + $0x3d8] sm:$0xff]
        %v7815 = vld [vmem:[#allocation16 + $0x3e0] sm:$0xff]
        %v7816 = vld [vmem:[#allocation16 + $0x3e8] sm:$0xff]
        %v7817 = vld [vmem:[#allocation16 + $0x3f0] sm:$0xff]
        %v7818 = vld [vmem:[#allocation16 + $0x3f8] sm:$0xff]
        %v7819 = vld [vmem:[#allocation16 + $0x400] sm:$0xff]
        %v7820 = vld [vmem:[#allocation16 + $0x408] sm:$0xff]
        %v7821 = vld [vmem:[#allocation16 + $0x410] sm:$0xff]
        %v7822 = vld [vmem:[#allocation16 + $0x418] sm:$0xff]
        %v7823 = vld [vmem:[#allocation16 + $0x420] sm:$0xff]
        %v7824 = vld [vmem:[#allocation16 + $0x428] sm:$0xff]
        %v7825 = vld [vmem:[#allocation16 + $0x430] sm:$0xff]
        %v7826 = vld [vmem:[#allocation16 + $0x438] sm:$0xff]
        %v7827 = vld [vmem:[#allocation16 + $0x440] sm:$0xff]
        %v7828 = vld [vmem:[#allocation16 + $0x448] sm:$0xff]
        %v7829 = vld [vmem:[#allocation16 + $0x450] sm:$0xff]
        %v7830 = vld [vmem:[#allocation16 + $0x458] sm:$0xff]
        %v7831 = vld [vmem:[#allocation16 + $0x460] sm:$0xff]
        %v7832 = vld [vmem:[#allocation16 + $0x468] sm:$0xff]
        %v7833 = vld [vmem:[#allocation16 + $0x470] sm:$0xff]
        %v7834 = vld [vmem:[#allocation16 + $0x478] sm:$0xff]
        %v7835 = vld [vmem:[#allocation16 + $0x480] sm:$0xff]
        %v7836 = vld [vmem:[#allocation16 + $0x488] sm:$0xff]
        %v7837 = vld [vmem:[#allocation16 + $0x490] sm:$0xff]
        %v7838 = vld [vmem:[#allocation16 + $0x498] sm:$0xff]
        %v7839 = vld [vmem:[#allocation16 + $0x4a0] sm:$0xff]
        %v7840 = vld [vmem:[#allocation16 + $0x4a8] sm:$0xff]
        %v7841 = vld [vmem:[#allocation16 + $0x4b0] sm:$0xff]
        %v7842 = vld [vmem:[#allocation16 + $0x4b8] sm:$0xff]
        %v7843 = vld [vmem:[#allocation16 + $0x4c0] sm:$0xff]
        %v7844 = vld [vmem:[#allocation16 + $0x4c8] sm:$0xff]
        %v7845 = vld [vmem:[#allocation16 + $0x4d0] sm:$0xff]
        %v7846 = vld [vmem:[#allocation16 + $0x4d8] sm:$0xff]
        %v7847 = vld [vmem:[#allocation16 + $0x4e0] sm:$0xff]
        %v7848 = vld [vmem:[#allocation16 + $0x4e8] sm:$0xff]
        %v7849 = vld [vmem:[#allocation16 + $0x4f0] sm:$0xff]
        %v7850 = vld [vmem:[#allocation16 + $0x4f8] sm:$0xff]
        %v7851 = vld [vmem:[#allocation16 + $0x500] sm:$0xff]
        %v7852 = vld [vmem:[#allocation16 + $0x508] sm:$0xff]
        %v7853 = vld [vmem:[#allocation16 + $0x510] sm:$0xff]
        %v7854 = vld [vmem:[#allocation16 + $0x518] sm:$0xff]
        %v7855 = vld [vmem:[#allocation16 + $0x520] sm:$0xff]
        %v7856 = vld [vmem:[#allocation16 + $0x528] sm:$0xff]
        %v7857 = vld [vmem:[#allocation16 + $0x530] sm:$0xff]
        %v7858 = vld [vmem:[#allocation16 + $0x538] sm:$0xff]
        %v7859 = vld [vmem:[#allocation16 + $0x540] sm:$0xff]
        %v7860 = vld [vmem:[#allocation16 + $0x548] sm:$0xff]
        %v7861 = vld [vmem:[#allocation16 + $0x550] sm:$0xff]
        %v7862 = vld [vmem:[#allocation16 + $0x558] sm:$0xff]
        %v7863 = vld [vmem:[#allocation16 + $0x560] sm:$0xff]
        %v7864 = vld [vmem:[#allocation16 + $0x568] sm:$0xff]
        %v7865 = vld [vmem:[#allocation16 + $0x570] sm:$0xff]
        %v7866 = vld [vmem:[#allocation16 + $0x578] sm:$0xff]
        %v7867 = vld [vmem:[#allocation16 + $0x580] sm:$0xff]
        %v7868 = vld [vmem:[#allocation16 + $0x588] sm:$0xff]
        %v7869 = vld [vmem:[#allocation16 + $0x590] sm:$0xff]
        %v7870 = vld [vmem:[#allocation16 + $0x598] sm:$0xff]
        %v7871 = vld [vmem:[#allocation16 + $0x5a0] sm:$0xff]
        %v7872 = vld [vmem:[#allocation16 + $0x5a8] sm:$0xff]
        %v7873 = vld [vmem:[#allocation16 + $0x5b0] sm:$0xff]
        %v7874 = vld [vmem:[#allocation16 + $0x5b8] sm:$0xff]
        %v7875 = vld [vmem:[#allocation16 + $0x5c0] sm:$0xff]
        %v7876 = vld [vmem:[#allocation16 + $0x5c8] sm:$0xff]
        %v7877 = vld [vmem:[#allocation16 + $0x5d0] sm:$0xff]
        %v7878 = vld [vmem:[#allocation16 + $0x5d8] sm:$0xff]
        %v7879 = vld [vmem:[#allocation16 + $0x5e0] sm:$0xff]
        %v7880 = vld [vmem:[#allocation16 + $0x5e8] sm:$0xff]
        %v7881 = vld [vmem:[#allocation16 + $0x5f0] sm:$0xff]
        %v7882 = vld [vmem:[#allocation16 + $0x5f8] sm:$0xff]
        %v7883 = vld [vmem:[#allocation16 + $0x600] sm:$0xff]
        %v7884 = vld [vmem:[#allocation16 + $0x608] sm:$0xff]
        %v7885 = vld [vmem:[#allocation16 + $0x610] sm:$0xff]
        %v7886 = vld [vmem:[#allocation16 + $0x618] sm:$0xff]
        %v7887 = vld [vmem:[#allocation16 + $0x620] sm:$0xff]
        %v7888 = vld [vmem:[#allocation16 + $0x628] sm:$0xff]
        %v7889 = vld [vmem:[#allocation16 + $0x630] sm:$0xff]
        %v7890 = vld [vmem:[#allocation16 + $0x638] sm:$0xff]
        %v7891 = vld [vmem:[#allocation16 + $0x640] sm:$0xff]
        %v7892 = vld [vmem:[#allocation16 + $0x648] sm:$0xff]
        %v7893 = vld [vmem:[#allocation16 + $0x650] sm:$0xff]
        %v7894 = vld [vmem:[#allocation16 + $0x658] sm:$0xff]
        %v7895 = vld [vmem:[#allocation16 + $0x660] sm:$0xff]
        %v7896 = vld [vmem:[#allocation16 + $0x668] sm:$0xff]
        %v7897 = vld [vmem:[#allocation16 + $0x670] sm:$0xff]
        %v7898 = vld [vmem:[#allocation16 + $0x678] sm:$0xff]
        %v7899 = vld [vmem:[#allocation16 + $0x680] sm:$0xff]
        %v7900 = vld [vmem:[#allocation16 + $0x688] sm:$0xff]
        %v7901 = vld [vmem:[#allocation16 + $0x690] sm:$0xff]
        %v7902 = vld [vmem:[#allocation16 + $0x698] sm:$0xff]
        %v7903 = vld [vmem:[#allocation16 + $0x6a0] sm:$0xff]
        %v7904 = vld [vmem:[#allocation16 + $0x6a8] sm:$0xff]
        %v7905 = vld [vmem:[#allocation16 + $0x6b0] sm:$0xff]
        %v7906 = vld [vmem:[#allocation16 + $0x6b8] sm:$0xff]
        %v7907 = vld [vmem:[#allocation16 + $0x6c0] sm:$0xff]
        %v7908 = vld [vmem:[#allocation16 + $0x6c8] sm:$0xff]
        %v7909 = vld [vmem:[#allocation16 + $0x6d0] sm:$0xff]
        %v7910 = vld [vmem:[#allocation16 + $0x6d8] sm:$0xff]
        %v7911 = vld [vmem:[#allocation16 + $0x6e0] sm:$0xff]
        %v7912 = vld [vmem:[#allocation16 + $0x6e8] sm:$0xff]
        %v7913 = vld [vmem:[#allocation16 + $0x6f0] sm:$0xff]
        %v7914 = vld [vmem:[#allocation16 + $0x6f8] sm:$0xff]
        %v7915 = vld [vmem:[#allocation16 + $0x700] sm:$0xff]
        %v7916 = vld [vmem:[#allocation16 + $0x708] sm:$0xff]
        %v7917 = vld [vmem:[#allocation16 + $0x710] sm:$0xff]
        %v7918 = vld [vmem:[#allocation16 + $0x718] sm:$0xff]
        %v7919 = vld [vmem:[#allocation16 + $0x720] sm:$0xff]
        %v7920 = vld [vmem:[#allocation16 + $0x728] sm:$0xff]
        %v7921 = vld [vmem:[#allocation16 + $0x730] sm:$0xff]
        %v7922 = vld [vmem:[#allocation16 + $0x738] sm:$0xff]
        %v7923 = vld [vmem:[#allocation16 + $0x740] sm:$0xff]
        %v7924 = vld [vmem:[#allocation16 + $0x748] sm:$0xff]
        %v7925 = vld [vmem:[#allocation16 + $0x750] sm:$0xff]
        %v7926 = vld [vmem:[#allocation16 + $0x758] sm:$0xff]
        %v7927 = vld [vmem:[#allocation16 + $0x760] sm:$0xff]
        %v7928 = vld [vmem:[#allocation16 + $0x768] sm:$0xff]
        %v7929 = vld [vmem:[#allocation16 + $0x770] sm:$0xff]
        %v7930 = vld [vmem:[#allocation16 + $0x778] sm:$0xff]
        %v7931 = vld [vmem:[#allocation16 + $0x780] sm:$0xff]
        %v7932 = vld [vmem:[#allocation16 + $0x788] sm:$0xff]
        %v7933 = vld [vmem:[#allocation16 + $0x790] sm:$0xff]
        %v7934 = vld [vmem:[#allocation16 + $0x798] sm:$0xff]
        %v7935 = vld [vmem:[#allocation16 + $0x7a0] sm:$0xff]
        %v7936 = vld [vmem:[#allocation16 + $0x7a8] sm:$0xff]
        %v7937 = vld [vmem:[#allocation16 + $0x7b0] sm:$0xff]
        %v7938 = vld [vmem:[#allocation16 + $0x7b8] sm:$0xff]
        %v7939 = vld [vmem:[#allocation16 + $0x7c0] sm:$0xff]
        %v7940 = vld [vmem:[#allocation16 + $0x7c8] sm:$0xff]
        %v7941 = vld [vmem:[#allocation16 + $0x7d0] sm:$0xff]
        %v7942 = vld [vmem:[#allocation16 + $0x7d8] sm:$0xff]
        %v7943 = vld [vmem:[#allocation16 + $0x7e0] sm:$0xff]
        %v7944 = vld [vmem:[#allocation16 + $0x7e8] sm:$0xff]
        %v7945 = vld [vmem:[#allocation16 + $0x7f0] sm:$0xff]
        %v7946 = vld [vmem:[#allocation16 + $0x7f8] sm:$0xff]
        %v7947 = vld [vmem:[#allocation16 + $0x800] sm:$0xff]
        %v7948 = vld [vmem:[#allocation16 + $0x808] sm:$0xff]
        %v7949 = vld [vmem:[#allocation16 + $0x810] sm:$0xff]
        %v7950 = vld [vmem:[#allocation16 + $0x818] sm:$0xff]
        %v7951 = vld [vmem:[#allocation16 + $0x820] sm:$0xff]
        %v7952 = vld [vmem:[#allocation16 + $0x828] sm:$0xff]
        %v7953 = vld [vmem:[#allocation16 + $0x830] sm:$0xff]
        %v7954 = vld [vmem:[#allocation16 + $0x838] sm:$0xff]
        %v7955 = vld [vmem:[#allocation16 + $0x840] sm:$0xff]
        %v7956 = vld [vmem:[#allocation16 + $0x848] sm:$0xff]
        %v7957 = vld [vmem:[#allocation16 + $0x850] sm:$0xff]
        %v7958 = vld [vmem:[#allocation16 + $0x858] sm:$0xff]
        %v7959 = vld [vmem:[#allocation16 + $0x860] sm:$0xff]
        %v7960 = vld [vmem:[#allocation16 + $0x868] sm:$0xff]
        %v7961 = vld [vmem:[#allocation16 + $0x870] sm:$0xff]
        %v7962 = vld [vmem:[#allocation16 + $0x878] sm:$0xff]
        %v7963 = vld [vmem:[#allocation16 + $0x880] sm:$0xff]
        %v7964 = vld [vmem:[#allocation16 + $0x888] sm:$0xff]
        %v7965 = vld [vmem:[#allocation16 + $0x890] sm:$0xff]
        %v7966 = vld [vmem:[#allocation16 + $0x898] sm:$0xff]
        %v7967 = vld [vmem:[#allocation16 + $0x8a0] sm:$0xff]
        %v7968 = vld [vmem:[#allocation16 + $0x8a8] sm:$0xff]
        %v7969 = vld [vmem:[#allocation16 + $0x8b0] sm:$0xff]
        %v7970 = vld [vmem:[#allocation16 + $0x8b8] sm:$0xff]
        %v7971 = vld [vmem:[#allocation16 + $0x8c0] sm:$0xff]
        %v7972 = vld [vmem:[#allocation16 + $0x8c8] sm:$0xff]
        %v7973 = vld [vmem:[#allocation16 + $0x8d0] sm:$0xff]
        %v7974 = vld [vmem:[#allocation16 + $0x8d8] sm:$0xff]
        %v7975 = vld [vmem:[#allocation16 + $0x8e0] sm:$0xff]
        %v7976 = vld [vmem:[#allocation16 + $0x8e8] sm:$0xff]
        %v7977 = vld [vmem:[#allocation16 + $0x8f0] sm:$0xff]
        %v7978 = vld [vmem:[#allocation16 + $0x8f8] sm:$0xff]
        %v7979 = vld [vmem:[#allocation16 + $0x900] sm:$0xff]
        %v7980 = vld [vmem:[#allocation16 + $0x908] sm:$0xff]
        %v7981 = vld [vmem:[#allocation16 + $0x910] sm:$0xff]
        %v7982 = vld [vmem:[#allocation16 + $0x918] sm:$0xff]
        %v7983 = vld [vmem:[#allocation16 + $0x920] sm:$0xff]
        %v7984 = vld [vmem:[#allocation16 + $0x928] sm:$0xff]
        %v7985 = vld [vmem:[#allocation16 + $0x930] sm:$0xff]
        %v7986 = vld [vmem:[#allocation16 + $0x938] sm:$0xff]
        %v7987 = vld [vmem:[#allocation16 + $0x940] sm:$0xff]
        %v7988 = vld [vmem:[#allocation16 + $0x948] sm:$0xff]
        %v7989 = vld [vmem:[#allocation16 + $0x950] sm:$0xff]
        %v7990 = vld [vmem:[#allocation16 + $0x958] sm:$0xff]
        %v7991 = vld [vmem:[#allocation16 + $0x960] sm:$0xff]
        %v7992 = vld [vmem:[#allocation16 + $0x968] sm:$0xff]
        %v7993 = vld [vmem:[#allocation16 + $0x970] sm:$0xff]
        %v7994 = vld [vmem:[#allocation16 + $0x978] sm:$0xff]
        %v7995 = vld [vmem:[#allocation16 + $0x980] sm:$0xff]
        %v7996 = vld [vmem:[#allocation16 + $0x988] sm:$0xff]
        %v7997 = vld [vmem:[#allocation16 + $0x990] sm:$0xff]
        %v7998 = vld [vmem:[#allocation16 + $0x998] sm:$0xff]
        %v7999 = vld [vmem:[#allocation16 + $0x9a0] sm:$0xff]
        %v8000 = vld [vmem:[#allocation16 + $0x9a8] sm:$0xff]
        %v8001 = vld [vmem:[#allocation16 + $0x9b0] sm:$0xff]
        %v8002 = vld [vmem:[#allocation16 + $0x9b8] sm:$0xff]
        %v8003 = vld [vmem:[#allocation16 + $0x9c0] sm:$0xff]
        %v8004 = vld [vmem:[#allocation16 + $0x9c8] sm:$0xff]
        %v8005 = vld [vmem:[#allocation16 + $0x9d0] sm:$0xff]
        %v8006 = vld [vmem:[#allocation16 + $0x9d8] sm:$0xff]
        %v8007 = vld [vmem:[#allocation16 + $0x9e0] sm:$0xff]
        %v8008 = vld [vmem:[#allocation16 + $0x9e8] sm:$0xff]
        %v8009 = vld [vmem:[#allocation16 + $0x9f0] sm:$0xff]
        %v8010 = vld [vmem:[#allocation16 + $0x9f8] sm:$0xff]
        %v8011 = vld [vmem:[#allocation16 + $0xa00] sm:$0xff]
        %v8012 = vld [vmem:[#allocation16 + $0xa08] sm:$0xff]
        %v8013 = vld [vmem:[#allocation16 + $0xa10] sm:$0xff]
        %v8014 = vld [vmem:[#allocation16 + $0xa18] sm:$0xff]
        %v8015 = vld [vmem:[#allocation16 + $0xa20] sm:$0xff]
        %v8016 = vld [vmem:[#allocation16 + $0xa28] sm:$0xff]
        %v8017 = vld [vmem:[#allocation16 + $0xa30] sm:$0xff]
        %v8018 = vld [vmem:[#allocation16 + $0xa38] sm:$0xff]
        %v8019 = vld [vmem:[#allocation16 + $0xa40] sm:$0xff]
        %v8020 = vld [vmem:[#allocation16 + $0xa48] sm:$0xff]
        %v8021 = vld [vmem:[#allocation16 + $0xa50] sm:$0xff]
        %v8022 = vld [vmem:[#allocation16 + $0xa58] sm:$0xff]
        %v8023 = vld [vmem:[#allocation16 + $0xa60] sm:$0xff]
        %v8024 = vld [vmem:[#allocation16 + $0xa68] sm:$0xff]
        %v8025 = vld [vmem:[#allocation16 + $0xa70] sm:$0xff]
        %v8026 = vld [vmem:[#allocation16 + $0xa78] sm:$0xff]
        %v8027 = vld [vmem:[#allocation16 + $0xa80] sm:$0xff]
        %v8028 = vld [vmem:[#allocation16 + $0xa88] sm:$0xff]
        %v8029 = vld [vmem:[#allocation16 + $0xa90] sm:$0xff]
        %v8030 = vld [vmem:[#allocation16 + $0xa98] sm:$0xff]
        %v8031 = vld [vmem:[#allocation16 + $0xaa0] sm:$0xff]
        %v8032 = vld [vmem:[#allocation16 + $0xaa8] sm:$0xff]
        %v8033 = vld [vmem:[#allocation16 + $0xab0] sm:$0xff]
        %v8034 = vld [vmem:[#allocation16 + $0xab8] sm:$0xff]
        %v8035 = vld [vmem:[#allocation16 + $0xac0] sm:$0xff]
        %v8036 = vld [vmem:[#allocation16 + $0xac8] sm:$0xff]
        %v8037 = vld [vmem:[#allocation16 + $0xad0] sm:$0xff]
        %v8038 = vld [vmem:[#allocation16 + $0xad8] sm:$0xff]
        %v8039 = vld [vmem:[#allocation16 + $0xae0] sm:$0xff]
        %v8040 = vld [vmem:[#allocation16 + $0xae8] sm:$0xff]
        %v8041 = vld [vmem:[#allocation16 + $0xaf0] sm:$0xff]
        %v8042 = vld [vmem:[#allocation16 + $0xaf8] sm:$0xff]
        %v8043 = vld [vmem:[#allocation16 + $0xb00] sm:$0xff]
        %v8044 = vld [vmem:[#allocation16 + $0xb08] sm:$0xff]
        %v8045 = vld [vmem:[#allocation16 + $0xb10] sm:$0xff]
        %v8046 = vld [vmem:[#allocation16 + $0xb18] sm:$0xff]
        %v8047 = vld [vmem:[#allocation16 + $0xb20] sm:$0xff]
        %v8048 = vld [vmem:[#allocation16 + $0xb28] sm:$0xff]
        %v8049 = vld [vmem:[#allocation16 + $0xb30] sm:$0xff]
        %v8050 = vld [vmem:[#allocation16 + $0xb38] sm:$0xff]
        %v8051 = vld [vmem:[#allocation16 + $0xb40] sm:$0xff]
        %v8052 = vld [vmem:[#allocation16 + $0xb48] sm:$0xff]
        %v8053 = vld [vmem:[#allocation16 + $0xb50] sm:$0xff]
        %v8054 = vld [vmem:[#allocation16 + $0xb58] sm:$0xff]
        %v8055 = vld [vmem:[#allocation16 + $0xb60] sm:$0xff]
        %v8056 = vld [vmem:[#allocation16 + $0xb68] sm:$0xff]
        %v8057 = vld [vmem:[#allocation16 + $0xb70] sm:$0xff]
        %v8058 = vld [vmem:[#allocation16 + $0xb78] sm:$0xff]
        %v8059 = vld [vmem:[#allocation16 + $0xb80] sm:$0xff]
        %v8060 = vld [vmem:[#allocation16 + $0xb88] sm:$0xff]
        %v8061 = vld [vmem:[#allocation16 + $0xb90] sm:$0xff]
        %v8062 = vld [vmem:[#allocation16 + $0xb98] sm:$0xff]
        %v8063 = vld [vmem:[#allocation16 + $0xba0] sm:$0xff]
        %v8064 = vld [vmem:[#allocation16 + $0xba8] sm:$0xff]
        %v8065 = vld [vmem:[#allocation16 + $0xbb0] sm:$0xff]
        %v8066 = vld [vmem:[#allocation16 + $0xbb8] sm:$0xff]
        %v8067 = vld [vmem:[#allocation16 + $0xbc0] sm:$0xff]
        %v8068 = vld [vmem:[#allocation16 + $0xbc8] sm:$0xff]
        %v8069 = vld [vmem:[#allocation16 + $0xbd0] sm:$0xff]
        %v8070 = vld [vmem:[#allocation16 + $0xbd8] sm:$0xff]
        %v8071 = vld [vmem:[#allocation16 + $0xbe0] sm:$0xff]
        %v8072 = vld [vmem:[#allocation16 + $0xbe8] sm:$0xff]
        %v8073 = vld [vmem:[#allocation16 + $0xbf0] sm:$0xff]
        %v8074 = vld [vmem:[#allocation16 + $0xbf8] sm:$0xff]
        %v8075 = vld [vmem:[#allocation16 + $0xc00] sm:$0xff]
        %v8076 = vld [vmem:[#allocation16 + $0xc08] sm:$0xff]
        %v8077 = vld [vmem:[#allocation16 + $0xc10] sm:$0xff]
        %v8078 = vld [vmem:[#allocation16 + $0xc18] sm:$0xff]
        %v8079 = vld [vmem:[#allocation16 + $0xc20] sm:$0xff]
        %v8080 = vld [vmem:[#allocation16 + $0xc28] sm:$0xff]
        %v8081 = vld [vmem:[#allocation16 + $0xc30] sm:$0xff]
        %v8082 = vld [vmem:[#allocation16 + $0xc38] sm:$0xff]
        %v8083 = vld [vmem:[#allocation16 + $0xc40] sm:$0xff]
        %v8084 = vld [vmem:[#allocation16 + $0xc48] sm:$0xff]
        %v8085 = vld [vmem:[#allocation16 + $0xc50] sm:$0xff]
        %v8086 = vld [vmem:[#allocation16 + $0xc58] sm:$0xff]
        %v8087 = vld [vmem:[#allocation16 + $0xc60] sm:$0xff]
        %v8088 = vld [vmem:[#allocation16 + $0xc68] sm:$0xff]
        %v8089 = vld [vmem:[#allocation16 + $0xc70] sm:$0xff]
        %v8090 = vld [vmem:[#allocation16 + $0xc78] sm:$0xff]
        %v8091 = vld [vmem:[#allocation16 + $0xc80] sm:$0xff]
        %v8092 = vld [vmem:[#allocation16 + $0xc88] sm:$0xff]
        %v8093 = vld [vmem:[#allocation16 + $0xc90] sm:$0xff]
        %v8094 = vld [vmem:[#allocation16 + $0xc98] sm:$0xff]
        %v8095 = vld [vmem:[#allocation16 + $0xca0] sm:$0xff]
        %v8096 = vld [vmem:[#allocation16 + $0xca8] sm:$0xff]
        %v8097 = vld [vmem:[#allocation16 + $0xcb0] sm:$0xff]
        %v8098 = vld [vmem:[#allocation16 + $0xcb8] sm:$0xff]
        %v8099 = vld [vmem:[#allocation16 + $0xcc0] sm:$0xff]
        %v8100 = vld [vmem:[#allocation16 + $0xcc8] sm:$0xff]
        %v8101 = vld [vmem:[#allocation16 + $0xcd0] sm:$0xff]
        %v8102 = vld [vmem:[#allocation16 + $0xcd8] sm:$0xff]
        %v8103 = vld [vmem:[#allocation16 + $0xce0] sm:$0xff]
        %v8104 = vld [vmem:[#allocation16 + $0xce8] sm:$0xff]
        %v8105 = vld [vmem:[#allocation16 + $0xcf0] sm:$0xff]
        %v8106 = vld [vmem:[#allocation16 + $0xcf8] sm:$0xff]
        %v8107 = vld [vmem:[#allocation16 + $0xd00] sm:$0xff]
        %v8108 = vld [vmem:[#allocation16 + $0xd08] sm:$0xff]
        %v8109 = vld [vmem:[#allocation16 + $0xd10] sm:$0xff]
        %v8110 = vld [vmem:[#allocation16 + $0xd18] sm:$0xff]
        %v8111 = vld [vmem:[#allocation16 + $0xd20] sm:$0xff]
        %v8112 = vld [vmem:[#allocation16 + $0xd28] sm:$0xff]
        %v8113 = vld [vmem:[#allocation16 + $0xd30] sm:$0xff]
        %v8114 = vld [vmem:[#allocation16 + $0xd38] sm:$0xff]
        %v8115 = vld [vmem:[#allocation16 + $0xd40] sm:$0xff]
        %v8116 = vld [vmem:[#allocation16 + $0xd48] sm:$0xff]
        %v8117 = vld [vmem:[#allocation16 + $0xd50] sm:$0xff]
        %v8118 = vld [vmem:[#allocation16 + $0xd58] sm:$0xff]
        %v8119 = vld [vmem:[#allocation16 + $0xd60] sm:$0xff]
        %v8120 = vld [vmem:[#allocation16 + $0xd68] sm:$0xff]
        %v8121 = vld [vmem:[#allocation16 + $0xd70] sm:$0xff]
        %v8122 = vld [vmem:[#allocation16 + $0xd78] sm:$0xff]
        %v8123 = vld [vmem:[#allocation16 + $0xd80] sm:$0xff]
        %v8124 = vld [vmem:[#allocation16 + $0xd88] sm:$0xff]
        %v8125 = vld [vmem:[#allocation16 + $0xd90] sm:$0xff]
        %v8126 = vld [vmem:[#allocation16 + $0xd98] sm:$0xff]
        %v8127 = vld [vmem:[#allocation16 + $0xda0] sm:$0xff]
        %v8128 = vld [vmem:[#allocation16 + $0xda8] sm:$0xff]
        %v8129 = vld [vmem:[#allocation16 + $0xdb0] sm:$0xff]
        %v8130 = vld [vmem:[#allocation16 + $0xdb8] sm:$0xff]
        %v8131 = vld [vmem:[#allocation16 + $0xdc0] sm:$0xff]
        %v8132 = vld [vmem:[#allocation16 + $0xdc8] sm:$0xff]
        %v8133 = vld [vmem:[#allocation16 + $0xdd0] sm:$0xff]
        %v8134 = vld [vmem:[#allocation16 + $0xdd8] sm:$0xff]
        %v8135 = vld [vmem:[#allocation16 + $0xde0] sm:$0xff]
        %v8136 = vld [vmem:[#allocation16 + $0xde8] sm:$0xff]
        %v8137 = vld [vmem:[#allocation16 + $0xdf0] sm:$0xff]
        %v8138 = vld [vmem:[#allocation16 + $0xdf8] sm:$0xff]
        %v8139 = vld [vmem:[#allocation16 + $0xe00] sm:$0xff]
        %v8140 = vld [vmem:[#allocation16 + $0xe08] sm:$0xff]
        %v8141 = vld [vmem:[#allocation16 + $0xe10] sm:$0xff]
        %v8142 = vld [vmem:[#allocation16 + $0xe18] sm:$0xff]
        %v8143 = vld [vmem:[#allocation16 + $0xe20] sm:$0xff]
        %v8144 = vld [vmem:[#allocation16 + $0xe28] sm:$0xff]
        %v8145 = vld [vmem:[#allocation16 + $0xe30] sm:$0xff]
        %v8146 = vld [vmem:[#allocation16 + $0xe38] sm:$0xff]
        %v8147 = vld [vmem:[#allocation16 + $0xe40] sm:$0xff]
        %v8148 = vld [vmem:[#allocation16 + $0xe48] sm:$0xff]
        %v8149 = vld [vmem:[#allocation16 + $0xe50] sm:$0xff]
        %v8150 = vld [vmem:[#allocation16 + $0xe58] sm:$0xff]
        %v8151 = vld [vmem:[#allocation16 + $0xe60] sm:$0xff]
        %v8152 = vld [vmem:[#allocation16 + $0xe68] sm:$0xff]
        %v8153 = vld [vmem:[#allocation16 + $0xe70] sm:$0xff]
        %v8154 = vld [vmem:[#allocation16 + $0xe78] sm:$0xff]
        %v8155 = vld [vmem:[#allocation16 + $0xe80] sm:$0xff]
        %v8156 = vld [vmem:[#allocation16 + $0xe88] sm:$0xff]
        %v8157 = vld [vmem:[#allocation16 + $0xe90] sm:$0xff]
        %v8158 = vld [vmem:[#allocation16 + $0xe98] sm:$0xff]
        %v8159 = vld [vmem:[#allocation16 + $0xea0] sm:$0xff]
        %v8160 = vld [vmem:[#allocation16 + $0xea8] sm:$0xff]
        %v8161 = vld [vmem:[#allocation16 + $0xeb0] sm:$0xff]
        %v8162 = vld [vmem:[#allocation16 + $0xeb8] sm:$0xff]
        %v8163 = vld [vmem:[#allocation16 + $0xec0] sm:$0xff]
        %v8164 = vld [vmem:[#allocation16 + $0xec8] sm:$0xff]
        %v8165 = vld [vmem:[#allocation16 + $0xed0] sm:$0xff]
        %v8166 = vld [vmem:[#allocation16 + $0xed8] sm:$0xff]
        %v8167 = vld [vmem:[#allocation16 + $0xee0] sm:$0xff]
        %v8168 = vld [vmem:[#allocation16 + $0xee8] sm:$0xff]
        %v8169 = vld [vmem:[#allocation16 + $0xef0] sm:$0xff]
        %v8170 = vld [vmem:[#allocation16 + $0xef8] sm:$0xff]
        %v8171 = vld [vmem:[#allocation16 + $0xf00] sm:$0xff]
        %v8172 = vld [vmem:[#allocation16 + $0xf08] sm:$0xff]
        %v8173 = vld [vmem:[#allocation16 + $0xf10] sm:$0xff]
        %v8174 = vld [vmem:[#allocation16 + $0xf18] sm:$0xff]
        %v8175 = vld [vmem:[#allocation16 + $0xf20] sm:$0xff]
        %v8176 = vld [vmem:[#allocation16 + $0xf28] sm:$0xff]
        %v8177 = vld [vmem:[#allocation16 + $0xf30] sm:$0xff]
        %v8178 = vld [vmem:[#allocation16 + $0xf38] sm:$0xff]
        %v8179 = vld [vmem:[#allocation16 + $0xf40] sm:$0xff]
        %v8180 = vld [vmem:[#allocation16 + $0xf48] sm:$0xff]
        %v8181 = vld [vmem:[#allocation16 + $0xf50] sm:$0xff]
        %v8182 = vld [vmem:[#allocation16 + $0xf58] sm:$0xff]
        %v8183 = vld [vmem:[#allocation16 + $0xf60] sm:$0xff]
        %v8184 = vld [vmem:[#allocation16 + $0xf68] sm:$0xff]
        %v8185 = vld [vmem:[#allocation16 + $0xf70] sm:$0xff]
        %v8186 = vld [vmem:[#allocation16 + $0xf78] sm:$0xff]
        %v8187 = vld [vmem:[#allocation16 + $0xf80] sm:$0xff]
        %v8188 = vld [vmem:[#allocation16 + $0xf88] sm:$0xff]
        %v8189 = vld [vmem:[#allocation16 + $0xf90] sm:$0xff]
        %v8190 = vld [vmem:[#allocation16 + $0xf98] sm:$0xff]
        %v8191 = vld [vmem:[#allocation16 + $0xfa0] sm:$0xff]
        %v8192 = vld [vmem:[#allocation16 + $0xfa8] sm:$0xff]
        %v8193 = vld [vmem:[#allocation16 + $0xfb0] sm:$0xff]
        %v8194 = vld [vmem:[#allocation16 + $0xfb8] sm:$0xff]
        %v8195 = vld [vmem:[#allocation16 + $0xfc0] sm:$0xff]
        %v8196 = vld [vmem:[#allocation16 + $0xfc8] sm:$0xff]
        %v8197 = vld [vmem:[#allocation16 + $0xfd0] sm:$0xff]
        %v8198 = vld [vmem:[#allocation16 + $0xfd8] sm:$0xff]
        %v8199 = vld [vmem:[#allocation16 + $0xfe0] sm:$0xff]
        %v8200 = vld [vmem:[#allocation16 + $0xfe8] sm:$0xff]
        %v8201 = vld [vmem:[#allocation16 + $0xff0] sm:$0xff]
        %v8202 = vld [vmem:[#allocation16 + $0xff8] sm:$0xff]
        %v8203 = vld [vmem:[#allocation17] sm:$0xff]
        %v8205 = vperm.slane %v8203, 0
        %v8206 = vperm.slane %v8203, 1
        %v8207 = vperm.slane %v8203, 2
        %v8208 = vperm.slane %v8203, 3
        %v8209 = vperm.slane %v8203, 4
        %v8210 = vperm.slane %v8203, 5
        %v8211 = vperm.slane %v8203, 6
        %v8212 = vperm.slane %v8203, 7
        %v8733 = vunpack.c.l.b16 %v7691
        %v8734 = vunpack.c.h.b16 %v7691
        %v8735 = vunpack.c.l.b16 %v7692
        %v8736 = vunpack.c.h.b16 %v7692
        %v8737 = vunpack.c.l.b16 %v7693
        %v8738 = vunpack.c.h.b16 %v7693
        %v8739 = vunpack.c.l.b16 %v7694
        %v8740 = vunpack.c.h.b16 %v7694
        %v8741 = vunpack.c.l.b16 %v7695
        %v8742 = vunpack.c.h.b16 %v7695
        %v8743 = vunpack.c.l.b16 %v7696
        %v8744 = vunpack.c.h.b16 %v7696
        %v8745 = vunpack.c.l.b16 %v7697
        %v8746 = vunpack.c.h.b16 %v7697
        %v8747 = vunpack.c.l.b16 %v7698
        %v8748 = vunpack.c.h.b16 %v7698
        %v8749 = vunpack.c.l.b16 %v7699
        %v8750 = vunpack.c.h.b16 %v7699
        %v8751 = vunpack.c.l.b16 %v7700
        %v8752 = vunpack.c.h.b16 %v7700
        %v8753 = vunpack.c.l.b16 %v7701
        %v8754 = vunpack.c.h.b16 %v7701
        %v8755 = vunpack.c.l.b16 %v7702
        %v8756 = vunpack.c.h.b16 %v7702
        %v8757 = vunpack.c.l.b16 %v7703
        %v8758 = vunpack.c.h.b16 %v7703
        %v8759 = vunpack.c.l.b16 %v7704
        %v8760 = vunpack.c.h.b16 %v7704
        %v8761 = vunpack.c.l.b16 %v7705
        %v8762 = vunpack.c.h.b16 %v7705
        %v8763 = vunpack.c.l.b16 %v7706
        %v8764 = vunpack.c.h.b16 %v7706
        %v8765 = vunpack.c.l.b16 %v7707
        %v8766 = vunpack.c.h.b16 %v7707
        %v8767 = vunpack.c.l.b16 %v7708
        %v8768 = vunpack.c.h.b16 %v7708
        %v8769 = vunpack.c.l.b16 %v7709
        %v8770 = vunpack.c.h.b16 %v7709
        %v8771 = vunpack.c.l.b16 %v7710
        %v8772 = vunpack.c.h.b16 %v7710
        %v8773 = vunpack.c.l.b16 %v7711
        %v8774 = vunpack.c.h.b16 %v7711
        %v8775 = vunpack.c.l.b16 %v7712
        %v8776 = vunpack.c.h.b16 %v7712
        %v8777 = vunpack.c.l.b16 %v7713
        %v8778 = vunpack.c.h.b16 %v7713
        %v8779 = vunpack.c.l.b16 %v7714
        %v8780 = vunpack.c.h.b16 %v7714
        %v8781 = vunpack.c.l.b16 %v7715
        %v8782 = vunpack.c.h.b16 %v7715
        %v8783 = vunpack.c.l.b16 %v7716
        %v8784 = vunpack.c.h.b16 %v7716
        %v8785 = vunpack.c.l.b16 %v7717
        %v8786 = vunpack.c.h.b16 %v7717
        %v8787 = vunpack.c.l.b16 %v7718
        %v8788 = vunpack.c.h.b16 %v7718
        %v8789 = vunpack.c.l.b16 %v7719
        %v8790 = vunpack.c.h.b16 %v7719
        %v8791 = vunpack.c.l.b16 %v7720
        %v8792 = vunpack.c.h.b16 %v7720
        %v8793 = vunpack.c.l.b16 %v7721
        %v8794 = vunpack.c.h.b16 %v7721
        %v8795 = vunpack.c.l.b16 %v7722
        %v8796 = vunpack.c.h.b16 %v7722
        %v8797 = vunpack.c.l.b16 %v7723
        %v8798 = vunpack.c.h.b16 %v7723
        %v8799 = vunpack.c.l.b16 %v7724
        %v8800 = vunpack.c.h.b16 %v7724
        %v8801 = vunpack.c.l.b16 %v7725
        %v8802 = vunpack.c.h.b16 %v7725
        %v8803 = vunpack.c.l.b16 %v7726
        %v8804 = vunpack.c.h.b16 %v7726
        %v8805 = vunpack.c.l.b16 %v7727
        %v8806 = vunpack.c.h.b16 %v7727
        %v8807 = vunpack.c.l.b16 %v7728
        %v8808 = vunpack.c.h.b16 %v7728
        %v8809 = vunpack.c.l.b16 %v7729
        %v8810 = vunpack.c.h.b16 %v7729
        %v8811 = vunpack.c.l.b16 %v7730
        %v8812 = vunpack.c.h.b16 %v7730
        %v8813 = vunpack.c.l.b16 %v7731
        %v8814 = vunpack.c.h.b16 %v7731
        %v8815 = vunpack.c.l.b16 %v7732
        %v8816 = vunpack.c.h.b16 %v7732
        %v8817 = vunpack.c.l.b16 %v7733
        %v8818 = vunpack.c.h.b16 %v7733
        %v8819 = vunpack.c.l.b16 %v7734
        %v8820 = vunpack.c.h.b16 %v7734
        %v8821 = vunpack.c.l.b16 %v7735
        %v8822 = vunpack.c.h.b16 %v7735
        %v8823 = vunpack.c.l.b16 %v7736
        %v8824 = vunpack.c.h.b16 %v7736
        %v8825 = vunpack.c.l.b16 %v7737
        %v8826 = vunpack.c.h.b16 %v7737
        %v8827 = vunpack.c.l.b16 %v7738
        %v8828 = vunpack.c.h.b16 %v7738
        %v8829 = vunpack.c.l.b16 %v7739
        %v8830 = vunpack.c.h.b16 %v7739
        %v8831 = vunpack.c.l.b16 %v7740
        %v8832 = vunpack.c.h.b16 %v7740
        %v8833 = vunpack.c.l.b16 %v7741
        %v8834 = vunpack.c.h.b16 %v7741
        %v8835 = vunpack.c.l.b16 %v7742
        %v8836 = vunpack.c.h.b16 %v7742
        %v8837 = vunpack.c.l.b16 %v7743
        %v8838 = vunpack.c.h.b16 %v7743
        %v8839 = vunpack.c.l.b16 %v7744
        %v8840 = vunpack.c.h.b16 %v7744
        %v8841 = vunpack.c.l.b16 %v7745
        %v8842 = vunpack.c.h.b16 %v7745
        %v8843 = vunpack.c.l.b16 %v7746
        %v8844 = vunpack.c.h.b16 %v7746
        %v8845 = vunpack.c.l.b16 %v7747
        %v8846 = vunpack.c.h.b16 %v7747
        %v8847 = vunpack.c.l.b16 %v7748
        %v8848 = vunpack.c.h.b16 %v7748
        %v8849 = vunpack.c.l.b16 %v7749
        %v8850 = vunpack.c.h.b16 %v7749
        %v8851 = vunpack.c.l.b16 %v7750
        %v8852 = vunpack.c.h.b16 %v7750
        %v8853 = vunpack.c.l.b16 %v7751
        %v8854 = vunpack.c.h.b16 %v7751
        %v8855 = vunpack.c.l.b16 %v7752
        %v8856 = vunpack.c.h.b16 %v7752
        %v8857 = vunpack.c.l.b16 %v7753
        %v8858 = vunpack.c.h.b16 %v7753
        %v8859 = vunpack.c.l.b16 %v7754
        %v8860 = vunpack.c.h.b16 %v7754
        %v8861 = vunpack.c.l.b16 %v7755
        %v8862 = vunpack.c.h.b16 %v7755
        %v8863 = vunpack.c.l.b16 %v7756
        %v8864 = vunpack.c.h.b16 %v7756
        %v8865 = vunpack.c.l.b16 %v7757
        %v8866 = vunpack.c.h.b16 %v7757
        %v8867 = vunpack.c.l.b16 %v7758
        %v8868 = vunpack.c.h.b16 %v7758
        %v8869 = vunpack.c.l.b16 %v7759
        %v8870 = vunpack.c.h.b16 %v7759
        %v8871 = vunpack.c.l.b16 %v7760
        %v8872 = vunpack.c.h.b16 %v7760
        %v8873 = vunpack.c.l.b16 %v7761
        %v8874 = vunpack.c.h.b16 %v7761
        %v8875 = vunpack.c.l.b16 %v7762
        %v8876 = vunpack.c.h.b16 %v7762
        %v8877 = vunpack.c.l.b16 %v7763
        %v8878 = vunpack.c.h.b16 %v7763
        %v8879 = vunpack.c.l.b16 %v7764
        %v8880 = vunpack.c.h.b16 %v7764
        %v8881 = vunpack.c.l.b16 %v7765
        %v8882 = vunpack.c.h.b16 %v7765
        %v8883 = vunpack.c.l.b16 %v7766
        %v8884 = vunpack.c.h.b16 %v7766
        %v8885 = vunpack.c.l.b16 %v7767
        %v8886 = vunpack.c.h.b16 %v7767
        %v8887 = vunpack.c.l.b16 %v7768
        %v8888 = vunpack.c.h.b16 %v7768
        %v8889 = vunpack.c.l.b16 %v7769
        %v8890 = vunpack.c.h.b16 %v7769
        %v8891 = vunpack.c.l.b16 %v7770
        %v8892 = vunpack.c.h.b16 %v7770
        %v8893 = vunpack.c.l.b16 %v7771
        %v8894 = vunpack.c.h.b16 %v7771
        %v8895 = vunpack.c.l.b16 %v7772
        %v8896 = vunpack.c.h.b16 %v7772
        %v8897 = vunpack.c.l.b16 %v7773
        %v8898 = vunpack.c.h.b16 %v7773
        %v8899 = vunpack.c.l.b16 %v7774
        %v8900 = vunpack.c.h.b16 %v7774
        %v8901 = vunpack.c.l.b16 %v7775
        %v8902 = vunpack.c.h.b16 %v7775
        %v8903 = vunpack.c.l.b16 %v7776
        %v8904 = vunpack.c.h.b16 %v7776
        %v8905 = vunpack.c.l.b16 %v7777
        %v8906 = vunpack.c.h.b16 %v7777
        %v8907 = vunpack.c.l.b16 %v7778
        %v8908 = vunpack.c.h.b16 %v7778
        %v8909 = vunpack.c.l.b16 %v7779
        %v8910 = vunpack.c.h.b16 %v7779
        %v8911 = vunpack.c.l.b16 %v7780
        %v8912 = vunpack.c.h.b16 %v7780
        %v8913 = vunpack.c.l.b16 %v7781
        %v8914 = vunpack.c.h.b16 %v7781
        %v8915 = vunpack.c.l.b16 %v7782
        %v8916 = vunpack.c.h.b16 %v7782
        %v8917 = vunpack.c.l.b16 %v7783
        %v8918 = vunpack.c.h.b16 %v7783
        %v8919 = vunpack.c.l.b16 %v7784
        %v8920 = vunpack.c.h.b16 %v7784
        %v8921 = vunpack.c.l.b16 %v7785
        %v8922 = vunpack.c.h.b16 %v7785
        %v8923 = vunpack.c.l.b16 %v7786
        %v8924 = vunpack.c.h.b16 %v7786
        %v8925 = vunpack.c.l.b16 %v7787
        %v8926 = vunpack.c.h.b16 %v7787
        %v8927 = vunpack.c.l.b16 %v7788
        %v8928 = vunpack.c.h.b16 %v7788
        %v8929 = vunpack.c.l.b16 %v7789
        %v8930 = vunpack.c.h.b16 %v7789
        %v8931 = vunpack.c.l.b16 %v7790
        %v8932 = vunpack.c.h.b16 %v7790
        %v8933 = vunpack.c.l.b16 %v7791
        %v8934 = vunpack.c.h.b16 %v7791
        %v8935 = vunpack.c.l.b16 %v7792
        %v8936 = vunpack.c.h.b16 %v7792
        %v8937 = vunpack.c.l.b16 %v7793
        %v8938 = vunpack.c.h.b16 %v7793
        %v8939 = vunpack.c.l.b16 %v7794
        %v8940 = vunpack.c.h.b16 %v7794
        %v8941 = vunpack.c.l.b16 %v7795
        %v8942 = vunpack.c.h.b16 %v7795
        %v8943 = vunpack.c.l.b16 %v7796
        %v8944 = vunpack.c.h.b16 %v7796
        %v8945 = vunpack.c.l.b16 %v7797
        %v8946 = vunpack.c.h.b16 %v7797
        %v8947 = vunpack.c.l.b16 %v7798
        %v8948 = vunpack.c.h.b16 %v7798
        %v8949 = vunpack.c.l.b16 %v7799
        %v8950 = vunpack.c.h.b16 %v7799
        %v8951 = vunpack.c.l.b16 %v7800
        %v8952 = vunpack.c.h.b16 %v7800
        %v8953 = vunpack.c.l.b16 %v7801
        %v8954 = vunpack.c.h.b16 %v7801
        %v8955 = vunpack.c.l.b16 %v7802
        %v8956 = vunpack.c.h.b16 %v7802
        %v8957 = vunpack.c.l.b16 %v7803
        %v8958 = vunpack.c.h.b16 %v7803
        %v8959 = vunpack.c.l.b16 %v7804
        %v8960 = vunpack.c.h.b16 %v7804
        %v8961 = vunpack.c.l.b16 %v7805
        %v8962 = vunpack.c.h.b16 %v7805
        %v8963 = vunpack.c.l.b16 %v7806
        %v8964 = vunpack.c.h.b16 %v7806
        %v8965 = vunpack.c.l.b16 %v7807
        %v8966 = vunpack.c.h.b16 %v7807
        %v8967 = vunpack.c.l.b16 %v7808
        %v8968 = vunpack.c.h.b16 %v7808
        %v8969 = vunpack.c.l.b16 %v7809
        %v8970 = vunpack.c.h.b16 %v7809
        %v8971 = vunpack.c.l.b16 %v7810
        %v8972 = vunpack.c.h.b16 %v7810
        %v8973 = vunpack.c.l.b16 %v7811
        %v8974 = vunpack.c.h.b16 %v7811
        %v8975 = vunpack.c.l.b16 %v7812
        %v8976 = vunpack.c.h.b16 %v7812
        %v8977 = vunpack.c.l.b16 %v7813
        %v8978 = vunpack.c.h.b16 %v7813
        %v8979 = vunpack.c.l.b16 %v7814
        %v8980 = vunpack.c.h.b16 %v7814
        %v8981 = vunpack.c.l.b16 %v7815
        %v8982 = vunpack.c.h.b16 %v7815
        %v8983 = vunpack.c.l.b16 %v7816
        %v8984 = vunpack.c.h.b16 %v7816
        %v8985 = vunpack.c.l.b16 %v7817
        %v8986 = vunpack.c.h.b16 %v7817
        %v8987 = vunpack.c.l.b16 %v7818
        %v8988 = vunpack.c.h.b16 %v7818
        %v8989 = vunpack.c.l.b16 %v7819
        %v8990 = vunpack.c.h.b16 %v7819
        %v8991 = vunpack.c.l.b16 %v7820
        %v8992 = vunpack.c.h.b16 %v7820
        %v8993 = vunpack.c.l.b16 %v7821
        %v8994 = vunpack.c.h.b16 %v7821
        %v8995 = vunpack.c.l.b16 %v7822
        %v8996 = vunpack.c.h.b16 %v7822
        %v8997 = vunpack.c.l.b16 %v7823
        %v8998 = vunpack.c.h.b16 %v7823
        %v8999 = vunpack.c.l.b16 %v7824
        %v9000 = vunpack.c.h.b16 %v7824
        %v9001 = vunpack.c.l.b16 %v7825
        %v9002 = vunpack.c.h.b16 %v7825
        %v9003 = vunpack.c.l.b16 %v7826
        %v9004 = vunpack.c.h.b16 %v7826
        %v9005 = vunpack.c.l.b16 %v7827
        %v9006 = vunpack.c.h.b16 %v7827
        %v9007 = vunpack.c.l.b16 %v7828
        %v9008 = vunpack.c.h.b16 %v7828
        %v9009 = vunpack.c.l.b16 %v7829
        %v9010 = vunpack.c.h.b16 %v7829
        %v9011 = vunpack.c.l.b16 %v7830
        %v9012 = vunpack.c.h.b16 %v7830
        %v9013 = vunpack.c.l.b16 %v7831
        %v9014 = vunpack.c.h.b16 %v7831
        %v9015 = vunpack.c.l.b16 %v7832
        %v9016 = vunpack.c.h.b16 %v7832
        %v9017 = vunpack.c.l.b16 %v7833
        %v9018 = vunpack.c.h.b16 %v7833
        %v9019 = vunpack.c.l.b16 %v7834
        %v9020 = vunpack.c.h.b16 %v7834
        %v9021 = vunpack.c.l.b16 %v7835
        %v9022 = vunpack.c.h.b16 %v7835
        %v9023 = vunpack.c.l.b16 %v7836
        %v9024 = vunpack.c.h.b16 %v7836
        %v9025 = vunpack.c.l.b16 %v7837
        %v9026 = vunpack.c.h.b16 %v7837
        %v9027 = vunpack.c.l.b16 %v7838
        %v9028 = vunpack.c.h.b16 %v7838
        %v9029 = vunpack.c.l.b16 %v7839
        %v9030 = vunpack.c.h.b16 %v7839
        %v9031 = vunpack.c.l.b16 %v7840
        %v9032 = vunpack.c.h.b16 %v7840
        %v9033 = vunpack.c.l.b16 %v7841
        %v9034 = vunpack.c.h.b16 %v7841
        %v9035 = vunpack.c.l.b16 %v7842
        %v9036 = vunpack.c.h.b16 %v7842
        %v9037 = vunpack.c.l.b16 %v7843
        %v9038 = vunpack.c.h.b16 %v7843
        %v9039 = vunpack.c.l.b16 %v7844
        %v9040 = vunpack.c.h.b16 %v7844
        %v9041 = vunpack.c.l.b16 %v7845
        %v9042 = vunpack.c.h.b16 %v7845
        %v9043 = vunpack.c.l.b16 %v7846
        %v9044 = vunpack.c.h.b16 %v7846
        %v9045 = vunpack.c.l.b16 %v7847
        %v9046 = vunpack.c.h.b16 %v7847
        %v9047 = vunpack.c.l.b16 %v7848
        %v9048 = vunpack.c.h.b16 %v7848
        %v9049 = vunpack.c.l.b16 %v7849
        %v9050 = vunpack.c.h.b16 %v7849
        %v9051 = vunpack.c.l.b16 %v7850
        %v9052 = vunpack.c.h.b16 %v7850
        %v9053 = vunpack.c.l.b16 %v7851
        %v9054 = vunpack.c.h.b16 %v7851
        %v9055 = vunpack.c.l.b16 %v7852
        %v9056 = vunpack.c.h.b16 %v7852
        %v9057 = vunpack.c.l.b16 %v7853
        %v9058 = vunpack.c.h.b16 %v7853
        %v9059 = vunpack.c.l.b16 %v7854
        %v9060 = vunpack.c.h.b16 %v7854
        %v9061 = vunpack.c.l.b16 %v7855
        %v9062 = vunpack.c.h.b16 %v7855
        %v9063 = vunpack.c.l.b16 %v7856
        %v9064 = vunpack.c.h.b16 %v7856
        %v9065 = vunpack.c.l.b16 %v7857
        %v9066 = vunpack.c.h.b16 %v7857
        %v9067 = vunpack.c.l.b16 %v7858
        %v9068 = vunpack.c.h.b16 %v7858
        %v9069 = vunpack.c.l.b16 %v7859
        %v9070 = vunpack.c.h.b16 %v7859
        %v9071 = vunpack.c.l.b16 %v7860
        %v9072 = vunpack.c.h.b16 %v7860
        %v9073 = vunpack.c.l.b16 %v7861
        %v9074 = vunpack.c.h.b16 %v7861
        %v9075 = vunpack.c.l.b16 %v7862
        %v9076 = vunpack.c.h.b16 %v7862
        %v9077 = vunpack.c.l.b16 %v7863
        %v9078 = vunpack.c.h.b16 %v7863
        %v9079 = vunpack.c.l.b16 %v7864
        %v9080 = vunpack.c.h.b16 %v7864
        %v9081 = vunpack.c.l.b16 %v7865
        %v9082 = vunpack.c.h.b16 %v7865
        %v9083 = vunpack.c.l.b16 %v7866
        %v9084 = vunpack.c.h.b16 %v7866
        %v9085 = vunpack.c.l.b16 %v7867
        %v9086 = vunpack.c.h.b16 %v7867
        %v9087 = vunpack.c.l.b16 %v7868
        %v9088 = vunpack.c.h.b16 %v7868
        %v9089 = vunpack.c.l.b16 %v7869
        %v9090 = vunpack.c.h.b16 %v7869
        %v9091 = vunpack.c.l.b16 %v7870
        %v9092 = vunpack.c.h.b16 %v7870
        %v9093 = vunpack.c.l.b16 %v7871
        %v9094 = vunpack.c.h.b16 %v7871
        %v9095 = vunpack.c.l.b16 %v7872
        %v9096 = vunpack.c.h.b16 %v7872
        %v9097 = vunpack.c.l.b16 %v7873
        %v9098 = vunpack.c.h.b16 %v7873
        %v9099 = vunpack.c.l.b16 %v7874
        %v9100 = vunpack.c.h.b16 %v7874
        %v9101 = vunpack.c.l.b16 %v7875
        %v9102 = vunpack.c.h.b16 %v7875
        %v9103 = vunpack.c.l.b16 %v7876
        %v9104 = vunpack.c.h.b16 %v7876
        %v9105 = vunpack.c.l.b16 %v7877
        %v9106 = vunpack.c.h.b16 %v7877
        %v9107 = vunpack.c.l.b16 %v7878
        %v9108 = vunpack.c.h.b16 %v7878
        %v9109 = vunpack.c.l.b16 %v7879
        %v9110 = vunpack.c.h.b16 %v7879
        %v9111 = vunpack.c.l.b16 %v7880
        %v9112 = vunpack.c.h.b16 %v7880
        %v9113 = vunpack.c.l.b16 %v7881
        %v9114 = vunpack.c.h.b16 %v7881
        %v9115 = vunpack.c.l.b16 %v7882
        %v9116 = vunpack.c.h.b16 %v7882
        %v9117 = vunpack.c.l.b16 %v7883
        %v9118 = vunpack.c.h.b16 %v7883
        %v9119 = vunpack.c.l.b16 %v7884
        %v9120 = vunpack.c.h.b16 %v7884
        %v9121 = vunpack.c.l.b16 %v7885
        %v9122 = vunpack.c.h.b16 %v7885
        %v9123 = vunpack.c.l.b16 %v7886
        %v9124 = vunpack.c.h.b16 %v7886
        %v9125 = vunpack.c.l.b16 %v7887
        %v9126 = vunpack.c.h.b16 %v7887
        %v9127 = vunpack.c.l.b16 %v7888
        %v9128 = vunpack.c.h.b16 %v7888
        %v9129 = vunpack.c.l.b16 %v7889
        %v9130 = vunpack.c.h.b16 %v7889
        %v9131 = vunpack.c.l.b16 %v7890
        %v9132 = vunpack.c.h.b16 %v7890
        %v9133 = vunpack.c.l.b16 %v7891
        %v9134 = vunpack.c.h.b16 %v7891
        %v9135 = vunpack.c.l.b16 %v7892
        %v9136 = vunpack.c.h.b16 %v7892
        %v9137 = vunpack.c.l.b16 %v7893
        %v9138 = vunpack.c.h.b16 %v7893
        %v9139 = vunpack.c.l.b16 %v7894
        %v9140 = vunpack.c.h.b16 %v7894
        %v9141 = vunpack.c.l.b16 %v7895
        %v9142 = vunpack.c.h.b16 %v7895
        %v9143 = vunpack.c.l.b16 %v7896
        %v9144 = vunpack.c.h.b16 %v7896
        %v9145 = vunpack.c.l.b16 %v7897
        %v9146 = vunpack.c.h.b16 %v7897
        %v9147 = vunpack.c.l.b16 %v7898
        %v9148 = vunpack.c.h.b16 %v7898
        %v9149 = vunpack.c.l.b16 %v7899
        %v9150 = vunpack.c.h.b16 %v7899
        %v9151 = vunpack.c.l.b16 %v7900
        %v9152 = vunpack.c.h.b16 %v7900
        %v9153 = vunpack.c.l.b16 %v7901
        %v9154 = vunpack.c.h.b16 %v7901
        %v9155 = vunpack.c.l.b16 %v7902
        %v9156 = vunpack.c.h.b16 %v7902
        %v9157 = vunpack.c.l.b16 %v7903
        %v9158 = vunpack.c.h.b16 %v7903
        %v9159 = vunpack.c.l.b16 %v7904
        %v9160 = vunpack.c.h.b16 %v7904
        %v9161 = vunpack.c.l.b16 %v7905
        %v9162 = vunpack.c.h.b16 %v7905
        %v9163 = vunpack.c.l.b16 %v7906
        %v9164 = vunpack.c.h.b16 %v7906
        %v9165 = vunpack.c.l.b16 %v7907
        %v9166 = vunpack.c.h.b16 %v7907
        %v9167 = vunpack.c.l.b16 %v7908
        %v9168 = vunpack.c.h.b16 %v7908
        %v9169 = vunpack.c.l.b16 %v7909
        %v9170 = vunpack.c.h.b16 %v7909
        %v9171 = vunpack.c.l.b16 %v7910
        %v9172 = vunpack.c.h.b16 %v7910
        %v9173 = vunpack.c.l.b16 %v7911
        %v9174 = vunpack.c.h.b16 %v7911
        %v9175 = vunpack.c.l.b16 %v7912
        %v9176 = vunpack.c.h.b16 %v7912
        %v9177 = vunpack.c.l.b16 %v7913
        %v9178 = vunpack.c.h.b16 %v7913
        %v9179 = vunpack.c.l.b16 %v7914
        %v9180 = vunpack.c.h.b16 %v7914
        %v9181 = vunpack.c.l.b16 %v7915
        %v9182 = vunpack.c.h.b16 %v7915
        %v9183 = vunpack.c.l.b16 %v7916
        %v9184 = vunpack.c.h.b16 %v7916
        %v9185 = vunpack.c.l.b16 %v7917
        %v9186 = vunpack.c.h.b16 %v7917
        %v9187 = vunpack.c.l.b16 %v7918
        %v9188 = vunpack.c.h.b16 %v7918
        %v9189 = vunpack.c.l.b16 %v7919
        %v9190 = vunpack.c.h.b16 %v7919
        %v9191 = vunpack.c.l.b16 %v7920
        %v9192 = vunpack.c.h.b16 %v7920
        %v9193 = vunpack.c.l.b16 %v7921
        %v9194 = vunpack.c.h.b16 %v7921
        %v9195 = vunpack.c.l.b16 %v7922
        %v9196 = vunpack.c.h.b16 %v7922
        %v9197 = vunpack.c.l.b16 %v7923
        %v9198 = vunpack.c.h.b16 %v7923
        %v9199 = vunpack.c.l.b16 %v7924
        %v9200 = vunpack.c.h.b16 %v7924
        %v9201 = vunpack.c.l.b16 %v7925
        %v9202 = vunpack.c.h.b16 %v7925
        %v9203 = vunpack.c.l.b16 %v7926
        %v9204 = vunpack.c.h.b16 %v7926
        %v9205 = vunpack.c.l.b16 %v7927
        %v9206 = vunpack.c.h.b16 %v7927
        %v9207 = vunpack.c.l.b16 %v7928
        %v9208 = vunpack.c.h.b16 %v7928
        %v9209 = vunpack.c.l.b16 %v7929
        %v9210 = vunpack.c.h.b16 %v7929
        %v9211 = vunpack.c.l.b16 %v7930
        %v9212 = vunpack.c.h.b16 %v7930
        %v9213 = vunpack.c.l.b16 %v7931
        %v9214 = vunpack.c.h.b16 %v7931
        %v9215 = vunpack.c.l.b16 %v7932
        %v9216 = vunpack.c.h.b16 %v7932
        %v9217 = vunpack.c.l.b16 %v7933
        %v9218 = vunpack.c.h.b16 %v7933
        %v9219 = vunpack.c.l.b16 %v7934
        %v9220 = vunpack.c.h.b16 %v7934
        %v9221 = vunpack.c.l.b16 %v7935
        %v9222 = vunpack.c.h.b16 %v7935
        %v9223 = vunpack.c.l.b16 %v7936
        %v9224 = vunpack.c.h.b16 %v7936
        %v9225 = vunpack.c.l.b16 %v7937
        %v9226 = vunpack.c.h.b16 %v7937
        %v9227 = vunpack.c.l.b16 %v7938
        %v9228 = vunpack.c.h.b16 %v7938
        %v9229 = vunpack.c.l.b16 %v7939
        %v9230 = vunpack.c.h.b16 %v7939
        %v9231 = vunpack.c.l.b16 %v7940
        %v9232 = vunpack.c.h.b16 %v7940
        %v9233 = vunpack.c.l.b16 %v7941
        %v9234 = vunpack.c.h.b16 %v7941
        %v9235 = vunpack.c.l.b16 %v7942
        %v9236 = vunpack.c.h.b16 %v7942
        %v9237 = vunpack.c.l.b16 %v7943
        %v9238 = vunpack.c.h.b16 %v7943
        %v9239 = vunpack.c.l.b16 %v7944
        %v9240 = vunpack.c.h.b16 %v7944
        %v9241 = vunpack.c.l.b16 %v7945
        %v9242 = vunpack.c.h.b16 %v7945
        %v9243 = vunpack.c.l.b16 %v7946
        %v9244 = vunpack.c.h.b16 %v7946
        %v9245 = vunpack.c.l.b16 %v7947
        %v9246 = vunpack.c.h.b16 %v7947
        %v9247 = vunpack.c.l.b16 %v7948
        %v9248 = vunpack.c.h.b16 %v7948
        %v9249 = vunpack.c.l.b16 %v7949
        %v9250 = vunpack.c.h.b16 %v7949
        %v9251 = vunpack.c.l.b16 %v7950
        %v9252 = vunpack.c.h.b16 %v7950
        %v9253 = vunpack.c.l.b16 %v7951
        %v9254 = vunpack.c.h.b16 %v7951
        %v9255 = vunpack.c.l.b16 %v7952
        %v9256 = vunpack.c.h.b16 %v7952
        %v9257 = vunpack.c.l.b16 %v7953
        %v9258 = vunpack.c.h.b16 %v7953
        %v9259 = vunpack.c.l.b16 %v7954
        %v9260 = vunpack.c.h.b16 %v7954
        %v9261 = vunpack.c.l.b16 %v7955
        %v9262 = vunpack.c.h.b16 %v7955
        %v9263 = vunpack.c.l.b16 %v7956
        %v9264 = vunpack.c.h.b16 %v7956
        %v9265 = vunpack.c.l.b16 %v7957
        %v9266 = vunpack.c.h.b16 %v7957
        %v9267 = vunpack.c.l.b16 %v7958
        %v9268 = vunpack.c.h.b16 %v7958
        %v9269 = vunpack.c.l.b16 %v7959
        %v9270 = vunpack.c.h.b16 %v7959
        %v9271 = vunpack.c.l.b16 %v7960
        %v9272 = vunpack.c.h.b16 %v7960
        %v9273 = vunpack.c.l.b16 %v7961
        %v9274 = vunpack.c.h.b16 %v7961
        %v9275 = vunpack.c.l.b16 %v7962
        %v9276 = vunpack.c.h.b16 %v7962
        %v9277 = vunpack.c.l.b16 %v7963
        %v9278 = vunpack.c.h.b16 %v7963
        %v9279 = vunpack.c.l.b16 %v7964
        %v9280 = vunpack.c.h.b16 %v7964
        %v9281 = vunpack.c.l.b16 %v7965
        %v9282 = vunpack.c.h.b16 %v7965
        %v9283 = vunpack.c.l.b16 %v7966
        %v9284 = vunpack.c.h.b16 %v7966
        %v9285 = vunpack.c.l.b16 %v7967
        %v9286 = vunpack.c.h.b16 %v7967
        %v9287 = vunpack.c.l.b16 %v7968
        %v9288 = vunpack.c.h.b16 %v7968
        %v9289 = vunpack.c.l.b16 %v7969
        %v9290 = vunpack.c.h.b16 %v7969
        %v9291 = vunpack.c.l.b16 %v7970
        %v9292 = vunpack.c.h.b16 %v7970
        %v9293 = vunpack.c.l.b16 %v7971
        %v9294 = vunpack.c.h.b16 %v7971
        %v9295 = vunpack.c.l.b16 %v7972
        %v9296 = vunpack.c.h.b16 %v7972
        %v9297 = vunpack.c.l.b16 %v7973
        %v9298 = vunpack.c.h.b16 %v7973
        %v9299 = vunpack.c.l.b16 %v7974
        %v9300 = vunpack.c.h.b16 %v7974
        %v9301 = vunpack.c.l.b16 %v7975
        %v9302 = vunpack.c.h.b16 %v7975
        %v9303 = vunpack.c.l.b16 %v7976
        %v9304 = vunpack.c.h.b16 %v7976
        %v9305 = vunpack.c.l.b16 %v7977
        %v9306 = vunpack.c.h.b16 %v7977
        %v9307 = vunpack.c.l.b16 %v7978
        %v9308 = vunpack.c.h.b16 %v7978
        %v9309 = vunpack.c.l.b16 %v7979
        %v9310 = vunpack.c.h.b16 %v7979
        %v9311 = vunpack.c.l.b16 %v7980
        %v9312 = vunpack.c.h.b16 %v7980
        %v9313 = vunpack.c.l.b16 %v7981
        %v9314 = vunpack.c.h.b16 %v7981
        %v9315 = vunpack.c.l.b16 %v7982
        %v9316 = vunpack.c.h.b16 %v7982
        %v9317 = vunpack.c.l.b16 %v7983
        %v9318 = vunpack.c.h.b16 %v7983
        %v9319 = vunpack.c.l.b16 %v7984
        %v9320 = vunpack.c.h.b16 %v7984
        %v9321 = vunpack.c.l.b16 %v7985
        %v9322 = vunpack.c.h.b16 %v7985
        %v9323 = vunpack.c.l.b16 %v7986
        %v9324 = vunpack.c.h.b16 %v7986
        %v9325 = vunpack.c.l.b16 %v7987
        %v9326 = vunpack.c.h.b16 %v7987
        %v9327 = vunpack.c.l.b16 %v7988
        %v9328 = vunpack.c.h.b16 %v7988
        %v9329 = vunpack.c.l.b16 %v7989
        %v9330 = vunpack.c.h.b16 %v7989
        %v9331 = vunpack.c.l.b16 %v7990
        %v9332 = vunpack.c.h.b16 %v7990
        %v9333 = vunpack.c.l.b16 %v7991
        %v9334 = vunpack.c.h.b16 %v7991
        %v9335 = vunpack.c.l.b16 %v7992
        %v9336 = vunpack.c.h.b16 %v7992
        %v9337 = vunpack.c.l.b16 %v7993
        %v9338 = vunpack.c.h.b16 %v7993
        %v9339 = vunpack.c.l.b16 %v7994
        %v9340 = vunpack.c.h.b16 %v7994
        %v9341 = vunpack.c.l.b16 %v7995
        %v9342 = vunpack.c.h.b16 %v7995
        %v9343 = vunpack.c.l.b16 %v7996
        %v9344 = vunpack.c.h.b16 %v7996
        %v9345 = vunpack.c.l.b16 %v7997
        %v9346 = vunpack.c.h.b16 %v7997
        %v9347 = vunpack.c.l.b16 %v7998
        %v9348 = vunpack.c.h.b16 %v7998
        %v9349 = vunpack.c.l.b16 %v7999
        %v9350 = vunpack.c.h.b16 %v7999
        %v9351 = vunpack.c.l.b16 %v8000
        %v9352 = vunpack.c.h.b16 %v8000
        %v9353 = vunpack.c.l.b16 %v8001
        %v9354 = vunpack.c.h.b16 %v8001
        %v9355 = vunpack.c.l.b16 %v8002
        %v9356 = vunpack.c.h.b16 %v8002
        %v9357 = vunpack.c.l.b16 %v8003
        %v9358 = vunpack.c.h.b16 %v8003
        %v9359 = vunpack.c.l.b16 %v8004
        %v9360 = vunpack.c.h.b16 %v8004
        %v9361 = vunpack.c.l.b16 %v8005
        %v9362 = vunpack.c.h.b16 %v8005
        %v9363 = vunpack.c.l.b16 %v8006
        %v9364 = vunpack.c.h.b16 %v8006
        %v9365 = vunpack.c.l.b16 %v8007
        %v9366 = vunpack.c.h.b16 %v8007
        %v9367 = vunpack.c.l.b16 %v8008
        %v9368 = vunpack.c.h.b16 %v8008
        %v9369 = vunpack.c.l.b16 %v8009
        %v9370 = vunpack.c.h.b16 %v8009
        %v9371 = vunpack.c.l.b16 %v8010
        %v9372 = vunpack.c.h.b16 %v8010
        %v9373 = vunpack.c.l.b16 %v8011
        %v9374 = vunpack.c.h.b16 %v8011
        %v9375 = vunpack.c.l.b16 %v8012
        %v9376 = vunpack.c.h.b16 %v8012
        %v9377 = vunpack.c.l.b16 %v8013
        %v9378 = vunpack.c.h.b16 %v8013
        %v9379 = vunpack.c.l.b16 %v8014
        %v9380 = vunpack.c.h.b16 %v8014
        %v9381 = vunpack.c.l.b16 %v8015
        %v9382 = vunpack.c.h.b16 %v8015
        %v9383 = vunpack.c.l.b16 %v8016
        %v9384 = vunpack.c.h.b16 %v8016
        %v9385 = vunpack.c.l.b16 %v8017
        %v9386 = vunpack.c.h.b16 %v8017
        %v9387 = vunpack.c.l.b16 %v8018
        %v9388 = vunpack.c.h.b16 %v8018
        %v9389 = vunpack.c.l.b16 %v8019
        %v9390 = vunpack.c.h.b16 %v8019
        %v9391 = vunpack.c.l.b16 %v8020
        %v9392 = vunpack.c.h.b16 %v8020
        %v9393 = vunpack.c.l.b16 %v8021
        %v9394 = vunpack.c.h.b16 %v8021
        %v9395 = vunpack.c.l.b16 %v8022
        %v9396 = vunpack.c.h.b16 %v8022
        %v9397 = vunpack.c.l.b16 %v8023
        %v9398 = vunpack.c.h.b16 %v8023
        %v9399 = vunpack.c.l.b16 %v8024
        %v9400 = vunpack.c.h.b16 %v8024
        %v9401 = vunpack.c.l.b16 %v8025
        %v9402 = vunpack.c.h.b16 %v8025
        %v9403 = vunpack.c.l.b16 %v8026
        %v9404 = vunpack.c.h.b16 %v8026
        %v9405 = vunpack.c.l.b16 %v8027
        %v9406 = vunpack.c.h.b16 %v8027
        %v9407 = vunpack.c.l.b16 %v8028
        %v9408 = vunpack.c.h.b16 %v8028
        %v9409 = vunpack.c.l.b16 %v8029
        %v9410 = vunpack.c.h.b16 %v8029
        %v9411 = vunpack.c.l.b16 %v8030
        %v9412 = vunpack.c.h.b16 %v8030
        %v9413 = vunpack.c.l.b16 %v8031
        %v9414 = vunpack.c.h.b16 %v8031
        %v9415 = vunpack.c.l.b16 %v8032
        %v9416 = vunpack.c.h.b16 %v8032
        %v9417 = vunpack.c.l.b16 %v8033
        %v9418 = vunpack.c.h.b16 %v8033
        %v9419 = vunpack.c.l.b16 %v8034
        %v9420 = vunpack.c.h.b16 %v8034
        %v9421 = vunpack.c.l.b16 %v8035
        %v9422 = vunpack.c.h.b16 %v8035
        %v9423 = vunpack.c.l.b16 %v8036
        %v9424 = vunpack.c.h.b16 %v8036
        %v9425 = vunpack.c.l.b16 %v8037
        %v9426 = vunpack.c.h.b16 %v8037
        %v9427 = vunpack.c.l.b16 %v8038
        %v9428 = vunpack.c.h.b16 %v8038
        %v9429 = vunpack.c.l.b16 %v8039
        %v9430 = vunpack.c.h.b16 %v8039
        %v9431 = vunpack.c.l.b16 %v8040
        %v9432 = vunpack.c.h.b16 %v8040
        %v9433 = vunpack.c.l.b16 %v8041
        %v9434 = vunpack.c.h.b16 %v8041
        %v9435 = vunpack.c.l.b16 %v8042
        %v9436 = vunpack.c.h.b16 %v8042
        %v9437 = vunpack.c.l.b16 %v8043
        %v9438 = vunpack.c.h.b16 %v8043
        %v9439 = vunpack.c.l.b16 %v8044
        %v9440 = vunpack.c.h.b16 %v8044
        %v9441 = vunpack.c.l.b16 %v8045
        %v9442 = vunpack.c.h.b16 %v8045
        %v9443 = vunpack.c.l.b16 %v8046
        %v9444 = vunpack.c.h.b16 %v8046
        %v9445 = vunpack.c.l.b16 %v8047
        %v9446 = vunpack.c.h.b16 %v8047
        %v9447 = vunpack.c.l.b16 %v8048
        %v9448 = vunpack.c.h.b16 %v8048
        %v9449 = vunpack.c.l.b16 %v8049
        %v9450 = vunpack.c.h.b16 %v8049
        %v9451 = vunpack.c.l.b16 %v8050
        %v9452 = vunpack.c.h.b16 %v8050
        %v9453 = vunpack.c.l.b16 %v8051
        %v9454 = vunpack.c.h.b16 %v8051
        %v9455 = vunpack.c.l.b16 %v8052
        %v9456 = vunpack.c.h.b16 %v8052
        %v9457 = vunpack.c.l.b16 %v8053
        %v9458 = vunpack.c.h.b16 %v8053
        %v9459 = vunpack.c.l.b16 %v8054
        %v9460 = vunpack.c.h.b16 %v8054
        %v9461 = vunpack.c.l.b16 %v8055
        %v9462 = vunpack.c.h.b16 %v8055
        %v9463 = vunpack.c.l.b16 %v8056
        %v9464 = vunpack.c.h.b16 %v8056
        %v9465 = vunpack.c.l.b16 %v8057
        %v9466 = vunpack.c.h.b16 %v8057
        %v9467 = vunpack.c.l.b16 %v8058
        %v9468 = vunpack.c.h.b16 %v8058
        %v9469 = vunpack.c.l.b16 %v8059
        %v9470 = vunpack.c.h.b16 %v8059
        %v9471 = vunpack.c.l.b16 %v8060
        %v9472 = vunpack.c.h.b16 %v8060
        %v9473 = vunpack.c.l.b16 %v8061
        %v9474 = vunpack.c.h.b16 %v8061
        %v9475 = vunpack.c.l.b16 %v8062
        %v9476 = vunpack.c.h.b16 %v8062
        %v9477 = vunpack.c.l.b16 %v8063
        %v9478 = vunpack.c.h.b16 %v8063
        %v9479 = vunpack.c.l.b16 %v8064
        %v9480 = vunpack.c.h.b16 %v8064
        %v9481 = vunpack.c.l.b16 %v8065
        %v9482 = vunpack.c.h.b16 %v8065
        %v9483 = vunpack.c.l.b16 %v8066
        %v9484 = vunpack.c.h.b16 %v8066
        %v9485 = vunpack.c.l.b16 %v8067
        %v9486 = vunpack.c.h.b16 %v8067
        %v9487 = vunpack.c.l.b16 %v8068
        %v9488 = vunpack.c.h.b16 %v8068
        %v9489 = vunpack.c.l.b16 %v8069
        %v9490 = vunpack.c.h.b16 %v8069
        %v9491 = vunpack.c.l.b16 %v8070
        %v9492 = vunpack.c.h.b16 %v8070
        %v9493 = vunpack.c.l.b16 %v8071
        %v9494 = vunpack.c.h.b16 %v8071
        %v9495 = vunpack.c.l.b16 %v8072
        %v9496 = vunpack.c.h.b16 %v8072
        %v9497 = vunpack.c.l.b16 %v8073
        %v9498 = vunpack.c.h.b16 %v8073
        %v9499 = vunpack.c.l.b16 %v8074
        %v9500 = vunpack.c.h.b16 %v8074
        %v9501 = vunpack.c.l.b16 %v8075
        %v9502 = vunpack.c.h.b16 %v8075
        %v9503 = vunpack.c.l.b16 %v8076
        %v9504 = vunpack.c.h.b16 %v8076
        %v9505 = vunpack.c.l.b16 %v8077
        %v9506 = vunpack.c.h.b16 %v8077
        %v9507 = vunpack.c.l.b16 %v8078
        %v9508 = vunpack.c.h.b16 %v8078
        %v9509 = vunpack.c.l.b16 %v8079
        %v9510 = vunpack.c.h.b16 %v8079
        %v9511 = vunpack.c.l.b16 %v8080
        %v9512 = vunpack.c.h.b16 %v8080
        %v9513 = vunpack.c.l.b16 %v8081
        %v9514 = vunpack.c.h.b16 %v8081
        %v9515 = vunpack.c.l.b16 %v8082
        %v9516 = vunpack.c.h.b16 %v8082
        %v9517 = vunpack.c.l.b16 %v8083
        %v9518 = vunpack.c.h.b16 %v8083
        %v9519 = vunpack.c.l.b16 %v8084
        %v9520 = vunpack.c.h.b16 %v8084
        %v9521 = vunpack.c.l.b16 %v8085
        %v9522 = vunpack.c.h.b16 %v8085
        %v9523 = vunpack.c.l.b16 %v8086
        %v9524 = vunpack.c.h.b16 %v8086
        %v9525 = vunpack.c.l.b16 %v8087
        %v9526 = vunpack.c.h.b16 %v8087
        %v9527 = vunpack.c.l.b16 %v8088
        %v9528 = vunpack.c.h.b16 %v8088
        %v9529 = vunpack.c.l.b16 %v8089
        %v9530 = vunpack.c.h.b16 %v8089
        %v9531 = vunpack.c.l.b16 %v8090
        %v9532 = vunpack.c.h.b16 %v8090
        %v9533 = vunpack.c.l.b16 %v8091
        %v9534 = vunpack.c.h.b16 %v8091
        %v9535 = vunpack.c.l.b16 %v8092
        %v9536 = vunpack.c.h.b16 %v8092
        %v9537 = vunpack.c.l.b16 %v8093
        %v9538 = vunpack.c.h.b16 %v8093
        %v9539 = vunpack.c.l.b16 %v8094
        %v9540 = vunpack.c.h.b16 %v8094
        %v9541 = vunpack.c.l.b16 %v8095
        %v9542 = vunpack.c.h.b16 %v8095
        %v9543 = vunpack.c.l.b16 %v8096
        %v9544 = vunpack.c.h.b16 %v8096
        %v9545 = vunpack.c.l.b16 %v8097
        %v9546 = vunpack.c.h.b16 %v8097
        %v9547 = vunpack.c.l.b16 %v8098
        %v9548 = vunpack.c.h.b16 %v8098
        %v9549 = vunpack.c.l.b16 %v8099
        %v9550 = vunpack.c.h.b16 %v8099
        %v9551 = vunpack.c.l.b16 %v8100
        %v9552 = vunpack.c.h.b16 %v8100
        %v9553 = vunpack.c.l.b16 %v8101
        %v9554 = vunpack.c.h.b16 %v8101
        %v9555 = vunpack.c.l.b16 %v8102
        %v9556 = vunpack.c.h.b16 %v8102
        %v9557 = vunpack.c.l.b16 %v8103
        %v9558 = vunpack.c.h.b16 %v8103
        %v9559 = vunpack.c.l.b16 %v8104
        %v9560 = vunpack.c.h.b16 %v8104
        %v9561 = vunpack.c.l.b16 %v8105
        %v9562 = vunpack.c.h.b16 %v8105
        %v9563 = vunpack.c.l.b16 %v8106
        %v9564 = vunpack.c.h.b16 %v8106
        %v9565 = vunpack.c.l.b16 %v8107
        %v9566 = vunpack.c.h.b16 %v8107
        %v9567 = vunpack.c.l.b16 %v8108
        %v9568 = vunpack.c.h.b16 %v8108
        %v9569 = vunpack.c.l.b16 %v8109
        %v9570 = vunpack.c.h.b16 %v8109
        %v9571 = vunpack.c.l.b16 %v8110
        %v9572 = vunpack.c.h.b16 %v8110
        %v9573 = vunpack.c.l.b16 %v8111
        %v9574 = vunpack.c.h.b16 %v8111
        %v9575 = vunpack.c.l.b16 %v8112
        %v9576 = vunpack.c.h.b16 %v8112
        %v9577 = vunpack.c.l.b16 %v8113
        %v9578 = vunpack.c.h.b16 %v8113
        %v9579 = vunpack.c.l.b16 %v8114
        %v9580 = vunpack.c.h.b16 %v8114
        %v9581 = vunpack.c.l.b16 %v8115
        %v9582 = vunpack.c.h.b16 %v8115
        %v9583 = vunpack.c.l.b16 %v8116
        %v9584 = vunpack.c.h.b16 %v8116
        %v9585 = vunpack.c.l.b16 %v8117
        %v9586 = vunpack.c.h.b16 %v8117
        %v9587 = vunpack.c.l.b16 %v8118
        %v9588 = vunpack.c.h.b16 %v8118
        %v9589 = vunpack.c.l.b16 %v8119
        %v9590 = vunpack.c.h.b16 %v8119
        %v9591 = vunpack.c.l.b16 %v8120
        %v9592 = vunpack.c.h.b16 %v8120
        %v9593 = vunpack.c.l.b16 %v8121
        %v9594 = vunpack.c.h.b16 %v8121
        %v9595 = vunpack.c.l.b16 %v8122
        %v9596 = vunpack.c.h.b16 %v8122
        %v9597 = vunpack.c.l.b16 %v8123
        %v9598 = vunpack.c.h.b16 %v8123
        %v9599 = vunpack.c.l.b16 %v8124
        %v9600 = vunpack.c.h.b16 %v8124
        %v9601 = vunpack.c.l.b16 %v8125
        %v9602 = vunpack.c.h.b16 %v8125
        %v9603 = vunpack.c.l.b16 %v8126
        %v9604 = vunpack.c.h.b16 %v8126
        %v9605 = vunpack.c.l.b16 %v8127
        %v9606 = vunpack.c.h.b16 %v8127
        %v9607 = vunpack.c.l.b16 %v8128
        %v9608 = vunpack.c.h.b16 %v8128
        %v9609 = vunpack.c.l.b16 %v8129
        %v9610 = vunpack.c.h.b16 %v8129
        %v9611 = vunpack.c.l.b16 %v8130
        %v9612 = vunpack.c.h.b16 %v8130
        %v9613 = vunpack.c.l.b16 %v8131
        %v9614 = vunpack.c.h.b16 %v8131
        %v9615 = vunpack.c.l.b16 %v8132
        %v9616 = vunpack.c.h.b16 %v8132
        %v9617 = vunpack.c.l.b16 %v8133
        %v9618 = vunpack.c.h.b16 %v8133
        %v9619 = vunpack.c.l.b16 %v8134
        %v9620 = vunpack.c.h.b16 %v8134
        %v9621 = vunpack.c.l.b16 %v8135
        %v9622 = vunpack.c.h.b16 %v8135
        %v9623 = vunpack.c.l.b16 %v8136
        %v9624 = vunpack.c.h.b16 %v8136
        %v9625 = vunpack.c.l.b16 %v8137
        %v9626 = vunpack.c.h.b16 %v8137
        %v9627 = vunpack.c.l.b16 %v8138
        %v9628 = vunpack.c.h.b16 %v8138
        %v9629 = vunpack.c.l.b16 %v8139
        %v9630 = vunpack.c.h.b16 %v8139
        %v9631 = vunpack.c.l.b16 %v8140
        %v9632 = vunpack.c.h.b16 %v8140
        %v9633 = vunpack.c.l.b16 %v8141
        %v9634 = vunpack.c.h.b16 %v8141
        %v9635 = vunpack.c.l.b16 %v8142
        %v9636 = vunpack.c.h.b16 %v8142
        %v9637 = vunpack.c.l.b16 %v8143
        %v9638 = vunpack.c.h.b16 %v8143
        %v9639 = vunpack.c.l.b16 %v8144
        %v9640 = vunpack.c.h.b16 %v8144
        %v9641 = vunpack.c.l.b16 %v8145
        %v9642 = vunpack.c.h.b16 %v8145
        %v9643 = vunpack.c.l.b16 %v8146
        %v9644 = vunpack.c.h.b16 %v8146
        %v9645 = vunpack.c.l.b16 %v8147
        %v9646 = vunpack.c.h.b16 %v8147
        %v9647 = vunpack.c.l.b16 %v8148
        %v9648 = vunpack.c.h.b16 %v8148
        %v9649 = vunpack.c.l.b16 %v8149
        %v9650 = vunpack.c.h.b16 %v8149
        %v9651 = vunpack.c.l.b16 %v8150
        %v9652 = vunpack.c.h.b16 %v8150
        %v9653 = vunpack.c.l.b16 %v8151
        %v9654 = vunpack.c.h.b16 %v8151
        %v9655 = vunpack.c.l.b16 %v8152
        %v9656 = vunpack.c.h.b16 %v8152
        %v9657 = vunpack.c.l.b16 %v8153
        %v9658 = vunpack.c.h.b16 %v8153
        %v9659 = vunpack.c.l.b16 %v8154
        %v9660 = vunpack.c.h.b16 %v8154
        %v9661 = vunpack.c.l.b16 %v8155
        %v9662 = vunpack.c.h.b16 %v8155
        %v9663 = vunpack.c.l.b16 %v8156
        %v9664 = vunpack.c.h.b16 %v8156
        %v9665 = vunpack.c.l.b16 %v8157
        %v9666 = vunpack.c.h.b16 %v8157
        %v9667 = vunpack.c.l.b16 %v8158
        %v9668 = vunpack.c.h.b16 %v8158
        %v9669 = vunpack.c.l.b16 %v8159
        %v9670 = vunpack.c.h.b16 %v8159
        %v9671 = vunpack.c.l.b16 %v8160
        %v9672 = vunpack.c.h.b16 %v8160
        %v9673 = vunpack.c.l.b16 %v8161
        %v9674 = vunpack.c.h.b16 %v8161
        %v9675 = vunpack.c.l.b16 %v8162
        %v9676 = vunpack.c.h.b16 %v8162
        %v9677 = vunpack.c.l.b16 %v8163
        %v9678 = vunpack.c.h.b16 %v8163
        %v9679 = vunpack.c.l.b16 %v8164
        %v9680 = vunpack.c.h.b16 %v8164
        %v9681 = vunpack.c.l.b16 %v8165
        %v9682 = vunpack.c.h.b16 %v8165
        %v9683 = vunpack.c.l.b16 %v8166
        %v9684 = vunpack.c.h.b16 %v8166
        %v9685 = vunpack.c.l.b16 %v8167
        %v9686 = vunpack.c.h.b16 %v8167
        %v9687 = vunpack.c.l.b16 %v8168
        %v9688 = vunpack.c.h.b16 %v8168
        %v9689 = vunpack.c.l.b16 %v8169
        %v9690 = vunpack.c.h.b16 %v8169
        %v9691 = vunpack.c.l.b16 %v8170
        %v9692 = vunpack.c.h.b16 %v8170
        %v9693 = vunpack.c.l.b16 %v8171
        %v9694 = vunpack.c.h.b16 %v8171
        %v9695 = vunpack.c.l.b16 %v8172
        %v9696 = vunpack.c.h.b16 %v8172
        %v9697 = vunpack.c.l.b16 %v8173
        %v9698 = vunpack.c.h.b16 %v8173
        %v9699 = vunpack.c.l.b16 %v8174
        %v9700 = vunpack.c.h.b16 %v8174
        %v9701 = vunpack.c.l.b16 %v8175
        %v9702 = vunpack.c.h.b16 %v8175
        %v9703 = vunpack.c.l.b16 %v8176
        %v9704 = vunpack.c.h.b16 %v8176
        %v9705 = vunpack.c.l.b16 %v8177
        %v9706 = vunpack.c.h.b16 %v8177
        %v9707 = vunpack.c.l.b16 %v8178
        %v9708 = vunpack.c.h.b16 %v8178
        %v9709 = vunpack.c.l.b16 %v8179
        %v9710 = vunpack.c.h.b16 %v8179
        %v9711 = vunpack.c.l.b16 %v8180
        %v9712 = vunpack.c.h.b16 %v8180
        %v9713 = vunpack.c.l.b16 %v8181
        %v9714 = vunpack.c.h.b16 %v8181
        %v9715 = vunpack.c.l.b16 %v8182
        %v9716 = vunpack.c.h.b16 %v8182
        %v9717 = vunpack.c.l.b16 %v8183
        %v9718 = vunpack.c.h.b16 %v8183
        %v9719 = vunpack.c.l.b16 %v8184
        %v9720 = vunpack.c.h.b16 %v8184
        %v9721 = vunpack.c.l.b16 %v8185
        %v9722 = vunpack.c.h.b16 %v8185
        %v9723 = vunpack.c.l.b16 %v8186
        %v9724 = vunpack.c.h.b16 %v8186
        %v9725 = vunpack.c.l.b16 %v8187
        %v9726 = vunpack.c.h.b16 %v8187
        %v9727 = vunpack.c.l.b16 %v8188
        %v9728 = vunpack.c.h.b16 %v8188
        %v9729 = vunpack.c.l.b16 %v8189
        %v9730 = vunpack.c.h.b16 %v8189
        %v9731 = vunpack.c.l.b16 %v8190
        %v9732 = vunpack.c.h.b16 %v8190
        %v9733 = vunpack.c.l.b16 %v8191
        %v9734 = vunpack.c.h.b16 %v8191
        %v9735 = vunpack.c.l.b16 %v8192
        %v9736 = vunpack.c.h.b16 %v8192
        %v9737 = vunpack.c.l.b16 %v8193
        %v9738 = vunpack.c.h.b16 %v8193
        %v9739 = vunpack.c.l.b16 %v8194
        %v9740 = vunpack.c.h.b16 %v8194
        %v9741 = vunpack.c.l.b16 %v8195
        %v9742 = vunpack.c.h.b16 %v8195
        %v9743 = vunpack.c.l.b16 %v8196
        %v9744 = vunpack.c.h.b16 %v8196
        %v9745 = vunpack.c.l.b16 %v8197
        %v9746 = vunpack.c.h.b16 %v8197
        %v9747 = vunpack.c.l.b16 %v8198
        %v9748 = vunpack.c.h.b16 %v8198
        %v9749 = vunpack.c.l.b16 %v8199
        %v9750 = vunpack.c.h.b16 %v8199
        %v9751 = vunpack.c.l.b16 %v8200
        %v9752 = vunpack.c.h.b16 %v8200
        %v9753 = vunpack.c.l.b16 %v8201
        %v9754 = vunpack.c.h.b16 %v8201
        %v9755 = vunpack.c.l.b16 %v8202
        %v9756 = vunpack.c.h.b16 %v8202
        %v9757 = vpack.c.b16 %v8741, %v8733
        %v9758 = vpack.c.b16 %v8742, %v8734
        %v9759 = vpack.c.b16 %v8743, %v8735
        %v9760 = vpack.c.b16 %v8744, %v8736
        %v9761 = vpack.c.b16 %v8745, %v8737
        %v9762 = vpack.c.b16 %v8746, %v8738
        %v9763 = vpack.c.b16 %v8747, %v8739
        %v9764 = vpack.c.b16 %v8748, %v8740
        %v9765 = vpack.c.b16 %v8757, %v8749
        %v9766 = vpack.c.b16 %v8758, %v8750
        %v9767 = vpack.c.b16 %v8759, %v8751
        %v9768 = vpack.c.b16 %v8760, %v8752
        %v9769 = vpack.c.b16 %v8761, %v8753
        %v9770 = vpack.c.b16 %v8762, %v8754
        %v9771 = vpack.c.b16 %v8763, %v8755
        %v9772 = vpack.c.b16 %v8764, %v8756
        %v9773 = vpack.c.b16 %v8773, %v8765
        %v9774 = vpack.c.b16 %v8774, %v8766
        %v9775 = vpack.c.b16 %v8775, %v8767
        %v9776 = vpack.c.b16 %v8776, %v8768
        %v9777 = vpack.c.b16 %v8777, %v8769
        %v9778 = vpack.c.b16 %v8778, %v8770
        %v9779 = vpack.c.b16 %v8779, %v8771
        %v9780 = vpack.c.b16 %v8780, %v8772
        %v9781 = vpack.c.b16 %v8789, %v8781
        %v9782 = vpack.c.b16 %v8790, %v8782
        %v9783 = vpack.c.b16 %v8791, %v8783
        %v9784 = vpack.c.b16 %v8792, %v8784
        %v9785 = vpack.c.b16 %v8793, %v8785
        %v9786 = vpack.c.b16 %v8794, %v8786
        %v9787 = vpack.c.b16 %v8795, %v8787
        %v9788 = vpack.c.b16 %v8796, %v8788
        %v9789 = vpack.c.b16 %v8805, %v8797
        %v9790 = vpack.c.b16 %v8806, %v8798
        %v9791 = vpack.c.b16 %v8807, %v8799
        %v9792 = vpack.c.b16 %v8808, %v8800
        %v9793 = vpack.c.b16 %v8809, %v8801
        %v9794 = vpack.c.b16 %v8810, %v8802
        %v9795 = vpack.c.b16 %v8811, %v8803
        %v9796 = vpack.c.b16 %v8812, %v8804
        %v9797 = vpack.c.b16 %v8821, %v8813
        %v9798 = vpack.c.b16 %v8822, %v8814
        %v9799 = vpack.c.b16 %v8823, %v8815
        %v9800 = vpack.c.b16 %v8824, %v8816
        %v9801 = vpack.c.b16 %v8825, %v8817
        %v9802 = vpack.c.b16 %v8826, %v8818
        %v9803 = vpack.c.b16 %v8827, %v8819
        %v9804 = vpack.c.b16 %v8828, %v8820
        %v9805 = vpack.c.b16 %v8837, %v8829
        %v9806 = vpack.c.b16 %v8838, %v8830
        %v9807 = vpack.c.b16 %v8839, %v8831
        %v9808 = vpack.c.b16 %v8840, %v8832
        %v9809 = vpack.c.b16 %v8841, %v8833
        %v9810 = vpack.c.b16 %v8842, %v8834
        %v9811 = vpack.c.b16 %v8843, %v8835
        %v9812 = vpack.c.b16 %v8844, %v8836
        %v9813 = vpack.c.b16 %v8853, %v8845
        %v9814 = vpack.c.b16 %v8854, %v8846
        %v9815 = vpack.c.b16 %v8855, %v8847
        %v9816 = vpack.c.b16 %v8856, %v8848
        %v9817 = vpack.c.b16 %v8857, %v8849
        %v9818 = vpack.c.b16 %v8858, %v8850
        %v9819 = vpack.c.b16 %v8859, %v8851
        %v9820 = vpack.c.b16 %v8860, %v8852
        %v9821 = vpack.c.b16 %v8869, %v8861
        %v9822 = vpack.c.b16 %v8870, %v8862
        %v9823 = vpack.c.b16 %v8871, %v8863
        %v9824 = vpack.c.b16 %v8872, %v8864
        %v9825 = vpack.c.b16 %v8873, %v8865
        %v9826 = vpack.c.b16 %v8874, %v8866
        %v9827 = vpack.c.b16 %v8875, %v8867
        %v9828 = vpack.c.b16 %v8876, %v8868
        %v9829 = vpack.c.b16 %v8885, %v8877
        %v9830 = vpack.c.b16 %v8886, %v8878
        %v9831 = vpack.c.b16 %v8887, %v8879
        %v9832 = vpack.c.b16 %v8888, %v8880
        %v9833 = vpack.c.b16 %v8889, %v8881
        %v9834 = vpack.c.b16 %v8890, %v8882
        %v9835 = vpack.c.b16 %v8891, %v8883
        %v9836 = vpack.c.b16 %v8892, %v8884
        %v9837 = vpack.c.b16 %v8901, %v8893
        %v9838 = vpack.c.b16 %v8902, %v8894
        %v9839 = vpack.c.b16 %v8903, %v8895
        %v9840 = vpack.c.b16 %v8904, %v8896
        %v9841 = vpack.c.b16 %v8905, %v8897
        %v9842 = vpack.c.b16 %v8906, %v8898
        %v9843 = vpack.c.b16 %v8907, %v8899
        %v9844 = vpack.c.b16 %v8908, %v8900
        %v9845 = vpack.c.b16 %v8917, %v8909
        %v9846 = vpack.c.b16 %v8918, %v8910
        %v9847 = vpack.c.b16 %v8919, %v8911
        %v9848 = vpack.c.b16 %v8920, %v8912
        %v9849 = vpack.c.b16 %v8921, %v8913
        %v9850 = vpack.c.b16 %v8922, %v8914
        %v9851 = vpack.c.b16 %v8923, %v8915
        %v9852 = vpack.c.b16 %v8924, %v8916
        %v9853 = vpack.c.b16 %v8933, %v8925
        %v9854 = vpack.c.b16 %v8934, %v8926
        %v9855 = vpack.c.b16 %v8935, %v8927
        %v9856 = vpack.c.b16 %v8936, %v8928
        %v9857 = vpack.c.b16 %v8937, %v8929
        %v9858 = vpack.c.b16 %v8938, %v8930
        %v9859 = vpack.c.b16 %v8939, %v8931
        %v9860 = vpack.c.b16 %v8940, %v8932
        %v9861 = vpack.c.b16 %v8949, %v8941
        %v9862 = vpack.c.b16 %v8950, %v8942
        %v9863 = vpack.c.b16 %v8951, %v8943
        %v9864 = vpack.c.b16 %v8952, %v8944
        %v9865 = vpack.c.b16 %v8953, %v8945
        %v9866 = vpack.c.b16 %v8954, %v8946
        %v9867 = vpack.c.b16 %v8955, %v8947
        %v9868 = vpack.c.b16 %v8956, %v8948
        %v9869 = vpack.c.b16 %v8965, %v8957
        %v9870 = vpack.c.b16 %v8966, %v8958
        %v9871 = vpack.c.b16 %v8967, %v8959
        %v9872 = vpack.c.b16 %v8968, %v8960
        %v9873 = vpack.c.b16 %v8969, %v8961
        %v9874 = vpack.c.b16 %v8970, %v8962
        %v9875 = vpack.c.b16 %v8971, %v8963
        %v9876 = vpack.c.b16 %v8972, %v8964
        %v9877 = vpack.c.b16 %v8981, %v8973
        %v9878 = vpack.c.b16 %v8982, %v8974
        %v9879 = vpack.c.b16 %v8983, %v8975
        %v9880 = vpack.c.b16 %v8984, %v8976
        %v9881 = vpack.c.b16 %v8985, %v8977
        %v9882 = vpack.c.b16 %v8986, %v8978
        %v9883 = vpack.c.b16 %v8987, %v8979
        %v9884 = vpack.c.b16 %v8988, %v8980
        %v9885 = vpack.c.b16 %v8997, %v8989
        %v9886 = vpack.c.b16 %v8998, %v8990
        %v9887 = vpack.c.b16 %v8999, %v8991
        %v9888 = vpack.c.b16 %v9000, %v8992
        %v9889 = vpack.c.b16 %v9001, %v8993
        %v9890 = vpack.c.b16 %v9002, %v8994
        %v9891 = vpack.c.b16 %v9003, %v8995
        %v9892 = vpack.c.b16 %v9004, %v8996
        %v9893 = vpack.c.b16 %v9013, %v9005
        %v9894 = vpack.c.b16 %v9014, %v9006
        %v9895 = vpack.c.b16 %v9015, %v9007
        %v9896 = vpack.c.b16 %v9016, %v9008
        %v9897 = vpack.c.b16 %v9017, %v9009
        %v9898 = vpack.c.b16 %v9018, %v9010
        %v9899 = vpack.c.b16 %v9019, %v9011
        %v9900 = vpack.c.b16 %v9020, %v9012
        %v9901 = vpack.c.b16 %v9029, %v9021
        %v9902 = vpack.c.b16 %v9030, %v9022
        %v9903 = vpack.c.b16 %v9031, %v9023
        %v9904 = vpack.c.b16 %v9032, %v9024
        %v9905 = vpack.c.b16 %v9033, %v9025
        %v9906 = vpack.c.b16 %v9034, %v9026
        %v9907 = vpack.c.b16 %v9035, %v9027
        %v9908 = vpack.c.b16 %v9036, %v9028
        %v9909 = vpack.c.b16 %v9045, %v9037
        %v9910 = vpack.c.b16 %v9046, %v9038
        %v9911 = vpack.c.b16 %v9047, %v9039
        %v9912 = vpack.c.b16 %v9048, %v9040
        %v9913 = vpack.c.b16 %v9049, %v9041
        %v9914 = vpack.c.b16 %v9050, %v9042
        %v9915 = vpack.c.b16 %v9051, %v9043
        %v9916 = vpack.c.b16 %v9052, %v9044
        %v9917 = vpack.c.b16 %v9061, %v9053
        %v9918 = vpack.c.b16 %v9062, %v9054
        %v9919 = vpack.c.b16 %v9063, %v9055
        %v9920 = vpack.c.b16 %v9064, %v9056
        %v9921 = vpack.c.b16 %v9065, %v9057
        %v9922 = vpack.c.b16 %v9066, %v9058
        %v9923 = vpack.c.b16 %v9067, %v9059
        %v9924 = vpack.c.b16 %v9068, %v9060
        %v9925 = vpack.c.b16 %v9077, %v9069
        %v9926 = vpack.c.b16 %v9078, %v9070
        %v9927 = vpack.c.b16 %v9079, %v9071
        %v9928 = vpack.c.b16 %v9080, %v9072
        %v9929 = vpack.c.b16 %v9081, %v9073
        %v9930 = vpack.c.b16 %v9082, %v9074
        %v9931 = vpack.c.b16 %v9083, %v9075
        %v9932 = vpack.c.b16 %v9084, %v9076
        %v9933 = vpack.c.b16 %v9093, %v9085
        %v9934 = vpack.c.b16 %v9094, %v9086
        %v9935 = vpack.c.b16 %v9095, %v9087
        %v9936 = vpack.c.b16 %v9096, %v9088
        %v9937 = vpack.c.b16 %v9097, %v9089
        %v9938 = vpack.c.b16 %v9098, %v9090
        %v9939 = vpack.c.b16 %v9099, %v9091
        %v9940 = vpack.c.b16 %v9100, %v9092
        %v9941 = vpack.c.b16 %v9109, %v9101
        %v9942 = vpack.c.b16 %v9110, %v9102
        %v9943 = vpack.c.b16 %v9111, %v9103
        %v9944 = vpack.c.b16 %v9112, %v9104
        %v9945 = vpack.c.b16 %v9113, %v9105
        %v9946 = vpack.c.b16 %v9114, %v9106
        %v9947 = vpack.c.b16 %v9115, %v9107
        %v9948 = vpack.c.b16 %v9116, %v9108
        %v9949 = vpack.c.b16 %v9125, %v9117
        %v9950 = vpack.c.b16 %v9126, %v9118
        %v9951 = vpack.c.b16 %v9127, %v9119
        %v9952 = vpack.c.b16 %v9128, %v9120
        %v9953 = vpack.c.b16 %v9129, %v9121
        %v9954 = vpack.c.b16 %v9130, %v9122
        %v9955 = vpack.c.b16 %v9131, %v9123
        %v9956 = vpack.c.b16 %v9132, %v9124
        %v9957 = vpack.c.b16 %v9141, %v9133
        %v9958 = vpack.c.b16 %v9142, %v9134
        %v9959 = vpack.c.b16 %v9143, %v9135
        %v9960 = vpack.c.b16 %v9144, %v9136
        %v9961 = vpack.c.b16 %v9145, %v9137
        %v9962 = vpack.c.b16 %v9146, %v9138
        %v9963 = vpack.c.b16 %v9147, %v9139
        %v9964 = vpack.c.b16 %v9148, %v9140
        %v9965 = vpack.c.b16 %v9157, %v9149
        %v9966 = vpack.c.b16 %v9158, %v9150
        %v9967 = vpack.c.b16 %v9159, %v9151
        %v9968 = vpack.c.b16 %v9160, %v9152
        %v9969 = vpack.c.b16 %v9161, %v9153
        %v9970 = vpack.c.b16 %v9162, %v9154
        %v9971 = vpack.c.b16 %v9163, %v9155
        %v9972 = vpack.c.b16 %v9164, %v9156
        %v9973 = vpack.c.b16 %v9173, %v9165
        %v9974 = vpack.c.b16 %v9174, %v9166
        %v9975 = vpack.c.b16 %v9175, %v9167
        %v9976 = vpack.c.b16 %v9176, %v9168
        %v9977 = vpack.c.b16 %v9177, %v9169
        %v9978 = vpack.c.b16 %v9178, %v9170
        %v9979 = vpack.c.b16 %v9179, %v9171
        %v9980 = vpack.c.b16 %v9180, %v9172
        %v9981 = vpack.c.b16 %v9189, %v9181
        %v9982 = vpack.c.b16 %v9190, %v9182
        %v9983 = vpack.c.b16 %v9191, %v9183
        %v9984 = vpack.c.b16 %v9192, %v9184
        %v9985 = vpack.c.b16 %v9193, %v9185
        %v9986 = vpack.c.b16 %v9194, %v9186
        %v9987 = vpack.c.b16 %v9195, %v9187
        %v9988 = vpack.c.b16 %v9196, %v9188
        %v9989 = vpack.c.b16 %v9205, %v9197
        %v9990 = vpack.c.b16 %v9206, %v9198
        %v9991 = vpack.c.b16 %v9207, %v9199
        %v9992 = vpack.c.b16 %v9208, %v9200
        %v9993 = vpack.c.b16 %v9209, %v9201
        %v9994 = vpack.c.b16 %v9210, %v9202
        %v9995 = vpack.c.b16 %v9211, %v9203
        %v9996 = vpack.c.b16 %v9212, %v9204
        %v9997 = vpack.c.b16 %v9221, %v9213
        %v9998 = vpack.c.b16 %v9222, %v9214
        %v9999 = vpack.c.b16 %v9223, %v9215
        %v10000 = vpack.c.b16 %v9224, %v9216
        %v10001 = vpack.c.b16 %v9225, %v9217
        %v10002 = vpack.c.b16 %v9226, %v9218
        %v10003 = vpack.c.b16 %v9227, %v9219
        %v10004 = vpack.c.b16 %v9228, %v9220
        %v10005 = vpack.c.b16 %v9237, %v9229
        %v10006 = vpack.c.b16 %v9238, %v9230
        %v10007 = vpack.c.b16 %v9239, %v9231
        %v10008 = vpack.c.b16 %v9240, %v9232
        %v10009 = vpack.c.b16 %v9241, %v9233
        %v10010 = vpack.c.b16 %v9242, %v9234
        %v10011 = vpack.c.b16 %v9243, %v9235
        %v10012 = vpack.c.b16 %v9244, %v9236
        %v10013 = vpack.c.b16 %v9253, %v9245
        %v10014 = vpack.c.b16 %v9254, %v9246
        %v10015 = vpack.c.b16 %v9255, %v9247
        %v10016 = vpack.c.b16 %v9256, %v9248
        %v10017 = vpack.c.b16 %v9257, %v9249
        %v10018 = vpack.c.b16 %v9258, %v9250
        %v10019 = vpack.c.b16 %v9259, %v9251
        %v10020 = vpack.c.b16 %v9260, %v9252
        %v10021 = vpack.c.b16 %v9269, %v9261
        %v10022 = vpack.c.b16 %v9270, %v9262
        %v10023 = vpack.c.b16 %v9271, %v9263
        %v10024 = vpack.c.b16 %v9272, %v9264
        %v10025 = vpack.c.b16 %v9273, %v9265
        %v10026 = vpack.c.b16 %v9274, %v9266
        %v10027 = vpack.c.b16 %v9275, %v9267
        %v10028 = vpack.c.b16 %v9276, %v9268
        %v10029 = vpack.c.b16 %v9285, %v9277
        %v10030 = vpack.c.b16 %v9286, %v9278
        %v10031 = vpack.c.b16 %v9287, %v9279
        %v10032 = vpack.c.b16 %v9288, %v9280
        %v10033 = vpack.c.b16 %v9289, %v9281
        %v10034 = vpack.c.b16 %v9290, %v9282
        %v10035 = vpack.c.b16 %v9291, %v9283
        %v10036 = vpack.c.b16 %v9292, %v9284
        %v10037 = vpack.c.b16 %v9301, %v9293
        %v10038 = vpack.c.b16 %v9302, %v9294
        %v10039 = vpack.c.b16 %v9303, %v9295
        %v10040 = vpack.c.b16 %v9304, %v9296
        %v10041 = vpack.c.b16 %v9305, %v9297
        %v10042 = vpack.c.b16 %v9306, %v9298
        %v10043 = vpack.c.b16 %v9307, %v9299
        %v10044 = vpack.c.b16 %v9308, %v9300
        %v10045 = vpack.c.b16 %v9317, %v9309
        %v10046 = vpack.c.b16 %v9318, %v9310
        %v10047 = vpack.c.b16 %v9319, %v9311
        %v10048 = vpack.c.b16 %v9320, %v9312
        %v10049 = vpack.c.b16 %v9321, %v9313
        %v10050 = vpack.c.b16 %v9322, %v9314
        %v10051 = vpack.c.b16 %v9323, %v9315
        %v10052 = vpack.c.b16 %v9324, %v9316
        %v10053 = vpack.c.b16 %v9333, %v9325
        %v10054 = vpack.c.b16 %v9334, %v9326
        %v10055 = vpack.c.b16 %v9335, %v9327
        %v10056 = vpack.c.b16 %v9336, %v9328
        %v10057 = vpack.c.b16 %v9337, %v9329
        %v10058 = vpack.c.b16 %v9338, %v9330
        %v10059 = vpack.c.b16 %v9339, %v9331
        %v10060 = vpack.c.b16 %v9340, %v9332
        %v10061 = vpack.c.b16 %v9349, %v9341
        %v10062 = vpack.c.b16 %v9350, %v9342
        %v10063 = vpack.c.b16 %v9351, %v9343
        %v10064 = vpack.c.b16 %v9352, %v9344
        %v10065 = vpack.c.b16 %v9353, %v9345
        %v10066 = vpack.c.b16 %v9354, %v9346
        %v10067 = vpack.c.b16 %v9355, %v9347
        %v10068 = vpack.c.b16 %v9356, %v9348
        %v10069 = vpack.c.b16 %v9365, %v9357
        %v10070 = vpack.c.b16 %v9366, %v9358
        %v10071 = vpack.c.b16 %v9367, %v9359
        %v10072 = vpack.c.b16 %v9368, %v9360
        %v10073 = vpack.c.b16 %v9369, %v9361
        %v10074 = vpack.c.b16 %v9370, %v9362
        %v10075 = vpack.c.b16 %v9371, %v9363
        %v10076 = vpack.c.b16 %v9372, %v9364
        %v10077 = vpack.c.b16 %v9381, %v9373
        %v10078 = vpack.c.b16 %v9382, %v9374
        %v10079 = vpack.c.b16 %v9383, %v9375
        %v10080 = vpack.c.b16 %v9384, %v9376
        %v10081 = vpack.c.b16 %v9385, %v9377
        %v10082 = vpack.c.b16 %v9386, %v9378
        %v10083 = vpack.c.b16 %v9387, %v9379
        %v10084 = vpack.c.b16 %v9388, %v9380
        %v10085 = vpack.c.b16 %v9397, %v9389
        %v10086 = vpack.c.b16 %v9398, %v9390
        %v10087 = vpack.c.b16 %v9399, %v9391
        %v10088 = vpack.c.b16 %v9400, %v9392
        %v10089 = vpack.c.b16 %v9401, %v9393
        %v10090 = vpack.c.b16 %v9402, %v9394
        %v10091 = vpack.c.b16 %v9403, %v9395
        %v10092 = vpack.c.b16 %v9404, %v9396
        %v10093 = vpack.c.b16 %v9413, %v9405
        %v10094 = vpack.c.b16 %v9414, %v9406
        %v10095 = vpack.c.b16 %v9415, %v9407
        %v10096 = vpack.c.b16 %v9416, %v9408
        %v10097 = vpack.c.b16 %v9417, %v9409
        %v10098 = vpack.c.b16 %v9418, %v9410
        %v10099 = vpack.c.b16 %v9419, %v9411
        %v10100 = vpack.c.b16 %v9420, %v9412
        %v10101 = vpack.c.b16 %v9429, %v9421
        %v10102 = vpack.c.b16 %v9430, %v9422
        %v10103 = vpack.c.b16 %v9431, %v9423
        %v10104 = vpack.c.b16 %v9432, %v9424
        %v10105 = vpack.c.b16 %v9433, %v9425
        %v10106 = vpack.c.b16 %v9434, %v9426
        %v10107 = vpack.c.b16 %v9435, %v9427
        %v10108 = vpack.c.b16 %v9436, %v9428
        %v10109 = vpack.c.b16 %v9445, %v9437
        %v10110 = vpack.c.b16 %v9446, %v9438
        %v10111 = vpack.c.b16 %v9447, %v9439
        %v10112 = vpack.c.b16 %v9448, %v9440
        %v10113 = vpack.c.b16 %v9449, %v9441
        %v10114 = vpack.c.b16 %v9450, %v9442
        %v10115 = vpack.c.b16 %v9451, %v9443
        %v10116 = vpack.c.b16 %v9452, %v9444
        %v10117 = vpack.c.b16 %v9461, %v9453
        %v10118 = vpack.c.b16 %v9462, %v9454
        %v10119 = vpack.c.b16 %v9463, %v9455
        %v10120 = vpack.c.b16 %v9464, %v9456
        %v10121 = vpack.c.b16 %v9465, %v9457
        %v10122 = vpack.c.b16 %v9466, %v9458
        %v10123 = vpack.c.b16 %v9467, %v9459
        %v10124 = vpack.c.b16 %v9468, %v9460
        %v10125 = vpack.c.b16 %v9477, %v9469
        %v10126 = vpack.c.b16 %v9478, %v9470
        %v10127 = vpack.c.b16 %v9479, %v9471
        %v10128 = vpack.c.b16 %v9480, %v9472
        %v10129 = vpack.c.b16 %v9481, %v9473
        %v10130 = vpack.c.b16 %v9482, %v9474
        %v10131 = vpack.c.b16 %v9483, %v9475
        %v10132 = vpack.c.b16 %v9484, %v9476
        %v10133 = vpack.c.b16 %v9493, %v9485
        %v10134 = vpack.c.b16 %v9494, %v9486
        %v10135 = vpack.c.b16 %v9495, %v9487
        %v10136 = vpack.c.b16 %v9496, %v9488
        %v10137 = vpack.c.b16 %v9497, %v9489
        %v10138 = vpack.c.b16 %v9498, %v9490
        %v10139 = vpack.c.b16 %v9499, %v9491
        %v10140 = vpack.c.b16 %v9500, %v9492
        %v10141 = vpack.c.b16 %v9509, %v9501
        %v10142 = vpack.c.b16 %v9510, %v9502
        %v10143 = vpack.c.b16 %v9511, %v9503
        %v10144 = vpack.c.b16 %v9512, %v9504
        %v10145 = vpack.c.b16 %v9513, %v9505
        %v10146 = vpack.c.b16 %v9514, %v9506
        %v10147 = vpack.c.b16 %v9515, %v9507
        %v10148 = vpack.c.b16 %v9516, %v9508
        %v10149 = vpack.c.b16 %v9525, %v9517
        %v10150 = vpack.c.b16 %v9526, %v9518
        %v10151 = vpack.c.b16 %v9527, %v9519
        %v10152 = vpack.c.b16 %v9528, %v9520
        %v10153 = vpack.c.b16 %v9529, %v9521
        %v10154 = vpack.c.b16 %v9530, %v9522
        %v10155 = vpack.c.b16 %v9531, %v9523
        %v10156 = vpack.c.b16 %v9532, %v9524
        %v10157 = vpack.c.b16 %v9541, %v9533
        %v10158 = vpack.c.b16 %v9542, %v9534
        %v10159 = vpack.c.b16 %v9543, %v9535
        %v10160 = vpack.c.b16 %v9544, %v9536
        %v10161 = vpack.c.b16 %v9545, %v9537
        %v10162 = vpack.c.b16 %v9546, %v9538
        %v10163 = vpack.c.b16 %v9547, %v9539
        %v10164 = vpack.c.b16 %v9548, %v9540
        %v10165 = vpack.c.b16 %v9557, %v9549
        %v10166 = vpack.c.b16 %v9558, %v9550
        %v10167 = vpack.c.b16 %v9559, %v9551
        %v10168 = vpack.c.b16 %v9560, %v9552
        %v10169 = vpack.c.b16 %v9561, %v9553
        %v10170 = vpack.c.b16 %v9562, %v9554
        %v10171 = vpack.c.b16 %v9563, %v9555
        %v10172 = vpack.c.b16 %v9564, %v9556
        %v10173 = vpack.c.b16 %v9573, %v9565
        %v10174 = vpack.c.b16 %v9574, %v9566
        %v10175 = vpack.c.b16 %v9575, %v9567
        %v10176 = vpack.c.b16 %v9576, %v9568
        %v10177 = vpack.c.b16 %v9577, %v9569
        %v10178 = vpack.c.b16 %v9578, %v9570
        %v10179 = vpack.c.b16 %v9579, %v9571
        %v10180 = vpack.c.b16 %v9580, %v9572
        %v10181 = vpack.c.b16 %v9589, %v9581
        %v10182 = vpack.c.b16 %v9590, %v9582
        %v10183 = vpack.c.b16 %v9591, %v9583
        %v10184 = vpack.c.b16 %v9592, %v9584
        %v10185 = vpack.c.b16 %v9593, %v9585
        %v10186 = vpack.c.b16 %v9594, %v9586
        %v10187 = vpack.c.b16 %v9595, %v9587
        %v10188 = vpack.c.b16 %v9596, %v9588
        %v10189 = vpack.c.b16 %v9605, %v9597
        %v10190 = vpack.c.b16 %v9606, %v9598
        %v10191 = vpack.c.b16 %v9607, %v9599
        %v10192 = vpack.c.b16 %v9608, %v9600
        %v10193 = vpack.c.b16 %v9609, %v9601
        %v10194 = vpack.c.b16 %v9610, %v9602
        %v10195 = vpack.c.b16 %v9611, %v9603
        %v10196 = vpack.c.b16 %v9612, %v9604
        %v10197 = vpack.c.b16 %v9621, %v9613
        %v10198 = vpack.c.b16 %v9622, %v9614
        %v10199 = vpack.c.b16 %v9623, %v9615
        %v10200 = vpack.c.b16 %v9624, %v9616
        %v10201 = vpack.c.b16 %v9625, %v9617
        %v10202 = vpack.c.b16 %v9626, %v9618
        %v10203 = vpack.c.b16 %v9627, %v9619
        %v10204 = vpack.c.b16 %v9628, %v9620
        %v10205 = vpack.c.b16 %v9637, %v9629
        %v10206 = vpack.c.b16 %v9638, %v9630
        %v10207 = vpack.c.b16 %v9639, %v9631
        %v10208 = vpack.c.b16 %v9640, %v9632
        %v10209 = vpack.c.b16 %v9641, %v9633
        %v10210 = vpack.c.b16 %v9642, %v9634
        %v10211 = vpack.c.b16 %v9643, %v9635
        %v10212 = vpack.c.b16 %v9644, %v9636
        %v10213 = vpack.c.b16 %v9653, %v9645
        %v10214 = vpack.c.b16 %v9654, %v9646
        %v10215 = vpack.c.b16 %v9655, %v9647
        %v10216 = vpack.c.b16 %v9656, %v9648
        %v10217 = vpack.c.b16 %v9657, %v9649
        %v10218 = vpack.c.b16 %v9658, %v9650
        %v10219 = vpack.c.b16 %v9659, %v9651
        %v10220 = vpack.c.b16 %v9660, %v9652
        %v10221 = vpack.c.b16 %v9669, %v9661
        %v10222 = vpack.c.b16 %v9670, %v9662
        %v10223 = vpack.c.b16 %v9671, %v9663
        %v10224 = vpack.c.b16 %v9672, %v9664
        %v10225 = vpack.c.b16 %v9673, %v9665
        %v10226 = vpack.c.b16 %v9674, %v9666
        %v10227 = vpack.c.b16 %v9675, %v9667
        %v10228 = vpack.c.b16 %v9676, %v9668
        %v10229 = vpack.c.b16 %v9685, %v9677
        %v10230 = vpack.c.b16 %v9686, %v9678
        %v10231 = vpack.c.b16 %v9687, %v9679
        %v10232 = vpack.c.b16 %v9688, %v9680
        %v10233 = vpack.c.b16 %v9689, %v9681
        %v10234 = vpack.c.b16 %v9690, %v9682
        %v10235 = vpack.c.b16 %v9691, %v9683
        %v10236 = vpack.c.b16 %v9692, %v9684
        %v10237 = vpack.c.b16 %v9701, %v9693
        %v10238 = vpack.c.b16 %v9702, %v9694
        %v10239 = vpack.c.b16 %v9703, %v9695
        %v10240 = vpack.c.b16 %v9704, %v9696
        %v10241 = vpack.c.b16 %v9705, %v9697
        %v10242 = vpack.c.b16 %v9706, %v9698
        %v10243 = vpack.c.b16 %v9707, %v9699
        %v10244 = vpack.c.b16 %v9708, %v9700
        %v10245 = vpack.c.b16 %v9717, %v9709
        %v10246 = vpack.c.b16 %v9718, %v9710
        %v10247 = vpack.c.b16 %v9719, %v9711
        %v10248 = vpack.c.b16 %v9720, %v9712
        %v10249 = vpack.c.b16 %v9721, %v9713
        %v10250 = vpack.c.b16 %v9722, %v9714
        %v10251 = vpack.c.b16 %v9723, %v9715
        %v10252 = vpack.c.b16 %v9724, %v9716
        %v10253 = vpack.c.b16 %v9733, %v9725
        %v10254 = vpack.c.b16 %v9734, %v9726
        %v10255 = vpack.c.b16 %v9735, %v9727
        %v10256 = vpack.c.b16 %v9736, %v9728
        %v10257 = vpack.c.b16 %v9737, %v9729
        %v10258 = vpack.c.b16 %v9738, %v9730
        %v10259 = vpack.c.b16 %v9739, %v9731
        %v10260 = vpack.c.b16 %v9740, %v9732
        %v10261 = vpack.c.b16 %v9749, %v9741
        %v10262 = vpack.c.b16 %v9750, %v9742
        %v10263 = vpack.c.b16 %v9751, %v9743
        %v10264 = vpack.c.b16 %v9752, %v9744
        %v10265 = vpack.c.b16 %v9753, %v9745
        %v10266 = vpack.c.b16 %v9754, %v9746
        %v10267 = vpack.c.b16 %v9755, %v9747
        %v10268 = vpack.c.b16 %v9756, %v9748
        %10781 = vmatpush.bf16.msra.mxu0 %v9813
        %10782 = vmatpush.bf16.msra.mxu0 %v9805
        %10783 = vmatpush.bf16.msra.mxu0 %v9797
        %10784 = vmatpush.bf16.msra.mxu0 %v9789
        %10785 = vmatpush.bf16.msra.mxu0 %v9781
        %10786 = vmatpush.bf16.msra.mxu0 %v9773
        %10787 = vmatpush.bf16.msra.mxu0 %v9765
        %10788 = vmatpush.bf16.msra.mxu0 %v9757
        %10789 = vmatmul.bf16.gmra.mxu0 %v7683
        %v10790 = vpop.f32.mrf.mxu0
        %v10791 = vadd.f32 %v8205, %v10790
        %v10792 = vpop.f32.mrf.mxu0
        %10793 = vdwg.mxu0
        %10794 = vmatpush.bf16.msra.mxu0 %v9877
        %10795 = vmatpush.bf16.msra.mxu0 %v9869
        %10796 = vmatpush.bf16.msra.mxu0 %v9861
        %10797 = vmatpush.bf16.msra.mxu0 %v9853
        %10798 = vmatpush.bf16.msra.mxu0 %v9845
        %10799 = vmatpush.bf16.msra.mxu0 %v9837
        %10800 = vmatpush.bf16.msra.mxu0 %v9829
        %10801 = vmatpush.bf16.msra.mxu0 %v9821
        %10802 = vmatmul.bf16.gmra.mxu0 %v7684
        %v10803 = vpop.f32.mrf.mxu0
        %v10804 = vadd.f32 %v10791, %v10803
        %v10805 = vpop.f32.mrf.mxu0
        %10806 = vdwg.mxu0
        %10807 = vmatpush.bf16.msra.mxu0 %v9941
        %10808 = vmatpush.bf16.msra.mxu0 %v9933
        %10809 = vmatpush.bf16.msra.mxu0 %v9925
        %10810 = vmatpush.bf16.msra.mxu0 %v9917
        %10811 = vmatpush.bf16.msra.mxu0 %v9909
        %10812 = vmatpush.bf16.msra.mxu0 %v9901
        %10813 = vmatpush.bf16.msra.mxu0 %v9893
        %10814 = vmatpush.bf16.msra.mxu0 %v9885
        %10815 = vmatmul.bf16.gmra.mxu0 %v7685
        %v10816 = vpop.f32.mrf.mxu0
        %v10817 = vadd.f32 %v10804, %v10816
        %v10818 = vpop.f32.mrf.mxu0
        %10819 = vdwg.mxu0
        %10820 = vmatpush.bf16.msra.mxu0 %v10005
        %10821 = vmatpush.bf16.msra.mxu0 %v9997
        %10822 = vmatpush.bf16.msra.mxu0 %v9989
        %10823 = vmatpush.bf16.msra.mxu0 %v9981
        %10824 = vmatpush.bf16.msra.mxu0 %v9973
        %10825 = vmatpush.bf16.msra.mxu0 %v9965
        %10826 = vmatpush.bf16.msra.mxu0 %v9957
        %10827 = vmatpush.bf16.msra.mxu0 %v9949
        %10828 = vmatmul.bf16.gmra.mxu0 %v7686
        %v10829 = vpop.f32.mrf.mxu0
        %v10830 = vadd.f32 %v10817, %v10829
        %v10831 = vpop.f32.mrf.mxu0
        %10832 = vdwg.mxu0
        %10833 = vmatpush.bf16.msra.mxu0 %v10069
        %10834 = vmatpush.bf16.msra.mxu0 %v10061
        %10835 = vmatpush.bf16.msra.mxu0 %v10053
        %10836 = vmatpush.bf16.msra.mxu0 %v10045
        %10837 = vmatpush.bf16.msra.mxu0 %v10037
        %10838 = vmatpush.bf16.msra.mxu0 %v10029
        %10839 = vmatpush.bf16.msra.mxu0 %v10021
        %10840 = vmatpush.bf16.msra.mxu0 %v10013
        %10841 = vmatmul.bf16.gmra.mxu0 %v7687
        %v10842 = vpop.f32.mrf.mxu0
        %v10843 = vadd.f32 %v10830, %v10842
        %v10844 = vpop.f32.mrf.mxu0
        %10845 = vdwg.mxu0
        %10846 = vmatpush.bf16.msra.mxu0 %v10133
        %10847 = vmatpush.bf16.msra.mxu0 %v10125
        %10848 = vmatpush.bf16.msra.mxu0 %v10117
        %10849 = vmatpush.bf16.msra.mxu0 %v10109
        %10850 = vmatpush.bf16.msra.mxu0 %v10101
        %10851 = vmatpush.bf16.msra.mxu0 %v10093
        %10852 = vmatpush.bf16.msra.mxu0 %v10085
        %10853 = vmatpush.bf16.msra.mxu0 %v10077
        %10854 = vmatmul.bf16.gmra.mxu0 %v7688
        %v10855 = vpop.f32.mrf.mxu0
        %v10856 = vadd.f32 %v10843, %v10855
        %v10857 = vpop.f32.mrf.mxu0
        %10858 = vdwg.mxu0
        %10859 = vmatpush.bf16.msra.mxu0 %v10197
        %10860 = vmatpush.bf16.msra.mxu0 %v10189
        %10861 = vmatpush.bf16.msra.mxu0 %v10181
        %10862 = vmatpush.bf16.msra.mxu0 %v10173
        %10863 = vmatpush.bf16.msra.mxu0 %v10165
        %10864 = vmatpush.bf16.msra.mxu0 %v10157
        %10865 = vmatpush.bf16.msra.mxu0 %v10149
        %10866 = vmatpush.bf16.msra.mxu0 %v10141
        %10867 = vmatmul.bf16.gmra.mxu0 %v7689
        %v10868 = vpop.f32.mrf.mxu0
        %v10869 = vadd.f32 %v10856, %v10868
        %v10870 = vpop.f32.mrf.mxu0
        %10871 = vdwg.mxu0
        %10872 = vmatpush.bf16.msra.mxu0 %v10261
        %10873 = vmatpush.bf16.msra.mxu0 %v10253
        %10874 = vmatpush.bf16.msra.mxu0 %v10245
        %10875 = vmatpush.bf16.msra.mxu0 %v10237
        %10876 = vmatpush.bf16.msra.mxu0 %v10229
        %10877 = vmatpush.bf16.msra.mxu0 %v10221
        %10878 = vmatpush.bf16.msra.mxu0 %v10213
        %10879 = vmatpush.bf16.msra.mxu0 %v10205
        %10880 = vmatmul.bf16.gmra.mxu0 %v7690
        %v10881 = vpop.f32.mrf.mxu0
        %v10882 = vadd.f32 %v10869, %v10881
        %v10883 = vpop.f32.mrf.mxu0
        %10884 = vdwg.mxu0
        %10885 = vmatpush.bf16.msra.mxu0 %v9814
        %10886 = vmatpush.bf16.msra.mxu0 %v9806
        %10887 = vmatpush.bf16.msra.mxu0 %v9798
        %10888 = vmatpush.bf16.msra.mxu0 %v9790
        %10889 = vmatpush.bf16.msra.mxu0 %v9782
        %10890 = vmatpush.bf16.msra.mxu0 %v9774
        %10891 = vmatpush.bf16.msra.mxu0 %v9766
        %10892 = vmatpush.bf16.msra.mxu0 %v9758
        %10893 = vmatmul.bf16.gmra.mxu0 %v7683
        %v10894 = vpop.f32.mrf.mxu0
        %v10895 = vadd.f32 %v8206, %v10894
        %v10896 = vpop.f32.mrf.mxu0
        %10897 = vdwg.mxu0
        %10898 = vmatpush.bf16.msra.mxu0 %v9878
        %10899 = vmatpush.bf16.msra.mxu0 %v9870
        %10900 = vmatpush.bf16.msra.mxu0 %v9862
        %10901 = vmatpush.bf16.msra.mxu0 %v9854
        %10902 = vmatpush.bf16.msra.mxu0 %v9846
        %10903 = vmatpush.bf16.msra.mxu0 %v9838
        %10904 = vmatpush.bf16.msra.mxu0 %v9830
        %10905 = vmatpush.bf16.msra.mxu0 %v9822
        %10906 = vmatmul.bf16.gmra.mxu0 %v7684
        %v10907 = vpop.f32.mrf.mxu0
        %v10908 = vadd.f32 %v10895, %v10907
        %v10909 = vpop.f32.mrf.mxu0
        %10910 = vdwg.mxu0
        %10911 = vmatpush.bf16.msra.mxu0 %v9942
        %10912 = vmatpush.bf16.msra.mxu0 %v9934
        %10913 = vmatpush.bf16.msra.mxu0 %v9926
        %10914 = vmatpush.bf16.msra.mxu0 %v9918
        %10915 = vmatpush.bf16.msra.mxu0 %v9910
        %10916 = vmatpush.bf16.msra.mxu0 %v9902
        %10917 = vmatpush.bf16.msra.mxu0 %v9894
        %10918 = vmatpush.bf16.msra.mxu0 %v9886
        %10919 = vmatmul.bf16.gmra.mxu0 %v7685
        %v10920 = vpop.f32.mrf.mxu0
        %v10921 = vadd.f32 %v10908, %v10920
        %v10922 = vpop.f32.mrf.mxu0
        %10923 = vdwg.mxu0
        %10924 = vmatpush.bf16.msra.mxu0 %v10006
        %10925 = vmatpush.bf16.msra.mxu0 %v9998
        %10926 = vmatpush.bf16.msra.mxu0 %v9990
        %10927 = vmatpush.bf16.msra.mxu0 %v9982
        %10928 = vmatpush.bf16.msra.mxu0 %v9974
        %10929 = vmatpush.bf16.msra.mxu0 %v9966
        %10930 = vmatpush.bf16.msra.mxu0 %v9958
        %10931 = vmatpush.bf16.msra.mxu0 %v9950
        %10932 = vmatmul.bf16.gmra.mxu0 %v7686
        %v10933 = vpop.f32.mrf.mxu0
        %v10934 = vadd.f32 %v10921, %v10933
        %v10935 = vpop.f32.mrf.mxu0
        %10936 = vdwg.mxu0
        %10937 = vmatpush.bf16.msra.mxu0 %v10070
        %10938 = vmatpush.bf16.msra.mxu0 %v10062
        %10939 = vmatpush.bf16.msra.mxu0 %v10054
        %10940 = vmatpush.bf16.msra.mxu0 %v10046
        %10941 = vmatpush.bf16.msra.mxu0 %v10038
        %10942 = vmatpush.bf16.msra.mxu0 %v10030
        %10943 = vmatpush.bf16.msra.mxu0 %v10022
        %10944 = vmatpush.bf16.msra.mxu0 %v10014
        %10945 = vmatmul.bf16.gmra.mxu0 %v7687
        %v10946 = vpop.f32.mrf.mxu0
        %v10947 = vadd.f32 %v10934, %v10946
        %v10948 = vpop.f32.mrf.mxu0
        %10949 = vdwg.mxu0
        %10950 = vmatpush.bf16.msra.mxu0 %v10134
        %10951 = vmatpush.bf16.msra.mxu0 %v10126
        %10952 = vmatpush.bf16.msra.mxu0 %v10118
        %10953 = vmatpush.bf16.msra.mxu0 %v10110
        %10954 = vmatpush.bf16.msra.mxu0 %v10102
        %10955 = vmatpush.bf16.msra.mxu0 %v10094
        %10956 = vmatpush.bf16.msra.mxu0 %v10086
        %10957 = vmatpush.bf16.msra.mxu0 %v10078
        %10958 = vmatmul.bf16.gmra.mxu0 %v7688
        %v10959 = vpop.f32.mrf.mxu0
        %v10960 = vadd.f32 %v10947, %v10959
        %v10961 = vpop.f32.mrf.mxu0
        %10962 = vdwg.mxu0
        %10963 = vmatpush.bf16.msra.mxu0 %v10198
        %10964 = vmatpush.bf16.msra.mxu0 %v10190
        %10965 = vmatpush.bf16.msra.mxu0 %v10182
        %10966 = vmatpush.bf16.msra.mxu0 %v10174
        %10967 = vmatpush.bf16.msra.mxu0 %v10166
        %10968 = vmatpush.bf16.msra.mxu0 %v10158
        %10969 = vmatpush.bf16.msra.mxu0 %v10150
        %10970 = vmatpush.bf16.msra.mxu0 %v10142
        %10971 = vmatmul.bf16.gmra.mxu0 %v7689
        %v10972 = vpop.f32.mrf.mxu0
        %v10973 = vadd.f32 %v10960, %v10972
        %v10974 = vpop.f32.mrf.mxu0
        %10975 = vdwg.mxu0
        %10976 = vmatpush.bf16.msra.mxu0 %v10262
        %10977 = vmatpush.bf16.msra.mxu0 %v10254
        %10978 = vmatpush.bf16.msra.mxu0 %v10246
        %10979 = vmatpush.bf16.msra.mxu0 %v10238
        %10980 = vmatpush.bf16.msra.mxu0 %v10230
        %10981 = vmatpush.bf16.msra.mxu0 %v10222
        %10982 = vmatpush.bf16.msra.mxu0 %v10214
        %10983 = vmatpush.bf16.msra.mxu0 %v10206
        %10984 = vmatmul.bf16.gmra.mxu0 %v7690
        %v10985 = vpop.f32.mrf.mxu0
        %v10986 = vadd.f32 %v10973, %v10985
        %v10987 = vpop.f32.mrf.mxu0
        %10988 = vdwg.mxu0
        %10989 = vmatpush.bf16.msra.mxu0 %v9815
        %10990 = vmatpush.bf16.msra.mxu0 %v9807
        %10991 = vmatpush.bf16.msra.mxu0 %v9799
        %10992 = vmatpush.bf16.msra.mxu0 %v9791
        %10993 = vmatpush.bf16.msra.mxu0 %v9783
        %10994 = vmatpush.bf16.msra.mxu0 %v9775
        %10995 = vmatpush.bf16.msra.mxu0 %v9767
        %10996 = vmatpush.bf16.msra.mxu0 %v9759
        %10997 = vmatmul.bf16.gmra.mxu0 %v7683
        %v10998 = vpop.f32.mrf.mxu0
        %v10999 = vadd.f32 %v8207, %v10998
        %v11000 = vpop.f32.mrf.mxu0
        %11001 = vdwg.mxu0
        %11002 = vmatpush.bf16.msra.mxu0 %v9879
        %11003 = vmatpush.bf16.msra.mxu0 %v9871
        %11004 = vmatpush.bf16.msra.mxu0 %v9863
        %11005 = vmatpush.bf16.msra.mxu0 %v9855
        %11006 = vmatpush.bf16.msra.mxu0 %v9847
        %11007 = vmatpush.bf16.msra.mxu0 %v9839
        %11008 = vmatpush.bf16.msra.mxu0 %v9831
        %11009 = vmatpush.bf16.msra.mxu0 %v9823
        %11010 = vmatmul.bf16.gmra.mxu0 %v7684
        %v11011 = vpop.f32.mrf.mxu0
        %v11012 = vadd.f32 %v10999, %v11011
        %v11013 = vpop.f32.mrf.mxu0
        %11014 = vdwg.mxu0
        %11015 = vmatpush.bf16.msra.mxu0 %v9943
        %11016 = vmatpush.bf16.msra.mxu0 %v9935
        %11017 = vmatpush.bf16.msra.mxu0 %v9927
        %11018 = vmatpush.bf16.msra.mxu0 %v9919
        %11019 = vmatpush.bf16.msra.mxu0 %v9911
        %11020 = vmatpush.bf16.msra.mxu0 %v9903
        %11021 = vmatpush.bf16.msra.mxu0 %v9895
        %11022 = vmatpush.bf16.msra.mxu0 %v9887
        %11023 = vmatmul.bf16.gmra.mxu0 %v7685
        %v11024 = vpop.f32.mrf.mxu0
        %v11025 = vadd.f32 %v11012, %v11024
        %v11026 = vpop.f32.mrf.mxu0
        %11027 = vdwg.mxu0
        %11028 = vmatpush.bf16.msra.mxu0 %v10007
        %11029 = vmatpush.bf16.msra.mxu0 %v9999
        %11030 = vmatpush.bf16.msra.mxu0 %v9991
        %11031 = vmatpush.bf16.msra.mxu0 %v9983
        %11032 = vmatpush.bf16.msra.mxu0 %v9975
        %11033 = vmatpush.bf16.msra.mxu0 %v9967
        %11034 = vmatpush.bf16.msra.mxu0 %v9959
        %11035 = vmatpush.bf16.msra.mxu0 %v9951
        %11036 = vmatmul.bf16.gmra.mxu0 %v7686
        %v11037 = vpop.f32.mrf.mxu0
        %v11038 = vadd.f32 %v11025, %v11037
        %v11039 = vpop.f32.mrf.mxu0
        %11040 = vdwg.mxu0
        %11041 = vmatpush.bf16.msra.mxu0 %v10071
        %11042 = vmatpush.bf16.msra.mxu0 %v10063
        %11043 = vmatpush.bf16.msra.mxu0 %v10055
        %11044 = vmatpush.bf16.msra.mxu0 %v10047
        %11045 = vmatpush.bf16.msra.mxu0 %v10039
        %11046 = vmatpush.bf16.msra.mxu0 %v10031
        %11047 = vmatpush.bf16.msra.mxu0 %v10023
        %11048 = vmatpush.bf16.msra.mxu0 %v10015
        %11049 = vmatmul.bf16.gmra.mxu0 %v7687
        %v11050 = vpop.f32.mrf.mxu0
        %v11051 = vadd.f32 %v11038, %v11050
        %v11052 = vpop.f32.mrf.mxu0
        %11053 = vdwg.mxu0
        %11054 = vmatpush.bf16.msra.mxu0 %v10135
        %11055 = vmatpush.bf16.msra.mxu0 %v10127
        %11056 = vmatpush.bf16.msra.mxu0 %v10119
        %11057 = vmatpush.bf16.msra.mxu0 %v10111
        %11058 = vmatpush.bf16.msra.mxu0 %v10103
        %11059 = vmatpush.bf16.msra.mxu0 %v10095
        %11060 = vmatpush.bf16.msra.mxu0 %v10087
        %11061 = vmatpush.bf16.msra.mxu0 %v10079
        %11062 = vmatmul.bf16.gmra.mxu0 %v7688
        %v11063 = vpop.f32.mrf.mxu0
        %v11064 = vadd.f32 %v11051, %v11063
        %v11065 = vpop.f32.mrf.mxu0
        %11066 = vdwg.mxu0
        %11067 = vmatpush.bf16.msra.mxu0 %v10199
        %11068 = vmatpush.bf16.msra.mxu0 %v10191
        %11069 = vmatpush.bf16.msra.mxu0 %v10183
        %11070 = vmatpush.bf16.msra.mxu0 %v10175
        %11071 = vmatpush.bf16.msra.mxu0 %v10167
        %11072 = vmatpush.bf16.msra.mxu0 %v10159
        %11073 = vmatpush.bf16.msra.mxu0 %v10151
        %11074 = vmatpush.bf16.msra.mxu0 %v10143
        %11075 = vmatmul.bf16.gmra.mxu0 %v7689
        %v11076 = vpop.f32.mrf.mxu0
        %v11077 = vadd.f32 %v11064, %v11076
        %v11078 = vpop.f32.mrf.mxu0
        %11079 = vdwg.mxu0
        %11080 = vmatpush.bf16.msra.mxu0 %v10263
        %11081 = vmatpush.bf16.msra.mxu0 %v10255
        %11082 = vmatpush.bf16.msra.mxu0 %v10247
        %11083 = vmatpush.bf16.msra.mxu0 %v10239
        %11084 = vmatpush.bf16.msra.mxu0 %v10231
        %11085 = vmatpush.bf16.msra.mxu0 %v10223
        %11086 = vmatpush.bf16.msra.mxu0 %v10215
        %11087 = vmatpush.bf16.msra.mxu0 %v10207
        %11088 = vmatmul.bf16.gmra.mxu0 %v7690
        %v11089 = vpop.f32.mrf.mxu0
        %v11090 = vadd.f32 %v11077, %v11089
        %v11091 = vpop.f32.mrf.mxu0
        %11092 = vdwg.mxu0
        %11093 = vmatpush.bf16.msra.mxu0 %v9816
        %11094 = vmatpush.bf16.msra.mxu0 %v9808
        %11095 = vmatpush.bf16.msra.mxu0 %v9800
        %11096 = vmatpush.bf16.msra.mxu0 %v9792
        %11097 = vmatpush.bf16.msra.mxu0 %v9784
        %11098 = vmatpush.bf16.msra.mxu0 %v9776
        %11099 = vmatpush.bf16.msra.mxu0 %v9768
        %11100 = vmatpush.bf16.msra.mxu0 %v9760
        %11101 = vmatmul.bf16.gmra.mxu0 %v7683
        %v11102 = vpop.f32.mrf.mxu0
        %v11103 = vadd.f32 %v8208, %v11102
        %v11104 = vpop.f32.mrf.mxu0
        %11105 = vdwg.mxu0
        %11106 = vmatpush.bf16.msra.mxu0 %v9880
        %11107 = vmatpush.bf16.msra.mxu0 %v9872
        %11108 = vmatpush.bf16.msra.mxu0 %v9864
        %11109 = vmatpush.bf16.msra.mxu0 %v9856
        %11110 = vmatpush.bf16.msra.mxu0 %v9848
        %11111 = vmatpush.bf16.msra.mxu0 %v9840
        %11112 = vmatpush.bf16.msra.mxu0 %v9832
        %11113 = vmatpush.bf16.msra.mxu0 %v9824
        %11114 = vmatmul.bf16.gmra.mxu0 %v7684
        %v11115 = vpop.f32.mrf.mxu0
        %v11116 = vadd.f32 %v11103, %v11115
        %v11117 = vpop.f32.mrf.mxu0
        %11118 = vdwg.mxu0
        %11119 = vmatpush.bf16.msra.mxu0 %v9944
        %11120 = vmatpush.bf16.msra.mxu0 %v9936
        %11121 = vmatpush.bf16.msra.mxu0 %v9928
        %11122 = vmatpush.bf16.msra.mxu0 %v9920
        %11123 = vmatpush.bf16.msra.mxu0 %v9912
        %11124 = vmatpush.bf16.msra.mxu0 %v9904
        %11125 = vmatpush.bf16.msra.mxu0 %v9896
        %11126 = vmatpush.bf16.msra.mxu0 %v9888
        %11127 = vmatmul.bf16.gmra.mxu0 %v7685
        %v11128 = vpop.f32.mrf.mxu0
        %v11129 = vadd.f32 %v11116, %v11128
        %v11130 = vpop.f32.mrf.mxu0
        %11131 = vdwg.mxu0
        %11132 = vmatpush.bf16.msra.mxu0 %v10008
        %11133 = vmatpush.bf16.msra.mxu0 %v10000
        %11134 = vmatpush.bf16.msra.mxu0 %v9992
        %11135 = vmatpush.bf16.msra.mxu0 %v9984
        %11136 = vmatpush.bf16.msra.mxu0 %v9976
        %11137 = vmatpush.bf16.msra.mxu0 %v9968
        %11138 = vmatpush.bf16.msra.mxu0 %v9960
        %11139 = vmatpush.bf16.msra.mxu0 %v9952
        %11140 = vmatmul.bf16.gmra.mxu0 %v7686
        %v11141 = vpop.f32.mrf.mxu0
        %v11142 = vadd.f32 %v11129, %v11141
        %v11143 = vpop.f32.mrf.mxu0
        %11144 = vdwg.mxu0
        %11145 = vmatpush.bf16.msra.mxu0 %v10072
        %11146 = vmatpush.bf16.msra.mxu0 %v10064
        %11147 = vmatpush.bf16.msra.mxu0 %v10056
        %11148 = vmatpush.bf16.msra.mxu0 %v10048
        %11149 = vmatpush.bf16.msra.mxu0 %v10040
        %11150 = vmatpush.bf16.msra.mxu0 %v10032
        %11151 = vmatpush.bf16.msra.mxu0 %v10024
        %11152 = vmatpush.bf16.msra.mxu0 %v10016
        %11153 = vmatmul.bf16.gmra.mxu0 %v7687
        %v11154 = vpop.f32.mrf.mxu0
        %v11155 = vadd.f32 %v11142, %v11154
        %v11156 = vpop.f32.mrf.mxu0
        %11157 = vdwg.mxu0
        %11158 = vmatpush.bf16.msra.mxu0 %v10136
        %11159 = vmatpush.bf16.msra.mxu0 %v10128
        %11160 = vmatpush.bf16.msra.mxu0 %v10120
        %11161 = vmatpush.bf16.msra.mxu0 %v10112
        %11162 = vmatpush.bf16.msra.mxu0 %v10104
        %11163 = vmatpush.bf16.msra.mxu0 %v10096
        %11164 = vmatpush.bf16.msra.mxu0 %v10088
        %11165 = vmatpush.bf16.msra.mxu0 %v10080
        %11166 = vmatmul.bf16.gmra.mxu0 %v7688
        %v11167 = vpop.f32.mrf.mxu0
        %v11168 = vadd.f32 %v11155, %v11167
        %v11169 = vpop.f32.mrf.mxu0
        %11170 = vdwg.mxu0
        %11171 = vmatpush.bf16.msra.mxu0 %v10200
        %11172 = vmatpush.bf16.msra.mxu0 %v10192
        %11173 = vmatpush.bf16.msra.mxu0 %v10184
        %11174 = vmatpush.bf16.msra.mxu0 %v10176
        %11175 = vmatpush.bf16.msra.mxu0 %v10168
        %11176 = vmatpush.bf16.msra.mxu0 %v10160
        %11177 = vmatpush.bf16.msra.mxu0 %v10152
        %11178 = vmatpush.bf16.msra.mxu0 %v10144
        %11179 = vmatmul.bf16.gmra.mxu0 %v7689
        %v11180 = vpop.f32.mrf.mxu0
        %v11181 = vadd.f32 %v11168, %v11180
        %v11182 = vpop.f32.mrf.mxu0
        %11183 = vdwg.mxu0
        %11184 = vmatpush.bf16.msra.mxu0 %v10264
        %11185 = vmatpush.bf16.msra.mxu0 %v10256
        %11186 = vmatpush.bf16.msra.mxu0 %v10248
        %11187 = vmatpush.bf16.msra.mxu0 %v10240
        %11188 = vmatpush.bf16.msra.mxu0 %v10232
        %11189 = vmatpush.bf16.msra.mxu0 %v10224
        %11190 = vmatpush.bf16.msra.mxu0 %v10216
        %11191 = vmatpush.bf16.msra.mxu0 %v10208
        %11192 = vmatmul.bf16.gmra.mxu0 %v7690
        %v11193 = vpop.f32.mrf.mxu0
        %v11194 = vadd.f32 %v11181, %v11193
        %v11195 = vpop.f32.mrf.mxu0
        %11196 = vdwg.mxu0
        %11197 = vmatpush.bf16.msra.mxu0 %v9817
        %11198 = vmatpush.bf16.msra.mxu0 %v9809
        %11199 = vmatpush.bf16.msra.mxu0 %v9801
        %11200 = vmatpush.bf16.msra.mxu0 %v9793
        %11201 = vmatpush.bf16.msra.mxu0 %v9785
        %11202 = vmatpush.bf16.msra.mxu0 %v9777
        %11203 = vmatpush.bf16.msra.mxu0 %v9769
        %11204 = vmatpush.bf16.msra.mxu0 %v9761
        %11205 = vmatmul.bf16.gmra.mxu0 %v7683
        %v11206 = vpop.f32.mrf.mxu0
        %v11207 = vadd.f32 %v8209, %v11206
        %v11208 = vpop.f32.mrf.mxu0
        %11209 = vdwg.mxu0
        %11210 = vmatpush.bf16.msra.mxu0 %v9881
        %11211 = vmatpush.bf16.msra.mxu0 %v9873
        %11212 = vmatpush.bf16.msra.mxu0 %v9865
        %11213 = vmatpush.bf16.msra.mxu0 %v9857
        %11214 = vmatpush.bf16.msra.mxu0 %v9849
        %11215 = vmatpush.bf16.msra.mxu0 %v9841
        %11216 = vmatpush.bf16.msra.mxu0 %v9833
        %11217 = vmatpush.bf16.msra.mxu0 %v9825
        %11218 = vmatmul.bf16.gmra.mxu0 %v7684
        %v11219 = vpop.f32.mrf.mxu0
        %v11220 = vadd.f32 %v11207, %v11219
        %v11221 = vpop.f32.mrf.mxu0
        %11222 = vdwg.mxu0
        %11223 = vmatpush.bf16.msra.mxu0 %v9945
        %11224 = vmatpush.bf16.msra.mxu0 %v9937
        %11225 = vmatpush.bf16.msra.mxu0 %v9929
        %11226 = vmatpush.bf16.msra.mxu0 %v9921
        %11227 = vmatpush.bf16.msra.mxu0 %v9913
        %11228 = vmatpush.bf16.msra.mxu0 %v9905
        %11229 = vmatpush.bf16.msra.mxu0 %v9897
        %11230 = vmatpush.bf16.msra.mxu0 %v9889
        %11231 = vmatmul.bf16.gmra.mxu0 %v7685
        %v11232 = vpop.f32.mrf.mxu0
        %v11233 = vadd.f32 %v11220, %v11232
        %v11234 = vpop.f32.mrf.mxu0
        %11235 = vdwg.mxu0
        %11236 = vmatpush.bf16.msra.mxu0 %v10009
        %11237 = vmatpush.bf16.msra.mxu0 %v10001
        %11238 = vmatpush.bf16.msra.mxu0 %v9993
        %11239 = vmatpush.bf16.msra.mxu0 %v9985
        %11240 = vmatpush.bf16.msra.mxu0 %v9977
        %11241 = vmatpush.bf16.msra.mxu0 %v9969
        %11242 = vmatpush.bf16.msra.mxu0 %v9961
        %11243 = vmatpush.bf16.msra.mxu0 %v9953
        %11244 = vmatmul.bf16.gmra.mxu0 %v7686
        %v11245 = vpop.f32.mrf.mxu0
        %v11246 = vadd.f32 %v11233, %v11245
        %v11247 = vpop.f32.mrf.mxu0
        %11248 = vdwg.mxu0
        %11249 = vmatpush.bf16.msra.mxu0 %v10073
        %11250 = vmatpush.bf16.msra.mxu0 %v10065
        %11251 = vmatpush.bf16.msra.mxu0 %v10057
        %11252 = vmatpush.bf16.msra.mxu0 %v10049
        %11253 = vmatpush.bf16.msra.mxu0 %v10041
        %11254 = vmatpush.bf16.msra.mxu0 %v10033
        %11255 = vmatpush.bf16.msra.mxu0 %v10025
        %11256 = vmatpush.bf16.msra.mxu0 %v10017
        %11257 = vmatmul.bf16.gmra.mxu0 %v7687
        %v11258 = vpop.f32.mrf.mxu0
        %v11259 = vadd.f32 %v11246, %v11258
        %v11260 = vpop.f32.mrf.mxu0
        %11261 = vdwg.mxu0
        %11262 = vmatpush.bf16.msra.mxu0 %v10137
        %11263 = vmatpush.bf16.msra.mxu0 %v10129
        %11264 = vmatpush.bf16.msra.mxu0 %v10121
        %11265 = vmatpush.bf16.msra.mxu0 %v10113
        %11266 = vmatpush.bf16.msra.mxu0 %v10105
        %11267 = vmatpush.bf16.msra.mxu0 %v10097
        %11268 = vmatpush.bf16.msra.mxu0 %v10089
        %11269 = vmatpush.bf16.msra.mxu0 %v10081
        %11270 = vmatmul.bf16.gmra.mxu0 %v7688
        %v11271 = vpop.f32.mrf.mxu0
        %v11272 = vadd.f32 %v11259, %v11271
        %v11273 = vpop.f32.mrf.mxu0
        %11274 = vdwg.mxu0
        %11275 = vmatpush.bf16.msra.mxu0 %v10201
        %11276 = vmatpush.bf16.msra.mxu0 %v10193
        %11277 = vmatpush.bf16.msra.mxu0 %v10185
        %11278 = vmatpush.bf16.msra.mxu0 %v10177
        %11279 = vmatpush.bf16.msra.mxu0 %v10169
        %11280 = vmatpush.bf16.msra.mxu0 %v10161
        %11281 = vmatpush.bf16.msra.mxu0 %v10153
        %11282 = vmatpush.bf16.msra.mxu0 %v10145
        %11283 = vmatmul.bf16.gmra.mxu0 %v7689
        %v11284 = vpop.f32.mrf.mxu0
        %v11285 = vadd.f32 %v11272, %v11284
        %v11286 = vpop.f32.mrf.mxu0
        %11287 = vdwg.mxu0
        %11288 = vmatpush.bf16.msra.mxu0 %v10265
        %11289 = vmatpush.bf16.msra.mxu0 %v10257
        %11290 = vmatpush.bf16.msra.mxu0 %v10249
        %11291 = vmatpush.bf16.msra.mxu0 %v10241
        %11292 = vmatpush.bf16.msra.mxu0 %v10233
        %11293 = vmatpush.bf16.msra.mxu0 %v10225
        %11294 = vmatpush.bf16.msra.mxu0 %v10217
        %11295 = vmatpush.bf16.msra.mxu0 %v10209
        %11296 = vmatmul.bf16.gmra.mxu0 %v7690
        %v11297 = vpop.f32.mrf.mxu0
        %v11298 = vadd.f32 %v11285, %v11297
        %v11299 = vpop.f32.mrf.mxu0
        %11300 = vdwg.mxu0
        %11301 = vmatpush.bf16.msra.mxu0 %v9818
        %11302 = vmatpush.bf16.msra.mxu0 %v9810
        %11303 = vmatpush.bf16.msra.mxu0 %v9802
        %11304 = vmatpush.bf16.msra.mxu0 %v9794
        %11305 = vmatpush.bf16.msra.mxu0 %v9786
        %11306 = vmatpush.bf16.msra.mxu0 %v9778
        %11307 = vmatpush.bf16.msra.mxu0 %v9770
        %11308 = vmatpush.bf16.msra.mxu0 %v9762
        %11309 = vmatmul.bf16.gmra.mxu0 %v7683
        %v11310 = vpop.f32.mrf.mxu0
        %v11311 = vadd.f32 %v8210, %v11310
        %v11312 = vpop.f32.mrf.mxu0
        %11313 = vdwg.mxu0
        %11314 = vmatpush.bf16.msra.mxu0 %v9882
        %11315 = vmatpush.bf16.msra.mxu0 %v9874
        %11316 = vmatpush.bf16.msra.mxu0 %v9866
        %11317 = vmatpush.bf16.msra.mxu0 %v9858
        %11318 = vmatpush.bf16.msra.mxu0 %v9850
        %11319 = vmatpush.bf16.msra.mxu0 %v9842
        %11320 = vmatpush.bf16.msra.mxu0 %v9834
        %11321 = vmatpush.bf16.msra.mxu0 %v9826
        %11322 = vmatmul.bf16.gmra.mxu0 %v7684
        %v11323 = vpop.f32.mrf.mxu0
        %v11324 = vadd.f32 %v11311, %v11323
        %v11325 = vpop.f32.mrf.mxu0
        %11326 = vdwg.mxu0
        %11327 = vmatpush.bf16.msra.mxu0 %v9946
        %11328 = vmatpush.bf16.msra.mxu0 %v9938
        %11329 = vmatpush.bf16.msra.mxu0 %v9930
        %11330 = vmatpush.bf16.msra.mxu0 %v9922
        %11331 = vmatpush.bf16.msra.mxu0 %v9914
        %11332 = vmatpush.bf16.msra.mxu0 %v9906
        %11333 = vmatpush.bf16.msra.mxu0 %v9898
        %11334 = vmatpush.bf16.msra.mxu0 %v9890
        %11335 = vmatmul.bf16.gmra.mxu0 %v7685
        %v11336 = vpop.f32.mrf.mxu0
        %v11337 = vadd.f32 %v11324, %v11336
        %v11338 = vpop.f32.mrf.mxu0
        %11339 = vdwg.mxu0
        %11340 = vmatpush.bf16.msra.mxu0 %v10010
        %11341 = vmatpush.bf16.msra.mxu0 %v10002
        %11342 = vmatpush.bf16.msra.mxu0 %v9994
        %11343 = vmatpush.bf16.msra.mxu0 %v9986
        %11344 = vmatpush.bf16.msra.mxu0 %v9978
        %11345 = vmatpush.bf16.msra.mxu0 %v9970
        %11346 = vmatpush.bf16.msra.mxu0 %v9962
        %11347 = vmatpush.bf16.msra.mxu0 %v9954
        %11348 = vmatmul.bf16.gmra.mxu0 %v7686
        %v11349 = vpop.f32.mrf.mxu0
        %v11350 = vadd.f32 %v11337, %v11349
        %v11351 = vpop.f32.mrf.mxu0
        %11352 = vdwg.mxu0
        %11353 = vmatpush.bf16.msra.mxu0 %v10074
        %11354 = vmatpush.bf16.msra.mxu0 %v10066
        %11355 = vmatpush.bf16.msra.mxu0 %v10058
        %11356 = vmatpush.bf16.msra.mxu0 %v10050
        %11357 = vmatpush.bf16.msra.mxu0 %v10042
        %11358 = vmatpush.bf16.msra.mxu0 %v10034
        %11359 = vmatpush.bf16.msra.mxu0 %v10026
        %11360 = vmatpush.bf16.msra.mxu0 %v10018
        %11361 = vmatmul.bf16.gmra.mxu0 %v7687
        %v11362 = vpop.f32.mrf.mxu0
        %v11363 = vadd.f32 %v11350, %v11362
        %v11364 = vpop.f32.mrf.mxu0
        %11365 = vdwg.mxu0
        %11366 = vmatpush.bf16.msra.mxu0 %v10138
        %11367 = vmatpush.bf16.msra.mxu0 %v10130
        %11368 = vmatpush.bf16.msra.mxu0 %v10122
        %11369 = vmatpush.bf16.msra.mxu0 %v10114
        %11370 = vmatpush.bf16.msra.mxu0 %v10106
        %11371 = vmatpush.bf16.msra.mxu0 %v10098
        %11372 = vmatpush.bf16.msra.mxu0 %v10090
        %11373 = vmatpush.bf16.msra.mxu0 %v10082
        %11374 = vmatmul.bf16.gmra.mxu0 %v7688
        %v11375 = vpop.f32.mrf.mxu0
        %v11376 = vadd.f32 %v11363, %v11375
        %v11377 = vpop.f32.mrf.mxu0
        %11378 = vdwg.mxu0
        %11379 = vmatpush.bf16.msra.mxu0 %v10202
        %11380 = vmatpush.bf16.msra.mxu0 %v10194
        %11381 = vmatpush.bf16.msra.mxu0 %v10186
        %11382 = vmatpush.bf16.msra.mxu0 %v10178
        %11383 = vmatpush.bf16.msra.mxu0 %v10170
        %11384 = vmatpush.bf16.msra.mxu0 %v10162
        %11385 = vmatpush.bf16.msra.mxu0 %v10154
        %11386 = vmatpush.bf16.msra.mxu0 %v10146
        %11387 = vmatmul.bf16.gmra.mxu0 %v7689
        %v11388 = vpop.f32.mrf.mxu0
        %v11389 = vadd.f32 %v11376, %v11388
        %v11390 = vpop.f32.mrf.mxu0
        %11391 = vdwg.mxu0
        %11392 = vmatpush.bf16.msra.mxu0 %v10266
        %11393 = vmatpush.bf16.msra.mxu0 %v10258
        %11394 = vmatpush.bf16.msra.mxu0 %v10250
        %11395 = vmatpush.bf16.msra.mxu0 %v10242
        %11396 = vmatpush.bf16.msra.mxu0 %v10234
        %11397 = vmatpush.bf16.msra.mxu0 %v10226
        %11398 = vmatpush.bf16.msra.mxu0 %v10218
        %11399 = vmatpush.bf16.msra.mxu0 %v10210
        %11400 = vmatmul.bf16.gmra.mxu0 %v7690
        %v11401 = vpop.f32.mrf.mxu0
        %v11402 = vadd.f32 %v11389, %v11401
        %v11403 = vpop.f32.mrf.mxu0
        %11404 = vdwg.mxu0
        %11405 = vmatpush.bf16.msra.mxu0 %v9819
        %11406 = vmatpush.bf16.msra.mxu0 %v9811
        %11407 = vmatpush.bf16.msra.mxu0 %v9803
        %11408 = vmatpush.bf16.msra.mxu0 %v9795
        %11409 = vmatpush.bf16.msra.mxu0 %v9787
        %11410 = vmatpush.bf16.msra.mxu0 %v9779
        %11411 = vmatpush.bf16.msra.mxu0 %v9771
        %11412 = vmatpush.bf16.msra.mxu0 %v9763
        %11413 = vmatmul.bf16.gmra.mxu0 %v7683
        %v11414 = vpop.f32.mrf.mxu0
        %v11415 = vadd.f32 %v8211, %v11414
        %v11416 = vpop.f32.mrf.mxu0
        %11417 = vdwg.mxu0
        %11418 = vmatpush.bf16.msra.mxu0 %v9883
        %11419 = vmatpush.bf16.msra.mxu0 %v9875
        %11420 = vmatpush.bf16.msra.mxu0 %v9867
        %11421 = vmatpush.bf16.msra.mxu0 %v9859
        %11422 = vmatpush.bf16.msra.mxu0 %v9851
        %11423 = vmatpush.bf16.msra.mxu0 %v9843
        %11424 = vmatpush.bf16.msra.mxu0 %v9835
        %11425 = vmatpush.bf16.msra.mxu0 %v9827
        %11426 = vmatmul.bf16.gmra.mxu0 %v7684
        %v11427 = vpop.f32.mrf.mxu0
        %v11428 = vadd.f32 %v11415, %v11427
        %v11429 = vpop.f32.mrf.mxu0
        %11430 = vdwg.mxu0
        %11431 = vmatpush.bf16.msra.mxu0 %v9947
        %11432 = vmatpush.bf16.msra.mxu0 %v9939
        %11433 = vmatpush.bf16.msra.mxu0 %v9931
        %11434 = vmatpush.bf16.msra.mxu0 %v9923
        %11435 = vmatpush.bf16.msra.mxu0 %v9915
        %11436 = vmatpush.bf16.msra.mxu0 %v9907
        %11437 = vmatpush.bf16.msra.mxu0 %v9899
        %11438 = vmatpush.bf16.msra.mxu0 %v9891
        %11439 = vmatmul.bf16.gmra.mxu0 %v7685
        %v11440 = vpop.f32.mrf.mxu0
        %v11441 = vadd.f32 %v11428, %v11440
        %v11442 = vpop.f32.mrf.mxu0
        %11443 = vdwg.mxu0
        %11444 = vmatpush.bf16.msra.mxu0 %v10011
        %11445 = vmatpush.bf16.msra.mxu0 %v10003
        %11446 = vmatpush.bf16.msra.mxu0 %v9995
        %11447 = vmatpush.bf16.msra.mxu0 %v9987
        %11448 = vmatpush.bf16.msra.mxu0 %v9979
        %11449 = vmatpush.bf16.msra.mxu0 %v9971
        %11450 = vmatpush.bf16.msra.mxu0 %v9963
        %11451 = vmatpush.bf16.msra.mxu0 %v9955
        %11452 = vmatmul.bf16.gmra.mxu0 %v7686
        %v11453 = vpop.f32.mrf.mxu0
        %v11454 = vadd.f32 %v11441, %v11453
        %v11455 = vpop.f32.mrf.mxu0
        %11456 = vdwg.mxu0
        %11457 = vmatpush.bf16.msra.mxu0 %v10075
        %11458 = vmatpush.bf16.msra.mxu0 %v10067
        %11459 = vmatpush.bf16.msra.mxu0 %v10059
        %11460 = vmatpush.bf16.msra.mxu0 %v10051
        %11461 = vmatpush.bf16.msra.mxu0 %v10043
        %11462 = vmatpush.bf16.msra.mxu0 %v10035
        %11463 = vmatpush.bf16.msra.mxu0 %v10027
        %11464 = vmatpush.bf16.msra.mxu0 %v10019
        %11465 = vmatmul.bf16.gmra.mxu0 %v7687
        %v11466 = vpop.f32.mrf.mxu0
        %v11467 = vadd.f32 %v11454, %v11466
        %v11468 = vpop.f32.mrf.mxu0
        %11469 = vdwg.mxu0
        %11470 = vmatpush.bf16.msra.mxu0 %v10139
        %11471 = vmatpush.bf16.msra.mxu0 %v10131
        %11472 = vmatpush.bf16.msra.mxu0 %v10123
        %11473 = vmatpush.bf16.msra.mxu0 %v10115
        %11474 = vmatpush.bf16.msra.mxu0 %v10107
        %11475 = vmatpush.bf16.msra.mxu0 %v10099
        %11476 = vmatpush.bf16.msra.mxu0 %v10091
        %11477 = vmatpush.bf16.msra.mxu0 %v10083
        %11478 = vmatmul.bf16.gmra.mxu0 %v7688
        %v11479 = vpop.f32.mrf.mxu0
        %v11480 = vadd.f32 %v11467, %v11479
        %v11481 = vpop.f32.mrf.mxu0
        %11482 = vdwg.mxu0
        %11483 = vmatpush.bf16.msra.mxu0 %v10203
        %11484 = vmatpush.bf16.msra.mxu0 %v10195
        %11485 = vmatpush.bf16.msra.mxu0 %v10187
        %11486 = vmatpush.bf16.msra.mxu0 %v10179
        %11487 = vmatpush.bf16.msra.mxu0 %v10171
        %11488 = vmatpush.bf16.msra.mxu0 %v10163
        %11489 = vmatpush.bf16.msra.mxu0 %v10155
        %11490 = vmatpush.bf16.msra.mxu0 %v10147
        %11491 = vmatmul.bf16.gmra.mxu0 %v7689
        %v11492 = vpop.f32.mrf.mxu0
        %v11493 = vadd.f32 %v11480, %v11492
        %v11494 = vpop.f32.mrf.mxu0
        %11495 = vdwg.mxu0
        %11496 = vmatpush.bf16.msra.mxu0 %v10267
        %11497 = vmatpush.bf16.msra.mxu0 %v10259
        %11498 = vmatpush.bf16.msra.mxu0 %v10251
        %11499 = vmatpush.bf16.msra.mxu0 %v10243
        %11500 = vmatpush.bf16.msra.mxu0 %v10235
        %11501 = vmatpush.bf16.msra.mxu0 %v10227
        %11502 = vmatpush.bf16.msra.mxu0 %v10219
        %11503 = vmatpush.bf16.msra.mxu0 %v10211
        %11504 = vmatmul.bf16.gmra.mxu0 %v7690
        %v11505 = vpop.f32.mrf.mxu0
        %v11506 = vadd.f32 %v11493, %v11505
        %v11507 = vpop.f32.mrf.mxu0
        %11508 = vdwg.mxu0
        %11509 = vmatpush.bf16.msra.mxu0 %v9820
        %11510 = vmatpush.bf16.msra.mxu0 %v9812
        %11511 = vmatpush.bf16.msra.mxu0 %v9804
        %11512 = vmatpush.bf16.msra.mxu0 %v9796
        %11513 = vmatpush.bf16.msra.mxu0 %v9788
        %11514 = vmatpush.bf16.msra.mxu0 %v9780
        %11515 = vmatpush.bf16.msra.mxu0 %v9772
        %11516 = vmatpush.bf16.msra.mxu0 %v9764
        %11517 = vmatmul.bf16.gmra.mxu0 %v7683
        %v11518 = vpop.f32.mrf.mxu0
        %v11519 = vadd.f32 %v8212, %v11518
        %v11520 = vpop.f32.mrf.mxu0
        %11521 = vdwg.mxu0
        %11522 = vmatpush.bf16.msra.mxu0 %v9884
        %11523 = vmatpush.bf16.msra.mxu0 %v9876
        %11524 = vmatpush.bf16.msra.mxu0 %v9868
        %11525 = vmatpush.bf16.msra.mxu0 %v9860
        %11526 = vmatpush.bf16.msra.mxu0 %v9852
        %11527 = vmatpush.bf16.msra.mxu0 %v9844
        %11528 = vmatpush.bf16.msra.mxu0 %v9836
        %11529 = vmatpush.bf16.msra.mxu0 %v9828
        %11530 = vmatmul.bf16.gmra.mxu0 %v7684
        %v11531 = vpop.f32.mrf.mxu0
        %v11532 = vadd.f32 %v11519, %v11531
        %v11533 = vpop.f32.mrf.mxu0
        %11534 = vdwg.mxu0
        %11535 = vmatpush.bf16.msra.mxu0 %v9948
        %11536 = vmatpush.bf16.msra.mxu0 %v9940
        %11537 = vmatpush.bf16.msra.mxu0 %v9932
        %11538 = vmatpush.bf16.msra.mxu0 %v9924
        %11539 = vmatpush.bf16.msra.mxu0 %v9916
        %11540 = vmatpush.bf16.msra.mxu0 %v9908
        %11541 = vmatpush.bf16.msra.mxu0 %v9900
        %11542 = vmatpush.bf16.msra.mxu0 %v9892
        %11543 = vmatmul.bf16.gmra.mxu0 %v7685
        %v11544 = vpop.f32.mrf.mxu0
        %v11545 = vadd.f32 %v11532, %v11544
        %v11546 = vpop.f32.mrf.mxu0
        %11547 = vdwg.mxu0
        %11548 = vmatpush.bf16.msra.mxu0 %v10012
        %11549 = vmatpush.bf16.msra.mxu0 %v10004
        %11550 = vmatpush.bf16.msra.mxu0 %v9996
        %11551 = vmatpush.bf16.msra.mxu0 %v9988
        %11552 = vmatpush.bf16.msra.mxu0 %v9980
        %11553 = vmatpush.bf16.msra.mxu0 %v9972
        %11554 = vmatpush.bf16.msra.mxu0 %v9964
        %11555 = vmatpush.bf16.msra.mxu0 %v9956
        %11556 = vmatmul.bf16.gmra.mxu0 %v7686
        %v11557 = vpop.f32.mrf.mxu0
        %v11558 = vadd.f32 %v11545, %v11557
        %v11559 = vpop.f32.mrf.mxu0
        %11560 = vdwg.mxu0
        %11561 = vmatpush.bf16.msra.mxu0 %v10076
        %11562 = vmatpush.bf16.msra.mxu0 %v10068
        %11563 = vmatpush.bf16.msra.mxu0 %v10060
        %11564 = vmatpush.bf16.msra.mxu0 %v10052
        %11565 = vmatpush.bf16.msra.mxu0 %v10044
        %11566 = vmatpush.bf16.msra.mxu0 %v10036
        %11567 = vmatpush.bf16.msra.mxu0 %v10028
        %11568 = vmatpush.bf16.msra.mxu0 %v10020
        %11569 = vmatmul.bf16.gmra.mxu0 %v7687
        %v11570 = vpop.f32.mrf.mxu0
        %v11571 = vadd.f32 %v11558, %v11570
        %v11572 = vpop.f32.mrf.mxu0
        %11573 = vdwg.mxu0
        %11574 = vmatpush.bf16.msra.mxu0 %v10140
        %11575 = vmatpush.bf16.msra.mxu0 %v10132
        %11576 = vmatpush.bf16.msra.mxu0 %v10124
        %11577 = vmatpush.bf16.msra.mxu0 %v10116
        %11578 = vmatpush.bf16.msra.mxu0 %v10108
        %11579 = vmatpush.bf16.msra.mxu0 %v10100
        %11580 = vmatpush.bf16.msra.mxu0 %v10092
        %11581 = vmatpush.bf16.msra.mxu0 %v10084
        %11582 = vmatmul.bf16.gmra.mxu0 %v7688
        %v11583 = vpop.f32.mrf.mxu0
        %v11584 = vadd.f32 %v11571, %v11583
        %v11585 = vpop.f32.mrf.mxu0
        %11586 = vdwg.mxu0
        %11587 = vmatpush.bf16.msra.mxu0 %v10204
        %11588 = vmatpush.bf16.msra.mxu0 %v10196
        %11589 = vmatpush.bf16.msra.mxu0 %v10188
        %11590 = vmatpush.bf16.msra.mxu0 %v10180
        %11591 = vmatpush.bf16.msra.mxu0 %v10172
        %11592 = vmatpush.bf16.msra.mxu0 %v10164
        %11593 = vmatpush.bf16.msra.mxu0 %v10156
        %11594 = vmatpush.bf16.msra.mxu0 %v10148
        %11595 = vmatmul.bf16.gmra.mxu0 %v7689
        %v11596 = vpop.f32.mrf.mxu0
        %v11597 = vadd.f32 %v11584, %v11596
        %v11598 = vpop.f32.mrf.mxu0
        %11599 = vdwg.mxu0
        %11600 = vmatpush.bf16.msra.mxu0 %v10268
        %11601 = vmatpush.bf16.msra.mxu0 %v10260
        %11602 = vmatpush.bf16.msra.mxu0 %v10252
        %11603 = vmatpush.bf16.msra.mxu0 %v10244
        %11604 = vmatpush.bf16.msra.mxu0 %v10236
        %11605 = vmatpush.bf16.msra.mxu0 %v10228
        %11606 = vmatpush.bf16.msra.mxu0 %v10220
        %11607 = vmatpush.bf16.msra.mxu0 %v10212
        %11608 = vmatmul.bf16.gmra.mxu0 %v7690
        %v11609 = vpop.f32.mrf.mxu0
        %v11610 = vadd.f32 %v11597, %v11609
        %v11611 = vpop.f32.mrf.mxu0
        %11612 = vdwg.mxu0
        %v11613 = vmax.f32 %v10882, 0.0
        %v11614 = vmax.f32 %v10986, 0.0
        %v11615 = vmax.f32 %v11090, 0.0
        %v11616 = vmax.f32 %v11194, 0.0
        %v11617 = vmax.f32 %v11298, 0.0
        %v11618 = vmax.f32 %v11402, 0.0
        %v11619 = vmax.f32 %v11506, 0.0
        %v11620 = vmax.f32 %v11610, 0.0
        %v11621 = vpack.c.bf16 %v11613, %v11613
        %v11622 = vpack.c.bf16 %v11614, %v11614
        %v11623 = vpack.c.bf16 %v11615, %v11615
        %v11624 = vpack.c.bf16 %v11616, %v11616
        %v11625 = vpack.c.bf16 %v11617, %v11617
        %v11626 = vpack.c.bf16 %v11618, %v11618
        %v11627 = vpack.c.bf16 %v11619, %v11619
        %v11628 = vpack.c.bf16 %v11620, %v11620
        %v11629 = vld [vmem:[#allocation19] sm:$0xff]
        %v11630 = vld [vmem:[#allocation19 + $0x8] sm:$0xff]
        %v11631 = vld [vmem:[#allocation19 + $0x10] sm:$0xff]
        %v11632 = vld [vmem:[#allocation19 + $0x18] sm:$0xff]
        %v11633 = vld [vmem:[#allocation19 + $0x20] sm:$0xff]
        %v11634 = vld [vmem:[#allocation19 + $0x28] sm:$0xff]
        %v11635 = vld [vmem:[#allocation19 + $0x30] sm:$0xff]
        %v11636 = vld [vmem:[#allocation19 + $0x38] sm:$0xff]
        %v11637 = vld [vmem:[#allocation19 + $0x40] sm:$0xff]
        %v11638 = vld [vmem:[#allocation19 + $0x48] sm:$0xff]
        %v11639 = vld [vmem:[#allocation19 + $0x50] sm:$0xff]
        %v11640 = vld [vmem:[#allocation19 + $0x58] sm:$0xff]
        %v11641 = vld [vmem:[#allocation19 + $0x60] sm:$0xff]
        %v11642 = vld [vmem:[#allocation19 + $0x68] sm:$0xff]
        %v11643 = vld [vmem:[#allocation19 + $0x70] sm:$0xff]
        %v11644 = vld [vmem:[#allocation19 + $0x78] sm:$0xff]
        %v11645 = vld [vmem:[#allocation19 + $0x80] sm:$0xff]
        %v11646 = vld [vmem:[#allocation19 + $0x88] sm:$0xff]
        %v11647 = vld [vmem:[#allocation19 + $0x90] sm:$0xff]
        %v11648 = vld [vmem:[#allocation19 + $0x98] sm:$0xff]
        %v11649 = vld [vmem:[#allocation19 + $0xa0] sm:$0xff]
        %v11650 = vld [vmem:[#allocation19 + $0xa8] sm:$0xff]
        %v11651 = vld [vmem:[#allocation19 + $0xb0] sm:$0xff]
        %v11652 = vld [vmem:[#allocation19 + $0xb8] sm:$0xff]
        %v11653 = vld [vmem:[#allocation19 + $0xc0] sm:$0xff]
        %v11654 = vld [vmem:[#allocation19 + $0xc8] sm:$0xff]
        %v11655 = vld [vmem:[#allocation19 + $0xd0] sm:$0xff]
        %v11656 = vld [vmem:[#allocation19 + $0xd8] sm:$0xff]
        %v11657 = vld [vmem:[#allocation19 + $0xe0] sm:$0xff]
        %v11658 = vld [vmem:[#allocation19 + $0xe8] sm:$0xff]
        %v11659 = vld [vmem:[#allocation19 + $0xf0] sm:$0xff]
        %v11660 = vld [vmem:[#allocation19 + $0xf8] sm:$0xff]
        %v11661 = vld [vmem:[#allocation19 + $0x100] sm:$0xff]
        %v11662 = vld [vmem:[#allocation19 + $0x108] sm:$0xff]
        %v11663 = vld [vmem:[#allocation19 + $0x110] sm:$0xff]
        %v11664 = vld [vmem:[#allocation19 + $0x118] sm:$0xff]
        %v11665 = vld [vmem:[#allocation19 + $0x120] sm:$0xff]
        %v11666 = vld [vmem:[#allocation19 + $0x128] sm:$0xff]
        %v11667 = vld [vmem:[#allocation19 + $0x130] sm:$0xff]
        %v11668 = vld [vmem:[#allocation19 + $0x138] sm:$0xff]
        %v11669 = vld [vmem:[#allocation19 + $0x140] sm:$0xff]
        %v11670 = vld [vmem:[#allocation19 + $0x148] sm:$0xff]
        %v11671 = vld [vmem:[#allocation19 + $0x150] sm:$0xff]
        %v11672 = vld [vmem:[#allocation19 + $0x158] sm:$0xff]
        %v11673 = vld [vmem:[#allocation19 + $0x160] sm:$0xff]
        %v11674 = vld [vmem:[#allocation19 + $0x168] sm:$0xff]
        %v11675 = vld [vmem:[#allocation19 + $0x170] sm:$0xff]
        %v11676 = vld [vmem:[#allocation19 + $0x178] sm:$0xff]
        %v11677 = vld [vmem:[#allocation19 + $0x180] sm:$0xff]
        %v11678 = vld [vmem:[#allocation19 + $0x188] sm:$0xff]
        %v11679 = vld [vmem:[#allocation19 + $0x190] sm:$0xff]
        %v11680 = vld [vmem:[#allocation19 + $0x198] sm:$0xff]
        %v11681 = vld [vmem:[#allocation19 + $0x1a0] sm:$0xff]
        %v11682 = vld [vmem:[#allocation19 + $0x1a8] sm:$0xff]
        %v11683 = vld [vmem:[#allocation19 + $0x1b0] sm:$0xff]
        %v11684 = vld [vmem:[#allocation19 + $0x1b8] sm:$0xff]
        %v11685 = vld [vmem:[#allocation19 + $0x1c0] sm:$0xff]
        %v11686 = vld [vmem:[#allocation19 + $0x1c8] sm:$0xff]
        %v11687 = vld [vmem:[#allocation19 + $0x1d0] sm:$0xff]
        %v11688 = vld [vmem:[#allocation19 + $0x1d8] sm:$0xff]
        %v11689 = vld [vmem:[#allocation19 + $0x1e0] sm:$0xff]
        %v11690 = vld [vmem:[#allocation19 + $0x1e8] sm:$0xff]
        %v11691 = vld [vmem:[#allocation19 + $0x1f0] sm:$0xff]
        %v11692 = vld [vmem:[#allocation19 + $0x1f8] sm:$0xff]
        %v11693 = vld [vmem:[#allocation19 + $0x200] sm:$0xff]
        %v11694 = vld [vmem:[#allocation19 + $0x208] sm:$0xff]
        %v11695 = vld [vmem:[#allocation19 + $0x210] sm:$0xff]
        %v11696 = vld [vmem:[#allocation19 + $0x218] sm:$0xff]
        %v11697 = vld [vmem:[#allocation19 + $0x220] sm:$0xff]
        %v11698 = vld [vmem:[#allocation19 + $0x228] sm:$0xff]
        %v11699 = vld [vmem:[#allocation19 + $0x230] sm:$0xff]
        %v11700 = vld [vmem:[#allocation19 + $0x238] sm:$0xff]
        %v11701 = vld [vmem:[#allocation19 + $0x240] sm:$0xff]
        %v11702 = vld [vmem:[#allocation19 + $0x248] sm:$0xff]
        %v11703 = vld [vmem:[#allocation19 + $0x250] sm:$0xff]
        %v11704 = vld [vmem:[#allocation19 + $0x258] sm:$0xff]
        %v11705 = vld [vmem:[#allocation19 + $0x260] sm:$0xff]
        %v11706 = vld [vmem:[#allocation19 + $0x268] sm:$0xff]
        %v11707 = vld [vmem:[#allocation19 + $0x270] sm:$0xff]
        %v11708 = vld [vmem:[#allocation19 + $0x278] sm:$0xff]
        %v11709 = vld [vmem:[#allocation19 + $0x280] sm:$0xff]
        %v11710 = vld [vmem:[#allocation19 + $0x288] sm:$0xff]
        %v11711 = vld [vmem:[#allocation19 + $0x290] sm:$0xff]
        %v11712 = vld [vmem:[#allocation19 + $0x298] sm:$0xff]
        %v11713 = vld [vmem:[#allocation19 + $0x2a0] sm:$0xff]
        %v11714 = vld [vmem:[#allocation19 + $0x2a8] sm:$0xff]
        %v11715 = vld [vmem:[#allocation19 + $0x2b0] sm:$0xff]
        %v11716 = vld [vmem:[#allocation19 + $0x2b8] sm:$0xff]
        %v11717 = vld [vmem:[#allocation19 + $0x2c0] sm:$0xff]
        %v11718 = vld [vmem:[#allocation19 + $0x2c8] sm:$0xff]
        %v11719 = vld [vmem:[#allocation19 + $0x2d0] sm:$0xff]
        %v11720 = vld [vmem:[#allocation19 + $0x2d8] sm:$0xff]
        %v11721 = vld [vmem:[#allocation19 + $0x2e0] sm:$0xff]
        %v11722 = vld [vmem:[#allocation19 + $0x2e8] sm:$0xff]
        %v11723 = vld [vmem:[#allocation19 + $0x2f0] sm:$0xff]
        %v11724 = vld [vmem:[#allocation19 + $0x2f8] sm:$0xff]
        %v11725 = vld [vmem:[#allocation19 + $0x300] sm:$0xff]
        %v11726 = vld [vmem:[#allocation19 + $0x308] sm:$0xff]
        %v11727 = vld [vmem:[#allocation19 + $0x310] sm:$0xff]
        %v11728 = vld [vmem:[#allocation19 + $0x318] sm:$0xff]
        %v11729 = vld [vmem:[#allocation19 + $0x320] sm:$0xff]
        %v11730 = vld [vmem:[#allocation19 + $0x328] sm:$0xff]
        %v11731 = vld [vmem:[#allocation19 + $0x330] sm:$0xff]
        %v11732 = vld [vmem:[#allocation19 + $0x338] sm:$0xff]
        %v11733 = vld [vmem:[#allocation19 + $0x340] sm:$0xff]
        %v11734 = vld [vmem:[#allocation19 + $0x348] sm:$0xff]
        %v11735 = vld [vmem:[#allocation19 + $0x350] sm:$0xff]
        %v11736 = vld [vmem:[#allocation19 + $0x358] sm:$0xff]
        %v11737 = vld [vmem:[#allocation19 + $0x360] sm:$0xff]
        %v11738 = vld [vmem:[#allocation19 + $0x368] sm:$0xff]
        %v11739 = vld [vmem:[#allocation19 + $0x370] sm:$0xff]
        %v11740 = vld [vmem:[#allocation19 + $0x378] sm:$0xff]
        %v11741 = vld [vmem:[#allocation19 + $0x380] sm:$0xff]
        %v11742 = vld [vmem:[#allocation19 + $0x388] sm:$0xff]
        %v11743 = vld [vmem:[#allocation19 + $0x390] sm:$0xff]
        %v11744 = vld [vmem:[#allocation19 + $0x398] sm:$0xff]
        %v11745 = vld [vmem:[#allocation19 + $0x3a0] sm:$0xff]
        %v11746 = vld [vmem:[#allocation19 + $0x3a8] sm:$0xff]
        %v11747 = vld [vmem:[#allocation19 + $0x3b0] sm:$0xff]
        %v11748 = vld [vmem:[#allocation19 + $0x3b8] sm:$0xff]
        %v11749 = vld [vmem:[#allocation19 + $0x3c0] sm:$0xff]
        %v11750 = vld [vmem:[#allocation19 + $0x3c8] sm:$0xff]
        %v11751 = vld [vmem:[#allocation19 + $0x3d0] sm:$0xff]
        %v11752 = vld [vmem:[#allocation19 + $0x3d8] sm:$0xff]
        %v11753 = vld [vmem:[#allocation19 + $0x3e0] sm:$0xff]
        %v11754 = vld [vmem:[#allocation19 + $0x3e8] sm:$0xff]
        %v11755 = vld [vmem:[#allocation19 + $0x3f0] sm:$0xff]
        %v11756 = vld [vmem:[#allocation19 + $0x3f8] sm:$0xff]
        %v11757 = vld [vmem:[#allocation20] sm:$0x3]
        %v11759 = vperm.slane %v11757, 0
        %v11760 = vperm.slane %v11757, 1
        %v11891 = vunpack.c.l.b16 %v11629
        %v11892 = vunpack.c.h.b16 %v11629
        %v11893 = vunpack.c.l.b16 %v11630
        %v11894 = vunpack.c.h.b16 %v11630
        %v11895 = vunpack.c.l.b16 %v11631
        %v11896 = vunpack.c.h.b16 %v11631
        %v11897 = vunpack.c.l.b16 %v11632
        %v11898 = vunpack.c.h.b16 %v11632
        %v11899 = vunpack.c.l.b16 %v11633
        %v11900 = vunpack.c.h.b16 %v11633
        %v11901 = vunpack.c.l.b16 %v11634
        %v11902 = vunpack.c.h.b16 %v11634
        %v11903 = vunpack.c.l.b16 %v11635
        %v11904 = vunpack.c.h.b16 %v11635
        %v11905 = vunpack.c.l.b16 %v11636
        %v11906 = vunpack.c.h.b16 %v11636
        %v11907 = vunpack.c.l.b16 %v11637
        %v11908 = vunpack.c.h.b16 %v11637
        %v11909 = vunpack.c.l.b16 %v11638
        %v11910 = vunpack.c.h.b16 %v11638
        %v11911 = vunpack.c.l.b16 %v11639
        %v11912 = vunpack.c.h.b16 %v11639
        %v11913 = vunpack.c.l.b16 %v11640
        %v11914 = vunpack.c.h.b16 %v11640
        %v11915 = vunpack.c.l.b16 %v11641
        %v11916 = vunpack.c.h.b16 %v11641
        %v11917 = vunpack.c.l.b16 %v11642
        %v11918 = vunpack.c.h.b16 %v11642
        %v11919 = vunpack.c.l.b16 %v11643
        %v11920 = vunpack.c.h.b16 %v11643
        %v11921 = vunpack.c.l.b16 %v11644
        %v11922 = vunpack.c.h.b16 %v11644
        %v11923 = vunpack.c.l.b16 %v11645
        %v11924 = vunpack.c.h.b16 %v11645
        %v11925 = vunpack.c.l.b16 %v11646
        %v11926 = vunpack.c.h.b16 %v11646
        %v11927 = vunpack.c.l.b16 %v11647
        %v11928 = vunpack.c.h.b16 %v11647
        %v11929 = vunpack.c.l.b16 %v11648
        %v11930 = vunpack.c.h.b16 %v11648
        %v11931 = vunpack.c.l.b16 %v11649
        %v11932 = vunpack.c.h.b16 %v11649
        %v11933 = vunpack.c.l.b16 %v11650
        %v11934 = vunpack.c.h.b16 %v11650
        %v11935 = vunpack.c.l.b16 %v11651
        %v11936 = vunpack.c.h.b16 %v11651
        %v11937 = vunpack.c.l.b16 %v11652
        %v11938 = vunpack.c.h.b16 %v11652
        %v11939 = vunpack.c.l.b16 %v11653
        %v11940 = vunpack.c.h.b16 %v11653
        %v11941 = vunpack.c.l.b16 %v11654
        %v11942 = vunpack.c.h.b16 %v11654
        %v11943 = vunpack.c.l.b16 %v11655
        %v11944 = vunpack.c.h.b16 %v11655
        %v11945 = vunpack.c.l.b16 %v11656
        %v11946 = vunpack.c.h.b16 %v11656
        %v11947 = vunpack.c.l.b16 %v11657
        %v11948 = vunpack.c.h.b16 %v11657
        %v11949 = vunpack.c.l.b16 %v11658
        %v11950 = vunpack.c.h.b16 %v11658
        %v11951 = vunpack.c.l.b16 %v11659
        %v11952 = vunpack.c.h.b16 %v11659
        %v11953 = vunpack.c.l.b16 %v11660
        %v11954 = vunpack.c.h.b16 %v11660
        %v11955 = vunpack.c.l.b16 %v11661
        %v11956 = vunpack.c.h.b16 %v11661
        %v11957 = vunpack.c.l.b16 %v11662
        %v11958 = vunpack.c.h.b16 %v11662
        %v11959 = vunpack.c.l.b16 %v11663
        %v11960 = vunpack.c.h.b16 %v11663
        %v11961 = vunpack.c.l.b16 %v11664
        %v11962 = vunpack.c.h.b16 %v11664
        %v11963 = vunpack.c.l.b16 %v11665
        %v11964 = vunpack.c.h.b16 %v11665
        %v11965 = vunpack.c.l.b16 %v11666
        %v11966 = vunpack.c.h.b16 %v11666
        %v11967 = vunpack.c.l.b16 %v11667
        %v11968 = vunpack.c.h.b16 %v11667
        %v11969 = vunpack.c.l.b16 %v11668
        %v11970 = vunpack.c.h.b16 %v11668
        %v11971 = vunpack.c.l.b16 %v11669
        %v11972 = vunpack.c.h.b16 %v11669
        %v11973 = vunpack.c.l.b16 %v11670
        %v11974 = vunpack.c.h.b16 %v11670
        %v11975 = vunpack.c.l.b16 %v11671
        %v11976 = vunpack.c.h.b16 %v11671
        %v11977 = vunpack.c.l.b16 %v11672
        %v11978 = vunpack.c.h.b16 %v11672
        %v11979 = vunpack.c.l.b16 %v11673
        %v11980 = vunpack.c.h.b16 %v11673
        %v11981 = vunpack.c.l.b16 %v11674
        %v11982 = vunpack.c.h.b16 %v11674
        %v11983 = vunpack.c.l.b16 %v11675
        %v11984 = vunpack.c.h.b16 %v11675
        %v11985 = vunpack.c.l.b16 %v11676
        %v11986 = vunpack.c.h.b16 %v11676
        %v11987 = vunpack.c.l.b16 %v11677
        %v11988 = vunpack.c.h.b16 %v11677
        %v11989 = vunpack.c.l.b16 %v11678
        %v11990 = vunpack.c.h.b16 %v11678
        %v11991 = vunpack.c.l.b16 %v11679
        %v11992 = vunpack.c.h.b16 %v11679
        %v11993 = vunpack.c.l.b16 %v11680
        %v11994 = vunpack.c.h.b16 %v11680
        %v11995 = vunpack.c.l.b16 %v11681
        %v11996 = vunpack.c.h.b16 %v11681
        %v11997 = vunpack.c.l.b16 %v11682
        %v11998 = vunpack.c.h.b16 %v11682
        %v11999 = vunpack.c.l.b16 %v11683
        %v12000 = vunpack.c.h.b16 %v11683
        %v12001 = vunpack.c.l.b16 %v11684
        %v12002 = vunpack.c.h.b16 %v11684
        %v12003 = vunpack.c.l.b16 %v11685
        %v12004 = vunpack.c.h.b16 %v11685
        %v12005 = vunpack.c.l.b16 %v11686
        %v12006 = vunpack.c.h.b16 %v11686
        %v12007 = vunpack.c.l.b16 %v11687
        %v12008 = vunpack.c.h.b16 %v11687
        %v12009 = vunpack.c.l.b16 %v11688
        %v12010 = vunpack.c.h.b16 %v11688
        %v12011 = vunpack.c.l.b16 %v11689
        %v12012 = vunpack.c.h.b16 %v11689
        %v12013 = vunpack.c.l.b16 %v11690
        %v12014 = vunpack.c.h.b16 %v11690
        %v12015 = vunpack.c.l.b16 %v11691
        %v12016 = vunpack.c.h.b16 %v11691
        %v12017 = vunpack.c.l.b16 %v11692
        %v12018 = vunpack.c.h.b16 %v11692
        %v12019 = vunpack.c.l.b16 %v11693
        %v12020 = vunpack.c.h.b16 %v11693
        %v12021 = vunpack.c.l.b16 %v11694
        %v12022 = vunpack.c.h.b16 %v11694
        %v12023 = vunpack.c.l.b16 %v11695
        %v12024 = vunpack.c.h.b16 %v11695
        %v12025 = vunpack.c.l.b16 %v11696
        %v12026 = vunpack.c.h.b16 %v11696
        %v12027 = vunpack.c.l.b16 %v11697
        %v12028 = vunpack.c.h.b16 %v11697
        %v12029 = vunpack.c.l.b16 %v11698
        %v12030 = vunpack.c.h.b16 %v11698
        %v12031 = vunpack.c.l.b16 %v11699
        %v12032 = vunpack.c.h.b16 %v11699
        %v12033 = vunpack.c.l.b16 %v11700
        %v12034 = vunpack.c.h.b16 %v11700
        %v12035 = vunpack.c.l.b16 %v11701
        %v12036 = vunpack.c.h.b16 %v11701
        %v12037 = vunpack.c.l.b16 %v11702
        %v12038 = vunpack.c.h.b16 %v11702
        %v12039 = vunpack.c.l.b16 %v11703
        %v12040 = vunpack.c.h.b16 %v11703
        %v12041 = vunpack.c.l.b16 %v11704
        %v12042 = vunpack.c.h.b16 %v11704
        %v12043 = vunpack.c.l.b16 %v11705
        %v12044 = vunpack.c.h.b16 %v11705
        %v12045 = vunpack.c.l.b16 %v11706
        %v12046 = vunpack.c.h.b16 %v11706
        %v12047 = vunpack.c.l.b16 %v11707
        %v12048 = vunpack.c.h.b16 %v11707
        %v12049 = vunpack.c.l.b16 %v11708
        %v12050 = vunpack.c.h.b16 %v11708
        %v12051 = vunpack.c.l.b16 %v11709
        %v12052 = vunpack.c.h.b16 %v11709
        %v12053 = vunpack.c.l.b16 %v11710
        %v12054 = vunpack.c.h.b16 %v11710
        %v12055 = vunpack.c.l.b16 %v11711
        %v12056 = vunpack.c.h.b16 %v11711
        %v12057 = vunpack.c.l.b16 %v11712
        %v12058 = vunpack.c.h.b16 %v11712
        %v12059 = vunpack.c.l.b16 %v11713
        %v12060 = vunpack.c.h.b16 %v11713
        %v12061 = vunpack.c.l.b16 %v11714
        %v12062 = vunpack.c.h.b16 %v11714
        %v12063 = vunpack.c.l.b16 %v11715
        %v12064 = vunpack.c.h.b16 %v11715
        %v12065 = vunpack.c.l.b16 %v11716
        %v12066 = vunpack.c.h.b16 %v11716
        %v12067 = vunpack.c.l.b16 %v11717
        %v12068 = vunpack.c.h.b16 %v11717
        %v12069 = vunpack.c.l.b16 %v11718
        %v12070 = vunpack.c.h.b16 %v11718
        %v12071 = vunpack.c.l.b16 %v11719
        %v12072 = vunpack.c.h.b16 %v11719
        %v12073 = vunpack.c.l.b16 %v11720
        %v12074 = vunpack.c.h.b16 %v11720
        %v12075 = vunpack.c.l.b16 %v11721
        %v12076 = vunpack.c.h.b16 %v11721
        %v12077 = vunpack.c.l.b16 %v11722
        %v12078 = vunpack.c.h.b16 %v11722
        %v12079 = vunpack.c.l.b16 %v11723
        %v12080 = vunpack.c.h.b16 %v11723
        %v12081 = vunpack.c.l.b16 %v11724
        %v12082 = vunpack.c.h.b16 %v11724
        %v12083 = vunpack.c.l.b16 %v11725
        %v12084 = vunpack.c.h.b16 %v11725
        %v12085 = vunpack.c.l.b16 %v11726
        %v12086 = vunpack.c.h.b16 %v11726
        %v12087 = vunpack.c.l.b16 %v11727
        %v12088 = vunpack.c.h.b16 %v11727
        %v12089 = vunpack.c.l.b16 %v11728
        %v12090 = vunpack.c.h.b16 %v11728
        %v12091 = vunpack.c.l.b16 %v11729
        %v12092 = vunpack.c.h.b16 %v11729
        %v12093 = vunpack.c.l.b16 %v11730
        %v12094 = vunpack.c.h.b16 %v11730
        %v12095 = vunpack.c.l.b16 %v11731
        %v12096 = vunpack.c.h.b16 %v11731
        %v12097 = vunpack.c.l.b16 %v11732
        %v12098 = vunpack.c.h.b16 %v11732
        %v12099 = vunpack.c.l.b16 %v11733
        %v12100 = vunpack.c.h.b16 %v11733
        %v12101 = vunpack.c.l.b16 %v11734
        %v12102 = vunpack.c.h.b16 %v11734
        %v12103 = vunpack.c.l.b16 %v11735
        %v12104 = vunpack.c.h.b16 %v11735
        %v12105 = vunpack.c.l.b16 %v11736
        %v12106 = vunpack.c.h.b16 %v11736
        %v12107 = vunpack.c.l.b16 %v11737
        %v12108 = vunpack.c.h.b16 %v11737
        %v12109 = vunpack.c.l.b16 %v11738
        %v12110 = vunpack.c.h.b16 %v11738
        %v12111 = vunpack.c.l.b16 %v11739
        %v12112 = vunpack.c.h.b16 %v11739
        %v12113 = vunpack.c.l.b16 %v11740
        %v12114 = vunpack.c.h.b16 %v11740
        %v12115 = vunpack.c.l.b16 %v11741
        %v12116 = vunpack.c.h.b16 %v11741
        %v12117 = vunpack.c.l.b16 %v11742
        %v12118 = vunpack.c.h.b16 %v11742
        %v12119 = vunpack.c.l.b16 %v11743
        %v12120 = vunpack.c.h.b16 %v11743
        %v12121 = vunpack.c.l.b16 %v11744
        %v12122 = vunpack.c.h.b16 %v11744
        %v12123 = vunpack.c.l.b16 %v11745
        %v12124 = vunpack.c.h.b16 %v11745
        %v12125 = vunpack.c.l.b16 %v11746
        %v12126 = vunpack.c.h.b16 %v11746
        %v12127 = vunpack.c.l.b16 %v11747
        %v12128 = vunpack.c.h.b16 %v11747
        %v12129 = vunpack.c.l.b16 %v11748
        %v12130 = vunpack.c.h.b16 %v11748
        %v12131 = vunpack.c.l.b16 %v11749
        %v12132 = vunpack.c.h.b16 %v11749
        %v12133 = vunpack.c.l.b16 %v11750
        %v12134 = vunpack.c.h.b16 %v11750
        %v12135 = vunpack.c.l.b16 %v11751
        %v12136 = vunpack.c.h.b16 %v11751
        %v12137 = vunpack.c.l.b16 %v11752
        %v12138 = vunpack.c.h.b16 %v11752
        %v12139 = vunpack.c.l.b16 %v11753
        %v12140 = vunpack.c.h.b16 %v11753
        %v12141 = vunpack.c.l.b16 %v11754
        %v12142 = vunpack.c.h.b16 %v11754
        %v12143 = vunpack.c.l.b16 %v11755
        %v12144 = vunpack.c.h.b16 %v11755
        %v12145 = vunpack.c.l.b16 %v11756
        %v12146 = vunpack.c.h.b16 %v11756
        %v12147 = vpack.c.b16 %v11893, %v11891
        %v12148 = vpack.c.b16 %v11894, %v11892
        %v12149 = vpack.c.b16 %v11897, %v11895
        %v12150 = vpack.c.b16 %v11898, %v11896
        %v12151 = vpack.c.b16 %v11901, %v11899
        %v12152 = vpack.c.b16 %v11902, %v11900
        %v12153 = vpack.c.b16 %v11905, %v11903
        %v12154 = vpack.c.b16 %v11906, %v11904
        %v12155 = vpack.c.b16 %v11909, %v11907
        %v12156 = vpack.c.b16 %v11910, %v11908
        %v12157 = vpack.c.b16 %v11913, %v11911
        %v12158 = vpack.c.b16 %v11914, %v11912
        %v12159 = vpack.c.b16 %v11917, %v11915
        %v12160 = vpack.c.b16 %v11918, %v11916
        %v12161 = vpack.c.b16 %v11921, %v11919
        %v12162 = vpack.c.b16 %v11922, %v11920
        %v12163 = vpack.c.b16 %v11925, %v11923
        %v12164 = vpack.c.b16 %v11926, %v11924
        %v12165 = vpack.c.b16 %v11929, %v11927
        %v12166 = vpack.c.b16 %v11930, %v11928
        %v12167 = vpack.c.b16 %v11933, %v11931
        %v12168 = vpack.c.b16 %v11934, %v11932
        %v12169 = vpack.c.b16 %v11937, %v11935
        %v12170 = vpack.c.b16 %v11938, %v11936
        %v12171 = vpack.c.b16 %v11941, %v11939
        %v12172 = vpack.c.b16 %v11942, %v11940
        %v12173 = vpack.c.b16 %v11945, %v11943
        %v12174 = vpack.c.b16 %v11946, %v11944
        %v12175 = vpack.c.b16 %v11949, %v11947
        %v12176 = vpack.c.b16 %v11950, %v11948
        %v12177 = vpack.c.b16 %v11953, %v11951
        %v12178 = vpack.c.b16 %v11954, %v11952
        %v12179 = vpack.c.b16 %v11957, %v11955
        %v12180 = vpack.c.b16 %v11958, %v11956
        %v12181 = vpack.c.b16 %v11961, %v11959
        %v12182 = vpack.c.b16 %v11962, %v11960
        %v12183 = vpack.c.b16 %v11965, %v11963
        %v12184 = vpack.c.b16 %v11966, %v11964
        %v12185 = vpack.c.b16 %v11969, %v11967
        %v12186 = vpack.c.b16 %v11970, %v11968
        %v12187 = vpack.c.b16 %v11973, %v11971
        %v12188 = vpack.c.b16 %v11974, %v11972
        %v12189 = vpack.c.b16 %v11977, %v11975
        %v12190 = vpack.c.b16 %v11978, %v11976
        %v12191 = vpack.c.b16 %v11981, %v11979
        %v12192 = vpack.c.b16 %v11982, %v11980
        %v12193 = vpack.c.b16 %v11985, %v11983
        %v12194 = vpack.c.b16 %v11986, %v11984
        %v12195 = vpack.c.b16 %v11989, %v11987
        %v12196 = vpack.c.b16 %v11990, %v11988
        %v12197 = vpack.c.b16 %v11993, %v11991
        %v12198 = vpack.c.b16 %v11994, %v11992
        %v12199 = vpack.c.b16 %v11997, %v11995
        %v12200 = vpack.c.b16 %v11998, %v11996
        %v12201 = vpack.c.b16 %v12001, %v11999
        %v12202 = vpack.c.b16 %v12002, %v12000
        %v12203 = vpack.c.b16 %v12005, %v12003
        %v12204 = vpack.c.b16 %v12006, %v12004
        %v12205 = vpack.c.b16 %v12009, %v12007
        %v12206 = vpack.c.b16 %v12010, %v12008
        %v12207 = vpack.c.b16 %v12013, %v12011
        %v12208 = vpack.c.b16 %v12014, %v12012
        %v12209 = vpack.c.b16 %v12017, %v12015
        %v12210 = vpack.c.b16 %v12018, %v12016
        %v12211 = vpack.c.b16 %v12021, %v12019
        %v12212 = vpack.c.b16 %v12022, %v12020
        %v12213 = vpack.c.b16 %v12025, %v12023
        %v12214 = vpack.c.b16 %v12026, %v12024
        %v12215 = vpack.c.b16 %v12029, %v12027
        %v12216 = vpack.c.b16 %v12030, %v12028
        %v12217 = vpack.c.b16 %v12033, %v12031
        %v12218 = vpack.c.b16 %v12034, %v12032
        %v12219 = vpack.c.b16 %v12037, %v12035
        %v12220 = vpack.c.b16 %v12038, %v12036
        %v12221 = vpack.c.b16 %v12041, %v12039
        %v12222 = vpack.c.b16 %v12042, %v12040
        %v12223 = vpack.c.b16 %v12045, %v12043
        %v12224 = vpack.c.b16 %v12046, %v12044
        %v12225 = vpack.c.b16 %v12049, %v12047
        %v12226 = vpack.c.b16 %v12050, %v12048
        %v12227 = vpack.c.b16 %v12053, %v12051
        %v12228 = vpack.c.b16 %v12054, %v12052
        %v12229 = vpack.c.b16 %v12057, %v12055
        %v12230 = vpack.c.b16 %v12058, %v12056
        %v12231 = vpack.c.b16 %v12061, %v12059
        %v12232 = vpack.c.b16 %v12062, %v12060
        %v12233 = vpack.c.b16 %v12065, %v12063
        %v12234 = vpack.c.b16 %v12066, %v12064
        %v12235 = vpack.c.b16 %v12069, %v12067
        %v12236 = vpack.c.b16 %v12070, %v12068
        %v12237 = vpack.c.b16 %v12073, %v12071
        %v12238 = vpack.c.b16 %v12074, %v12072
        %v12239 = vpack.c.b16 %v12077, %v12075
        %v12240 = vpack.c.b16 %v12078, %v12076
        %v12241 = vpack.c.b16 %v12081, %v12079
        %v12242 = vpack.c.b16 %v12082, %v12080
        %v12243 = vpack.c.b16 %v12085, %v12083
        %v12244 = vpack.c.b16 %v12086, %v12084
        %v12245 = vpack.c.b16 %v12089, %v12087
        %v12246 = vpack.c.b16 %v12090, %v12088
        %v12247 = vpack.c.b16 %v12093, %v12091
        %v12248 = vpack.c.b16 %v12094, %v12092
        %v12249 = vpack.c.b16 %v12097, %v12095
        %v12250 = vpack.c.b16 %v12098, %v12096
        %v12251 = vpack.c.b16 %v12101, %v12099
        %v12252 = vpack.c.b16 %v12102, %v12100
        %v12253 = vpack.c.b16 %v12105, %v12103
        %v12254 = vpack.c.b16 %v12106, %v12104
        %v12255 = vpack.c.b16 %v12109, %v12107
        %v12256 = vpack.c.b16 %v12110, %v12108
        %v12257 = vpack.c.b16 %v12113, %v12111
        %v12258 = vpack.c.b16 %v12114, %v12112
        %v12259 = vpack.c.b16 %v12117, %v12115
        %v12260 = vpack.c.b16 %v12118, %v12116
        %v12261 = vpack.c.b16 %v12121, %v12119
        %v12262 = vpack.c.b16 %v12122, %v12120
        %v12263 = vpack.c.b16 %v12125, %v12123
        %v12264 = vpack.c.b16 %v12126, %v12124
        %v12265 = vpack.c.b16 %v12129, %v12127
        %v12266 = vpack.c.b16 %v12130, %v12128
        %v12267 = vpack.c.b16 %v12133, %v12131
        %v12268 = vpack.c.b16 %v12134, %v12132
        %v12269 = vpack.c.b16 %v12137, %v12135
        %v12270 = vpack.c.b16 %v12138, %v12136
        %v12271 = vpack.c.b16 %v12141, %v12139
        %v12272 = vpack.c.b16 %v12142, %v12140
        %v12273 = vpack.c.b16 %v12145, %v12143
        %v12274 = vpack.c.b16 %v12146, %v12144
        %12403 = vmatpush.bf16.msra.mxu0 %v12161
        %12404 = vmatpush.bf16.msra.mxu0 %v12159
        %12405 = vmatpush.bf16.msra.mxu0 %v12157
        %12406 = vmatpush.bf16.msra.mxu0 %v12155
        %12407 = vmatpush.bf16.msra.mxu0 %v12153
        %12408 = vmatpush.bf16.msra.mxu0 %v12151
        %12409 = vmatpush.bf16.msra.mxu0 %v12149
        %12410 = vmatpush.bf16.msra.mxu0 %v12147
        %12411 = vmatmul.bf16.gmra.mxu0 %v11621
        %v12412 = vpop.f32.mrf.mxu0
        %v12413 = vadd.f32 %v11759, %v12412
        %v12414 = vpop.f32.mrf.mxu0
        %12415 = vdwg.mxu0
        %12416 = vmatpush.bf16.msra.mxu0 %v12177
        %12417 = vmatpush.bf16.msra.mxu0 %v12175
        %12418 = vmatpush.bf16.msra.mxu0 %v12173
        %12419 = vmatpush.bf16.msra.mxu0 %v12171
        %12420 = vmatpush.bf16.msra.mxu0 %v12169
        %12421 = vmatpush.bf16.msra.mxu0 %v12167
        %12422 = vmatpush.bf16.msra.mxu0 %v12165
        %12423 = vmatpush.bf16.msra.mxu0 %v12163
        %12424 = vmatmul.bf16.gmra.mxu0 %v11622
        %v12425 = vpop.f32.mrf.mxu0
        %v12426 = vadd.f32 %v12413, %v12425
        %v12427 = vpop.f32.mrf.mxu0
        %12428 = vdwg.mxu0
        %12429 = vmatpush.bf16.msra.mxu0 %v12193
        %12430 = vmatpush.bf16.msra.mxu0 %v12191
        %12431 = vmatpush.bf16.msra.mxu0 %v12189
        %12432 = vmatpush.bf16.msra.mxu0 %v12187
        %12433 = vmatpush.bf16.msra.mxu0 %v12185
        %12434 = vmatpush.bf16.msra.mxu0 %v12183
        %12435 = vmatpush.bf16.msra.mxu0 %v12181
        %12436 = vmatpush.bf16.msra.mxu0 %v12179
        %12437 = vmatmul.bf16.gmra.mxu0 %v11623
        %v12438 = vpop.f32.mrf.mxu0
        %v12439 = vadd.f32 %v12426, %v12438
        %v12440 = vpop.f32.mrf.mxu0
        %12441 = vdwg.mxu0
        %12442 = vmatpush.bf16.msra.mxu0 %v12209
        %12443 = vmatpush.bf16.msra.mxu0 %v12207
        %12444 = vmatpush.bf16.msra.mxu0 %v12205
        %12445 = vmatpush.bf16.msra.mxu0 %v12203
        %12446 = vmatpush.bf16.msra.mxu0 %v12201
        %12447 = vmatpush.bf16.msra.mxu0 %v12199
        %12448 = vmatpush.bf16.msra.mxu0 %v12197
        %12449 = vmatpush.bf16.msra.mxu0 %v12195
        %12450 = vmatmul.bf16.gmra.mxu0 %v11624
        %v12451 = vpop.f32.mrf.mxu0
        %v12452 = vadd.f32 %v12439, %v12451
        %v12453 = vpop.f32.mrf.mxu0
        %12454 = vdwg.mxu0
        %12455 = vmatpush.bf16.msra.mxu0 %v12225
        %12456 = vmatpush.bf16.msra.mxu0 %v12223
        %12457 = vmatpush.bf16.msra.mxu0 %v12221
        %12458 = vmatpush.bf16.msra.mxu0 %v12219
        %12459 = vmatpush.bf16.msra.mxu0 %v12217
        %12460 = vmatpush.bf16.msra.mxu0 %v12215
        %12461 = vmatpush.bf16.msra.mxu0 %v12213
        %12462 = vmatpush.bf16.msra.mxu0 %v12211
        %12463 = vmatmul.bf16.gmra.mxu0 %v11625
        %v12464 = vpop.f32.mrf.mxu0
        %v12465 = vadd.f32 %v12452, %v12464
        %v12466 = vpop.f32.mrf.mxu0
        %12467 = vdwg.mxu0
        %12468 = vmatpush.bf16.msra.mxu0 %v12241
        %12469 = vmatpush.bf16.msra.mxu0 %v12239
        %12470 = vmatpush.bf16.msra.mxu0 %v12237
        %12471 = vmatpush.bf16.msra.mxu0 %v12235
        %12472 = vmatpush.bf16.msra.mxu0 %v12233
        %12473 = vmatpush.bf16.msra.mxu0 %v12231
        %12474 = vmatpush.bf16.msra.mxu0 %v12229
        %12475 = vmatpush.bf16.msra.mxu0 %v12227
        %12476 = vmatmul.bf16.gmra.mxu0 %v11626
        %v12477 = vpop.f32.mrf.mxu0
        %v12478 = vadd.f32 %v12465, %v12477
        %v12479 = vpop.f32.mrf.mxu0
        %12480 = vdwg.mxu0
        %12481 = vmatpush.bf16.msra.mxu0 %v12257
        %12482 = vmatpush.bf16.msra.mxu0 %v12255
        %12483 = vmatpush.bf16.msra.mxu0 %v12253
        %12484 = vmatpush.bf16.msra.mxu0 %v12251
        %12485 = vmatpush.bf16.msra.mxu0 %v12249
        %12486 = vmatpush.bf16.msra.mxu0 %v12247
        %12487 = vmatpush.bf16.msra.mxu0 %v12245
        %12488 = vmatpush.bf16.msra.mxu0 %v12243
        %12489 = vmatmul.bf16.gmra.mxu0 %v11627
        %v12490 = vpop.f32.mrf.mxu0
        %v12491 = vadd.f32 %v12478, %v12490
        %v12492 = vpop.f32.mrf.mxu0
        %12493 = vdwg.mxu0
        %12494 = vmatpush.bf16.msra.mxu0 %v12273
        %12495 = vmatpush.bf16.msra.mxu0 %v12271
        %12496 = vmatpush.bf16.msra.mxu0 %v12269
        %12497 = vmatpush.bf16.msra.mxu0 %v12267
        %12498 = vmatpush.bf16.msra.mxu0 %v12265
        %12499 = vmatpush.bf16.msra.mxu0 %v12263
        %12500 = vmatpush.bf16.msra.mxu0 %v12261
        %12501 = vmatpush.bf16.msra.mxu0 %v12259
        %12502 = vmatmul.bf16.gmra.mxu0 %v11628
        %v12503 = vpop.f32.mrf.mxu0
        %v12504 = vadd.f32 %v12491, %v12503
        %v12505 = vpop.f32.mrf.mxu0
        %12506 = vdwg.mxu0
        %12507 = vmatpush.bf16.msra.mxu0 %v12162
        %12508 = vmatpush.bf16.msra.mxu0 %v12160
        %12509 = vmatpush.bf16.msra.mxu0 %v12158
        %12510 = vmatpush.bf16.msra.mxu0 %v12156
        %12511 = vmatpush.bf16.msra.mxu0 %v12154
        %12512 = vmatpush.bf16.msra.mxu0 %v12152
        %12513 = vmatpush.bf16.msra.mxu0 %v12150
        %12514 = vmatpush.bf16.msra.mxu0 %v12148
        %12515 = vmatmul.bf16.gmra.mxu0 %v11621
        %v12516 = vpop.f32.mrf.mxu0
        %v12517 = vadd.f32 %v11760, %v12516
        %v12518 = vpop.f32.mrf.mxu0
        %12519 = vdwg.mxu0
        %12520 = vmatpush.bf16.msra.mxu0 %v12178
        %12521 = vmatpush.bf16.msra.mxu0 %v12176
        %12522 = vmatpush.bf16.msra.mxu0 %v12174
        %12523 = vmatpush.bf16.msra.mxu0 %v12172
        %12524 = vmatpush.bf16.msra.mxu0 %v12170
        %12525 = vmatpush.bf16.msra.mxu0 %v12168
        %12526 = vmatpush.bf16.msra.mxu0 %v12166
        %12527 = vmatpush.bf16.msra.mxu0 %v12164
        %12528 = vmatmul.bf16.gmra.mxu0 %v11622
        %v12529 = vpop.f32.mrf.mxu0
        %v12530 = vadd.f32 %v12517, %v12529
        %v12531 = vpop.f32.mrf.mxu0
        %12532 = vdwg.mxu0
        %12533 = vmatpush.bf16.msra.mxu0 %v12194
        %12534 = vmatpush.bf16.msra.mxu0 %v12192
        %12535 = vmatpush.bf16.msra.mxu0 %v12190
        %12536 = vmatpush.bf16.msra.mxu0 %v12188
        %12537 = vmatpush.bf16.msra.mxu0 %v12186
        %12538 = vmatpush.bf16.msra.mxu0 %v12184
        %12539 = vmatpush.bf16.msra.mxu0 %v12182
        %12540 = vmatpush.bf16.msra.mxu0 %v12180
        %12541 = vmatmul.bf16.gmra.mxu0 %v11623
        %v12542 = vpop.f32.mrf.mxu0
        %v12543 = vadd.f32 %v12530, %v12542
        %v12544 = vpop.f32.mrf.mxu0
        %12545 = vdwg.mxu0
        %12546 = vmatpush.bf16.msra.mxu0 %v12210
        %12547 = vmatpush.bf16.msra.mxu0 %v12208
        %12548 = vmatpush.bf16.msra.mxu0 %v12206
        %12549 = vmatpush.bf16.msra.mxu0 %v12204
        %12550 = vmatpush.bf16.msra.mxu0 %v12202
        %12551 = vmatpush.bf16.msra.mxu0 %v12200
        %12552 = vmatpush.bf16.msra.mxu0 %v12198
        %12553 = vmatpush.bf16.msra.mxu0 %v12196
        %12554 = vmatmul.bf16.gmra.mxu0 %v11624
        %v12555 = vpop.f32.mrf.mxu0
        %v12556 = vadd.f32 %v12543, %v12555
        %v12557 = vpop.f32.mrf.mxu0
        %12558 = vdwg.mxu0
        %12559 = vmatpush.bf16.msra.mxu0 %v12226
        %12560 = vmatpush.bf16.msra.mxu0 %v12224
        %12561 = vmatpush.bf16.msra.mxu0 %v12222
        %12562 = vmatpush.bf16.msra.mxu0 %v12220
        %12563 = vmatpush.bf16.msra.mxu0 %v12218
        %12564 = vmatpush.bf16.msra.mxu0 %v12216
        %12565 = vmatpush.bf16.msra.mxu0 %v12214
        %12566 = vmatpush.bf16.msra.mxu0 %v12212
        %12567 = vmatmul.bf16.gmra.mxu0 %v11625
        %v12568 = vpop.f32.mrf.mxu0
        %v12569 = vadd.f32 %v12556, %v12568
        %v12570 = vpop.f32.mrf.mxu0
        %12571 = vdwg.mxu0
        %12572 = vmatpush.bf16.msra.mxu0 %v12242
        %12573 = vmatpush.bf16.msra.mxu0 %v12240
        %12574 = vmatpush.bf16.msra.mxu0 %v12238
        %12575 = vmatpush.bf16.msra.mxu0 %v12236
        %12576 = vmatpush.bf16.msra.mxu0 %v12234
        %12577 = vmatpush.bf16.msra.mxu0 %v12232
        %12578 = vmatpush.bf16.msra.mxu0 %v12230
        %12579 = vmatpush.bf16.msra.mxu0 %v12228
        %12580 = vmatmul.bf16.gmra.mxu0 %v11626
        %v12581 = vpop.f32.mrf.mxu0
        %v12582 = vadd.f32 %v12569, %v12581
        %v12583 = vpop.f32.mrf.mxu0
        %12584 = vdwg.mxu0
        %12585 = vmatpush.bf16.msra.mxu0 %v12258
        %12586 = vmatpush.bf16.msra.mxu0 %v12256
        %12587 = vmatpush.bf16.msra.mxu0 %v12254
        %12588 = vmatpush.bf16.msra.mxu0 %v12252
        %12589 = vmatpush.bf16.msra.mxu0 %v12250
        %12590 = vmatpush.bf16.msra.mxu0 %v12248
        %12591 = vmatpush.bf16.msra.mxu0 %v12246
        %12592 = vmatpush.bf16.msra.mxu0 %v12244
        %12593 = vmatmul.bf16.gmra.mxu0 %v11627
        %v12594 = vpop.f32.mrf.mxu0
        %v12595 = vadd.f32 %v12582, %v12594
        %v12596 = vpop.f32.mrf.mxu0
        %12597 = vdwg.mxu0
        %12598 = vmatpush.bf16.msra.mxu0 %v12274
        %12599 = vmatpush.bf16.msra.mxu0 %v12272
        %12600 = vmatpush.bf16.msra.mxu0 %v12270
        %12601 = vmatpush.bf16.msra.mxu0 %v12268
        %12602 = vmatpush.bf16.msra.mxu0 %v12266
        %12603 = vmatpush.bf16.msra.mxu0 %v12264
        %12604 = vmatpush.bf16.msra.mxu0 %v12262
        %12605 = vmatpush.bf16.msra.mxu0 %v12260
        %12606 = vmatmul.bf16.gmra.mxu0 %v11628
        %v12607 = vpop.f32.mrf.mxu0
        %v12608 = vadd.f32 %v12595, %v12607
        %v12609 = vpop.f32.mrf.mxu0
        %12610 = vdwg.mxu0
        %12611 = vst [vmem:[%s625] sm:$0xff] %v12504
        %12612 = vst [vmem:[%s625 + $0x8] sm:$0xff] %v12608
        %s12613 = sand.u32 %s320, 1
        %s12614 = scalar_lea.sflag [#allocation4], %s12613
        %s12615 = sand.u32 %s320, 1
        %s12616 = smul.addr %s12615, 16
        %s12617 = scalar_lea.vmem [#allocation22], %s12616
        // Predicated region
        $region121: #{dpcnn4code1_forward.1} parent=71 // pred_check
          %p12618 = pneg %p330
        $region122: #{dpcnn4code1_forward.1} parent=71 // pred_check_branch
          %12620 = sbr.rel (%p12618) target = $region124
        $region123: #{dpcnn4code1_forward.1} parent=71 // pred_region
          %12622 = vsyncadd %s12614, 0
          %s12623 = smul.addr %s34, 2
          %s12624 = smul.addr %s12623, 8
          %s12625 = scalar_lea.hbm %s13, %s12624
          %s12627 = sshll.u32 %s12617, 4
          %s12628 = int_to_ptr.vmem [resolvable:$true] %s12627
          %s12629 = sshll.u32 %s12625, 4
          %s12630 = int_to_ptr.hbm [resolvable:$true] %s12629
          %12632 = dma.vmem_to_hbm [thread:$0]  %s12628, 256, %s12630, %s12614
        $region124: #{dpcnn4code1_forward.1} parent=71 // pred_fallthru
          _
      $region72: #{dpcnn4code1_forward.1} parent=5 // pred_fallthru
        _
      %p12633 = scmp.le.s32.totalorder 2, %s29
      // Predicated region
      $region125: #{dpcnn4code1_forward.1} parent=5 // pred_check
        %p12634 = pneg %p12633
      $region126: #{dpcnn4code1_forward.1} parent=5 // pred_check_branch
        %12636 = sbr.rel (%p12634) target = $region128
      $region127: #{dpcnn4code1_forward.1} parent=5 // pred_region
        %s12637 = ssub.s32 %s29, 2
        // Predicated region
        $region129: #{dpcnn4code1_forward.1} parent=127 // pred_check
          %p12638 = pneg %p336
        $region130: #{dpcnn4code1_forward.1} parent=127 // pred_check_branch
          %12640 = sbr.rel (%p12638) target = $region132
        $region131: #{dpcnn4code1_forward.1} parent=127 // pred_region
          %s12641 = sand.u32 %s321, 1
          %s12642 = scalar_lea.sflag [#allocation4], %s12641
          %s12643 = sand.u32 %s321, 1
          %s12644 = smul.addr %s12643, 16
          %s12645 = scalar_lea.vmem [#allocation22], %s12644
          %12647 = dma.done %s12642, 256
        $region132: #{dpcnn4code1_forward.1} parent=127 // pred_fallthru
          _
      $region128: #{dpcnn4code1_forward.1} parent=5 // pred_fallthru
        _
    $region6: #{dpcnn4code1_forward.1} parent=1 // loop_footer
      %s33 = sadd.s32 1, %s29
    $region7: #{dpcnn4code1_forward.1} parent=1 // loop_footer_branch
      %28 = sbr.rel target = $region3
    $region8: #{dpcnn4code1_forward.1} parent=1 // loop_exit
      _
    %12648 = vsyncpa [#allocation3], 1
    %s12649 = scalar_lea.sflag [#allocation3], 1
    %12650 = vsyncpa %s12649, 1
    %12651 = vsyncpa [#allocation6], 1
    %12652 = vsyncpa [#allocation9], 1
    %12653 = vsyncpa [#allocation12], 1
    %12654 = vsyncpa [#allocation15], 1
    %12655 = vsyncpa [#allocation18], 1
    %12656 = vsyncpa [#allocation21], 1
    %12657 = vsyncpa [#allocation4], 1
    %s12658 = scalar_lea.sflag [#allocation4], 1
    %12659 = vsyncpa %s12658, 1

</llo_original>
